<compile_context>
chip_gen: v7x
topology: tpu7x:2x2x1
jax: 0.10.0
libtpu: 0.0.40
codegen_flags: <defaults>
</compile_context>

<pallas_src>
import jax
import jax.numpy as jnp
from jax import lax
from jax.experimental import pallas as pl
from jax.experimental.pallas import tpu as pltpu

N_EMBD = 64
N_HEAD = 8
HEAD_SIZE = N_EMBD // N_HEAD          # 8
BLOCK_SIZE = 64                       # max sequence length supported by the module
N_LAYER = 48                          # spec value (tests below use a shallow stack)
LN_EPS = 1e-5                         # PyTorch nn.LayerNorm default


def _layernorm(x, gamma, beta):
    mu = jnp.mean(x, axis=-1, keepdims=True)
    var = jnp.mean((x - mu) ** 2, axis=-1, keepdims=True)
    return (x - mu) * lax.rsqrt(var + LN_EPS) * gamma + beta


def _pick_block_batch(B, T):
    """Sequences per grid step: push the matmul M-dim (=BB*T) toward 128-256 while
    keeping >=2 grid steps when possible (v7x has 2 TensorCores; 'parallel' grid axis
    shards across them) and bounding per-step VMEM / vreg pressure."""
    best = 1
    for bb in range(1, B + 1):
        if B % bb:
            continue
        if bb * T > 256 or bb > 16:          # bound live intermediates per step
            continue
        if B > 1 and B // bb < 2:            # keep both TCs busy on v7x
            continue
        best = bb
    return best


# --------------------------------------------------------------------------------------
# Transformer Block kernel: x + MHA(LN1(x)) ; x + FFN(LN2(x))
# --------------------------------------------------------------------------------------
def block_kernel(x_ref, wqkv_ref, wo_ref, bo_ref, g1_ref, be1_ref,
                 g2_ref, be2_ref, w1_ref, b1_ref, w2_ref, b2_ref, o_ref):
    xb = x_ref[...]                                   # (BB, T, C) f32
    BB, T, C = xb.shape
    N = BB * T
    x = xb.reshape(N, C)                              # flatten rows -> MXU M = BB*T

    # ---- x + MHA(LN1(x)) ---------------------------------------------------------
    h = _layernorm(x, g1_ref[...], be1_ref[...])
    qkv = jnp.dot(h, wqkv_ref[...], preferred_element_type=jnp.float32)     # (N, 3C)
    # Reference scales by n_embd**-0.5 (not head_size**-0.5) — reproduced, applied once to q.
    q = qkv[:, :C] * (C ** -0.5)
    k = qkv[:, C:2 * C]
    v = qkv[:, 2 * C:]

    # Loop-invariant masks, built once (JAX does not CSE broadcasts inside loops).
    hh = lax.broadcasted_iota(jnp.int32, (N_HEAD, C), 0)
    cc = lax.broadcasted_iota(jnp.int32, (N_HEAD, C), 1)
    in_head = (cc >= hh * HEAD_SIZE) & (cc < (hh + 1) * HEAD_SIZE)
    head_mask = jnp.where(in_head, 1.0, 0.0)[:, None, :]          # (H, 1, C)
    row = lax.broadcasted_iota(jnp.int32, (T, T), 0)
    col = lax.broadcasted_iota(jnp.int32, (T, T), 1)
    causal_bias = jnp.where(col <= row, 0.0, -1e30)               # (T, T) additive mask

    # Static unroll over the BB sequences (BB*T capped at 256, so live ranges stay small).
    attn_rows = []
    for b in range(BB):
        sl = slice(b * T, (b + 1) * T)
        # Head h keeps only its hs=8 columns; zeros elsewhere make the full-C contraction
        # exactly the per-head dot — no 8-lane slicing, one batched einsum for all heads.
        qh = q[sl][None] * head_mask                              # (H, T, C)
        kh = k[sl][None] * head_mask
        vh = v[sl][None] * head_mask
        wei = jnp.einsum('htc,hsc->hts', qh, kh,
                         preferred_element_type=jnp.float32)      # (H, T, T)
        wei = wei + causal_bias[None]
        m = jnp.max(wei, axis=-1, keepdims=True)
        e = jnp.exp(wei - m)
        denom = jnp.sum(e, axis=-1, keepdims=True)
        p = e * pl.reciprocal(denom, approx=True)                 # EUP slot, not VALU div
        oh = jnp.einsum('hts,hsc->htc', p, vh,
                        preferred_element_type=jnp.float32)       # (H, T, C), zero off-head
        attn_rows.append(jnp.sum(oh, axis=0))                     # (T, C) == concat(heads)
    attn = attn_rows[0] if BB == 1 else jnp.concatenate(attn_rows, axis=0)   # (N, C)

    x1 = x + jnp.dot(attn, wo_ref[...], preferred_element_type=jnp.float32) + bo_ref[...]

    # ---- x + FFN(LN2(x)) ---------------------------------------------------------
    h2 = _layernorm(x1, g2_ref[...], be2_ref[...])
    f = jnp.dot(h2, w1_ref[...], preferred_element_type=jnp.float32) + b1_ref[...]
    f = jnp.maximum(f, 0.0)                                       # ReLU
    f = jnp.dot(f, w2_ref[...], preferred_element_type=jnp.float32) + b2_ref[...]
    o_ref[...] = (x1 + f).reshape(BB, T, C)


def transformer_block(x, block_params):
    """One pre-LN Block (multi-head causal self-attention + FFN); dropout = identity."""
    B, T, C = x.shape
    assert C == N_EMBD and T <= BLOCK_SIZE
    wqkv, wo, bo, g1, be1, g2, be2, w1, b1, w2, b2 = block_params
    BB = _pick_block_batch(B, T)

    full = lambda shape: pl.BlockSpec(shape, lambda i: (0,) * len(shape))
    grid_spec = pltpu.PrefetchScalarGridSpec(
        num_scalar_prefetch=0,
        grid=(B // BB,),
        in_specs=[
            pl.BlockSpec((BB, T, C), lambda i: (i, 0, 0)),   # x: BB sequences per step
            full((C, 3 * C)),                                # fused Wq|Wk|Wv
            full((C, C)), full((1, C)),                      # Wo, bo
            full((1, C)), full((1, C)),                      # ln1 gamma/beta
            full((1, C)), full((1, C)),                      # ln2 gamma/beta
            full((C, 4 * C)), full((1, 4 * C)),              # FFN W1, b1
            full((4 * C, C)), full((1, C)),                  # FFN W2, b2
        ],
        out_specs=pl.BlockSpec((BB, T, C), lambda i: (i, 0, 0)),
    )
    return pl.pallas_call(
        block_kernel,
        out_shape=jax.ShapeDtypeStruct((B, T, C), x.dtype),
        grid_spec=grid_spec,
        compiler_params=pltpu.CompilerParams(dimension_semantics=("parallel",)),
    )(x, wqkv, wo, bo, g1, be1, g2, be2, w1, b1, w2, b2)


# --------------------------------------------------------------------------------------
# Final LayerNorm + lm_head kernel (logits padded to a 128-lane multiple -> dense stores)
# --------------------------------------------------------------------------------------
def lm_head_kernel(x_ref, g_ref, b_ref, w_ref, bias_ref, o_ref):
    xb = x_ref[...]                                   # (BB, T, C)
    BB, T, C = xb.shape
    x = xb.reshape(BB * T, C)
    h = _layernorm(x, g_ref[...], b_ref[...])
    logits = jnp.dot(h, w_ref[...], preferred_element_type=jnp.float32) + bias_ref[...]
    o_ref[...] = logits.reshape(BB, T, logits.shape[-1])


def lm_head(x, lnf_g, lnf_b, lm_w, lm_b):
    B, T, C = x.shape
    V = lm_w.shape[1]
    Vp = ((V + 127) // 128) * 128                     # lane-dense output block
    w_p = jnp.pad(lm_w, ((0, 0), (0, Vp - V)))
    b_p = jnp.pad(lm_b, ((0, 0), (0, Vp - V)))
    BB = _pick_block_batch(B, T)

    full = lambda shape: pl.BlockSpec(shape, lambda i: (0,) * len(shape))
    grid_spec = pltpu.PrefetchScalarGridSpec(
        num_scalar_prefetch=0,
        grid=(B // BB,),
        in_specs=[pl.BlockSpec((BB, T, C), lambda i: (i, 0, 0)),
                  full((1, C)), full((1, C)), full((C, Vp)), full((1, Vp))],
        out_specs=pl.BlockSpec((BB, T, Vp), lambda i: (i, 0, 0)),
    )
    logits_p = pl.pallas_call(
        lm_head_kernel,
        out_shape=jax.ShapeDtypeStruct((B, T, Vp), x.dtype),
        grid_spec=grid_spec,
        compiler_params=pltpu.CompilerParams(dimension_semantics=("parallel",)),
    )(x, lnf_g, lnf_b, w_p, b_p)
    return logits_p[..., :V]


# --------------------------------------------------------------------------------------
# Full BigramLanguageModel forward
# --------------------------------------------------------------------------------------
def bigram_lm_forward(idx, params, targets=None):
    """(logits, loss) like BigramLanguageModel.forward (eval mode: dropout = identity)."""
    B, T = idx.shape
    assert T <= BLOCK_SIZE
    # TODO(synk): embedding gathers and the optional cross-entropy stay in plain JAX —
    # tiny ops with no beneficial Pallas equivalent here.
    x = jnp.take(params["tok_emb"], idx, axis=0) + params["pos_emb"][:T][None, :, :]
    for bp in params["blocks"]:
        x = transformer_block(x, bp)
    logits = lm_head(x, params["lnf_g"], params["lnf_b"], params["lm_w"], params["lm_b"])
    if targets is None:
        return logits, None
    V = logits.shape[-1]
    logp = jax.nn.log_softmax(logits.reshape(-1, V), axis=-1)
    nll = -jnp.take_along_axis(logp, targets.reshape(-1, 1), axis=-1)
    return logits, jnp.mean(nll)


# --------------------------------------------------------------------------------------
# Parameter init (deterministic) and pure-JAX reference for the self-test
# --------------------------------------------------------------------------------------
def init_block_params(key):
    C = N_EMBD
    ks = jax.random.split(key, 8)
    s = 0.1
    wq = jax.random.normal(ks[0], (C, C), jnp.float32) * s
    wk = jax.random.normal(ks[1], (C, C), jnp.float32) * s
    wv = jax.random.normal(ks[2], (C, C), jnp.float32) * s
    wqkv = jnp.concatenate([wq, wk, wv], axis=1)               # fused QKV packing
    wo = jax.random.normal(ks[3], (C, C), jnp.float32) * s
    bo = jax.random.normal(ks[4], (1, C), jnp.float32) * s
    g1 = jnp.ones((1, C), jnp.float32); be1 = jnp.zeros((1, C), jnp.float32)
    g2 = jnp.ones((1, C), jnp.float32); be2 = jnp.zeros((1, C), jnp.float32)
    w1 = jax.random.normal(ks[5], (C, 4 * C), jnp.float32) * s
    b1 = jax.random.normal(ks[6], (1, 4 * C), jnp.float32) * s
    w2 = jax.random.normal(ks[7], (4 * C, C), jnp.float32) * s
    b2 = jnp.zeros((1, C), jnp.float32)
    return (wqkv, wo, bo, g1, be1, g2, be2, w1, b1, w2, b2)


def init_model_params(key, vocab_size, n_layer):
    C = N_EMBD
    keys = jax.random.split(key, 3 + n_layer)
    return {
        "tok_emb": jax.random.normal(keys[0], (vocab_size, C), jnp.float32) * 0.1,
        "pos_emb": jax.random.normal(keys[1], (BLOCK_SIZE, C), jnp.float32) * 0.1,
        "lm_w": jax.random.normal(keys[2], (C, vocab_size), jnp.float32) * 0.1,
        "lm_b": jnp.zeros((1, vocab_size), jnp.float32),
        "lnf_g": jnp.ones((1, C), jnp.float32),
        "lnf_b": jnp.zeros((1, C), jnp.float32),
        "blocks": [init_block_params(k) for k in keys[3:]],
    }


def _ln_ref(x, g, b):
    mu = jnp.mean(x, -1, keepdims=True)
    var = jnp.mean((x - mu) ** 2, -1, keepdims=True)
    return (x - mu) / jnp.sqrt(var + LN_EPS) * g + b


def reference_block(x, bp):
    wqkv, wo, bo, g1, be1, g2, be2, w1, b1, w2, b2 = bp
    B, T, C = x.shape
    h = _ln_ref(x, g1, be1)
    qkv = h @ wqkv
    q, k, v = qkv[..., :C], qkv[..., C:2 * C], qkv[..., 2 * C:]
    qh = q.reshape(B, T, N_HEAD, HEAD_SIZE)
    kh = k.reshape(B, T, N_HEAD, HEAD_SIZE)
    vh = v.reshape(B, T, N_HEAD, HEAD_SIZE)
    wei = jnp.einsum('bthd,bshd->bhts', qh, kh) * (C ** -0.5)
    mask = jnp.tril(jnp.ones((T, T), bool))
    wei = jnp.where(mask, wei, -jnp.inf)
    p = jax.nn.softmax(wei, axis=-1)
    attn = jnp.einsum('bhts,bshd->bthd', p, vh).reshape(B, T, C)
    x1 = x + attn @ wo + bo
    h2 = _ln_ref(x1, g2, be2)
    f = jnp.maximum(h2 @ w1 + b1, 0.0) @ w2 + b2
    return x1 + f


def reference_model(idx, params):
    T = idx.shape[1]
    x = params["tok_emb"][idx] + params["pos_emb"][:T][None]
    for bp in params["blocks"]:
        x = reference_block(x, bp)
    x = _ln_ref(x, params["lnf_g"], params["lnf_b"])
    return x @ params["lm_w"] + params["lm_b"]


if __name__ == "__main__":
    key = jax.random.PRNGKey(0)
    k_idx, k_par, k_idx2, k_tgt = jax.random.split(key, 4)

    VOCAB = 65            # spec's tokenizer vocab depends on `document`; small demo vocab
    N_LAYER_TEST = 4      # spec uses n_layer=48; shallow stack keeps the demo run small
    params = init_model_params(k_par, VOCAB, N_LAYER_TEST)

    fwd = jax.jit(bigram_lm_forward)

    # Main shape: full block_size context, batch 4 (exercises BB=2 -> M=128 rows, grid=2).
    B, T = 4, BLOCK_SIZE
    idx = jax.random.randint(k_idx, (B, T), 0, VOCAB)
    logits, loss = fwd(idx, params)
    logits = jax.block_until_ready(logits)
    assert logits.shape == (B, T, VOCAB)
    assert loss is None
    ref = reference_model(idx, params)
    # Tolerance covers the EUP approximate reciprocal used for softmax normalization.
    assert jnp.allclose(logits, ref, rtol=2e-2, atol=2e-2), "mismatch vs reference (large)"

    # Small/odd shape: batch 2, seq 8 (BB=1 path).
    idx2 = jax.random.randint(k_idx2, (2, 8), 0, VOCAB)
    logits2, _ = fwd(idx2, params)
    logits2 = jax.block_until_ready(logits2)
    ref2 = reference_model(idx2, params)
    assert jnp.allclose(logits2, ref2, rtol=2e-2, atol=2e-2), "mismatch vs reference (small)"

    # Loss branch (plain-JAX cross-entropy).
    tgt = jax.random.randint(k_tgt, (2, 8), 0, VOCAB)
    _, l = fwd(idx2, params, tgt)
    assert bool(jnp.isfinite(jax.block_until_ready(l)))

    print("KERNEL_OK")
</pallas_src>

<mosaic_0001>
module attributes {stable_mosaic.version = 11 : i64} {
  func.func @block_kernel(%arg0: i32, %arg1: memref<2x64x64xf32, #tpu.memory_space<vmem>>, %arg2: memref<64x192xf32, #tpu.memory_space<vmem>>, %arg3: memref<64x64xf32, #tpu.memory_space<vmem>>, %arg4: memref<1x64xf32, #tpu.memory_space<vmem>>, %arg5: memref<1x64xf32, #tpu.memory_space<vmem>>, %arg6: memref<1x64xf32, #tpu.memory_space<vmem>>, %arg7: memref<1x64xf32, #tpu.memory_space<vmem>>, %arg8: memref<1x64xf32, #tpu.memory_space<vmem>>, %arg9: memref<64x256xf32, #tpu.memory_space<vmem>>, %arg10: memref<1x256xf32, #tpu.memory_space<vmem>>, %arg11: memref<256x64xf32, #tpu.memory_space<vmem>>, %arg12: memref<1x64xf32, #tpu.memory_space<vmem>>, %arg13: memref<2x64x64xf32, #tpu.memory_space<vmem>>) attributes {dimension_semantics = [#tpu.dimension_semantics<parallel>], iteration_bounds = array<i64: 2>, scalar_prefetch = 0 : i64, scratch_operands = 0 : i64, tpu.core_type = #tpu.core_type<tc>, window_params = [{transform_indices = @transform_0, window_bounds = array<i64: 2, 64, 64>}, {pipeline_mode = #tpu.pipeline_mode<synchronous>, transform_indices = @transform_1, window_bounds = array<i64: 64, 192>}, {pipeline_mode = #tpu.pipeline_mode<synchronous>, transform_indices = @transform_2, window_bounds = array<i64: 64, 64>}, {pipeline_mode = #tpu.pipeline_mode<synchronous>, transform_indices = @transform_3, window_bounds = array<i64: 1, 64>}, {pipeline_mode = #tpu.pipeline_mode<synchronous>, transform_indices = @transform_4, window_bounds = array<i64: 1, 64>}, {pipeline_mode = #tpu.pipeline_mode<synchronous>, transform_indices = @transform_5, window_bounds = array<i64: 1, 64>}, {pipeline_mode = #tpu.pipeline_mode<synchronous>, transform_indices = @transform_6, window_bounds = array<i64: 1, 64>}, {pipeline_mode = #tpu.pipeline_mode<synchronous>, transform_indices = @transform_7, window_bounds = array<i64: 1, 64>}, {pipeline_mode = #tpu.pipeline_mode<synchronous>, transform_indices = @transform_8, window_bounds = array<i64: 64, 256>}, {pipeline_mode = #tpu.pipeline_mode<synchronous>, transform_indices = @transform_9, window_bounds = array<i64: 1, 256>}, {pipeline_mode = #tpu.pipeline_mode<synchronous>, transform_indices = @transform_10, window_bounds = array<i64: 256, 64>}, {pipeline_mode = #tpu.pipeline_mode<synchronous>, transform_indices = @transform_11, window_bounds = array<i64: 1, 64>}, {transform_indices = @transform_12, window_bounds = array<i64: 2, 64, 64>}]} {
    %c0 = arith.constant 0 : index
    %c0_0 = arith.constant 0 : index
    %c0_1 = arith.constant 0 : index
    %0 = vector.load %arg1[%c0, %c0_0, %c0_1] : memref<2x64x64xf32, #tpu.memory_space<vmem>>, vector<2x64x64xf32>
    %1 = vector.shape_cast %0 : vector<2x64x64xf32> to vector<128x64xf32>
    %c0_2 = arith.constant 0 : index
    %c0_3 = arith.constant 0 : index
    %2 = vector.load %arg5[%c0_2, %c0_3] : memref<1x64xf32, #tpu.memory_space<vmem>>, vector<1x64xf32>
    %c0_4 = arith.constant 0 : index
    %c0_5 = arith.constant 0 : index
    %3 = vector.load %arg6[%c0_4, %c0_5] : memref<1x64xf32, #tpu.memory_space<vmem>>, vector<1x64xf32>
    %cst = arith.constant dense<0.000000e+00> : vector<128xf32>
    %4 = vector.multi_reduction <add>, %1, %cst [1] : vector<128x64xf32> to vector<128xf32>
    %5 = vector.shape_cast %4 : vector<128xf32> to vector<128x1xf32>
    %cst_6 = arith.constant 6.400000e+01 : f32
    %6 = vector.broadcast %cst_6 : f32 to vector<128x1xf32>
    %7 = arith.divf %5, %6 : vector<128x1xf32>
    %8 = vector.broadcast %7 : vector<128x1xf32> to vector<128x64xf32>
    %9 = arith.subf %1, %8 : vector<128x64xf32>
    %10 = arith.mulf %9, %9 : vector<128x64xf32>
    %cst_7 = arith.constant dense<0.000000e+00> : vector<128xf32>
    %11 = vector.multi_reduction <add>, %10, %cst_7 [1] : vector<128x64xf32> to vector<128xf32>
    %12 = vector.shape_cast %11 : vector<128xf32> to vector<128x1xf32>
    %cst_8 = arith.constant 6.400000e+01 : f32
    %13 = vector.broadcast %cst_8 : f32 to vector<128x1xf32>
    %14 = arith.divf %12, %13 : vector<128x1xf32>
    %15 = vector.broadcast %7 : vector<128x1xf32> to vector<128x64xf32>
    %16 = arith.subf %1, %15 : vector<128x64xf32>
    %cst_9 = arith.constant 9.99999974E-6 : f32
    %17 = vector.broadcast %cst_9 : f32 to vector<128x1xf32>
    %18 = arith.addf %14, %17 : vector<128x1xf32>
    %19 = math.rsqrt %18 : vector<128x1xf32>
    %20 = vector.broadcast %19 : vector<128x1xf32> to vector<128x64xf32>
    %21 = arith.mulf %16, %20 : vector<128x64xf32>
    %22 = vector.broadcast %2 : vector<1x64xf32> to vector<128x64xf32>
    %23 = arith.mulf %21, %22 : vector<128x64xf32>
    %24 = vector.broadcast %3 : vector<1x64xf32> to vector<128x64xf32>
    %25 = arith.addf %23, %24 : vector<128x64xf32>
    %c0_10 = arith.constant 0 : index
    %c0_11 = arith.constant 0 : index
    %26 = vector.load %arg2[%c0_10, %c0_11] : memref<64x192xf32, #tpu.memory_space<vmem>>, vector<64x192xf32>
    %cst_12 = arith.constant dense<0.000000e+00> : vector<128x192xf32>
    %27 = tpu.matmul %25, %26, %cst_12 {dimension_numbers = #tpu.dot_dimension_numbers<[1], [0], [0], [1], [0, 0, 1, 1], [], []>} : vector<128x64xf32>, vector<64x192xf32>, vector<128x192xf32> -> vector<128x192xf32>
    %28 = vector.extract_strided_slice %27 {offsets = [0, 0], sizes = [128, 64], strides = [1, 1]} : vector<128x192xf32> to vector<128x64xf32>
    %cst_13 = arith.constant 1.250000e-01 : f32
    %29 = vector.broadcast %cst_13 : f32 to vector<128x64xf32>
    %30 = arith.mulf %28, %29 : vector<128x64xf32>
    %31 = vector.extract_strided_slice %27 {offsets = [0, 64], sizes = [128, 64], strides = [1, 1]} : vector<128x192xf32> to vector<128x64xf32>
    %32 = vector.extract_strided_slice %27 {offsets = [0, 128], sizes = [128, 64], strides = [1, 1]} : vector<128x192xf32> to vector<128x64xf32>
    %33 = tpu.iota {dimensions = array<i32: 0>} : vector<8x64xi32>
    %34 = tpu.iota {dimensions = array<i32: 1>} : vector<8x64xi32>
    %c8_i32 = arith.constant 8 : i32
    %35 = vector.broadcast %c8_i32 : i32 to vector<8x64xi32>
    %36 = arith.muli %33, %35 : vector<8x64xi32>
    %37 = arith.cmpi sge, %34, %36 : vector<8x64xi32>
    %c1_i32 = arith.constant 1 : i32
    %38 = vector.broadcast %c1_i32 : i32 to vector<8x64xi32>
    %39 = arith.addi %33, %38 : vector<8x64xi32>
    %c8_i32_14 = arith.constant 8 : i32
    %40 = vector.broadcast %c8_i32_14 : i32 to vector<8x64xi32>
    %41 = arith.muli %39, %40 : vector<8x64xi32>
    %42 = arith.cmpi slt, %34, %41 : vector<8x64xi32>
    %43 = arith.andi %37, %42 : vector<8x64xi1>
    %cst_15 = arith.constant 1.000000e+00 : f32
    %cst_16 = arith.constant 0.000000e+00 : f32
    %44 = vector.broadcast %cst_15 : f32 to vector<8x64xf32>
    %45 = vector.broadcast %cst_16 : f32 to vector<8x64xf32>
    %46 = arith.select %43, %44, %45 : vector<8x64xi1>, vector<8x64xf32>
    %47 = vector.shape_cast %46 : vector<8x64xf32> to vector<8x1x64xf32>
    %48 = tpu.iota {dimensions = array<i32: 0>} : vector<64x64xi32>
    %49 = tpu.iota {dimensions = array<i32: 1>} : vector<64x64xi32>
    %50 = arith.cmpi sle, %49, %48 : vector<64x64xi32>
    %cst_17 = arith.constant 0.000000e+00 : f32
    %cst_18 = arith.constant -1.000000e+30 : f32
    %51 = vector.broadcast %cst_17 : f32 to vector<64x64xf32>
    %52 = vector.broadcast %cst_18 : f32 to vector<64x64xf32>
    %53 = arith.select %50, %51, %52 : vector<64x64xi1>, vector<64x64xf32>
    %54 = vector.extract_strided_slice %30 {offsets = [0, 0], sizes = [64, 64], strides = [1, 1]} : vector<128x64xf32> to vector<64x64xf32>
    %55 = vector.shape_cast %54 : vector<64x64xf32> to vector<1x64x64xf32>
    %56 = vector.broadcast %55 : vector<1x64x64xf32> to vector<8x64x64xf32>
    %57 = vector.broadcast %47 : vector<8x1x64xf32> to vector<8x64x64xf32>
    %58 = arith.mulf %56, %57 : vector<8x64x64xf32>
    %59 = vector.extract_strided_slice %31 {offsets = [0, 0], sizes = [64, 64], strides = [1, 1]} : vector<128x64xf32> to vector<64x64xf32>
    %60 = vector.shape_cast %59 : vector<64x64xf32> to vector<1x64x64xf32>
    %61 = vector.broadcast %60 : vector<1x64x64xf32> to vector<8x64x64xf32>
    %62 = vector.broadcast %47 : vector<8x1x64xf32> to vector<8x64x64xf32>
    %63 = arith.mulf %61, %62 : vector<8x64x64xf32>
    %64 = vector.extract_strided_slice %32 {offsets = [0, 0], sizes = [64, 64], strides = [1, 1]} : vector<128x64xf32> to vector<64x64xf32>
    %65 = vector.shape_cast %64 : vector<64x64xf32> to vector<1x64x64xf32>
    %66 = vector.broadcast %65 : vector<1x64x64xf32> to vector<8x64x64xf32>
    %67 = vector.broadcast %47 : vector<8x1x64xf32> to vector<8x64x64xf32>
    %68 = arith.mulf %66, %67 : vector<8x64x64xf32>
    "tpu.trace_start"() <{level = 10 : i32, message = "htc,hsc->hts"}> : () -> ()
    %cst_19 = arith.constant dense<0.000000e+00> : vector<8x64x64xf32>
    %69 = tpu.matmul %58, %63, %cst_19 {dimension_numbers = #tpu.dot_dimension_numbers<[2], [2], [1], [1], [0, 0, 0, 1, 1, 1], [0], [0]>} : vector<8x64x64xf32>, vector<8x64x64xf32>, vector<8x64x64xf32> -> vector<8x64x64xf32>
    "tpu.trace_stop"() : () -> ()
    %70 = vector.shape_cast %53 : vector<64x64xf32> to vector<1x64x64xf32>
    %71 = vector.broadcast %70 : vector<1x64x64xf32> to vector<8x64x64xf32>
    %72 = arith.addf %69, %71 : vector<8x64x64xf32>
    %cst_20 = arith.constant dense<0xFF800000> : vector<8x64xf32>
    %73 = vector.multi_reduction <maximumf>, %72, %cst_20 [2] : vector<8x64x64xf32> to vector<8x64xf32>
    %74 = vector.shape_cast %73 : vector<8x64xf32> to vector<8x64x1xf32>
    %75 = vector.broadcast %74 : vector<8x64x1xf32> to vector<8x64x64xf32>
    %76 = arith.subf %72, %75 : vector<8x64x64xf32>
    %77 = math.exp %76 : vector<8x64x64xf32>
    %cst_21 = arith.constant dense<0.000000e+00> : vector<8x64xf32>
    %78 = vector.multi_reduction <add>, %77, %cst_21 [2] : vector<8x64x64xf32> to vector<8x64xf32>
    %79 = vector.shape_cast %78 : vector<8x64xf32> to vector<8x64x1xf32>
    %80 = tpu.reciprocal %79 {approx = true} : vector<8x64x1xf32> -> vector<8x64x1xf32>
    %81 = vector.broadcast %80 : vector<8x64x1xf32> to vector<8x64x64xf32>
    %82 = arith.mulf %77, %81 : vector<8x64x64xf32>
    "tpu.trace_start"() <{level = 10 : i32, message = "hts,hsc->htc"}> : () -> ()
    %cst_22 = arith.constant dense<0.000000e+00> : vector<8x64x64xf32>
    %83 = tpu.matmul %82, %68, %cst_22 {dimension_numbers = #tpu.dot_dimension_numbers<[2], [1], [1], [2], [0, 0, 0, 1, 1, 2], [0], [0]>} : vector<8x64x64xf32>, vector<8x64x64xf32>, vector<8x64x64xf32> -> vector<8x64x64xf32>
    "tpu.trace_stop"() : () -> ()
    %cst_23 = arith.constant dense<0.000000e+00> : vector<64x64xf32>
    %84 = vector.multi_reduction <add>, %83, %cst_23 [0] : vector<8x64x64xf32> to vector<64x64xf32>
    %85 = vector.extract_strided_slice %30 {offsets = [64, 0], sizes = [64, 64], strides = [1, 1]} : vector<128x64xf32> to vector<64x64xf32>
    %86 = vector.shape_cast %85 : vector<64x64xf32> to vector<1x64x64xf32>
    %87 = vector.broadcast %86 : vector<1x64x64xf32> to vector<8x64x64xf32>
    %88 = vector.broadcast %47 : vector<8x1x64xf32> to vector<8x64x64xf32>
    %89 = arith.mulf %87, %88 : vector<8x64x64xf32>
    %90 = vector.extract_strided_slice %31 {offsets = [64, 0], sizes = [64, 64], strides = [1, 1]} : vector<128x64xf32> to vector<64x64xf32>
    %91 = vector.shape_cast %90 : vector<64x64xf32> to vector<1x64x64xf32>
    %92 = vector.broadcast %91 : vector<1x64x64xf32> to vector<8x64x64xf32>
    %93 = vector.broadcast %47 : vector<8x1x64xf32> to vector<8x64x64xf32>
    %94 = arith.mulf %92, %93 : vector<8x64x64xf32>
    %95 = vector.extract_strided_slice %32 {offsets = [64, 0], sizes = [64, 64], strides = [1, 1]} : vector<128x64xf32> to vector<64x64xf32>
    %96 = vector.shape_cast %95 : vector<64x64xf32> to vector<1x64x64xf32>
    %97 = vector.broadcast %96 : vector<1x64x64xf32> to vector<8x64x64xf32>
    %98 = vector.broadcast %47 : vector<8x1x64xf32> to vector<8x64x64xf32>
    %99 = arith.mulf %97, %98 : vector<8x64x64xf32>
    "tpu.trace_start"() <{level = 10 : i32, message = "htc,hsc->hts"}> : () -> ()
    %cst_24 = arith.constant dense<0.000000e+00> : vector<8x64x64xf32>
    %100 = tpu.matmul %89, %94, %cst_24 {dimension_numbers = #tpu.dot_dimension_numbers<[2], [2], [1], [1], [0, 0, 0, 1, 1, 1], [0], [0]>} : vector<8x64x64xf32>, vector<8x64x64xf32>, vector<8x64x64xf32> -> vector<8x64x64xf32>
    "tpu.trace_stop"() : () -> ()
    %101 = vector.shape_cast %53 : vector<64x64xf32> to vector<1x64x64xf32>
    %102 = vector.broadcast %101 : vector<1x64x64xf32> to vector<8x64x64xf32>
    %103 = arith.addf %100, %102 : vector<8x64x64xf32>
    %cst_25 = arith.constant dense<0xFF800000> : vector<8x64xf32>
    %104 = vector.multi_reduction <maximumf>, %103, %cst_25 [2] : vector<8x64x64xf32> to vector<8x64xf32>
    %105 = vector.shape_cast %104 : vector<8x64xf32> to vector<8x64x1xf32>
    %106 = vector.broadcast %105 : vector<8x64x1xf32> to vector<8x64x64xf32>
    %107 = arith.subf %103, %106 : vector<8x64x64xf32>
    %108 = math.exp %107 : vector<8x64x64xf32>
    %cst_26 = arith.constant dense<0.000000e+00> : vector<8x64xf32>
    %109 = vector.multi_reduction <add>, %108, %cst_26 [2] : vector<8x64x64xf32> to vector<8x64xf32>
    %110 = vector.shape_cast %109 : vector<8x64xf32> to vector<8x64x1xf32>
    %111 = tpu.reciprocal %110 {approx = true} : vector<8x64x1xf32> -> vector<8x64x1xf32>
    %112 = vector.broadcast %111 : vector<8x64x1xf32> to vector<8x64x64xf32>
    %113 = arith.mulf %108, %112 : vector<8x64x64xf32>
    "tpu.trace_start"() <{level = 10 : i32, message = "hts,hsc->htc"}> : () -> ()
    %cst_27 = arith.constant dense<0.000000e+00> : vector<8x64x64xf32>
    %114 = tpu.matmul %113, %99, %cst_27 {dimension_numbers = #tpu.dot_dimension_numbers<[2], [1], [1], [2], [0, 0, 0, 1, 1, 2], [0], [0]>} : vector<8x64x64xf32>, vector<8x64x64xf32>, vector<8x64x64xf32> -> vector<8x64x64xf32>
    "tpu.trace_stop"() : () -> ()
    %cst_28 = arith.constant dense<0.000000e+00> : vector<64x64xf32>
    %115 = vector.multi_reduction <add>, %114, %cst_28 [0] : vector<8x64x64xf32> to vector<64x64xf32>
    %116 = tpu.concatenate %84, %115 in 0 : vector<64x64xf32>, vector<64x64xf32> -> vector<128x64xf32>
    %c0_29 = arith.constant 0 : index
    %c0_30 = arith.constant 0 : index
    %117 = vector.load %arg3[%c0_29, %c0_30] : memref<64x64xf32, #tpu.memory_space<vmem>>, vector<64x64xf32>
    %cst_31 = arith.constant dense<0.000000e+00> : vector<128x64xf32>
    %118 = tpu.matmul %116, %117, %cst_31 {dimension_numbers = #tpu.dot_dimension_numbers<[1], [0], [0], [1], [0, 0, 1, 1], [], []>} : vector<128x64xf32>, vector<64x64xf32>, vector<128x64xf32> -> vector<128x64xf32>
    %119 = arith.addf %1, %118 : vector<128x64xf32>
    %c0_32 = arith.constant 0 : index
    %c0_33 = arith.constant 0 : index
    %120 = vector.load %arg4[%c0_32, %c0_33] : memref<1x64xf32, #tpu.memory_space<vmem>>, vector<1x64xf32>
    %121 = vector.broadcast %120 : vector<1x64xf32> to vector<128x64xf32>
    %122 = arith.addf %119, %121 : vector<128x64xf32>
    %c0_34 = arith.constant 0 : index
    %c0_35 = arith.constant 0 : index
    %123 = vector.load %arg7[%c0_34, %c0_35] : memref<1x64xf32, #tpu.memory_space<vmem>>, vector<1x64xf32>
    %c0_36 = arith.constant 0 : index
    %c0_37 = arith.constant 0 : index
    %124 = vector.load %arg8[%c0_36, %c0_37] : memref<1x64xf32, #tpu.memory_space<vmem>>, vector<1x64xf32>
    %cst_38 = arith.constant dense<0.000000e+00> : vector<128xf32>
    %125 = vector.multi_reduction <add>, %122, %cst_38 [1] : vector<128x64xf32> to vector<128xf32>
    %126 = vector.shape_cast %125 : vector<128xf32> to vector<128x1xf32>
    %cst_39 = arith.constant 6.400000e+01 : f32
    %127 = vector.broadcast %cst_39 : f32 to vector<128x1xf32>
    %128 = arith.divf %126, %127 : vector<128x1xf32>
    %129 = vector.broadcast %128 : vector<128x1xf32> to vector<128x64xf32>
    %130 = arith.subf %122, %129 : vector<128x64xf32>
    %131 = arith.mulf %130, %130 : vector<128x64xf32>
    %cst_40 = arith.constant dense<0.000000e+00> : vector<128xf32>
    %132 = vector.multi_reduction <add>, %131, %cst_40 [1] : vector<128x64xf32> to vector<128xf32>
    %133 = vector.shape_cast %132 : vector<128xf32> to vector<128x1xf32>
    %cst_41 = arith.constant 6.400000e+01 : f32
    %134 = vector.broadcast %cst_41 : f32 to vector<128x1xf32>
    %135 = arith.divf %133, %134 : vector<128x1xf32>
    %136 = vector.broadcast %128 : vector<128x1xf32> to vector<128x64xf32>
    %137 = arith.subf %122, %136 : vector<128x64xf32>
    %cst_42 = arith.constant 9.99999974E-6 : f32
    %138 = vector.broadcast %cst_42 : f32 to vector<128x1xf32>
    %139 = arith.addf %135, %138 : vector<128x1xf32>
    %140 = math.rsqrt %139 : vector<128x1xf32>
    %141 = vector.broadcast %140 : vector<128x1xf32> to vector<128x64xf32>
    %142 = arith.mulf %137, %141 : vector<128x64xf32>
    %143 = vector.broadcast %123 : vector<1x64xf32> to vector<128x64xf32>
    %144 = arith.mulf %142, %143 : vector<128x64xf32>
    %145 = vector.broadcast %124 : vector<1x64xf32> to vector<128x64xf32>
    %146 = arith.addf %144, %145 : vector<128x64xf32>
    %c0_43 = arith.constant 0 : index
    %c0_44 = arith.constant 0 : index
    %147 = vector.load %arg9[%c0_43, %c0_44] : memref<64x256xf32, #tpu.memory_space<vmem>>, vector<64x256xf32>
    %cst_45 = arith.constant dense<0.000000e+00> : vector<128x256xf32>
    %148 = tpu.matmul %146, %147, %cst_45 {dimension_numbers = #tpu.dot_dimension_numbers<[1], [0], [0], [1], [0, 0, 1, 1], [], []>} : vector<128x64xf32>, vector<64x256xf32>, vector<128x256xf32> -> vector<128x256xf32>
    %c0_46 = arith.constant 0 : index
    %c0_47 = arith.constant 0 : index
    %149 = vector.load %arg10[%c0_46, %c0_47] : memref<1x256xf32, #tpu.memory_space<vmem>>, vector<1x256xf32>
    %150 = vector.broadcast %149 : vector<1x256xf32> to vector<128x256xf32>
    %151 = arith.addf %148, %150 : vector<128x256xf32>
    %cst_48 = arith.constant 0.000000e+00 : f32
    %152 = vector.broadcast %cst_48 : f32 to vector<128x256xf32>
    %153 = arith.maximumf %151, %152 : vector<128x256xf32>
    %c0_49 = arith.constant 0 : index
    %c0_50 = arith.constant 0 : index
    %154 = vector.load %arg11[%c0_49, %c0_50] : memref<256x64xf32, #tpu.memory_space<vmem>>, vector<256x64xf32>
    %cst_51 = arith.constant dense<0.000000e+00> : vector<128x64xf32>
    %155 = tpu.matmul %153, %154, %cst_51 {dimension_numbers = #tpu.dot_dimension_numbers<[1], [0], [0], [1], [0, 0, 1, 1], [], []>} : vector<128x256xf32>, vector<256x64xf32>, vector<128x64xf32> -> vector<128x64xf32>
    %c0_52 = arith.constant 0 : index
    %c0_53 = arith.constant 0 : index
    %156 = vector.load %arg12[%c0_52, %c0_53] : memref<1x64xf32, #tpu.memory_space<vmem>>, vector<1x64xf32>
    %157 = vector.broadcast %156 : vector<1x64xf32> to vector<128x64xf32>
    %158 = arith.addf %155, %157 : vector<128x64xf32>
    %159 = arith.addf %122, %158 : vector<128x64xf32>
    %160 = vector.shape_cast %159 : vector<128x64xf32> to vector<2x64x64xf32>
    %c0_54 = arith.constant 0 : index
    %c0_55 = arith.constant 0 : index
    %c0_56 = arith.constant 0 : index
    %161 = vector.load %arg13[%c0_54, %c0_55, %c0_56] : memref<2x64x64xf32, #tpu.memory_space<vmem>>, vector<2x64x64xf32>
    tpu.vector_store %arg13[%c0_54, %c0_55, %c0_56], %160 {strides = array<i32>} : memref<2x64x64xf32, #tpu.memory_space<vmem>>, vector<2x64x64xf32>,
    return
  }
  func.func @transform_0(%arg0: i32) -> (i32, i32, i32) {
    %c0_i32 = arith.constant 0 : i32
    %c0_i32_0 = arith.constant 0 : i32
    %c0_i32_1 = arith.constant 0 : i32
    return %arg0, %c0_i32, %c0_i32_0 : i32, i32, i32
  }
  func.func @transform_1(%arg0: i32) -> (i32, i32) {
    %c0_i32 = arith.constant 0 : i32
    %c0_i32_0 = arith.constant 0 : i32
    %c0_i32_1 = arith.constant 0 : i32
    return %c0_i32, %c0_i32_0 : i32, i32
  }
  func.func @transform_2(%arg0: i32) -> (i32, i32) {
    %c0_i32 = arith.constant 0 : i32
    %c0_i32_0 = arith.constant 0 : i32
    %c0_i32_1 = arith.constant 0 : i32
    return %c0_i32, %c0_i32_0 : i32, i32
  }
  func.func @transform_3(%arg0: i32) -> (i32, i32) {
    %c0_i32 = arith.constant 0 : i32
    %c0_i32_0 = arith.constant 0 : i32
    %c0_i32_1 = arith.constant 0 : i32
    return %c0_i32, %c0_i32_0 : i32, i32
  }
  func.func @transform_4(%arg0: i32) -> (i32, i32) {
    %c0_i32 = arith.constant 0 : i32
    %c0_i32_0 = arith.constant 0 : i32
    %c0_i32_1 = arith.constant 0 : i32
    return %c0_i32, %c0_i32_0 : i32, i32
  }
  func.func @transform_5(%arg0: i32) -> (i32, i32) {
    %c0_i32 = arith.constant 0 : i32
    %c0_i32_0 = arith.constant 0 : i32
    %c0_i32_1 = arith.constant 0 : i32
    return %c0_i32, %c0_i32_0 : i32, i32
  }
  func.func @transform_6(%arg0: i32) -> (i32, i32) {
    %c0_i32 = arith.constant 0 : i32
    %c0_i32_0 = arith.constant 0 : i32
    %c0_i32_1 = arith.constant 0 : i32
    return %c0_i32, %c0_i32_0 : i32, i32
  }
  func.func @transform_7(%arg0: i32) -> (i32, i32) {
    %c0_i32 = arith.constant 0 : i32
    %c0_i32_0 = arith.constant 0 : i32
    %c0_i32_1 = arith.constant 0 : i32
    return %c0_i32, %c0_i32_0 : i32, i32
  }
  func.func @transform_8(%arg0: i32) -> (i32, i32) {
    %c0_i32 = arith.constant 0 : i32
    %c0_i32_0 = arith.constant 0 : i32
    %c0_i32_1 = arith.constant 0 : i32
    return %c0_i32, %c0_i32_0 : i32, i32
  }
  func.func @transform_9(%arg0: i32) -> (i32, i32) {
    %c0_i32 = arith.constant 0 : i32
    %c0_i32_0 = arith.constant 0 : i32
    %c0_i32_1 = arith.constant 0 : i32
    return %c0_i32, %c0_i32_0 : i32, i32
  }
  func.func @transform_10(%arg0: i32) -> (i32, i32) {
    %c0_i32 = arith.constant 0 : i32
    %c0_i32_0 = arith.constant 0 : i32
    %c0_i32_1 = arith.constant 0 : i32
    return %c0_i32, %c0_i32_0 : i32, i32
  }
  func.func @transform_11(%arg0: i32) -> (i32, i32) {
    %c0_i32 = arith.constant 0 : i32
    %c0_i32_0 = arith.constant 0 : i32
    %c0_i32_1 = arith.constant 0 : i32
    return %c0_i32, %c0_i32_0 : i32, i32
  }
  func.func @transform_12(%arg0: i32) -> (i32, i32, i32) {
    %c0_i32 = arith.constant 0 : i32
    %c0_i32_0 = arith.constant 0 : i32
    %c0_i32_1 = arith.constant 0 : i32
    return %arg0, %c0_i32, %c0_i32_0 : i32, i32, i32
  }
}

module attributes {stable_mosaic.version = 11 : i64} {
  func.func @lm_head_kernel(%arg0: i32, %arg1: memref<2x64x64xf32, #tpu.memory_space<vmem>>, %arg2: memref<1x64xf32, #tpu.memory_space<vmem>>, %arg3: memref<1x64xf32, #tpu.memory_space<vmem>>, %arg4: memref<64x128xf32, #tpu.memory_space<vmem>>, %arg5: memref<1x128xf32, #tpu.memory_space<vmem>>, %arg6: memref<2x64x128xf32, #tpu.memory_space<vmem>>) attributes {dimension_semantics = [#tpu.dimension_semantics<parallel>], iteration_bounds = array<i64: 2>, scalar_prefetch = 0 : i64, scratch_operands = 0 : i64, tpu.core_type = #tpu.core_type<tc>, window_params = [{transform_indices = @transform_0, window_bounds = array<i64: 2, 64, 64>}, {pipeline_mode = #tpu.pipeline_mode<synchronous>, transform_indices = @transform_1, window_bounds = array<i64: 1, 64>}, {pipeline_mode = #tpu.pipeline_mode<synchronous>, transform_indices = @transform_2, window_bounds = array<i64: 1, 64>}, {pipeline_mode = #tpu.pipeline_mode<synchronous>, transform_indices = @transform_3, window_bounds = array<i64: 64, 128>}, {pipeline_mode = #tpu.pipeline_mode<synchronous>, transform_indices = @transform_4, window_bounds = array<i64: 1, 128>}, {transform_indices = @transform_5, window_bounds = array<i64: 2, 64, 128>}]} {
    %c0 = arith.constant 0 : index
    %c0_0 = arith.constant 0 : index
    %c0_1 = arith.constant 0 : index
    %0 = vector.load %arg1[%c0, %c0_0, %c0_1] : memref<2x64x64xf32, #tpu.memory_space<vmem>>, vector<2x64x64xf32>
    %1 = vector.shape_cast %0 : vector<2x64x64xf32> to vector<128x64xf32>
    %c0_2 = arith.constant 0 : index
    %c0_3 = arith.constant 0 : index
    %2 = vector.load %arg2[%c0_2, %c0_3] : memref<1x64xf32, #tpu.memory_space<vmem>>, vector<1x64xf32>
    %c0_4 = arith.constant 0 : index
    %c0_5 = arith.constant 0 : index
    %3 = vector.load %arg3[%c0_4, %c0_5] : memref<1x64xf32, #tpu.memory_space<vmem>>, vector<1x64xf32>
    %cst = arith.constant dense<0.000000e+00> : vector<128xf32>
    %4 = vector.multi_reduction <add>, %1, %cst [1] : vector<128x64xf32> to vector<128xf32>
    %5 = vector.shape_cast %4 : vector<128xf32> to vector<128x1xf32>
    %cst_6 = arith.constant 6.400000e+01 : f32
    %6 = vector.broadcast %cst_6 : f32 to vector<128x1xf32>
    %7 = arith.divf %5, %6 : vector<128x1xf32>
    %8 = vector.broadcast %7 : vector<128x1xf32> to vector<128x64xf32>
    %9 = arith.subf %1, %8 : vector<128x64xf32>
    %10 = arith.mulf %9, %9 : vector<128x64xf32>
    %cst_7 = arith.constant dense<0.000000e+00> : vector<128xf32>
    %11 = vector.multi_reduction <add>, %10, %cst_7 [1] : vector<128x64xf32> to vector<128xf32>
    %12 = vector.shape_cast %11 : vector<128xf32> to vector<128x1xf32>
    %cst_8 = arith.constant 6.400000e+01 : f32
    %13 = vector.broadcast %cst_8 : f32 to vector<128x1xf32>
    %14 = arith.divf %12, %13 : vector<128x1xf32>
    %15 = vector.broadcast %7 : vector<128x1xf32> to vector<128x64xf32>
    %16 = arith.subf %1, %15 : vector<128x64xf32>
    %cst_9 = arith.constant 9.99999974E-6 : f32
    %17 = vector.broadcast %cst_9 : f32 to vector<128x1xf32>
    %18 = arith.addf %14, %17 : vector<128x1xf32>
    %19 = math.rsqrt %18 : vector<128x1xf32>
    %20 = vector.broadcast %19 : vector<128x1xf32> to vector<128x64xf32>
    %21 = arith.mulf %16, %20 : vector<128x64xf32>
    %22 = vector.broadcast %2 : vector<1x64xf32> to vector<128x64xf32>
    %23 = arith.mulf %21, %22 : vector<128x64xf32>
    %24 = vector.broadcast %3 : vector<1x64xf32> to vector<128x64xf32>
    %25 = arith.addf %23, %24 : vector<128x64xf32>
    %c0_10 = arith.constant 0 : index
    %c0_11 = arith.constant 0 : index
    %26 = vector.load %arg4[%c0_10, %c0_11] : memref<64x128xf32, #tpu.memory_space<vmem>>, vector<64x128xf32>
    %cst_12 = arith.constant dense<0.000000e+00> : vector<128x128xf32>
    %27 = tpu.matmul %25, %26, %cst_12 {dimension_numbers = #tpu.dot_dimension_numbers<[1], [0], [0], [1], [0, 0, 1, 1], [], []>} : vector<128x64xf32>, vector<64x128xf32>, vector<128x128xf32> -> vector<128x128xf32>
    %c0_13 = arith.constant 0 : index
    %c0_14 = arith.constant 0 : index
    %28 = vector.load %arg5[%c0_13, %c0_14] : memref<1x128xf32, #tpu.memory_space<vmem>>, vector<1x128xf32>
    %29 = vector.broadcast %28 : vector<1x128xf32> to vector<128x128xf32>
    %30 = arith.addf %27, %29 : vector<128x128xf32>
    %31 = vector.shape_cast %30 : vector<128x128xf32> to vector<2x64x128xf32>
    %c0_15 = arith.constant 0 : index
    %c0_16 = arith.constant 0 : index
    %c0_17 = arith.constant 0 : index
    %32 = vector.load %arg6[%c0_15, %c0_16, %c0_17] : memref<2x64x128xf32, #tpu.memory_space<vmem>>, vector<2x64x128xf32>
    tpu.vector_store %arg6[%c0_15, %c0_16, %c0_17], %31 {strides = array<i32>} : memref<2x64x128xf32, #tpu.memory_space<vmem>>, vector<2x64x128xf32>,
    return
  }
  func.func @transform_0(%arg0: i32) -> (i32, i32, i32) {
    %c0_i32 = arith.constant 0 : i32
    %c0_i32_0 = arith.constant 0 : i32
    %c0_i32_1 = arith.constant 0 : i32
    return %arg0, %c0_i32, %c0_i32_0 : i32, i32, i32
  }
  func.func @transform_1(%arg0: i32) -> (i32, i32) {
    %c0_i32 = arith.constant 0 : i32
    %c0_i32_0 = arith.constant 0 : i32
    %c0_i32_1 = arith.constant 0 : i32
    return %c0_i32, %c0_i32_0 : i32, i32
  }
  func.func @transform_2(%arg0: i32) -> (i32, i32) {
    %c0_i32 = arith.constant 0 : i32
    %c0_i32_0 = arith.constant 0 : i32
    %c0_i32_1 = arith.constant 0 : i32
    return %c0_i32, %c0_i32_0 : i32, i32
  }
  func.func @transform_3(%arg0: i32) -> (i32, i32) {
    %c0_i32 = arith.constant 0 : i32
    %c0_i32_0 = arith.constant 0 : i32
    %c0_i32_1 = arith.constant 0 : i32
    return %c0_i32, %c0_i32_0 : i32, i32
  }
  func.func @transform_4(%arg0: i32) -> (i32, i32) {
    %c0_i32 = arith.constant 0 : i32
    %c0_i32_0 = arith.constant 0 : i32
    %c0_i32_1 = arith.constant 0 : i32
    return %c0_i32, %c0_i32_0 : i32, i32
  }
  func.func @transform_5(%arg0: i32) -> (i32, i32, i32) {
    %c0_i32 = arith.constant 0 : i32
    %c0_i32_0 = arith.constant 0 : i32
    %c0_i32_1 = arith.constant 0 : i32
    return %arg0, %c0_i32, %c0_i32_0 : i32, i32, i32
  }
}

</mosaic_0001>

<llo_original>
// kernel: bigram_lm_forward.9
$region0: #{bigram_lm_forward.9}
  #allocation0 [shape = 'u32[]', space=smem, size = 0x4, offset = 0x4, fixed_abs, tag = 'smem constant byte address 0x4 - core index']
  #allocation1 [shape = 'u32[144,128]{1,0:T(1,128)}', space=vmem, size = 0x12000, scoped, tag = 'internal scratch']
  %s0 = inlined_call_operand.vmem [shape: f32[4,64,64], index: 0, kind: input, shape index: {}]
  %s1 = inlined_call_operand.vmem [shape: f32[1,64], index: 1, kind: input, shape index: {}]
  %s2 = inlined_call_operand.vmem [shape: f32[1,64], index: 2, kind: input, shape index: {}]
  %s3 = inlined_call_operand.vmem [shape: f32[64,128], index: 3, kind: input, shape index: {}]
  %s4 = inlined_call_operand.vmem [shape: f32[1,128], index: 4, kind: input, shape index: {}]
  %s5 = inlined_call_operand.hbm [shape: f32[4,64,128], index: 5, kind: output, shape index: {}]
  %s6 = sld [smem:[#allocation0]]
  $region53: #{bigram_lm_forward.9} parent=0
    _
  %s8 = ssub.s32 1, %s6
  %s9 = scalar_select 0, %s8, %s6
  $region1: #{bigram_lm_forward.9} parent=0
    #allocation2 [shape = 'u8[131072]{0}', space=vmem, size = 0x20000, scoped, tag = 'output window, operand 0']
    #allocation3 [shape = 's32[2]{0}', space=sflag, size = 0x8, scoped, tag = 'scoped memory for bigram_lm_forward.9']
    %10 = vsyncpa [#allocation3], 0
    %s11 = scalar_lea.sflag [#allocation3], 1
    %12 = vsyncpa %s11, 0
    loop: start=0, step=1, limit=4
    $region2: #{bigram_lm_forward.9} parent=1 // loop_pre_header
      _
    $region3: #{bigram_lm_forward.9} parent=1 // loop_header
      %s14 = sphi 0, %s18
      %p15 = scmp.ge.s32.totalorder %s14, 4
      %s24 = sphi 0, %s26
      %s27 = sphi 0, %s24
      %s28 = sphi 0, %s27
      %s44 = sphi 0, %s28
      %s48 = sphi 0, %s48
      %s50 = sphi 0, %s48
      %s51 = sphi 0, %s50
      %s65 = sphi 0, %s51
      %s69 = sphi 0, %s69
      %s71 = sphi 0, %s69
      %s72 = sphi 0, %s71
      %s86 = sphi 0, %s72
      %s90 = sphi 0, %s90
      %s92 = sphi 0, %s90
      %s93 = sphi 0, %s92
      %s107 = sphi 0, %s93
      %s111 = sphi 0, %s111
      %s113 = sphi 0, %s111
      %s114 = sphi 0, %s113
      %s128 = sphi 0, %s114
      %s134 = sphi 0, %s136
      %s137 = sphi 0, %s134
      %s138 = sphi 0, %s137
      %s154 = sphi 0, %s138
    $region4: #{bigram_lm_forward.9} parent=1 // loop_header_branch
      %17 = sbr.rel (%p15) target = $region8
    $region5: #{bigram_lm_forward.9} parent=1 // loop_body
      %s19 = ssub.s32 %s14, 1
      %s20 = ssub.s32 %s14, 2
      %s21 = sadd.s32 %s14, 1
      %s22 = ssub.s32 %s14, %s21
      %p23 = scmp.eq.s32.totalorder %s22, 0
      %s25 = sadd.s32 %s24, 1
      %s26 = scalar_select %p23, %s24, %s25
      %p29 = pneg %p23
      %p30 = scmp.eq.s32.totalorder %s14, 1
      %p31 = por %p29, %p30
      %p32 = scmp.ne.s32.totalorder %s24, %s27
      %p33 = scmp.eq.s32.totalorder %s14, 0
      %p34 = por %p32, %p33
      %p35 = scmp.ne.s32.totalorder %s24, %s27
      %p36 = scmp.eq.s32.totalorder %s19, 1
      %p37 = por %p35, %p36
      %p38 = scmp.ne.s32.totalorder %s27, %s28
      %p39 = scmp.eq.s32.totalorder %s19, 0
      %p40 = por %p38, %p39
      %p41 = scmp.ne.s32.totalorder %s27, %s28
      %p42 = scmp.eq.s32.totalorder %s20, 1
      %p43 = por %p41, %p42
      %p45 = scmp.ne.s32.totalorder %s28, %s44
      %p46 = scmp.eq.s32.totalorder %s20, 0
      %p47 = por %p45, %p46
      %s49 = sadd.s32 %s48, 1
      %p52 = scmp.eq.s32.totalorder %s14, 1
      %p53 = scmp.ne.s32.totalorder %s48, %s50
      %p54 = scmp.eq.s32.totalorder %s14, 0
      %p55 = por %p53, %p54
      %p56 = scmp.ne.s32.totalorder %s48, %s50
      %p57 = scmp.eq.s32.totalorder %s19, 1
      %p58 = por %p56, %p57
      %p59 = scmp.ne.s32.totalorder %s50, %s51
      %p60 = scmp.eq.s32.totalorder %s19, 0
      %p61 = por %p59, %p60
      %p62 = scmp.ne.s32.totalorder %s50, %s51
      %p63 = scmp.eq.s32.totalorder %s20, 1
      %p64 = por %p62, %p63
      %p66 = scmp.ne.s32.totalorder %s51, %s65
      %p67 = scmp.eq.s32.totalorder %s20, 0
      %p68 = por %p66, %p67
      %s70 = sadd.s32 %s69, 1
      %p73 = scmp.eq.s32.totalorder %s14, 1
      %p74 = scmp.ne.s32.totalorder %s69, %s71
      %p75 = scmp.eq.s32.totalorder %s14, 0
      %p76 = por %p74, %p75
      %p77 = scmp.ne.s32.totalorder %s69, %s71
      %p78 = scmp.eq.s32.totalorder %s19, 1
      %p79 = por %p77, %p78
      %p80 = scmp.ne.s32.totalorder %s71, %s72
      %p81 = scmp.eq.s32.totalorder %s19, 0
      %p82 = por %p80, %p81
      %p83 = scmp.ne.s32.totalorder %s71, %s72
      %p84 = scmp.eq.s32.totalorder %s20, 1
      %p85 = por %p83, %p84
      %p87 = scmp.ne.s32.totalorder %s72, %s86
      %p88 = scmp.eq.s32.totalorder %s20, 0
      %p89 = por %p87, %p88
      %s91 = sadd.s32 %s90, 1
      %p94 = scmp.eq.s32.totalorder %s14, 1
      %p95 = scmp.ne.s32.totalorder %s90, %s92
      %p96 = scmp.eq.s32.totalorder %s14, 0
      %p97 = por %p95, %p96
      %p98 = scmp.ne.s32.totalorder %s90, %s92
      %p99 = scmp.eq.s32.totalorder %s19, 1
      %p100 = por %p98, %p99
      %p101 = scmp.ne.s32.totalorder %s92, %s93
      %p102 = scmp.eq.s32.totalorder %s19, 0
      %p103 = por %p101, %p102
      %p104 = scmp.ne.s32.totalorder %s92, %s93
      %p105 = scmp.eq.s32.totalorder %s20, 1
      %p106 = por %p104, %p105
      %p108 = scmp.ne.s32.totalorder %s93, %s107
      %p109 = scmp.eq.s32.totalorder %s20, 0
      %p110 = por %p108, %p109
      %s112 = sadd.s32 %s111, 1
      %p115 = scmp.eq.s32.totalorder %s14, 1
      %p116 = scmp.ne.s32.totalorder %s111, %s113
      %p117 = scmp.eq.s32.totalorder %s14, 0
      %p118 = por %p116, %p117
      %p119 = scmp.ne.s32.totalorder %s111, %s113
      %p120 = scmp.eq.s32.totalorder %s19, 1
      %p121 = por %p119, %p120
      %p122 = scmp.ne.s32.totalorder %s113, %s114
      %p123 = scmp.eq.s32.totalorder %s19, 0
      %p124 = por %p122, %p123
      %p125 = scmp.ne.s32.totalorder %s113, %s114
      %p126 = scmp.eq.s32.totalorder %s20, 1
      %p127 = por %p125, %p126
      %p129 = scmp.ne.s32.totalorder %s114, %s128
      %p130 = scmp.eq.s32.totalorder %s20, 0
      %p131 = por %p129, %p130
      %s132 = ssub.s32 %s14, %s21
      %p133 = scmp.eq.s32.totalorder %s132, 0
      %s135 = sadd.s32 %s134, 1
      %s136 = scalar_select %p133, %s134, %s135
      %p139 = pneg %p133
      %p140 = scmp.eq.s32.totalorder %s14, 1
      %p141 = por %p139, %p140
      %p142 = scmp.ne.s32.totalorder %s134, %s137
      %p143 = scmp.eq.s32.totalorder %s14, 0
      %p144 = por %p142, %p143
      %p145 = scmp.ne.s32.totalorder %s134, %s137
      %p146 = scmp.eq.s32.totalorder %s19, 1
      %p147 = por %p145, %p146
      %p148 = scmp.ne.s32.totalorder %s137, %s138
      %p149 = scmp.eq.s32.totalorder %s19, 0
      %p150 = por %p148, %p149
      %p151 = scmp.ne.s32.totalorder %s137, %s138
      %p152 = scmp.eq.s32.totalorder %s20, 1
      %p153 = por %p151, %p152
      %p155 = scmp.ne.s32.totalorder %s138, %s154
      %p156 = scmp.eq.s32.totalorder %s20, 0
      %p157 = por %p155, %p156
      %p158 = scmp.le.s32.totalorder 1, %s14
      %p159 = scmp.lt.s32.totalorder %s14, 3
      %p160 = pnand %p158, %p159
      %p161 = pneg %p160
      // Predicated region
      $region9: #{bigram_lm_forward.9} parent=5 // pred_check
        _
      $region10: #{bigram_lm_forward.9} parent=5 // pred_check_branch
        %163 = sbr.rel (%p160) target = $region12
      $region11: #{bigram_lm_forward.9} parent=5 // pred_region
        %s164 = ssub.s32 %s14, 1
        // Predicated region
        $region13: #{bigram_lm_forward.9} parent=11 // pred_check
          %p165 = pneg %p61
        $region14: #{bigram_lm_forward.9} parent=11 // pred_check_branch
          %167 = sbr.rel (%p165) target = $region16
        $region15: #{bigram_lm_forward.9} parent=11 // pred_region
          _
        $region16: #{bigram_lm_forward.9} parent=11 // pred_fallthru
          _
        // Predicated region
        $region17: #{bigram_lm_forward.9} parent=11 // pred_check
          %p168 = pneg %p82
        $region18: #{bigram_lm_forward.9} parent=11 // pred_check_branch
          %170 = sbr.rel (%p168) target = $region20
        $region19: #{bigram_lm_forward.9} parent=11 // pred_region
          _
        $region20: #{bigram_lm_forward.9} parent=11 // pred_fallthru
          _
        // Predicated region
        $region21: #{bigram_lm_forward.9} parent=11 // pred_check
          %p171 = pneg %p103
        $region22: #{bigram_lm_forward.9} parent=11 // pred_check_branch
          %173 = sbr.rel (%p171) target = $region24
        $region23: #{bigram_lm_forward.9} parent=11 // pred_region
          _
        $region24: #{bigram_lm_forward.9} parent=11 // pred_fallthru
          _
        // Predicated region
        $region25: #{bigram_lm_forward.9} parent=11 // pred_check
          %p174 = pneg %p124
        $region26: #{bigram_lm_forward.9} parent=11 // pred_check_branch
          %176 = sbr.rel (%p174) target = $region28
        $region27: #{bigram_lm_forward.9} parent=11 // pred_region
          _
        $region28: #{bigram_lm_forward.9} parent=11 // pred_fallthru
          _
      $region12: #{bigram_lm_forward.9} parent=5 // pred_fallthru
        _
      %p177 = scmp.lt.s32.totalorder %s14, 2
      // Predicated region
      $region29: #{bigram_lm_forward.9} parent=5 // pred_check
        %p178 = pneg %p177
      $region30: #{bigram_lm_forward.9} parent=5 // pred_check_branch
        %180 = sbr.rel (%p178) target = $region32
      $region31: #{bigram_lm_forward.9} parent=5 // pred_region
        // Predicated region
        $region33: #{bigram_lm_forward.9} parent=31 // pred_check
          %p181 = pneg %p34
        $region34: #{bigram_lm_forward.9} parent=31 // pred_check_branch
          %183 = sbr.rel (%p181) target = $region36
        $region35: #{bigram_lm_forward.9} parent=31 // pred_region
          %s184 = smul.u32 2, %s14
          %p185 = scmp.lt.s32.totalorder %s184, 3
          %s186 = scalar_select %p185, %s184, 3
          %s187 = smul.addr %s186, 8
          %s188 = smul.addr %s187, 8
          %s189 = scalar_lea.vmem %s0, %s188
          %s190 = smul.u32 2, %s14
        $region36: #{bigram_lm_forward.9} parent=31 // pred_fallthru
          _
      $region32: #{bigram_lm_forward.9} parent=5 // pred_fallthru
        _
      %p191 = scmp.le.s32.totalorder 1, %s14
      %p192 = scmp.lt.s32.totalorder %s14, 3
      %p193 = pnand %p191, %p192
      %p194 = pneg %p193
      // Predicated region
      $region37: #{bigram_lm_forward.9} parent=5 // pred_check
        _
      $region38: #{bigram_lm_forward.9} parent=5 // pred_check_branch
        %196 = sbr.rel (%p193) target = $region40
      $region39: #{bigram_lm_forward.9} parent=5 // pred_region
        %s197 = ssub.s32 %s14, 1
        %s198 = smul.u32 2, %s19
        %p199 = scmp.lt.s32.totalorder %s198, 3
        %s200 = scalar_select %p199, %s198, 3
        %s201 = smul.addr %s200, 8
        %s202 = smul.addr %s201, 8
        %s203 = scalar_lea.vmem %s0, %s202
        %p204 = pneg %p40
        %p205 = pneg %p37
        %p206 = pneg %p61
        %p207 = pneg %p58
        %p208 = pneg %p82
        %p209 = pneg %p79
        %p210 = pneg %p103
        %p211 = pneg %p100
        %p212 = pneg %p124
        %p213 = pneg %p121
        %p214 = pneg %p150
        %p215 = pneg %p147
        %s216 = sand.u32 %s137, 1
        %s217 = scalar_lea.sflag [#allocation3], %s216
        %s218 = sand.u32 %s137, 1
        %s219 = smul.addr %s218, 128
        %s220 = scalar_lea.vmem [#allocation2], %s219
        %s221 = smul.u32 2, %s19
        %p222 = scmp.lt.s32.totalorder %s221, 3
        %s223 = scalar_select %p222, %s221, 3
        %s224 = smul.addr %s223, 8
        %s225 = smul.addr %s224, 8
        %s226 = scalar_lea.vmem %s0, %s225
        %s227 = smul.u32 2, %s19
        %s228 = smul.u32 2, %s19
        %v229 = vld [vmem:[%s226] sm:$0xff]
        %v230 = vld [vmem:[%s226 + $0x8] sm:$0xff]
        %v231 = vld [vmem:[%s226 + $0x10] sm:$0xff]
        %v232 = vld [vmem:[%s226 + $0x18] sm:$0xff]
        %v233 = vld [vmem:[%s226 + $0x20] sm:$0xff]
        %v234 = vld [vmem:[%s226 + $0x28] sm:$0xff]
        %v235 = vld [vmem:[%s226 + $0x30] sm:$0xff]
        %v236 = vld [vmem:[%s226 + $0x38] sm:$0xff]
        %v237 = vld [vmem:[%s226 + $0x40] sm:$0xff]
        %v238 = vld [vmem:[%s226 + $0x48] sm:$0xff]
        %v239 = vld [vmem:[%s226 + $0x50] sm:$0xff]
        %v240 = vld [vmem:[%s226 + $0x58] sm:$0xff]
        %v241 = vld [vmem:[%s226 + $0x60] sm:$0xff]
        %v242 = vld [vmem:[%s226 + $0x68] sm:$0xff]
        %v243 = vld [vmem:[%s226 + $0x70] sm:$0xff]
        %v244 = vld [vmem:[%s226 + $0x78] sm:$0xff]
        %v245 = vld [vmem:[%s1] sm:$0x1]
        %v246 = vld [vmem:[%s2] sm:$0x1]
        %vm247 = vcmask 523264
        %v248 = vsel %vm247, %v229, 0.0
        %249 = vadd.xlane.f32.xlu0 %v248
        %v250 = vpop.xlane.xlu0 %249
        %v251 = vsel %vm247, %v230, 0.0
        %252 = vadd.xlane.f32.xlu0 %v251
        %v253 = vpop.xlane.xlu0 %252
        %v254 = vsel %vm247, %v231, 0.0
        %255 = vadd.xlane.f32.xlu0 %v254
        %v256 = vpop.xlane.xlu0 %255
        %v257 = vsel %vm247, %v232, 0.0
        %258 = vadd.xlane.f32.xlu0 %v257
        %v259 = vpop.xlane.xlu0 %258
        %v260 = vsel %vm247, %v233, 0.0
        %261 = vadd.xlane.f32.xlu0 %v260
        %v262 = vpop.xlane.xlu0 %261
        %v263 = vsel %vm247, %v234, 0.0
        %264 = vadd.xlane.f32.xlu0 %v263
        %v265 = vpop.xlane.xlu0 %264
        %v266 = vsel %vm247, %v235, 0.0
        %267 = vadd.xlane.f32.xlu0 %v266
        %v268 = vpop.xlane.xlu0 %267
        %v269 = vsel %vm247, %v236, 0.0
        %270 = vadd.xlane.f32.xlu0 %v269
        %v271 = vpop.xlane.xlu0 %270
        %v272 = vsel %vm247, %v237, 0.0
        %273 = vadd.xlane.f32.xlu0 %v272
        %v274 = vpop.xlane.xlu0 %273
        %v275 = vsel %vm247, %v238, 0.0
        %276 = vadd.xlane.f32.xlu0 %v275
        %v277 = vpop.xlane.xlu0 %276
        %v278 = vsel %vm247, %v239, 0.0
        %279 = vadd.xlane.f32.xlu0 %v278
        %v280 = vpop.xlane.xlu0 %279
        %v281 = vsel %vm247, %v240, 0.0
        %282 = vadd.xlane.f32.xlu0 %v281
        %v283 = vpop.xlane.xlu0 %282
        %v284 = vsel %vm247, %v241, 0.0
        %285 = vadd.xlane.f32.xlu0 %v284
        %v286 = vpop.xlane.xlu0 %285
        %v287 = vsel %vm247, %v242, 0.0
        %288 = vadd.xlane.f32.xlu0 %v287
        %v289 = vpop.xlane.xlu0 %288
        %v290 = vsel %vm247, %v243, 0.0
        %291 = vadd.xlane.f32.xlu0 %v290
        %v292 = vpop.xlane.xlu0 %291
        %v293 = vsel %vm247, %v244, 0.0
        %294 = vadd.xlane.f32.xlu0 %v293
        %v295 = vpop.xlane.xlu0 %294
        %v296 = vrcp.pop 64.0
        %v297 = vmul.f32 %v250, %v296
        %v298 = vmul.f32 %v253, %v296
        %v299 = vmul.f32 %v256, %v296
        %v300 = vmul.f32 %v259, %v296
        %v301 = vmul.f32 %v262, %v296
        %v302 = vmul.f32 %v265, %v296
        %v303 = vmul.f32 %v268, %v296
        %v304 = vmul.f32 %v271, %v296
        %v305 = vmul.f32 %v274, %v296
        %v306 = vmul.f32 %v277, %v296
        %v307 = vmul.f32 %v280, %v296
        %v308 = vmul.f32 %v283, %v296
        %v309 = vmul.f32 %v286, %v296
        %v310 = vmul.f32 %v289, %v296
        %v311 = vmul.f32 %v292, %v296
        %v312 = vmul.f32 %v295, %v296
        %v313 = vsub.f32 %v229, %v297
        %v314 = vsub.f32 %v230, %v298
        %v315 = vsub.f32 %v231, %v299
        %v316 = vsub.f32 %v232, %v300
        %v317 = vsub.f32 %v233, %v301
        %v318 = vsub.f32 %v234, %v302
        %v319 = vsub.f32 %v235, %v303
        %v320 = vsub.f32 %v236, %v304
        %v321 = vsub.f32 %v237, %v305
        %v322 = vsub.f32 %v238, %v306
        %v323 = vsub.f32 %v239, %v307
        %v324 = vsub.f32 %v240, %v308
        %v325 = vsub.f32 %v241, %v309
        %v326 = vsub.f32 %v242, %v310
        %v327 = vsub.f32 %v243, %v311
        %v328 = vsub.f32 %v244, %v312
        %v329 = vmul.f32 %v313, %v313
        %v330 = vmul.f32 %v314, %v314
        %v331 = vmul.f32 %v315, %v315
        %v332 = vmul.f32 %v316, %v316
        %v333 = vmul.f32 %v317, %v317
        %v334 = vmul.f32 %v318, %v318
        %v335 = vmul.f32 %v319, %v319
        %v336 = vmul.f32 %v320, %v320
        %v337 = vmul.f32 %v321, %v321
        %v338 = vmul.f32 %v322, %v322
        %v339 = vmul.f32 %v323, %v323
        %v340 = vmul.f32 %v324, %v324
        %v341 = vmul.f32 %v325, %v325
        %v342 = vmul.f32 %v326, %v326
        %v343 = vmul.f32 %v327, %v327
        %v344 = vmul.f32 %v328, %v328
        %v345 = vsel %vm247, %v329, 0.0
        %346 = vadd.xlane.f32.xlu0 %v345
        %v347 = vpop.xlane.xlu0 %346
        %v348 = vsel %vm247, %v330, 0.0
        %349 = vadd.xlane.f32.xlu0 %v348
        %v350 = vpop.xlane.xlu0 %349
        %v351 = vsel %vm247, %v331, 0.0
        %352 = vadd.xlane.f32.xlu0 %v351
        %v353 = vpop.xlane.xlu0 %352
        %v354 = vsel %vm247, %v332, 0.0
        %355 = vadd.xlane.f32.xlu0 %v354
        %v356 = vpop.xlane.xlu0 %355
        %v357 = vsel %vm247, %v333, 0.0
        %358 = vadd.xlane.f32.xlu0 %v357
        %v359 = vpop.xlane.xlu0 %358
        %v360 = vsel %vm247, %v334, 0.0
        %361 = vadd.xlane.f32.xlu0 %v360
        %v362 = vpop.xlane.xlu0 %361
        %v363 = vsel %vm247, %v335, 0.0
        %364 = vadd.xlane.f32.xlu0 %v363
        %v365 = vpop.xlane.xlu0 %364
        %v366 = vsel %vm247, %v336, 0.0
        %367 = vadd.xlane.f32.xlu0 %v366
        %v368 = vpop.xlane.xlu0 %367
        %v369 = vsel %vm247, %v337, 0.0
        %370 = vadd.xlane.f32.xlu0 %v369
        %v371 = vpop.xlane.xlu0 %370
        %v372 = vsel %vm247, %v338, 0.0
        %373 = vadd.xlane.f32.xlu0 %v372
        %v374 = vpop.xlane.xlu0 %373
        %v375 = vsel %vm247, %v339, 0.0
        %376 = vadd.xlane.f32.xlu0 %v375
        %v377 = vpop.xlane.xlu0 %376
        %v378 = vsel %vm247, %v340, 0.0
        %379 = vadd.xlane.f32.xlu0 %v378
        %v380 = vpop.xlane.xlu0 %379
        %v381 = vsel %vm247, %v341, 0.0
        %382 = vadd.xlane.f32.xlu0 %v381
        %v383 = vpop.xlane.xlu0 %382
        %v384 = vsel %vm247, %v342, 0.0
        %385 = vadd.xlane.f32.xlu0 %v384
        %v386 = vpop.xlane.xlu0 %385
        %v387 = vsel %vm247, %v343, 0.0
        %388 = vadd.xlane.f32.xlu0 %v387
        %v389 = vpop.xlane.xlu0 %388
        %v390 = vsel %vm247, %v344, 0.0
        %391 = vadd.xlane.f32.xlu0 %v390
        %v392 = vpop.xlane.xlu0 %391
        %v393 = vmul.f32 %v347, %v296
        %v394 = vmul.f32 %v350, %v296
        %v395 = vmul.f32 %v353, %v296
        %v396 = vmul.f32 %v356, %v296
        %v397 = vmul.f32 %v359, %v296
        %v398 = vmul.f32 %v362, %v296
        %v399 = vmul.f32 %v365, %v296
        %v400 = vmul.f32 %v368, %v296
        %v401 = vmul.f32 %v371, %v296
        %v402 = vmul.f32 %v374, %v296
        %v403 = vmul.f32 %v377, %v296
        %v404 = vmul.f32 %v380, %v296
        %v405 = vmul.f32 %v383, %v296
        %v406 = vmul.f32 %v386, %v296
        %v407 = vmul.f32 %v389, %v296
        %v408 = vmul.f32 %v392, %v296
        %v409 = vadd.f32 %v393, 1e-05
        %v410 = vadd.f32 %v394, 1e-05
        %v411 = vadd.f32 %v395, 1e-05
        %v412 = vadd.f32 %v396, 1e-05
        %v413 = vadd.f32 %v397, 1e-05
        %v414 = vadd.f32 %v398, 1e-05
        %v415 = vadd.f32 %v399, 1e-05
        %v416 = vadd.f32 %v400, 1e-05
        %v417 = vadd.f32 %v401, 1e-05
        %v418 = vadd.f32 %v402, 1e-05
        %v419 = vadd.f32 %v403, 1e-05
        %v420 = vadd.f32 %v404, 1e-05
        %v421 = vadd.f32 %v405, 1e-05
        %v422 = vadd.f32 %v406, 1e-05
        %v423 = vadd.f32 %v407, 1e-05
        %v424 = vadd.f32 %v408, 1e-05
        %v425 = vrsqrt.pop %v409
        %v426 = vrsqrt.pop %v410
        %v427 = vrsqrt.pop %v411
        %v428 = vrsqrt.pop %v412
        %v429 = vrsqrt.pop %v413
        %v430 = vrsqrt.pop %v414
        %v431 = vrsqrt.pop %v415
        %v432 = vrsqrt.pop %v416
        %v433 = vrsqrt.pop %v417
        %v434 = vrsqrt.pop %v418
        %v435 = vrsqrt.pop %v419
        %v436 = vrsqrt.pop %v420
        %v437 = vrsqrt.pop %v421
        %v438 = vrsqrt.pop %v422
        %v439 = vrsqrt.pop %v423
        %v440 = vrsqrt.pop %v424
        %v441 = vmul.f32 %v313, %v425
        %v442 = vmul.f32 %v314, %v426
        %v443 = vmul.f32 %v315, %v427
        %v444 = vmul.f32 %v316, %v428
        %v445 = vmul.f32 %v317, %v429
        %v446 = vmul.f32 %v318, %v430
        %v447 = vmul.f32 %v319, %v431
        %v448 = vmul.f32 %v320, %v432
        %v449 = vmul.f32 %v321, %v433
        %v450 = vmul.f32 %v322, %v434
        %v451 = vmul.f32 %v323, %v435
        %v452 = vmul.f32 %v324, %v436
        %v453 = vmul.f32 %v325, %v437
        %v454 = vmul.f32 %v326, %v438
        %v455 = vmul.f32 %v327, %v439
        %v456 = vmul.f32 %v328, %v440
        %v458 = vlaneseq
        %v459 = vshrl.u32 %v458, 7
        %v460 = vsub.s32 0, %v459
        %v461 = vrot.slane %v245, %v460
        %v463 = vmul.f32 %v441, %v461
        %v464 = vmul.f32 %v442, %v461
        %v465 = vmul.f32 %v443, %v461
        %v466 = vmul.f32 %v444, %v461
        %v467 = vmul.f32 %v445, %v461
        %v468 = vmul.f32 %v446, %v461
        %v469 = vmul.f32 %v447, %v461
        %v470 = vmul.f32 %v448, %v461
        %v471 = vmul.f32 %v449, %v461
        %v472 = vmul.f32 %v450, %v461
        %v473 = vmul.f32 %v451, %v461
        %v474 = vmul.f32 %v452, %v461
        %v475 = vmul.f32 %v453, %v461
        %v476 = vmul.f32 %v454, %v461
        %v477 = vmul.f32 %v455, %v461
        %v478 = vmul.f32 %v456, %v461
        %v480 = vlaneseq
        %v481 = vshrl.u32 %v480, 7
        %v482 = vsub.s32 0, %v481
        %v483 = vrot.slane %v246, %v482
        %v485 = vadd.f32 %v463, %v483
        %v486 = vadd.f32 %v464, %v483
        %v487 = vadd.f32 %v465, %v483
        %v488 = vadd.f32 %v466, %v483
        %v489 = vadd.f32 %v467, %v483
        %v490 = vadd.f32 %v468, %v483
        %v491 = vadd.f32 %v469, %v483
        %v492 = vadd.f32 %v470, %v483
        %v493 = vadd.f32 %v471, %v483
        %v494 = vadd.f32 %v472, %v483
        %v495 = vadd.f32 %v473, %v483
        %v496 = vadd.f32 %v474, %v483
        %v497 = vadd.f32 %v475, %v483
        %v498 = vadd.f32 %v476, %v483
        %v499 = vadd.f32 %v477, %v483
        %v500 = vadd.f32 %v478, %v483
        %v501 = vld [vmem:[%s3] sm:$0xff]
        %v502 = vld [vmem:[%s3 + $0x8] sm:$0xff]
        %v503 = vld [vmem:[%s3 + $0x10] sm:$0xff]
        %v504 = vld [vmem:[%s3 + $0x18] sm:$0xff]
        %v505 = vld [vmem:[%s3 + $0x20] sm:$0xff]
        %v506 = vld [vmem:[%s3 + $0x28] sm:$0xff]
        %v507 = vld [vmem:[%s3 + $0x30] sm:$0xff]
        %v508 = vld [vmem:[%s3 + $0x38] sm:$0xff]
        %v509 = vld [vmem:[%s4] sm:$0x1]
        %v511 = vlaneseq
        %v512 = vshrl.u32 %v511, 7
        %v513 = vsub.s32 0, %v512
        %v514 = vrot.slane %v509, %v513
        %v517 = vsel %vm247, %v485, 0
        %v520 = vsel %vm247, %v486, 0
        %v523 = vsel %vm247, %v487, 0
        %v526 = vsel %vm247, %v488, 0
        %v529 = vsel %vm247, %v489, 0
        %v532 = vsel %vm247, %v490, 0
        %v535 = vsel %vm247, %v491, 0
        %v538 = vsel %vm247, %v492, 0
        %v541 = vsel %vm247, %v493, 0
        %v544 = vsel %vm247, %v494, 0
        %v547 = vsel %vm247, %v495, 0
        %v550 = vsel %vm247, %v496, 0
        %v553 = vsel %vm247, %v497, 0
        %v556 = vsel %vm247, %v498, 0
        %v559 = vsel %vm247, %v499, 0
        %v562 = vsel %vm247, %v500, 0
        %564 = vmatprep.subr.mxu0 0.0
        %565 = vmatpush1.msra.mxu0 %v501
        %566 = vmatprep.subr.mxu0 0.0
        %567 = vmatpush1.msra.mxu0 %v502
        %568 = vmatprep.subr.mxu0 0.0
        %569 = vmatpush1.msra.mxu0 %v503
        %570 = vmatprep.subr.mxu0 0.0
        %571 = vmatpush1.msra.mxu0 %v504
        %572 = vmatprep.subr.mxu0 0.0
        %573 = vmatpush1.msra.mxu0 %v505
        %574 = vmatprep.subr.mxu0 0.0
        %575 = vmatpush1.msra.mxu0 %v506
        %576 = vmatprep.subr.mxu0 0.0
        %577 = vmatpush1.msra.mxu0 %v507
        %578 = vmatprep.subr.mxu0 0.0
        %579 = vmatpush1.msra.mxu0 %v508
        %580 = vmatprep.subr.mxu0 0.0
        %581 = vmatpush1.msra.mxu0 0.0
        %582 = vmatprep.subr.mxu0 0.0
        %583 = vmatpush1.msra.mxu0 0.0
        %584 = vmatprep.subr.mxu0 0.0
        %585 = vmatpush1.msra.mxu0 0.0
        %586 = vmatprep.subr.mxu0 0.0
        %587 = vmatpush1.msra.mxu0 0.0
        %588 = vmatprep.subr.mxu0 0.0
        %589 = vmatpush1.msra.mxu0 0.0
        %590 = vmatprep.subr.mxu0 0.0
        %591 = vmatpush1.msra.mxu0 0.0
        %592 = vmatprep.subr.mxu0 0.0
        %593 = vmatpush1.msra.mxu0 0.0
        %594 = vmatprep.subr.mxu0 0.0
        %595 = vmatpush1.msra.mxu0 0.0
        %596 = vmatprep.subr.mxu0 0.0
        %597 = vmatpush1.msra.mxu0 0.0
        %598 = vmatprep.subr.mxu0 0.0
        %599 = vmatpush1.msra.mxu0 0.0
        %600 = vmatprep.subr.mxu0 0.0
        %601 = vmatpush1.msra.mxu0 0.0
        %602 = vmatprep.subr.mxu0 0.0
        %603 = vmatpush1.msra.mxu0 0.0
        %604 = vmatprep.subr.mxu0 0.0
        %605 = vmatpush1.msra.mxu0 0.0
        %606 = vmatprep.subr.mxu0 0.0
        %607 = vmatpush1.msra.mxu0 0.0
        %608 = vmatprep.subr.mxu0 0.0
        %609 = vmatpush1.msra.mxu0 0.0
        %610 = vmatprep.subr.mxu0 0.0
        %611 = vmatpush1.msra.mxu0 0.0
        %612 = vmatprep.subr.mxu0 0.0
        %613 = vmatpush1.msra.mxu0 0.0
        %614 = vmatprep.subr.mxu0 0.0
        %615 = vmatpush1.msra.mxu0 0.0
        %616 = vmatprep.subr.mxu0 0.0
        %617 = vmatpush1.msra.mxu0 0.0
        %618 = vmatprep.subr.mxu0 0.0
        %619 = vmatpush1.msra.mxu0 0.0
        %620 = vmatprep.subr.mxu0 0.0
        %621 = vmatpush1.msra.mxu0 0.0
        %622 = vmatprep.subr.mxu0 0.0
        %623 = vmatpush1.msra.mxu0 0.0
        %624 = vmatprep.subr.mxu0 0.0
        %625 = vmatpush1.msra.mxu0 0.0
        %626 = vmatprep.subr.mxu0 0.0
        %627 = vmatpush1.msra.mxu0 0.0
        %628 = vmatprep.mubr.f32.mxu0 0.0
        %629 = vmatmul.mubr.f32.gmra.mrb[0].mxu0 %v517
        %v630 = vpop.f32.mrb[0].mxu0
        %v631 = vadd.f32 %v514, %v630
        %v632 = vpop.f32.mrb[0].mxu0
        %633 = vmatprep.mubr.f32.mxu0 0.0
        %634 = vmatmul.mubr.f32.gmra.mrb[0].mxu0 %v520
        %v635 = vpop.f32.mrb[0].mxu0
        %v636 = vadd.f32 %v514, %v635
        %v637 = vpop.f32.mrb[0].mxu0
        %638 = vmatprep.mubr.f32.mxu0 0.0
        %639 = vmatmul.mubr.f32.gmra.mrb[0].mxu0 %v523
        %v640 = vpop.f32.mrb[0].mxu0
        %v641 = vadd.f32 %v514, %v640
        %v642 = vpop.f32.mrb[0].mxu0
        %643 = vmatprep.mubr.f32.mxu0 0.0
        %644 = vmatmul.mubr.f32.gmra.mrb[0].mxu0 %v526
        %v645 = vpop.f32.mrb[0].mxu0
        %v646 = vadd.f32 %v514, %v645
        %v647 = vpop.f32.mrb[0].mxu0
        %648 = vmatprep.mubr.f32.mxu0 0.0
        %649 = vmatmul.mubr.f32.gmra.mrb[0].mxu0 %v529
        %v650 = vpop.f32.mrb[0].mxu0
        %v651 = vadd.f32 %v514, %v650
        %v652 = vpop.f32.mrb[0].mxu0
        %653 = vmatprep.mubr.f32.mxu0 0.0
        %654 = vmatmul.mubr.f32.gmra.mrb[0].mxu0 %v532
        %v655 = vpop.f32.mrb[0].mxu0
        %v656 = vadd.f32 %v514, %v655
        %v657 = vpop.f32.mrb[0].mxu0
        %658 = vmatprep.mubr.f32.mxu0 0.0
        %659 = vmatmul.mubr.f32.gmra.mrb[0].mxu0 %v535
        %v660 = vpop.f32.mrb[0].mxu0
        %v661 = vadd.f32 %v514, %v660
        %v662 = vpop.f32.mrb[0].mxu0
        %663 = vmatprep.mubr.f32.mxu0 0.0
        %664 = vmatmul.mubr.f32.gmra.mrb[0].mxu0 %v538
        %v665 = vpop.f32.mrb[0].mxu0
        %v666 = vadd.f32 %v514, %v665
        %v667 = vpop.f32.mrb[0].mxu0
        %668 = vmatprep.mubr.f32.mxu0 0.0
        %669 = vmatmul.mubr.f32.gmra.mrb[0].mxu0 %v541
        %v670 = vpop.f32.mrb[0].mxu0
        %v671 = vadd.f32 %v514, %v670
        %v672 = vpop.f32.mrb[0].mxu0
        %673 = vmatprep.mubr.f32.mxu0 0.0
        %674 = vmatmul.mubr.f32.gmra.mrb[0].mxu0 %v544
        %v675 = vpop.f32.mrb[0].mxu0
        %v676 = vadd.f32 %v514, %v675
        %v677 = vpop.f32.mrb[0].mxu0
        %678 = vmatprep.mubr.f32.mxu0 0.0
        %679 = vmatmul.mubr.f32.gmra.mrb[0].mxu0 %v547
        %v680 = vpop.f32.mrb[0].mxu0
        %v681 = vadd.f32 %v514, %v680
        %v682 = vpop.f32.mrb[0].mxu0
        %683 = vmatprep.mubr.f32.mxu0 0.0
        %684 = vmatmul.mubr.f32.gmra.mrb[0].mxu0 %v550
        %v685 = vpop.f32.mrb[0].mxu0
        %v686 = vadd.f32 %v514, %v685
        %v687 = vpop.f32.mrb[0].mxu0
        %688 = vmatprep.mubr.f32.mxu0 0.0
        %689 = vmatmul.mubr.f32.gmra.mrb[0].mxu0 %v553
        %v690 = vpop.f32.mrb[0].mxu0
        %v691 = vadd.f32 %v514, %v690
        %v692 = vpop.f32.mrb[0].mxu0
        %693 = vmatprep.mubr.f32.mxu0 0.0
        %694 = vmatmul.mubr.f32.gmra.mrb[0].mxu0 %v556
        %v695 = vpop.f32.mrb[0].mxu0
        %v696 = vadd.f32 %v514, %v695
        %v697 = vpop.f32.mrb[0].mxu0
        %698 = vmatprep.mubr.f32.mxu0 0.0
        %699 = vmatmul.mubr.f32.gmra.mrb[0].mxu0 %v559
        %v700 = vpop.f32.mrb[0].mxu0
        %v701 = vadd.f32 %v514, %v700
        %v702 = vpop.f32.mrb[0].mxu0
        %703 = vmatprep.mubr.f32.mxu0 0.0
        %704 = vmatmul.mubr.f32.gmra.mrb[0].mxu0 %v562
        %v705 = vpop.f32.mrb[0].mxu0
        %v706 = vadd.f32 %v514, %v705
        %v707 = vpop.f32.mrb[0].mxu0
        %708 = vdwg.mxu0
        %709 = vst [vmem:[%s220] sm:$0xff] %v631
        %710 = vst [vmem:[%s220 + $0x8] sm:$0xff] %v636
        %711 = vst [vmem:[%s220 + $0x10] sm:$0xff] %v641
        %712 = vst [vmem:[%s220 + $0x18] sm:$0xff] %v646
        %713 = vst [vmem:[%s220 + $0x20] sm:$0xff] %v651
        %714 = vst [vmem:[%s220 + $0x28] sm:$0xff] %v656
        %715 = vst [vmem:[%s220 + $0x30] sm:$0xff] %v661
        %716 = vst [vmem:[%s220 + $0x38] sm:$0xff] %v666
        %717 = vst [vmem:[%s220 + $0x40] sm:$0xff] %v671
        %718 = vst [vmem:[%s220 + $0x48] sm:$0xff] %v676
        %719 = vst [vmem:[%s220 + $0x50] sm:$0xff] %v681
        %720 = vst [vmem:[%s220 + $0x58] sm:$0xff] %v686
        %721 = vst [vmem:[%s220 + $0x60] sm:$0xff] %v691
        %722 = vst [vmem:[%s220 + $0x68] sm:$0xff] %v696
        %723 = vst [vmem:[%s220 + $0x70] sm:$0xff] %v701
        %724 = vst [vmem:[%s220 + $0x78] sm:$0xff] %v706
        %s725 = sand.u32 %s137, 1
        %s726 = scalar_lea.sflag [#allocation3], %s725
        %s727 = sand.u32 %s137, 1
        %s728 = smul.addr %s727, 128
        %s729 = scalar_lea.vmem [#allocation2], %s728
        // Predicated region
        $region41: #{bigram_lm_forward.9} parent=39 // pred_check
          %p730 = pneg %p147
        $region42: #{bigram_lm_forward.9} parent=39 // pred_check_branch
          %732 = sbr.rel (%p730) target = $region44
        $region43: #{bigram_lm_forward.9} parent=39 // pred_region
          %s733 = smul.u32 2, %s19
          %s735 = ssub.s32 2048, 2048
          %736 = vsyncadd %s726, %s735
          %s737 = smul.addr %s733, 8
          %s738 = smul.addr %s737, 128
          %s739 = scalar_lea.hbm %s5, %s738
          %s740 = sshll.u32 %s729, 4
          %s741 = int_to_ptr.vmem [resolvable:$true] %s740
          %746 = dma.vmem_to_hbm [thread:$0]  %s741, 2048, %s739, %s726, 128, 128, 8
        $region44: #{bigram_lm_forward.9} parent=39 // pred_fallthru
          _
      $region40: #{bigram_lm_forward.9} parent=5 // pred_fallthru
        _
      %p747 = scmp.le.s32.totalorder 2, %s14
      // Predicated region
      $region45: #{bigram_lm_forward.9} parent=5 // pred_check
        %p748 = pneg %p747
      $region46: #{bigram_lm_forward.9} parent=5 // pred_check_branch
        %750 = sbr.rel (%p748) target = $region48
      $region47: #{bigram_lm_forward.9} parent=5 // pred_region
        %s751 = ssub.s32 %s14, 2
        // Predicated region
        $region49: #{bigram_lm_forward.9} parent=47 // pred_check
          %p752 = pneg %p153
        $region50: #{bigram_lm_forward.9} parent=47 // pred_check_branch
          %754 = sbr.rel (%p752) target = $region52
        $region51: #{bigram_lm_forward.9} parent=47 // pred_region
          %s755 = sand.u32 %s138, 1
          %s756 = scalar_lea.sflag [#allocation3], %s755
          %s757 = sand.u32 %s138, 1
          %s758 = smul.addr %s757, 128
          %s759 = scalar_lea.vmem [#allocation2], %s758
          %760 = dma.done %s756, 2048
        $region52: #{bigram_lm_forward.9} parent=47 // pred_fallthru
          _
      $region48: #{bigram_lm_forward.9} parent=5 // pred_fallthru
        _
    $region6: #{bigram_lm_forward.9} parent=1 // loop_footer
      %s18 = sadd.s32 1, %s14
    $region7: #{bigram_lm_forward.9} parent=1 // loop_footer_branch
      %13 = sbr.rel target = $region3
    $region8: #{bigram_lm_forward.9} parent=1 // loop_exit
      _
    %761 = vsyncpa [#allocation3], 1
    %s762 = scalar_lea.sflag [#allocation3], 1
    %763 = vsyncpa %s762, 1

// kernel: bigram_lm_forward.5
$region0: #{bigram_lm_forward.5}
  #allocation0 [shape = 'u32[]', space=smem, size = 0x4, offset = 0x4, fixed_abs, tag = 'smem constant byte address 0x4 - core index']
  #allocation1 [shape = 'u32[144,128]{1,0:T(1,128)}', space=vmem, size = 0x12000, scoped, tag = 'internal scratch']
  %s0 = inlined_call_operand.vmem [shape: f32[4,64,64], index: 0, kind: input, shape index: {}]
  %s1 = inlined_call_operand.vmem [shape: f32[64,192], index: 1, kind: input, shape index: {}]
  %s2 = inlined_call_operand.vmem [shape: f32[64,64], index: 2, kind: input, shape index: {}]
  %s3 = inlined_call_operand.vmem [shape: f32[1,64], index: 3, kind: input, shape index: {}]
  %s4 = inlined_call_operand.vmem [shape: f32[1,64], index: 4, kind: input, shape index: {}]
  %s5 = inlined_call_operand.vmem [shape: f32[1,64], index: 5, kind: input, shape index: {}]
  %s6 = inlined_call_operand.vmem [shape: f32[1,64], index: 6, kind: input, shape index: {}]
  %s7 = inlined_call_operand.vmem [shape: f32[1,64], index: 7, kind: input, shape index: {}]
  %s8 = inlined_call_operand.vmem [shape: f32[64,256], index: 8, kind: input, shape index: {}]
  %s9 = inlined_call_operand.vmem [shape: f32[1,256], index: 9, kind: input, shape index: {}]
  %s10 = inlined_call_operand.vmem [shape: f32[256,64], index: 10, kind: input, shape index: {}]
  %s11 = inlined_call_operand.vmem [shape: f32[1,64], index: 11, kind: input, shape index: {}]
  %s12 = inlined_call_operand.vmem [shape: f32[4,64,64], index: 12, kind: output, shape index: {}]
  %s13 = sld [smem:[#allocation0]]
  $region81: #{bigram_lm_forward.5} parent=0
    _
  %s15 = ssub.s32 1, %s13
  %s16 = scalar_select 0, %s15, %s13
  loop: start=0, step=1, limit=4
  $region2: #{bigram_lm_forward.5} parent=0 // loop_pre_header
    _
  $region3: #{bigram_lm_forward.5} parent=0 // loop_header
    %s18 = sphi 0, %s22
    %p19 = scmp.ge.s32.totalorder %s18, 4
    %s28 = sphi 0, %s30
    %s31 = sphi 0, %s28
    %s32 = sphi 0, %s31
    %s48 = sphi 0, %s32
    %s52 = sphi 0, %s52
    %s54 = sphi 0, %s52
    %s55 = sphi 0, %s54
    %s69 = sphi 0, %s55
    %s73 = sphi 0, %s73
    %s75 = sphi 0, %s73
    %s76 = sphi 0, %s75
    %s90 = sphi 0, %s76
    %s94 = sphi 0, %s94
    %s96 = sphi 0, %s94
    %s97 = sphi 0, %s96
    %s111 = sphi 0, %s97
    %s115 = sphi 0, %s115
    %s117 = sphi 0, %s115
    %s118 = sphi 0, %s117
    %s132 = sphi 0, %s118
    %s136 = sphi 0, %s136
    %s138 = sphi 0, %s136
    %s139 = sphi 0, %s138
    %s153 = sphi 0, %s139
    %s157 = sphi 0, %s157
    %s159 = sphi 0, %s157
    %s160 = sphi 0, %s159
    %s174 = sphi 0, %s160
    %s178 = sphi 0, %s178
    %s180 = sphi 0, %s178
    %s181 = sphi 0, %s180
    %s195 = sphi 0, %s181
    %s199 = sphi 0, %s199
    %s201 = sphi 0, %s199
    %s202 = sphi 0, %s201
    %s216 = sphi 0, %s202
    %s220 = sphi 0, %s220
    %s222 = sphi 0, %s220
    %s223 = sphi 0, %s222
    %s237 = sphi 0, %s223
    %s241 = sphi 0, %s241
    %s243 = sphi 0, %s241
    %s244 = sphi 0, %s243
    %s258 = sphi 0, %s244
    %s262 = sphi 0, %s262
    %s264 = sphi 0, %s262
    %s265 = sphi 0, %s264
    %s279 = sphi 0, %s265
    %s285 = sphi 0, %s287
    %s288 = sphi 0, %s285
    %s289 = sphi 0, %s288
    %s305 = sphi 0, %s289
  $region4: #{bigram_lm_forward.5} parent=0 // loop_header_branch
    %21 = sbr.rel (%p19) target = $region8
  $region5: #{bigram_lm_forward.5} parent=0 // loop_body
    %s23 = ssub.s32 %s18, 1
    %s24 = ssub.s32 %s18, 2
    %s25 = sadd.s32 %s18, 1
    %s26 = ssub.s32 %s18, %s25
    %p27 = scmp.eq.s32.totalorder %s26, 0
    %s29 = sadd.s32 %s28, 1
    %s30 = scalar_select %p27, %s28, %s29
    %p33 = pneg %p27
    %p34 = scmp.eq.s32.totalorder %s18, 1
    %p35 = por %p33, %p34
    %p36 = scmp.ne.s32.totalorder %s28, %s31
    %p37 = scmp.eq.s32.totalorder %s18, 0
    %p38 = por %p36, %p37
    %p39 = scmp.ne.s32.totalorder %s28, %s31
    %p40 = scmp.eq.s32.totalorder %s23, 1
    %p41 = por %p39, %p40
    %p42 = scmp.ne.s32.totalorder %s31, %s32
    %p43 = scmp.eq.s32.totalorder %s23, 0
    %p44 = por %p42, %p43
    %p45 = scmp.ne.s32.totalorder %s31, %s32
    %p46 = scmp.eq.s32.totalorder %s24, 1
    %p47 = por %p45, %p46
    %p49 = scmp.ne.s32.totalorder %s32, %s48
    %p50 = scmp.eq.s32.totalorder %s24, 0
    %p51 = por %p49, %p50
    %s53 = sadd.s32 %s52, 1
    %p56 = scmp.eq.s32.totalorder %s18, 1
    %p57 = scmp.ne.s32.totalorder %s52, %s54
    %p58 = scmp.eq.s32.totalorder %s18, 0
    %p59 = por %p57, %p58
    %p60 = scmp.ne.s32.totalorder %s52, %s54
    %p61 = scmp.eq.s32.totalorder %s23, 1
    %p62 = por %p60, %p61
    %p63 = scmp.ne.s32.totalorder %s54, %s55
    %p64 = scmp.eq.s32.totalorder %s23, 0
    %p65 = por %p63, %p64
    %p66 = scmp.ne.s32.totalorder %s54, %s55
    %p67 = scmp.eq.s32.totalorder %s24, 1
    %p68 = por %p66, %p67
    %p70 = scmp.ne.s32.totalorder %s55, %s69
    %p71 = scmp.eq.s32.totalorder %s24, 0
    %p72 = por %p70, %p71
    %s74 = sadd.s32 %s73, 1
    %p77 = scmp.eq.s32.totalorder %s18, 1
    %p78 = scmp.ne.s32.totalorder %s73, %s75
    %p79 = scmp.eq.s32.totalorder %s18, 0
    %p80 = por %p78, %p79
    %p81 = scmp.ne.s32.totalorder %s73, %s75
    %p82 = scmp.eq.s32.totalorder %s23, 1
    %p83 = por %p81, %p82
    %p84 = scmp.ne.s32.totalorder %s75, %s76
    %p85 = scmp.eq.s32.totalorder %s23, 0
    %p86 = por %p84, %p85
    %p87 = scmp.ne.s32.totalorder %s75, %s76
    %p88 = scmp.eq.s32.totalorder %s24, 1
    %p89 = por %p87, %p88
    %p91 = scmp.ne.s32.totalorder %s76, %s90
    %p92 = scmp.eq.s32.totalorder %s24, 0
    %p93 = por %p91, %p92
    %s95 = sadd.s32 %s94, 1
    %p98 = scmp.eq.s32.totalorder %s18, 1
    %p99 = scmp.ne.s32.totalorder %s94, %s96
    %p100 = scmp.eq.s32.totalorder %s18, 0
    %p101 = por %p99, %p100
    %p102 = scmp.ne.s32.totalorder %s94, %s96
    %p103 = scmp.eq.s32.totalorder %s23, 1
    %p104 = por %p102, %p103
    %p105 = scmp.ne.s32.totalorder %s96, %s97
    %p106 = scmp.eq.s32.totalorder %s23, 0
    %p107 = por %p105, %p106
    %p108 = scmp.ne.s32.totalorder %s96, %s97
    %p109 = scmp.eq.s32.totalorder %s24, 1
    %p110 = por %p108, %p109
    %p112 = scmp.ne.s32.totalorder %s97, %s111
    %p113 = scmp.eq.s32.totalorder %s24, 0
    %p114 = por %p112, %p113
    %s116 = sadd.s32 %s115, 1
    %p119 = scmp.eq.s32.totalorder %s18, 1
    %p120 = scmp.ne.s32.totalorder %s115, %s117
    %p121 = scmp.eq.s32.totalorder %s18, 0
    %p122 = por %p120, %p121
    %p123 = scmp.ne.s32.totalorder %s115, %s117
    %p124 = scmp.eq.s32.totalorder %s23, 1
    %p125 = por %p123, %p124
    %p126 = scmp.ne.s32.totalorder %s117, %s118
    %p127 = scmp.eq.s32.totalorder %s23, 0
    %p128 = por %p126, %p127
    %p129 = scmp.ne.s32.totalorder %s117, %s118
    %p130 = scmp.eq.s32.totalorder %s24, 1
    %p131 = por %p129, %p130
    %p133 = scmp.ne.s32.totalorder %s118, %s132
    %p134 = scmp.eq.s32.totalorder %s24, 0
    %p135 = por %p133, %p134
    %s137 = sadd.s32 %s136, 1
    %p140 = scmp.eq.s32.totalorder %s18, 1
    %p141 = scmp.ne.s32.totalorder %s136, %s138
    %p142 = scmp.eq.s32.totalorder %s18, 0
    %p143 = por %p141, %p142
    %p144 = scmp.ne.s32.totalorder %s136, %s138
    %p145 = scmp.eq.s32.totalorder %s23, 1
    %p146 = por %p144, %p145
    %p147 = scmp.ne.s32.totalorder %s138, %s139
    %p148 = scmp.eq.s32.totalorder %s23, 0
    %p149 = por %p147, %p148
    %p150 = scmp.ne.s32.totalorder %s138, %s139
    %p151 = scmp.eq.s32.totalorder %s24, 1
    %p152 = por %p150, %p151
    %p154 = scmp.ne.s32.totalorder %s139, %s153
    %p155 = scmp.eq.s32.totalorder %s24, 0
    %p156 = por %p154, %p155
    %s158 = sadd.s32 %s157, 1
    %p161 = scmp.eq.s32.totalorder %s18, 1
    %p162 = scmp.ne.s32.totalorder %s157, %s159
    %p163 = scmp.eq.s32.totalorder %s18, 0
    %p164 = por %p162, %p163
    %p165 = scmp.ne.s32.totalorder %s157, %s159
    %p166 = scmp.eq.s32.totalorder %s23, 1
    %p167 = por %p165, %p166
    %p168 = scmp.ne.s32.totalorder %s159, %s160
    %p169 = scmp.eq.s32.totalorder %s23, 0
    %p170 = por %p168, %p169
    %p171 = scmp.ne.s32.totalorder %s159, %s160
    %p172 = scmp.eq.s32.totalorder %s24, 1
    %p173 = por %p171, %p172
    %p175 = scmp.ne.s32.totalorder %s160, %s174
    %p176 = scmp.eq.s32.totalorder %s24, 0
    %p177 = por %p175, %p176
    %s179 = sadd.s32 %s178, 1
    %p182 = scmp.eq.s32.totalorder %s18, 1
    %p183 = scmp.ne.s32.totalorder %s178, %s180
    %p184 = scmp.eq.s32.totalorder %s18, 0
    %p185 = por %p183, %p184
    %p186 = scmp.ne.s32.totalorder %s178, %s180
    %p187 = scmp.eq.s32.totalorder %s23, 1
    %p188 = por %p186, %p187
    %p189 = scmp.ne.s32.totalorder %s180, %s181
    %p190 = scmp.eq.s32.totalorder %s23, 0
    %p191 = por %p189, %p190
    %p192 = scmp.ne.s32.totalorder %s180, %s181
    %p193 = scmp.eq.s32.totalorder %s24, 1
    %p194 = por %p192, %p193
    %p196 = scmp.ne.s32.totalorder %s181, %s195
    %p197 = scmp.eq.s32.totalorder %s24, 0
    %p198 = por %p196, %p197
    %s200 = sadd.s32 %s199, 1
    %p203 = scmp.eq.s32.totalorder %s18, 1
    %p204 = scmp.ne.s32.totalorder %s199, %s201
    %p205 = scmp.eq.s32.totalorder %s18, 0
    %p206 = por %p204, %p205
    %p207 = scmp.ne.s32.totalorder %s199, %s201
    %p208 = scmp.eq.s32.totalorder %s23, 1
    %p209 = por %p207, %p208
    %p210 = scmp.ne.s32.totalorder %s201, %s202
    %p211 = scmp.eq.s32.totalorder %s23, 0
    %p212 = por %p210, %p211
    %p213 = scmp.ne.s32.totalorder %s201, %s202
    %p214 = scmp.eq.s32.totalorder %s24, 1
    %p215 = por %p213, %p214
    %p217 = scmp.ne.s32.totalorder %s202, %s216
    %p218 = scmp.eq.s32.totalorder %s24, 0
    %p219 = por %p217, %p218
    %s221 = sadd.s32 %s220, 1
    %p224 = scmp.eq.s32.totalorder %s18, 1
    %p225 = scmp.ne.s32.totalorder %s220, %s222
    %p226 = scmp.eq.s32.totalorder %s18, 0
    %p227 = por %p225, %p226
    %p228 = scmp.ne.s32.totalorder %s220, %s222
    %p229 = scmp.eq.s32.totalorder %s23, 1
    %p230 = por %p228, %p229
    %p231 = scmp.ne.s32.totalorder %s222, %s223
    %p232 = scmp.eq.s32.totalorder %s23, 0
    %p233 = por %p231, %p232
    %p234 = scmp.ne.s32.totalorder %s222, %s223
    %p235 = scmp.eq.s32.totalorder %s24, 1
    %p236 = por %p234, %p235
    %p238 = scmp.ne.s32.totalorder %s223, %s237
    %p239 = scmp.eq.s32.totalorder %s24, 0
    %p240 = por %p238, %p239
    %s242 = sadd.s32 %s241, 1
    %p245 = scmp.eq.s32.totalorder %s18, 1
    %p246 = scmp.ne.s32.totalorder %s241, %s243
    %p247 = scmp.eq.s32.totalorder %s18, 0
    %p248 = por %p246, %p247
    %p249 = scmp.ne.s32.totalorder %s241, %s243
    %p250 = scmp.eq.s32.totalorder %s23, 1
    %p251 = por %p249, %p250
    %p252 = scmp.ne.s32.totalorder %s243, %s244
    %p253 = scmp.eq.s32.totalorder %s23, 0
    %p254 = por %p252, %p253
    %p255 = scmp.ne.s32.totalorder %s243, %s244
    %p256 = scmp.eq.s32.totalorder %s24, 1
    %p257 = por %p255, %p256
    %p259 = scmp.ne.s32.totalorder %s244, %s258
    %p260 = scmp.eq.s32.totalorder %s24, 0
    %p261 = por %p259, %p260
    %s263 = sadd.s32 %s262, 1
    %p266 = scmp.eq.s32.totalorder %s18, 1
    %p267 = scmp.ne.s32.totalorder %s262, %s264
    %p268 = scmp.eq.s32.totalorder %s18, 0
    %p269 = por %p267, %p268
    %p270 = scmp.ne.s32.totalorder %s262, %s264
    %p271 = scmp.eq.s32.totalorder %s23, 1
    %p272 = por %p270, %p271
    %p273 = scmp.ne.s32.totalorder %s264, %s265
    %p274 = scmp.eq.s32.totalorder %s23, 0
    %p275 = por %p273, %p274
    %p276 = scmp.ne.s32.totalorder %s264, %s265
    %p277 = scmp.eq.s32.totalorder %s24, 1
    %p278 = por %p276, %p277
    %p280 = scmp.ne.s32.totalorder %s265, %s279
    %p281 = scmp.eq.s32.totalorder %s24, 0
    %p282 = por %p280, %p281
    %s283 = ssub.s32 %s18, %s25
    %p284 = scmp.eq.s32.totalorder %s283, 0
    %s286 = sadd.s32 %s285, 1
    %s287 = scalar_select %p284, %s285, %s286
    %p290 = pneg %p284
    %p291 = scmp.eq.s32.totalorder %s18, 1
    %p292 = por %p290, %p291
    %p293 = scmp.ne.s32.totalorder %s285, %s288
    %p294 = scmp.eq.s32.totalorder %s18, 0
    %p295 = por %p293, %p294
    %p296 = scmp.ne.s32.totalorder %s285, %s288
    %p297 = scmp.eq.s32.totalorder %s23, 1
    %p298 = por %p296, %p297
    %p299 = scmp.ne.s32.totalorder %s288, %s289
    %p300 = scmp.eq.s32.totalorder %s23, 0
    %p301 = por %p299, %p300
    %p302 = scmp.ne.s32.totalorder %s288, %s289
    %p303 = scmp.eq.s32.totalorder %s24, 1
    %p304 = por %p302, %p303
    %p306 = scmp.ne.s32.totalorder %s289, %s305
    %p307 = scmp.eq.s32.totalorder %s24, 0
    %p308 = por %p306, %p307
    %p309 = scmp.le.s32.totalorder 1, %s18
    %p310 = scmp.lt.s32.totalorder %s18, 3
    %p311 = pnand %p309, %p310
    %p312 = pneg %p311
    // Predicated region
    $region9: #{bigram_lm_forward.5} parent=5 // pred_check
      _
    $region10: #{bigram_lm_forward.5} parent=5 // pred_check_branch
      %314 = sbr.rel (%p311) target = $region12
    $region11: #{bigram_lm_forward.5} parent=5 // pred_region
      %s315 = ssub.s32 %s18, 1
      // Predicated region
      $region13: #{bigram_lm_forward.5} parent=11 // pred_check
        %p316 = pneg %p65
      $region14: #{bigram_lm_forward.5} parent=11 // pred_check_branch
        %318 = sbr.rel (%p316) target = $region16
      $region15: #{bigram_lm_forward.5} parent=11 // pred_region
        _
      $region16: #{bigram_lm_forward.5} parent=11 // pred_fallthru
        _
      // Predicated region
      $region17: #{bigram_lm_forward.5} parent=11 // pred_check
        %p319 = pneg %p86
      $region18: #{bigram_lm_forward.5} parent=11 // pred_check_branch
        %321 = sbr.rel (%p319) target = $region20
      $region19: #{bigram_lm_forward.5} parent=11 // pred_region
        _
      $region20: #{bigram_lm_forward.5} parent=11 // pred_fallthru
        _
      // Predicated region
      $region21: #{bigram_lm_forward.5} parent=11 // pred_check
        %p322 = pneg %p107
      $region22: #{bigram_lm_forward.5} parent=11 // pred_check_branch
        %324 = sbr.rel (%p322) target = $region24
      $region23: #{bigram_lm_forward.5} parent=11 // pred_region
        _
      $region24: #{bigram_lm_forward.5} parent=11 // pred_fallthru
        _
      // Predicated region
      $region25: #{bigram_lm_forward.5} parent=11 // pred_check
        %p325 = pneg %p128
      $region26: #{bigram_lm_forward.5} parent=11 // pred_check_branch
        %327 = sbr.rel (%p325) target = $region28
      $region27: #{bigram_lm_forward.5} parent=11 // pred_region
        _
      $region28: #{bigram_lm_forward.5} parent=11 // pred_fallthru
        _
      // Predicated region
      $region29: #{bigram_lm_forward.5} parent=11 // pred_check
        %p328 = pneg %p149
      $region30: #{bigram_lm_forward.5} parent=11 // pred_check_branch
        %330 = sbr.rel (%p328) target = $region32
      $region31: #{bigram_lm_forward.5} parent=11 // pred_region
        _
      $region32: #{bigram_lm_forward.5} parent=11 // pred_fallthru
        _
      // Predicated region
      $region33: #{bigram_lm_forward.5} parent=11 // pred_check
        %p331 = pneg %p170
      $region34: #{bigram_lm_forward.5} parent=11 // pred_check_branch
        %333 = sbr.rel (%p331) target = $region36
      $region35: #{bigram_lm_forward.5} parent=11 // pred_region
        _
      $region36: #{bigram_lm_forward.5} parent=11 // pred_fallthru
        _
      // Predicated region
      $region37: #{bigram_lm_forward.5} parent=11 // pred_check
        %p334 = pneg %p191
      $region38: #{bigram_lm_forward.5} parent=11 // pred_check_branch
        %336 = sbr.rel (%p334) target = $region40
      $region39: #{bigram_lm_forward.5} parent=11 // pred_region
        _
      $region40: #{bigram_lm_forward.5} parent=11 // pred_fallthru
        _
      // Predicated region
      $region41: #{bigram_lm_forward.5} parent=11 // pred_check
        %p337 = pneg %p212
      $region42: #{bigram_lm_forward.5} parent=11 // pred_check_branch
        %339 = sbr.rel (%p337) target = $region44
      $region43: #{bigram_lm_forward.5} parent=11 // pred_region
        _
      $region44: #{bigram_lm_forward.5} parent=11 // pred_fallthru
        _
      // Predicated region
      $region45: #{bigram_lm_forward.5} parent=11 // pred_check
        %p340 = pneg %p233
      $region46: #{bigram_lm_forward.5} parent=11 // pred_check_branch
        %342 = sbr.rel (%p340) target = $region48
      $region47: #{bigram_lm_forward.5} parent=11 // pred_region
        _
      $region48: #{bigram_lm_forward.5} parent=11 // pred_fallthru
        _
      // Predicated region
      $region49: #{bigram_lm_forward.5} parent=11 // pred_check
        %p343 = pneg %p254
      $region50: #{bigram_lm_forward.5} parent=11 // pred_check_branch
        %345 = sbr.rel (%p343) target = $region52
      $region51: #{bigram_lm_forward.5} parent=11 // pred_region
        _
      $region52: #{bigram_lm_forward.5} parent=11 // pred_fallthru
        _
      // Predicated region
      $region53: #{bigram_lm_forward.5} parent=11 // pred_check
        %p346 = pneg %p275
      $region54: #{bigram_lm_forward.5} parent=11 // pred_check_branch
        %348 = sbr.rel (%p346) target = $region56
      $region55: #{bigram_lm_forward.5} parent=11 // pred_region
        _
      $region56: #{bigram_lm_forward.5} parent=11 // pred_fallthru
        _
    $region12: #{bigram_lm_forward.5} parent=5 // pred_fallthru
      _
    %p349 = scmp.lt.s32.totalorder %s18, 2
    // Predicated region
    $region57: #{bigram_lm_forward.5} parent=5 // pred_check
      %p350 = pneg %p349
    $region58: #{bigram_lm_forward.5} parent=5 // pred_check_branch
      %352 = sbr.rel (%p350) target = $region60
    $region59: #{bigram_lm_forward.5} parent=5 // pred_region
      // Predicated region
      $region61: #{bigram_lm_forward.5} parent=59 // pred_check
        %p353 = pneg %p38
      $region62: #{bigram_lm_forward.5} parent=59 // pred_check_branch
        %355 = sbr.rel (%p353) target = $region64
      $region63: #{bigram_lm_forward.5} parent=59 // pred_region
        %s356 = smul.u32 2, %s18
        %p357 = scmp.lt.s32.totalorder %s356, 3
        %s358 = scalar_select %p357, %s356, 3
        %s359 = smul.addr %s358, 8
        %s360 = smul.addr %s359, 8
        %s361 = scalar_lea.vmem %s0, %s360
        %s362 = smul.u32 2, %s18
      $region64: #{bigram_lm_forward.5} parent=59 // pred_fallthru
        _
    $region60: #{bigram_lm_forward.5} parent=5 // pred_fallthru
      _
    %p363 = scmp.le.s32.totalorder 1, %s18
    %p364 = scmp.lt.s32.totalorder %s18, 3
    %p365 = pnand %p363, %p364
    %p366 = pneg %p365
    // Predicated region
    $region65: #{bigram_lm_forward.5} parent=5 // pred_check
      _
    $region66: #{bigram_lm_forward.5} parent=5 // pred_check_branch
      %368 = sbr.rel (%p365) target = $region68
    $region67: #{bigram_lm_forward.5} parent=5 // pred_region
      %s369 = ssub.s32 %s18, 1
      %s370 = smul.u32 2, %s23
      %p371 = scmp.lt.s32.totalorder %s370, 3
      %s372 = scalar_select %p371, %s370, 3
      %s373 = smul.addr %s372, 8
      %s374 = smul.addr %s373, 8
      %s375 = scalar_lea.vmem %s0, %s374
      %p376 = pneg %p44
      %p377 = pneg %p41
      %p378 = pneg %p65
      %p379 = pneg %p62
      %p380 = pneg %p86
      %p381 = pneg %p83
      %p382 = pneg %p107
      %p383 = pneg %p104
      %p384 = pneg %p128
      %p385 = pneg %p125
      %p386 = pneg %p149
      %p387 = pneg %p146
      %p388 = pneg %p170
      %p389 = pneg %p167
      %p390 = pneg %p191
      %p391 = pneg %p188
      %p392 = pneg %p212
      %p393 = pneg %p209
      %p394 = pneg %p233
      %p395 = pneg %p230
      %p396 = pneg %p254
      %p397 = pneg %p251
      %p398 = pneg %p275
      %p399 = pneg %p272
      %p400 = pneg %p301
      %p401 = pneg %p298
      %s402 = smul.u32 2, %s23
      %p403 = scmp.lt.s32.totalorder %s402, 3
      %s404 = scalar_select %p403, %s402, 3
      %s405 = smul.addr %s404, 8
      %s406 = smul.addr %s405, 8
      %s407 = scalar_lea.vmem %s12, %s406
      %s408 = smul.u32 2, %s23
      %p409 = scmp.lt.s32.totalorder %s408, 3
      %s410 = scalar_select %p409, %s408, 3
      %s411 = smul.addr %s410, 8
      %s412 = smul.addr %s411, 8
      %s413 = scalar_lea.vmem %s0, %s412
      %s414 = smul.u32 2, %s23
      %s415 = smul.u32 2, %s23
      %p416 = scmp.lt.s32.totalorder %s415, 3
      %s417 = scalar_select %p416, %s415, 3
      %s418 = smul.addr %s417, 8
      %s419 = smul.addr %s418, 8
      %s420 = scalar_lea.vmem %s12, %s419
      %s421 = smul.u32 2, %s23
      %v422 = vld [vmem:[%s413] sm:$0xff]
      %v423 = vld [vmem:[%s413 + $0x8] sm:$0xff]
      %v424 = vld [vmem:[%s413 + $0x10] sm:$0xff]
      %v425 = vld [vmem:[%s413 + $0x18] sm:$0xff]
      %v426 = vld [vmem:[%s413 + $0x20] sm:$0xff]
      %v427 = vld [vmem:[%s413 + $0x28] sm:$0xff]
      %v428 = vld [vmem:[%s413 + $0x30] sm:$0xff]
      %v429 = vld [vmem:[%s413 + $0x38] sm:$0xff]
      %v430 = vld [vmem:[%s413 + $0x40] sm:$0xff]
      %v431 = vld [vmem:[%s413 + $0x48] sm:$0xff]
      %v432 = vld [vmem:[%s413 + $0x50] sm:$0xff]
      %v433 = vld [vmem:[%s413 + $0x58] sm:$0xff]
      %v434 = vld [vmem:[%s413 + $0x60] sm:$0xff]
      %v435 = vld [vmem:[%s413 + $0x68] sm:$0xff]
      %v436 = vld [vmem:[%s413 + $0x70] sm:$0xff]
      %v437 = vld [vmem:[%s413 + $0x78] sm:$0xff]
      %v438 = vld [vmem:[%s4] sm:$0x1]
      %v439 = vld [vmem:[%s5] sm:$0x1]
      %vm440 = vcmask 523264
      %v441 = vsel %vm440, %v422, 0.0
      %442 = vadd.xlane.f32.xlu0 %v441
      %v443 = vpop.xlane.xlu0 %442
      %v444 = vsel %vm440, %v423, 0.0
      %445 = vadd.xlane.f32.xlu0 %v444
      %v446 = vpop.xlane.xlu0 %445
      %v447 = vsel %vm440, %v424, 0.0
      %448 = vadd.xlane.f32.xlu0 %v447
      %v449 = vpop.xlane.xlu0 %448
      %v450 = vsel %vm440, %v425, 0.0
      %451 = vadd.xlane.f32.xlu0 %v450
      %v452 = vpop.xlane.xlu0 %451
      %v453 = vsel %vm440, %v426, 0.0
      %454 = vadd.xlane.f32.xlu0 %v453
      %v455 = vpop.xlane.xlu0 %454
      %v456 = vsel %vm440, %v427, 0.0
      %457 = vadd.xlane.f32.xlu0 %v456
      %v458 = vpop.xlane.xlu0 %457
      %v459 = vsel %vm440, %v428, 0.0
      %460 = vadd.xlane.f32.xlu0 %v459
      %v461 = vpop.xlane.xlu0 %460
      %v462 = vsel %vm440, %v429, 0.0
      %463 = vadd.xlane.f32.xlu0 %v462
      %v464 = vpop.xlane.xlu0 %463
      %v465 = vsel %vm440, %v430, 0.0
      %466 = vadd.xlane.f32.xlu0 %v465
      %v467 = vpop.xlane.xlu0 %466
      %v468 = vsel %vm440, %v431, 0.0
      %469 = vadd.xlane.f32.xlu0 %v468
      %v470 = vpop.xlane.xlu0 %469
      %v471 = vsel %vm440, %v432, 0.0
      %472 = vadd.xlane.f32.xlu0 %v471
      %v473 = vpop.xlane.xlu0 %472
      %v474 = vsel %vm440, %v433, 0.0
      %475 = vadd.xlane.f32.xlu0 %v474
      %v476 = vpop.xlane.xlu0 %475
      %v477 = vsel %vm440, %v434, 0.0
      %478 = vadd.xlane.f32.xlu0 %v477
      %v479 = vpop.xlane.xlu0 %478
      %v480 = vsel %vm440, %v435, 0.0
      %481 = vadd.xlane.f32.xlu0 %v480
      %v482 = vpop.xlane.xlu0 %481
      %v483 = vsel %vm440, %v436, 0.0
      %484 = vadd.xlane.f32.xlu0 %v483
      %v485 = vpop.xlane.xlu0 %484
      %v486 = vsel %vm440, %v437, 0.0
      %487 = vadd.xlane.f32.xlu0 %v486
      %v488 = vpop.xlane.xlu0 %487
      %v489 = vrcp.pop 64.0
      %v490 = vmul.f32 %v443, %v489
      %v491 = vmul.f32 %v446, %v489
      %v492 = vmul.f32 %v449, %v489
      %v493 = vmul.f32 %v452, %v489
      %v494 = vmul.f32 %v455, %v489
      %v495 = vmul.f32 %v458, %v489
      %v496 = vmul.f32 %v461, %v489
      %v497 = vmul.f32 %v464, %v489
      %v498 = vmul.f32 %v467, %v489
      %v499 = vmul.f32 %v470, %v489
      %v500 = vmul.f32 %v473, %v489
      %v501 = vmul.f32 %v476, %v489
      %v502 = vmul.f32 %v479, %v489
      %v503 = vmul.f32 %v482, %v489
      %v504 = vmul.f32 %v485, %v489
      %v505 = vmul.f32 %v488, %v489
      %v506 = vsub.f32 %v422, %v490
      %v507 = vsub.f32 %v423, %v491
      %v508 = vsub.f32 %v424, %v492
      %v509 = vsub.f32 %v425, %v493
      %v510 = vsub.f32 %v426, %v494
      %v511 = vsub.f32 %v427, %v495
      %v512 = vsub.f32 %v428, %v496
      %v513 = vsub.f32 %v429, %v497
      %v514 = vsub.f32 %v430, %v498
      %v515 = vsub.f32 %v431, %v499
      %v516 = vsub.f32 %v432, %v500
      %v517 = vsub.f32 %v433, %v501
      %v518 = vsub.f32 %v434, %v502
      %v519 = vsub.f32 %v435, %v503
      %v520 = vsub.f32 %v436, %v504
      %v521 = vsub.f32 %v437, %v505
      %v522 = vmul.f32 %v506, %v506
      %v523 = vmul.f32 %v507, %v507
      %v524 = vmul.f32 %v508, %v508
      %v525 = vmul.f32 %v509, %v509
      %v526 = vmul.f32 %v510, %v510
      %v527 = vmul.f32 %v511, %v511
      %v528 = vmul.f32 %v512, %v512
      %v529 = vmul.f32 %v513, %v513
      %v530 = vmul.f32 %v514, %v514
      %v531 = vmul.f32 %v515, %v515
      %v532 = vmul.f32 %v516, %v516
      %v533 = vmul.f32 %v517, %v517
      %v534 = vmul.f32 %v518, %v518
      %v535 = vmul.f32 %v519, %v519
      %v536 = vmul.f32 %v520, %v520
      %v537 = vmul.f32 %v521, %v521
      %v538 = vsel %vm440, %v522, 0.0
      %539 = vadd.xlane.f32.xlu0 %v538
      %v540 = vpop.xlane.xlu0 %539
      %v541 = vsel %vm440, %v523, 0.0
      %542 = vadd.xlane.f32.xlu0 %v541
      %v543 = vpop.xlane.xlu0 %542
      %v544 = vsel %vm440, %v524, 0.0
      %545 = vadd.xlane.f32.xlu0 %v544
      %v546 = vpop.xlane.xlu0 %545
      %v547 = vsel %vm440, %v525, 0.0
      %548 = vadd.xlane.f32.xlu0 %v547
      %v549 = vpop.xlane.xlu0 %548
      %v550 = vsel %vm440, %v526, 0.0
      %551 = vadd.xlane.f32.xlu0 %v550
      %v552 = vpop.xlane.xlu0 %551
      %v553 = vsel %vm440, %v527, 0.0
      %554 = vadd.xlane.f32.xlu0 %v553
      %v555 = vpop.xlane.xlu0 %554
      %v556 = vsel %vm440, %v528, 0.0
      %557 = vadd.xlane.f32.xlu0 %v556
      %v558 = vpop.xlane.xlu0 %557
      %v559 = vsel %vm440, %v529, 0.0
      %560 = vadd.xlane.f32.xlu0 %v559
      %v561 = vpop.xlane.xlu0 %560
      %v562 = vsel %vm440, %v530, 0.0
      %563 = vadd.xlane.f32.xlu0 %v562
      %v564 = vpop.xlane.xlu0 %563
      %v565 = vsel %vm440, %v531, 0.0
      %566 = vadd.xlane.f32.xlu0 %v565
      %v567 = vpop.xlane.xlu0 %566
      %v568 = vsel %vm440, %v532, 0.0
      %569 = vadd.xlane.f32.xlu0 %v568
      %v570 = vpop.xlane.xlu0 %569
      %v571 = vsel %vm440, %v533, 0.0
      %572 = vadd.xlane.f32.xlu0 %v571
      %v573 = vpop.xlane.xlu0 %572
      %v574 = vsel %vm440, %v534, 0.0
      %575 = vadd.xlane.f32.xlu0 %v574
      %v576 = vpop.xlane.xlu0 %575
      %v577 = vsel %vm440, %v535, 0.0
      %578 = vadd.xlane.f32.xlu0 %v577
      %v579 = vpop.xlane.xlu0 %578
      %v580 = vsel %vm440, %v536, 0.0
      %581 = vadd.xlane.f32.xlu0 %v580
      %v582 = vpop.xlane.xlu0 %581
      %v583 = vsel %vm440, %v537, 0.0
      %584 = vadd.xlane.f32.xlu0 %v583
      %v585 = vpop.xlane.xlu0 %584
      %v586 = vmul.f32 %v540, %v489
      %v587 = vmul.f32 %v543, %v489
      %v588 = vmul.f32 %v546, %v489
      %v589 = vmul.f32 %v549, %v489
      %v590 = vmul.f32 %v552, %v489
      %v591 = vmul.f32 %v555, %v489
      %v592 = vmul.f32 %v558, %v489
      %v593 = vmul.f32 %v561, %v489
      %v594 = vmul.f32 %v564, %v489
      %v595 = vmul.f32 %v567, %v489
      %v596 = vmul.f32 %v570, %v489
      %v597 = vmul.f32 %v573, %v489
      %v598 = vmul.f32 %v576, %v489
      %v599 = vmul.f32 %v579, %v489
      %v600 = vmul.f32 %v582, %v489
      %v601 = vmul.f32 %v585, %v489
      %v602 = vadd.f32 %v586, 1e-05
      %v603 = vadd.f32 %v587, 1e-05
      %v604 = vadd.f32 %v588, 1e-05
      %v605 = vadd.f32 %v589, 1e-05
      %v606 = vadd.f32 %v590, 1e-05
      %v607 = vadd.f32 %v591, 1e-05
      %v608 = vadd.f32 %v592, 1e-05
      %v609 = vadd.f32 %v593, 1e-05
      %v610 = vadd.f32 %v594, 1e-05
      %v611 = vadd.f32 %v595, 1e-05
      %v612 = vadd.f32 %v596, 1e-05
      %v613 = vadd.f32 %v597, 1e-05
      %v614 = vadd.f32 %v598, 1e-05
      %v615 = vadd.f32 %v599, 1e-05
      %v616 = vadd.f32 %v600, 1e-05
      %v617 = vadd.f32 %v601, 1e-05
      %v618 = vrsqrt.pop %v602
      %v619 = vrsqrt.pop %v603
      %v620 = vrsqrt.pop %v604
      %v621 = vrsqrt.pop %v605
      %v622 = vrsqrt.pop %v606
      %v623 = vrsqrt.pop %v607
      %v624 = vrsqrt.pop %v608
      %v625 = vrsqrt.pop %v609
      %v626 = vrsqrt.pop %v610
      %v627 = vrsqrt.pop %v611
      %v628 = vrsqrt.pop %v612
      %v629 = vrsqrt.pop %v613
      %v630 = vrsqrt.pop %v614
      %v631 = vrsqrt.pop %v615
      %v632 = vrsqrt.pop %v616
      %v633 = vrsqrt.pop %v617
      %v634 = vmul.f32 %v506, %v618
      %v635 = vmul.f32 %v507, %v619
      %v636 = vmul.f32 %v508, %v620
      %v637 = vmul.f32 %v509, %v621
      %v638 = vmul.f32 %v510, %v622
      %v639 = vmul.f32 %v511, %v623
      %v640 = vmul.f32 %v512, %v624
      %v641 = vmul.f32 %v513, %v625
      %v642 = vmul.f32 %v514, %v626
      %v643 = vmul.f32 %v515, %v627
      %v644 = vmul.f32 %v516, %v628
      %v645 = vmul.f32 %v517, %v629
      %v646 = vmul.f32 %v518, %v630
      %v647 = vmul.f32 %v519, %v631
      %v648 = vmul.f32 %v520, %v632
      %v649 = vmul.f32 %v521, %v633
      %v651 = vlaneseq
      %v652 = vshrl.u32 %v651, 7
      %v653 = vsub.s32 0, %v652
      %v654 = vrot.slane %v438, %v653
      %v656 = vmul.f32 %v634, %v654
      %v657 = vmul.f32 %v635, %v654
      %v658 = vmul.f32 %v636, %v654
      %v659 = vmul.f32 %v637, %v654
      %v660 = vmul.f32 %v638, %v654
      %v661 = vmul.f32 %v639, %v654
      %v662 = vmul.f32 %v640, %v654
      %v663 = vmul.f32 %v641, %v654
      %v664 = vmul.f32 %v642, %v654
      %v665 = vmul.f32 %v643, %v654
      %v666 = vmul.f32 %v644, %v654
      %v667 = vmul.f32 %v645, %v654
      %v668 = vmul.f32 %v646, %v654
      %v669 = vmul.f32 %v647, %v654
      %v670 = vmul.f32 %v648, %v654
      %v671 = vmul.f32 %v649, %v654
      %v673 = vlaneseq
      %v674 = vshrl.u32 %v673, 7
      %v675 = vsub.s32 0, %v674
      %v676 = vrot.slane %v439, %v675
      %v678 = vadd.f32 %v656, %v676
      %v679 = vadd.f32 %v657, %v676
      %v680 = vadd.f32 %v658, %v676
      %v681 = vadd.f32 %v659, %v676
      %v682 = vadd.f32 %v660, %v676
      %v683 = vadd.f32 %v661, %v676
      %v684 = vadd.f32 %v662, %v676
      %v685 = vadd.f32 %v663, %v676
      %v686 = vadd.f32 %v664, %v676
      %v687 = vadd.f32 %v665, %v676
      %v688 = vadd.f32 %v666, %v676
      %v689 = vadd.f32 %v667, %v676
      %v690 = vadd.f32 %v668, %v676
      %v691 = vadd.f32 %v669, %v676
      %v692 = vadd.f32 %v670, %v676
      %v693 = vadd.f32 %v671, %v676
      %v694 = vld [vmem:[%s1] sm:$0xff]
      %v695 = vld [vmem:[%s1 + $0x8] sm:$0xff]
      %v696 = vld [vmem:[%s1 + $0x10] sm:$0xff]
      %v697 = vld [vmem:[%s1 + $0x18] sm:$0xff]
      %v698 = vld [vmem:[%s1 + $0x20] sm:$0xff]
      %v699 = vld [vmem:[%s1 + $0x28] sm:$0xff]
      %v700 = vld [vmem:[%s1 + $0x30] sm:$0xff]
      %v701 = vld [vmem:[%s1 + $0x38] sm:$0xff]
      %v702 = vld [vmem:[%s1 + $0x40] sm:$0xff]
      %v703 = vld [vmem:[%s1 + $0x48] sm:$0xff]
      %v704 = vld [vmem:[%s1 + $0x50] sm:$0xff]
      %v705 = vld [vmem:[%s1 + $0x58] sm:$0xff]
      %v706 = vld [vmem:[%s1 + $0x60] sm:$0xff]
      %v707 = vld [vmem:[%s1 + $0x68] sm:$0xff]
      %v708 = vld [vmem:[%s1 + $0x70] sm:$0xff]
      %v709 = vld [vmem:[%s1 + $0x78] sm:$0xff]
      %v711 = vsel %vm440, %v678, 0
      %v714 = vsel %vm440, %v679, 0
      %v717 = vsel %vm440, %v680, 0
      %v720 = vsel %vm440, %v681, 0
      %v723 = vsel %vm440, %v682, 0
      %v726 = vsel %vm440, %v683, 0
      %v729 = vsel %vm440, %v684, 0
      %v732 = vsel %vm440, %v685, 0
      %v735 = vsel %vm440, %v686, 0
      %v738 = vsel %vm440, %v687, 0
      %v741 = vsel %vm440, %v688, 0
      %v744 = vsel %vm440, %v689, 0
      %v747 = vsel %vm440, %v690, 0
      %v750 = vsel %vm440, %v691, 0
      %v753 = vsel %vm440, %v692, 0
      %v756 = vsel %vm440, %v693, 0
      %758 = vmatprep.subr.mxu0 %v695
      %759 = vmatpush1.msra.mxu0 %v694
      %760 = vmatprep.subr.mxu0 %v697
      %761 = vmatpush1.msra.mxu0 %v696
      %762 = vmatprep.subr.mxu0 %v699
      %763 = vmatpush1.msra.mxu0 %v698
      %764 = vmatprep.subr.mxu0 %v701
      %765 = vmatpush1.msra.mxu0 %v700
      %766 = vmatprep.subr.mxu0 %v703
      %767 = vmatpush1.msra.mxu0 %v702
      %768 = vmatprep.subr.mxu0 %v705
      %769 = vmatpush1.msra.mxu0 %v704
      %770 = vmatprep.subr.mxu0 %v707
      %771 = vmatpush1.msra.mxu0 %v706
      %772 = vmatprep.subr.mxu0 %v709
      %773 = vmatpush1.msra.mxu0 %v708
      %774 = vmatprep.subr.mxu0 0.0
      %775 = vmatpush1.msra.mxu0 0.0
      %776 = vmatprep.subr.mxu0 0.0
      %777 = vmatpush1.msra.mxu0 0.0
      %778 = vmatprep.subr.mxu0 0.0
      %779 = vmatpush1.msra.mxu0 0.0
      %780 = vmatprep.subr.mxu0 0.0
      %781 = vmatpush1.msra.mxu0 0.0
      %782 = vmatprep.subr.mxu0 0.0
      %783 = vmatpush1.msra.mxu0 0.0
      %784 = vmatprep.subr.mxu0 0.0
      %785 = vmatpush1.msra.mxu0 0.0
      %786 = vmatprep.subr.mxu0 0.0
      %787 = vmatpush1.msra.mxu0 0.0
      %788 = vmatprep.subr.mxu0 0.0
      %789 = vmatpush1.msra.mxu0 0.0
      %790 = vmatprep.subr.mxu0 0.0
      %791 = vmatpush1.msra.mxu0 0.0
      %792 = vmatprep.subr.mxu0 0.0
      %793 = vmatpush1.msra.mxu0 0.0
      %794 = vmatprep.subr.mxu0 0.0
      %795 = vmatpush1.msra.mxu0 0.0
      %796 = vmatprep.subr.mxu0 0.0
      %797 = vmatpush1.msra.mxu0 0.0
      %798 = vmatprep.subr.mxu0 0.0
      %799 = vmatpush1.msra.mxu0 0.0
      %800 = vmatprep.subr.mxu0 0.0
      %801 = vmatpush1.msra.mxu0 0.0
      %802 = vmatprep.subr.mxu0 0.0
      %803 = vmatpush1.msra.mxu0 0.0
      %804 = vmatprep.subr.mxu0 0.0
      %805 = vmatpush1.msra.mxu0 0.0
      %806 = vmatprep.subr.mxu0 0.0
      %807 = vmatpush1.msra.mxu0 0.0
      %808 = vmatprep.subr.mxu0 0.0
      %809 = vmatpush1.msra.mxu0 0.0
      %810 = vmatprep.subr.mxu0 0.0
      %811 = vmatpush1.msra.mxu0 0.0
      %812 = vmatprep.subr.mxu0 0.0
      %813 = vmatpush1.msra.mxu0 0.0
      %814 = vmatprep.subr.mxu0 0.0
      %815 = vmatpush1.msra.mxu0 0.0
      %816 = vmatprep.subr.mxu0 0.0
      %817 = vmatpush1.msra.mxu0 0.0
      %818 = vmatprep.subr.mxu0 0.0
      %819 = vmatpush1.msra.mxu0 0.0
      %820 = vmatprep.subr.mxu0 0.0
      %821 = vmatpush1.msra.mxu0 0.0
      %822 = vmatprep.mubr.f32.mxu0 0.0
      %823 = vmatmul.mubr.f32.gmra.mrb[0].mxu0 %v711
      %v824 = vpop.f32.mrb[0].mxu0
      %v825 = vadd.f32 0.0, %v824
      %v826 = vpop.f32.mrb[0].mxu0
      %v827 = vadd.f32 0.0, %v826
      %828 = vmatprep.mubr.f32.mxu0 0.0
      %829 = vmatmul.mubr.f32.gmra.mrb[0].mxu0 %v714
      %v830 = vpop.f32.mrb[0].mxu0
      %v831 = vadd.f32 0.0, %v830
      %v832 = vpop.f32.mrb[0].mxu0
      %v833 = vadd.f32 0.0, %v832
      %834 = vmatprep.mubr.f32.mxu0 0.0
      %835 = vmatmul.mubr.f32.gmra.mrb[0].mxu0 %v717
      %v836 = vpop.f32.mrb[0].mxu0
      %v837 = vadd.f32 0.0, %v836
      %v838 = vpop.f32.mrb[0].mxu0
      %v839 = vadd.f32 0.0, %v838
      %840 = vmatprep.mubr.f32.mxu0 0.0
      %841 = vmatmul.mubr.f32.gmra.mrb[0].mxu0 %v720
      %v842 = vpop.f32.mrb[0].mxu0
      %v843 = vadd.f32 0.0, %v842
      %v844 = vpop.f32.mrb[0].mxu0
      %v845 = vadd.f32 0.0, %v844
      %846 = vmatprep.mubr.f32.mxu0 0.0
      %847 = vmatmul.mubr.f32.gmra.mrb[0].mxu0 %v723
      %v848 = vpop.f32.mrb[0].mxu0
      %v849 = vadd.f32 0.0, %v848
      %v850 = vpop.f32.mrb[0].mxu0
      %v851 = vadd.f32 0.0, %v850
      %852 = vmatprep.mubr.f32.mxu0 0.0
      %853 = vmatmul.mubr.f32.gmra.mrb[0].mxu0 %v726
      %v854 = vpop.f32.mrb[0].mxu0
      %v855 = vadd.f32 0.0, %v854
      %v856 = vpop.f32.mrb[0].mxu0
      %v857 = vadd.f32 0.0, %v856
      %858 = vmatprep.mubr.f32.mxu0 0.0
      %859 = vmatmul.mubr.f32.gmra.mrb[0].mxu0 %v729
      %v860 = vpop.f32.mrb[0].mxu0
      %v861 = vadd.f32 0.0, %v860
      %v862 = vpop.f32.mrb[0].mxu0
      %v863 = vadd.f32 0.0, %v862
      %864 = vmatprep.mubr.f32.mxu0 0.0
      %865 = vmatmul.mubr.f32.gmra.mrb[0].mxu0 %v732
      %v866 = vpop.f32.mrb[0].mxu0
      %v867 = vadd.f32 0.0, %v866
      %v868 = vpop.f32.mrb[0].mxu0
      %v869 = vadd.f32 0.0, %v868
      %870 = vmatprep.mubr.f32.mxu0 0.0
      %871 = vmatmul.mubr.f32.gmra.mrb[0].mxu0 %v735
      %v872 = vpop.f32.mrb[0].mxu0
      %v873 = vadd.f32 0.0, %v872
      %v874 = vpop.f32.mrb[0].mxu0
      %v875 = vadd.f32 0.0, %v874
      %876 = vmatprep.mubr.f32.mxu0 0.0
      %877 = vmatmul.mubr.f32.gmra.mrb[0].mxu0 %v738
      %v878 = vpop.f32.mrb[0].mxu0
      %v879 = vadd.f32 0.0, %v878
      %v880 = vpop.f32.mrb[0].mxu0
      %v881 = vadd.f32 0.0, %v880
      %882 = vmatprep.mubr.f32.mxu0 0.0
      %883 = vmatmul.mubr.f32.gmra.mrb[0].mxu0 %v741
      %v884 = vpop.f32.mrb[0].mxu0
      %v885 = vadd.f32 0.0, %v884
      %v886 = vpop.f32.mrb[0].mxu0
      %v887 = vadd.f32 0.0, %v886
      %888 = vmatprep.mubr.f32.mxu0 0.0
      %889 = vmatmul.mubr.f32.gmra.mrb[0].mxu0 %v744
      %v890 = vpop.f32.mrb[0].mxu0
      %v891 = vadd.f32 0.0, %v890
      %v892 = vpop.f32.mrb[0].mxu0
      %v893 = vadd.f32 0.0, %v892
      %894 = vmatprep.mubr.f32.mxu0 0.0
      %895 = vmatmul.mubr.f32.gmra.mrb[0].mxu0 %v747
      %v896 = vpop.f32.mrb[0].mxu0
      %v897 = vadd.f32 0.0, %v896
      %v898 = vpop.f32.mrb[0].mxu0
      %v899 = vadd.f32 0.0, %v898
      %900 = vmatprep.mubr.f32.mxu0 0.0
      %901 = vmatmul.mubr.f32.gmra.mrb[0].mxu0 %v750
      %v902 = vpop.f32.mrb[0].mxu0
      %v903 = vadd.f32 0.0, %v902
      %v904 = vpop.f32.mrb[0].mxu0
      %v905 = vadd.f32 0.0, %v904
      %906 = vmatprep.mubr.f32.mxu0 0.0
      %907 = vmatmul.mubr.f32.gmra.mrb[0].mxu0 %v753
      %v908 = vpop.f32.mrb[0].mxu0
      %v909 = vadd.f32 0.0, %v908
      %v910 = vpop.f32.mrb[0].mxu0
      %v911 = vadd.f32 0.0, %v910
      %912 = vmatprep.mubr.f32.mxu0 0.0
      %913 = vmatmul.mubr.f32.gmra.mrb[0].mxu0 %v756
      %v914 = vpop.f32.mrb[0].mxu0
      %v915 = vadd.f32 0.0, %v914
      %v916 = vpop.f32.mrb[0].mxu0
      %v917 = vadd.f32 0.0, %v916
      %918 = vdwg.mxu0
      %v919 = vmul.f32 %v825, 0.125
      %v920 = vmul.f32 %v831, 0.125
      %v921 = vmul.f32 %v837, 0.125
      %v922 = vmul.f32 %v843, 0.125
      %v923 = vmul.f32 %v849, 0.125
      %v924 = vmul.f32 %v855, 0.125
      %v925 = vmul.f32 %v861, 0.125
      %v926 = vmul.f32 %v867, 0.125
      %v927 = vmul.f32 %v873, 0.125
      %v928 = vmul.f32 %v879, 0.125
      %v929 = vmul.f32 %v885, 0.125
      %v930 = vmul.f32 %v891, 0.125
      %v931 = vmul.f32 %v897, 0.125
      %v932 = vmul.f32 %v903, 0.125
      %v933 = vmul.f32 %v909, 0.125
      %v934 = vmul.f32 %v915, 0.125
      %v935 = vlaneseq
      %v936 = vshrl.u32 %v935, 7
      %v937 = vlaneseq
      %v938 = vand.u32 %v937, 127
      %v939 = vmul.u32 %v936, 8
      %vm940 = vcmp.ge.s32.totalorder %v938, %v939
      %v941 = vadd.s32 %v936, 1
      %v942 = vmul.u32 %v941, 8
      %vm943 = vcmp.lt.s32.totalorder %v938, %v942
      %vm944 = vmand %vm940, %vm943
      %v945 = vsel %vm944, 1.0, 0.0
      %v947 = vcombine.high %v945, %v945
      %v949 = vunpack.c.l.s4 1966171168
      %v950 = vunpack.c.0.s8 %v949
      %v951 = vlaneseq
      %v952 = vshrl.u32 %v951, 7
      %v953 = vsub.s32 %v950, %v952
      %v954 = vrot.slane %v945, %v953
      %v956 = vunpack.c.l.s4 1966171168
      %v957 = vunpack.c.0.s8 %v956
      %v958 = vlaneseq
      %v959 = vshrl.u32 %v958, 7
      %v960 = vsub.s32 %v957, %v959
      %v961 = vrot.slane %v947, %v960
      %v962 = vcombine.high %v954, %v954
      %v963 = vcombine.high %v961, %v961
      %v965 = vunpack.c.l.s4 1966171168
      %v966 = vunpack.c.0.s8 %v965
      %v967 = vlaneseq
      %v968 = vshrl.u32 %v967, 7
      %v969 = vsub.s32 %v966, %v968
      %v970 = vrot.slane %v954, %v969
      %v972 = vunpack.c.l.s4 1966171168
      %v973 = vunpack.c.0.s8 %v972
      %v974 = vlaneseq
      %v975 = vshrl.u32 %v974, 7
      %v976 = vsub.s32 %v973, %v975
      %v977 = vrot.slane %v961, %v976
      %v979 = vunpack.c.l.s4 1966171168
      %v980 = vunpack.c.0.s8 %v979
      %v981 = vlaneseq
      %v982 = vshrl.u32 %v981, 7
      %v983 = vsub.s32 %v980, %v982
      %v984 = vrot.slane %v962, %v983
      %v986 = vunpack.c.l.s4 1966171168
      %v987 = vunpack.c.0.s8 %v986
      %v988 = vlaneseq
      %v989 = vshrl.u32 %v988, 7
      %v990 = vsub.s32 %v987, %v989
      %v991 = vrot.slane %v963, %v990
      %v992 = vcombine.high %v970, %v970
      %v993 = vcombine.high %v977, %v977
      %v994 = vcombine.high %v984, %v984
      %v995 = vcombine.high %v991, %v991
      %v996 = vadd.s32 %v936, 8
      %v997 = vadd.s32 %v936, 16
      %v998 = vadd.s32 %v936, 24
      %v999 = vadd.s32 %v936, 32
      %v1000 = vadd.s32 %v936, 40
      %v1001 = vadd.s32 %v936, 48
      %v1002 = vadd.s32 %v936, 56
      %vm1003 = vcmp.le.s32.totalorder %v938, %v936
      %vm1004 = vcmp.le.s32.totalorder %v938, %v996
      %vm1005 = vcmp.le.s32.totalorder %v938, %v997
      %vm1006 = vcmp.le.s32.totalorder %v938, %v998
      %vm1007 = vcmp.le.s32.totalorder %v938, %v999
      %vm1008 = vcmp.le.s32.totalorder %v938, %v1000
      %vm1009 = vcmp.le.s32.totalorder %v938, %v1001
      %vm1010 = vcmp.le.s32.totalorder %v938, %v1002
      %v1011 = vsel %vm1003, 0.0, -1e+30
      %v1012 = vsel %vm1004, 0.0, -1e+30
      %v1013 = vsel %vm1005, 0.0, -1e+30
      %v1014 = vsel %vm1006, 0.0, -1e+30
      %v1015 = vsel %vm1007, 0.0, -1e+30
      %v1016 = vsel %vm1008, 0.0, -1e+30
      %v1017 = vsel %vm1009, 0.0, -1e+30
      %v1018 = vsel %vm1010, 0.0, -1e+30
      %v1019 = vlaneseq
      %v1020 = vshrl.u32 %v1019, 7
      %v1021 = vsub.s32 0, %v1020
      %v1022 = vrot.slane %v970, %v1021
      %v1023 = vlaneseq
      %v1024 = vshrl.u32 %v1023, 7
      %v1025 = vsub.s32 0, %v1024
      %v1026 = vrot.slane %v984, %v1025
      %v1027 = vlaneseq
      %v1028 = vshrl.u32 %v1027, 7
      %v1029 = vsub.s32 0, %v1028
      %v1030 = vrot.slane %v992, %v1029
      %v1031 = vlaneseq
      %v1032 = vshrl.u32 %v1031, 7
      %v1033 = vsub.s32 0, %v1032
      %v1034 = vrot.slane %v994, %v1033
      %v1035 = vlaneseq
      %v1036 = vshrl.u32 %v1035, 7
      %v1037 = vsub.s32 0, %v1036
      %v1038 = vrot.slane %v977, %v1037
      %v1039 = vlaneseq
      %v1040 = vshrl.u32 %v1039, 7
      %v1041 = vsub.s32 0, %v1040
      %v1042 = vrot.slane %v991, %v1041
      %v1043 = vlaneseq
      %v1044 = vshrl.u32 %v1043, 7
      %v1045 = vsub.s32 0, %v1044
      %v1046 = vrot.slane %v993, %v1045
      %v1047 = vlaneseq
      %v1048 = vshrl.u32 %v1047, 7
      %v1049 = vsub.s32 0, %v1048
      %v1050 = vrot.slane %v995, %v1049
      %v1059 = vmul.f32 %v919, %v1022
      %v1060 = vmul.f32 %v920, %v1022
      %v1061 = vmul.f32 %v921, %v1022
      %v1062 = vmul.f32 %v922, %v1022
      %v1063 = vmul.f32 %v923, %v1022
      %v1064 = vmul.f32 %v924, %v1022
      %v1065 = vmul.f32 %v925, %v1022
      %v1066 = vmul.f32 %v926, %v1022
      %v1067 = vmul.f32 %v919, %v1026
      %v1068 = vmul.f32 %v920, %v1026
      %v1069 = vmul.f32 %v921, %v1026
      %v1070 = vmul.f32 %v922, %v1026
      %v1071 = vmul.f32 %v923, %v1026
      %v1072 = vmul.f32 %v924, %v1026
      %v1073 = vmul.f32 %v925, %v1026
      %v1074 = vmul.f32 %v926, %v1026
      %v1075 = vmul.f32 %v919, %v1030
      %v1076 = vmul.f32 %v920, %v1030
      %v1077 = vmul.f32 %v921, %v1030
      %v1078 = vmul.f32 %v922, %v1030
      %v1079 = vmul.f32 %v923, %v1030
      %v1080 = vmul.f32 %v924, %v1030
      %v1081 = vmul.f32 %v925, %v1030
      %v1082 = vmul.f32 %v926, %v1030
      %v1083 = vmul.f32 %v919, %v1034
      %v1084 = vmul.f32 %v920, %v1034
      %v1085 = vmul.f32 %v921, %v1034
      %v1086 = vmul.f32 %v922, %v1034
      %v1087 = vmul.f32 %v923, %v1034
      %v1088 = vmul.f32 %v924, %v1034
      %v1089 = vmul.f32 %v925, %v1034
      %v1090 = vmul.f32 %v926, %v1034
      %v1091 = vmul.f32 %v919, %v1038
      %v1092 = vmul.f32 %v920, %v1038
      %v1093 = vmul.f32 %v921, %v1038
      %v1094 = vmul.f32 %v922, %v1038
      %v1095 = vmul.f32 %v923, %v1038
      %v1096 = vmul.f32 %v924, %v1038
      %v1097 = vmul.f32 %v925, %v1038
      %v1098 = vmul.f32 %v926, %v1038
      %v1099 = vmul.f32 %v919, %v1042
      %v1100 = vmul.f32 %v920, %v1042
      %v1101 = vmul.f32 %v921, %v1042
      %v1102 = vmul.f32 %v922, %v1042
      %v1103 = vmul.f32 %v923, %v1042
      %v1104 = vmul.f32 %v924, %v1042
      %v1105 = vmul.f32 %v925, %v1042
      %v1106 = vmul.f32 %v926, %v1042
      %v1107 = vmul.f32 %v919, %v1046
      %v1108 = vmul.f32 %v920, %v1046
      %v1109 = vmul.f32 %v921, %v1046
      %v1110 = vmul.f32 %v922, %v1046
      %v1111 = vmul.f32 %v923, %v1046
      %v1112 = vmul.f32 %v924, %v1046
      %v1113 = vmul.f32 %v925, %v1046
      %v1114 = vmul.f32 %v926, %v1046
      %v1115 = vmul.f32 %v919, %v1050
      %v1116 = vmul.f32 %v920, %v1050
      %v1117 = vmul.f32 %v921, %v1050
      %v1118 = vmul.f32 %v922, %v1050
      %v1119 = vmul.f32 %v923, %v1050
      %v1120 = vmul.f32 %v924, %v1050
      %v1121 = vmul.f32 %v925, %v1050
      %v1122 = vmul.f32 %v926, %v1050
      %1123 = vrot.lane.b32.xlu0 %v1022, 64
      %v1124 = vpop.permute.xlu0 %1123
      %1125 = vrot.lane.b32.xlu0 %v1026, 64
      %v1126 = vpop.permute.xlu0 %1125
      %1127 = vrot.lane.b32.xlu0 %v1030, 64
      %v1128 = vpop.permute.xlu0 %1127
      %1129 = vrot.lane.b32.xlu0 %v1034, 64
      %v1130 = vpop.permute.xlu0 %1129
      %1131 = vrot.lane.b32.xlu0 %v1038, 64
      %v1132 = vpop.permute.xlu0 %1131
      %1133 = vrot.lane.b32.xlu0 %v1042, 64
      %v1134 = vpop.permute.xlu0 %1133
      %1135 = vrot.lane.b32.xlu0 %v1046, 64
      %v1136 = vpop.permute.xlu0 %1135
      %1137 = vrot.lane.b32.xlu0 %v1050, 64
      %v1138 = vpop.permute.xlu0 %1137
      %v1147 = vmul.f32 %v825, %v1124
      %v1148 = vmul.f32 %v831, %v1124
      %v1149 = vmul.f32 %v837, %v1124
      %v1150 = vmul.f32 %v843, %v1124
      %v1151 = vmul.f32 %v849, %v1124
      %v1152 = vmul.f32 %v855, %v1124
      %v1153 = vmul.f32 %v861, %v1124
      %v1154 = vmul.f32 %v867, %v1124
      %v1155 = vmul.f32 %v825, %v1126
      %v1156 = vmul.f32 %v831, %v1126
      %v1157 = vmul.f32 %v837, %v1126
      %v1158 = vmul.f32 %v843, %v1126
      %v1159 = vmul.f32 %v849, %v1126
      %v1160 = vmul.f32 %v855, %v1126
      %v1161 = vmul.f32 %v861, %v1126
      %v1162 = vmul.f32 %v867, %v1126
      %v1163 = vmul.f32 %v825, %v1128
      %v1164 = vmul.f32 %v831, %v1128
      %v1165 = vmul.f32 %v837, %v1128
      %v1166 = vmul.f32 %v843, %v1128
      %v1167 = vmul.f32 %v849, %v1128
      %v1168 = vmul.f32 %v855, %v1128
      %v1169 = vmul.f32 %v861, %v1128
      %v1170 = vmul.f32 %v867, %v1128
      %v1171 = vmul.f32 %v825, %v1130
      %v1172 = vmul.f32 %v831, %v1130
      %v1173 = vmul.f32 %v837, %v1130
      %v1174 = vmul.f32 %v843, %v1130
      %v1175 = vmul.f32 %v849, %v1130
      %v1176 = vmul.f32 %v855, %v1130
      %v1177 = vmul.f32 %v861, %v1130
      %v1178 = vmul.f32 %v867, %v1130
      %v1179 = vmul.f32 %v825, %v1132
      %v1180 = vmul.f32 %v831, %v1132
      %v1181 = vmul.f32 %v837, %v1132
      %v1182 = vmul.f32 %v843, %v1132
      %v1183 = vmul.f32 %v849, %v1132
      %v1184 = vmul.f32 %v855, %v1132
      %v1185 = vmul.f32 %v861, %v1132
      %v1186 = vmul.f32 %v867, %v1132
      %v1187 = vmul.f32 %v825, %v1134
      %v1188 = vmul.f32 %v831, %v1134
      %v1189 = vmul.f32 %v837, %v1134
      %v1190 = vmul.f32 %v843, %v1134
      %v1191 = vmul.f32 %v849, %v1134
      %v1192 = vmul.f32 %v855, %v1134
      %v1193 = vmul.f32 %v861, %v1134
      %v1194 = vmul.f32 %v867, %v1134
      %v1195 = vmul.f32 %v825, %v1136
      %v1196 = vmul.f32 %v831, %v1136
      %v1197 = vmul.f32 %v837, %v1136
      %v1198 = vmul.f32 %v843, %v1136
      %v1199 = vmul.f32 %v849, %v1136
      %v1200 = vmul.f32 %v855, %v1136
      %v1201 = vmul.f32 %v861, %v1136
      %v1202 = vmul.f32 %v867, %v1136
      %v1203 = vmul.f32 %v825, %v1138
      %v1204 = vmul.f32 %v831, %v1138
      %v1205 = vmul.f32 %v837, %v1138
      %v1206 = vmul.f32 %v843, %v1138
      %v1207 = vmul.f32 %v849, %v1138
      %v1208 = vmul.f32 %v855, %v1138
      %v1209 = vmul.f32 %v861, %v1138
      %v1210 = vmul.f32 %v867, %v1138
      %v1211 = vmul.f32 %v827, %v1022
      %v1212 = vmul.f32 %v833, %v1022
      %v1213 = vmul.f32 %v839, %v1022
      %v1214 = vmul.f32 %v845, %v1022
      %v1215 = vmul.f32 %v851, %v1022
      %v1216 = vmul.f32 %v857, %v1022
      %v1217 = vmul.f32 %v863, %v1022
      %v1218 = vmul.f32 %v869, %v1022
      %v1219 = vmul.f32 %v827, %v1026
      %v1220 = vmul.f32 %v833, %v1026
      %v1221 = vmul.f32 %v839, %v1026
      %v1222 = vmul.f32 %v845, %v1026
      %v1223 = vmul.f32 %v851, %v1026
      %v1224 = vmul.f32 %v857, %v1026
      %v1225 = vmul.f32 %v863, %v1026
      %v1226 = vmul.f32 %v869, %v1026
      %v1227 = vmul.f32 %v827, %v1030
      %v1228 = vmul.f32 %v833, %v1030
      %v1229 = vmul.f32 %v839, %v1030
      %v1230 = vmul.f32 %v845, %v1030
      %v1231 = vmul.f32 %v851, %v1030
      %v1232 = vmul.f32 %v857, %v1030
      %v1233 = vmul.f32 %v863, %v1030
      %v1234 = vmul.f32 %v869, %v1030
      %v1235 = vmul.f32 %v827, %v1034
      %v1236 = vmul.f32 %v833, %v1034
      %v1237 = vmul.f32 %v839, %v1034
      %v1238 = vmul.f32 %v845, %v1034
      %v1239 = vmul.f32 %v851, %v1034
      %v1240 = vmul.f32 %v857, %v1034
      %v1241 = vmul.f32 %v863, %v1034
      %v1242 = vmul.f32 %v869, %v1034
      %v1243 = vmul.f32 %v827, %v1038
      %v1244 = vmul.f32 %v833, %v1038
      %v1245 = vmul.f32 %v839, %v1038
      %v1246 = vmul.f32 %v845, %v1038
      %v1247 = vmul.f32 %v851, %v1038
      %v1248 = vmul.f32 %v857, %v1038
      %v1249 = vmul.f32 %v863, %v1038
      %v1250 = vmul.f32 %v869, %v1038
      %v1251 = vmul.f32 %v827, %v1042
      %v1252 = vmul.f32 %v833, %v1042
      %v1253 = vmul.f32 %v839, %v1042
      %v1254 = vmul.f32 %v845, %v1042
      %v1255 = vmul.f32 %v851, %v1042
      %v1256 = vmul.f32 %v857, %v1042
      %v1257 = vmul.f32 %v863, %v1042
      %v1258 = vmul.f32 %v869, %v1042
      %v1259 = vmul.f32 %v827, %v1046
      %v1260 = vmul.f32 %v833, %v1046
      %v1261 = vmul.f32 %v839, %v1046
      %v1262 = vmul.f32 %v845, %v1046
      %v1263 = vmul.f32 %v851, %v1046
      %v1264 = vmul.f32 %v857, %v1046
      %v1265 = vmul.f32 %v863, %v1046
      %v1266 = vmul.f32 %v869, %v1046
      %v1267 = vmul.f32 %v827, %v1050
      %v1268 = vmul.f32 %v833, %v1050
      %v1269 = vmul.f32 %v839, %v1050
      %v1270 = vmul.f32 %v845, %v1050
      %v1271 = vmul.f32 %v851, %v1050
      %v1272 = vmul.f32 %v857, %v1050
      %v1273 = vmul.f32 %v863, %v1050
      %v1274 = vmul.f32 %v869, %v1050
      %1283 = vrot.lane.b32.xlu0 %v1147, 64
      %v1284 = vpop.permute.xlu0 %1283
      %1285 = vrot.lane.b32.xlu0 %v1148, 64
      %v1286 = vpop.permute.xlu0 %1285
      %1287 = vrot.lane.b32.xlu0 %v1149, 64
      %v1288 = vpop.permute.xlu0 %1287
      %1289 = vrot.lane.b32.xlu0 %v1150, 64
      %v1290 = vpop.permute.xlu0 %1289
      %1291 = vrot.lane.b32.xlu0 %v1151, 64
      %v1292 = vpop.permute.xlu0 %1291
      %1293 = vrot.lane.b32.xlu0 %v1152, 64
      %v1294 = vpop.permute.xlu0 %1293
      %1295 = vrot.lane.b32.xlu0 %v1153, 64
      %v1296 = vpop.permute.xlu0 %1295
      %1297 = vrot.lane.b32.xlu0 %v1154, 64
      %v1298 = vpop.permute.xlu0 %1297
      %v1300 = vsel %vm440, %v1059, 0
      %v1303 = vsel %vm440, %v1060, 0
      %v1306 = vsel %vm440, %v1061, 0
      %v1309 = vsel %vm440, %v1062, 0
      %v1312 = vsel %vm440, %v1063, 0
      %v1315 = vsel %vm440, %v1064, 0
      %v1318 = vsel %vm440, %v1065, 0
      %v1321 = vsel %vm440, %v1066, 0
      %v1323 = vsel %vm440, %v1284, 0
      %v1325 = vsel %vm440, %v1286, 0
      %v1327 = vsel %vm440, %v1288, 0
      %v1329 = vsel %vm440, %v1290, 0
      %v1331 = vsel %vm440, %v1292, 0
      %v1333 = vsel %vm440, %v1294, 0
      %v1335 = vsel %vm440, %v1296, 0
      %v1337 = vsel %vm440, %v1298, 0
      %1339 = vmatprep.subr.mxu0 0.0
      %1340 = vmatpush1.xpose.msra.mxu0 %v1323
      %1341 = vmatprep.subr.mxu0 0.0
      %1342 = vmatpush1.xpose.msra.mxu0 %v1325
      %1343 = vmatprep.subr.mxu0 0.0
      %1344 = vmatpush1.xpose.msra.mxu0 %v1327
      %1345 = vmatprep.subr.mxu0 0.0
      %1346 = vmatpush1.xpose.msra.mxu0 %v1329
      %1347 = vmatprep.subr.mxu0 0.0
      %1348 = vmatpush1.xpose.msra.mxu0 %v1331
      %1349 = vmatprep.subr.mxu0 0.0
      %1350 = vmatpush1.xpose.msra.mxu0 %v1333
      %1351 = vmatprep.subr.mxu0 0.0
      %1352 = vmatpush1.xpose.msra.mxu0 %v1335
      %1353 = vmatprep.subr.mxu0 0.0
      %1354 = vmatpush1.xpose.msra.mxu0 %v1337
      %1355 = vmatprep.subr.mxu0 0.0
      %1356 = vmatpush1.xpose.msra.mxu0 0.0
      %1357 = vmatprep.subr.mxu0 0.0
      %1358 = vmatpush1.xpose.msra.mxu0 0.0
      %1359 = vmatprep.subr.mxu0 0.0
      %1360 = vmatpush1.xpose.msra.mxu0 0.0
      %1361 = vmatprep.subr.mxu0 0.0
      %1362 = vmatpush1.xpose.msra.mxu0 0.0
      %1363 = vmatprep.subr.mxu0 0.0
      %1364 = vmatpush1.xpose.msra.mxu0 0.0
      %1365 = vmatprep.subr.mxu0 0.0
      %1366 = vmatpush1.xpose.msra.mxu0 0.0
      %1367 = vmatprep.subr.mxu0 0.0
      %1368 = vmatpush1.xpose.msra.mxu0 0.0
      %1369 = vmatprep.subr.mxu0 0.0
      %1370 = vmatpush1.xpose.msra.mxu0 0.0
      %1371 = vmatprep.subr.mxu0 0.0
      %1372 = vmatpush1.xpose.msra.mxu0 0.0
      %1373 = vmatprep.subr.mxu0 0.0
      %1374 = vmatpush1.xpose.msra.mxu0 0.0
      %1375 = vmatprep.subr.mxu0 0.0
      %1376 = vmatpush1.xpose.msra.mxu0 0.0
      %1377 = vmatprep.subr.mxu0 0.0
      %1378 = vmatpush1.xpose.msra.mxu0 0.0
      %1379 = vmatprep.subr.mxu0 0.0
      %1380 = vmatpush1.xpose.msra.mxu0 0.0
      %1381 = vmatprep.subr.mxu0 0.0
      %1382 = vmatpush1.xpose.msra.mxu0 0.0
      %1383 = vmatprep.subr.mxu0 0.0
      %1384 = vmatpush1.xpose.msra.mxu0 0.0
      %1385 = vmatprep.subr.mxu0 0.0
      %1386 = vmatpush1.xpose.msra.mxu0 0.0
      %1387 = vmatprep.subr.mxu0 0.0
      %1388 = vmatpush1.xpose.msra.mxu0 0.0
      %1389 = vmatprep.subr.mxu0 0.0
      %1390 = vmatpush1.xpose.msra.mxu0 0.0
      %1391 = vmatprep.subr.mxu0 0.0
      %1392 = vmatpush1.xpose.msra.mxu0 0.0
      %1393 = vmatprep.subr.mxu0 0.0
      %1394 = vmatpush1.xpose.msra.mxu0 0.0
      %1395 = vmatprep.subr.mxu0 0.0
      %1396 = vmatpush1.xpose.msra.mxu0 0.0
      %1397 = vmatprep.subr.mxu0 0.0
      %1398 = vmatpush1.xpose.msra.mxu0 0.0
      %1399 = vmatprep.subr.mxu0 0.0
      %1400 = vmatpush1.xpose.msra.mxu0 0.0
      %1401 = vmatprep.subr.mxu0 0.0
      %1402 = vmatpush1.xpose.msra.mxu0 0.0
      %1403 = vmatprep.mubr.f32.mxu0 0.0
      %1404 = vmatmul.mubr.f32.gmra.mrb[0].mxu0 %v1300
      %v1405 = vpop.f32.mrb[0].mxu0
      %v1406 = vadd.f32 %v1011, %v1405
      %v1407 = vpop.f32.mrb[0].mxu0
      %1408 = vmatprep.mubr.f32.mxu0 0.0
      %1409 = vmatmul.mubr.f32.gmra.mrb[0].mxu0 %v1303
      %v1410 = vpop.f32.mrb[0].mxu0
      %v1411 = vadd.f32 %v1012, %v1410
      %v1412 = vpop.f32.mrb[0].mxu0
      %1413 = vmatprep.mubr.f32.mxu0 0.0
      %1414 = vmatmul.mubr.f32.gmra.mrb[0].mxu0 %v1306
      %v1415 = vpop.f32.mrb[0].mxu0
      %v1416 = vadd.f32 %v1013, %v1415
      %v1417 = vpop.f32.mrb[0].mxu0
      %1418 = vmatprep.mubr.f32.mxu0 0.0
      %1419 = vmatmul.mubr.f32.gmra.mrb[0].mxu0 %v1309
      %v1420 = vpop.f32.mrb[0].mxu0
      %v1421 = vadd.f32 %v1014, %v1420
      %v1422 = vpop.f32.mrb[0].mxu0
      %1423 = vmatprep.mubr.f32.mxu0 0.0
      %1424 = vmatmul.mubr.f32.gmra.mrb[0].mxu0 %v1312
      %v1425 = vpop.f32.mrb[0].mxu0
      %v1426 = vadd.f32 %v1015, %v1425
      %v1427 = vpop.f32.mrb[0].mxu0
      %1428 = vmatprep.mubr.f32.mxu0 0.0
      %1429 = vmatmul.mubr.f32.gmra.mrb[0].mxu0 %v1315
      %v1430 = vpop.f32.mrb[0].mxu0
      %v1431 = vadd.f32 %v1016, %v1430
      %v1432 = vpop.f32.mrb[0].mxu0
      %1433 = vmatprep.mubr.f32.mxu0 0.0
      %1434 = vmatmul.mubr.f32.gmra.mrb[0].mxu0 %v1318
      %v1435 = vpop.f32.mrb[0].mxu0
      %v1436 = vadd.f32 %v1017, %v1435
      %v1437 = vpop.f32.mrb[0].mxu0
      %1438 = vmatprep.mubr.f32.mxu0 0.0
      %1439 = vmatmul.mubr.f32.gmra.mrb[0].mxu0 %v1321
      %v1440 = vpop.f32.mrb[0].mxu0
      %v1441 = vadd.f32 %v1018, %v1440
      %v1442 = vpop.f32.mrb[0].mxu0
      %1443 = vdwg.mxu0
      %1452 = vrot.lane.b32.xlu0 %v1155, 64
      %v1453 = vpop.permute.xlu0 %1452
      %1454 = vrot.lane.b32.xlu0 %v1156, 64
      %v1455 = vpop.permute.xlu0 %1454
      %1456 = vrot.lane.b32.xlu0 %v1157, 64
      %v1457 = vpop.permute.xlu0 %1456
      %1458 = vrot.lane.b32.xlu0 %v1158, 64
      %v1459 = vpop.permute.xlu0 %1458
      %1460 = vrot.lane.b32.xlu0 %v1159, 64
      %v1461 = vpop.permute.xlu0 %1460
      %1462 = vrot.lane.b32.xlu0 %v1160, 64
      %v1463 = vpop.permute.xlu0 %1462
      %1464 = vrot.lane.b32.xlu0 %v1161, 64
      %v1465 = vpop.permute.xlu0 %1464
      %1466 = vrot.lane.b32.xlu0 %v1162, 64
      %v1467 = vpop.permute.xlu0 %1466
      %v1469 = vsel %vm440, %v1067, 0
      %v1472 = vsel %vm440, %v1068, 0
      %v1475 = vsel %vm440, %v1069, 0
      %v1478 = vsel %vm440, %v1070, 0
      %v1481 = vsel %vm440, %v1071, 0
      %v1484 = vsel %vm440, %v1072, 0
      %v1487 = vsel %vm440, %v1073, 0
      %v1490 = vsel %vm440, %v1074, 0
      %v1492 = vsel %vm440, %v1453, 0
      %v1494 = vsel %vm440, %v1455, 0
      %v1496 = vsel %vm440, %v1457, 0
      %v1498 = vsel %vm440, %v1459, 0
      %v1500 = vsel %vm440, %v1461, 0
      %v1502 = vsel %vm440, %v1463, 0
      %v1504 = vsel %vm440, %v1465, 0
      %v1506 = vsel %vm440, %v1467, 0
      %1508 = vmatprep.subr.mxu0 0.0
      %1509 = vmatpush1.xpose.msra.mxu0 %v1492
      %1510 = vmatprep.subr.mxu0 0.0
      %1511 = vmatpush1.xpose.msra.mxu0 %v1494
      %1512 = vmatprep.subr.mxu0 0.0
      %1513 = vmatpush1.xpose.msra.mxu0 %v1496
      %1514 = vmatprep.subr.mxu0 0.0
      %1515 = vmatpush1.xpose.msra.mxu0 %v1498
      %1516 = vmatprep.subr.mxu0 0.0
      %1517 = vmatpush1.xpose.msra.mxu0 %v1500
      %1518 = vmatprep.subr.mxu0 0.0
      %1519 = vmatpush1.xpose.msra.mxu0 %v1502
      %1520 = vmatprep.subr.mxu0 0.0
      %1521 = vmatpush1.xpose.msra.mxu0 %v1504
      %1522 = vmatprep.subr.mxu0 0.0
      %1523 = vmatpush1.xpose.msra.mxu0 %v1506
      %1524 = vmatprep.subr.mxu0 0.0
      %1525 = vmatpush1.xpose.msra.mxu0 0.0
      %1526 = vmatprep.subr.mxu0 0.0
      %1527 = vmatpush1.xpose.msra.mxu0 0.0
      %1528 = vmatprep.subr.mxu0 0.0
      %1529 = vmatpush1.xpose.msra.mxu0 0.0
      %1530 = vmatprep.subr.mxu0 0.0
      %1531 = vmatpush1.xpose.msra.mxu0 0.0
      %1532 = vmatprep.subr.mxu0 0.0
      %1533 = vmatpush1.xpose.msra.mxu0 0.0
      %1534 = vmatprep.subr.mxu0 0.0
      %1535 = vmatpush1.xpose.msra.mxu0 0.0
      %1536 = vmatprep.subr.mxu0 0.0
      %1537 = vmatpush1.xpose.msra.mxu0 0.0
      %1538 = vmatprep.subr.mxu0 0.0
      %1539 = vmatpush1.xpose.msra.mxu0 0.0
      %1540 = vmatprep.subr.mxu0 0.0
      %1541 = vmatpush1.xpose.msra.mxu0 0.0
      %1542 = vmatprep.subr.mxu0 0.0
      %1543 = vmatpush1.xpose.msra.mxu0 0.0
      %1544 = vmatprep.subr.mxu0 0.0
      %1545 = vmatpush1.xpose.msra.mxu0 0.0
      %1546 = vmatprep.subr.mxu0 0.0
      %1547 = vmatpush1.xpose.msra.mxu0 0.0
      %1548 = vmatprep.subr.mxu0 0.0
      %1549 = vmatpush1.xpose.msra.mxu0 0.0
      %1550 = vmatprep.subr.mxu0 0.0
      %1551 = vmatpush1.xpose.msra.mxu0 0.0
      %1552 = vmatprep.subr.mxu0 0.0
      %1553 = vmatpush1.xpose.msra.mxu0 0.0
      %1554 = vmatprep.subr.mxu0 0.0
      %1555 = vmatpush1.xpose.msra.mxu0 0.0
      %1556 = vmatprep.subr.mxu0 0.0
      %1557 = vmatpush1.xpose.msra.mxu0 0.0
      %1558 = vmatprep.subr.mxu0 0.0
      %1559 = vmatpush1.xpose.msra.mxu0 0.0
      %1560 = vmatprep.subr.mxu0 0.0
      %1561 = vmatpush1.xpose.msra.mxu0 0.0
      %1562 = vmatprep.subr.mxu0 0.0
      %1563 = vmatpush1.xpose.msra.mxu0 0.0
      %1564 = vmatprep.subr.mxu0 0.0
      %1565 = vmatpush1.xpose.msra.mxu0 0.0
      %1566 = vmatprep.subr.mxu0 0.0
      %1567 = vmatpush1.xpose.msra.mxu0 0.0
      %1568 = vmatprep.subr.mxu0 0.0
      %1569 = vmatpush1.xpose.msra.mxu0 0.0
      %1570 = vmatprep.subr.mxu0 0.0
      %1571 = vmatpush1.xpose.msra.mxu0 0.0
      %1572 = vmatprep.mubr.f32.mxu0 0.0
      %1573 = vmatmul.mubr.f32.gmra.mrb[0].mxu0 %v1469
      %v1574 = vpop.f32.mrb[0].mxu0
      %v1575 = vadd.f32 %v1011, %v1574
      %v1576 = vpop.f32.mrb[0].mxu0
      %1577 = vmatprep.mubr.f32.mxu0 0.0
      %1578 = vmatmul.mubr.f32.gmra.mrb[0].mxu0 %v1472
      %v1579 = vpop.f32.mrb[0].mxu0
      %v1580 = vadd.f32 %v1012, %v1579
      %v1581 = vpop.f32.mrb[0].mxu0
      %1582 = vmatprep.mubr.f32.mxu0 0.0
      %1583 = vmatmul.mubr.f32.gmra.mrb[0].mxu0 %v1475
      %v1584 = vpop.f32.mrb[0].mxu0
      %v1585 = vadd.f32 %v1013, %v1584
      %v1586 = vpop.f32.mrb[0].mxu0
      %1587 = vmatprep.mubr.f32.mxu0 0.0
      %1588 = vmatmul.mubr.f32.gmra.mrb[0].mxu0 %v1478
      %v1589 = vpop.f32.mrb[0].mxu0
      %v1590 = vadd.f32 %v1014, %v1589
      %v1591 = vpop.f32.mrb[0].mxu0
      %1592 = vmatprep.mubr.f32.mxu0 0.0
      %1593 = vmatmul.mubr.f32.gmra.mrb[0].mxu0 %v1481
      %v1594 = vpop.f32.mrb[0].mxu0
      %v1595 = vadd.f32 %v1015, %v1594
      %v1596 = vpop.f32.mrb[0].mxu0
      %1597 = vmatprep.mubr.f32.mxu0 0.0
      %1598 = vmatmul.mubr.f32.gmra.mrb[0].mxu0 %v1484
      %v1599 = vpop.f32.mrb[0].mxu0
      %v1600 = vadd.f32 %v1016, %v1599
      %v1601 = vpop.f32.mrb[0].mxu0
      %1602 = vmatprep.mubr.f32.mxu0 0.0
      %1603 = vmatmul.mubr.f32.gmra.mrb[0].mxu0 %v1487
      %v1604 = vpop.f32.mrb[0].mxu0
      %v1605 = vadd.f32 %v1017, %v1604
      %v1606 = vpop.f32.mrb[0].mxu0
      %1607 = vmatprep.mubr.f32.mxu0 0.0
      %1608 = vmatmul.mubr.f32.gmra.mrb[0].mxu0 %v1490
      %v1609 = vpop.f32.mrb[0].mxu0
      %v1610 = vadd.f32 %v1018, %v1609
      %v1611 = vpop.f32.mrb[0].mxu0
      %1612 = vdwg.mxu0
      %1621 = vrot.lane.b32.xlu0 %v1163, 64
      %v1622 = vpop.permute.xlu0 %1621
      %1623 = vrot.lane.b32.xlu0 %v1164, 64
      %v1624 = vpop.permute.xlu0 %1623
      %1625 = vrot.lane.b32.xlu0 %v1165, 64
      %v1626 = vpop.permute.xlu0 %1625
      %1627 = vrot.lane.b32.xlu0 %v1166, 64
      %v1628 = vpop.permute.xlu0 %1627
      %1629 = vrot.lane.b32.xlu0 %v1167, 64
      %v1630 = vpop.permute.xlu0 %1629
      %1631 = vrot.lane.b32.xlu0 %v1168, 64
      %v1632 = vpop.permute.xlu0 %1631
      %1633 = vrot.lane.b32.xlu0 %v1169, 64
      %v1634 = vpop.permute.xlu0 %1633
      %1635 = vrot.lane.b32.xlu0 %v1170, 64
      %v1636 = vpop.permute.xlu0 %1635
      %v1638 = vsel %vm440, %v1075, 0
      %v1641 = vsel %vm440, %v1076, 0
      %v1644 = vsel %vm440, %v1077, 0
      %v1647 = vsel %vm440, %v1078, 0
      %v1650 = vsel %vm440, %v1079, 0
      %v1653 = vsel %vm440, %v1080, 0
      %v1656 = vsel %vm440, %v1081, 0
      %v1659 = vsel %vm440, %v1082, 0
      %v1661 = vsel %vm440, %v1622, 0
      %v1663 = vsel %vm440, %v1624, 0
      %v1665 = vsel %vm440, %v1626, 0
      %v1667 = vsel %vm440, %v1628, 0
      %v1669 = vsel %vm440, %v1630, 0
      %v1671 = vsel %vm440, %v1632, 0
      %v1673 = vsel %vm440, %v1634, 0
      %v1675 = vsel %vm440, %v1636, 0
      %1677 = vmatprep.subr.mxu0 0.0
      %1678 = vmatpush1.xpose.msra.mxu0 %v1661
      %1679 = vmatprep.subr.mxu0 0.0
      %1680 = vmatpush1.xpose.msra.mxu0 %v1663
      %1681 = vmatprep.subr.mxu0 0.0
      %1682 = vmatpush1.xpose.msra.mxu0 %v1665
      %1683 = vmatprep.subr.mxu0 0.0
      %1684 = vmatpush1.xpose.msra.mxu0 %v1667
      %1685 = vmatprep.subr.mxu0 0.0
      %1686 = vmatpush1.xpose.msra.mxu0 %v1669
      %1687 = vmatprep.subr.mxu0 0.0
      %1688 = vmatpush1.xpose.msra.mxu0 %v1671
      %1689 = vmatprep.subr.mxu0 0.0
      %1690 = vmatpush1.xpose.msra.mxu0 %v1673
      %1691 = vmatprep.subr.mxu0 0.0
      %1692 = vmatpush1.xpose.msra.mxu0 %v1675
      %1693 = vmatprep.subr.mxu0 0.0
      %1694 = vmatpush1.xpose.msra.mxu0 0.0
      %1695 = vmatprep.subr.mxu0 0.0
      %1696 = vmatpush1.xpose.msra.mxu0 0.0
      %1697 = vmatprep.subr.mxu0 0.0
      %1698 = vmatpush1.xpose.msra.mxu0 0.0
      %1699 = vmatprep.subr.mxu0 0.0
      %1700 = vmatpush1.xpose.msra.mxu0 0.0
      %1701 = vmatprep.subr.mxu0 0.0
      %1702 = vmatpush1.xpose.msra.mxu0 0.0
      %1703 = vmatprep.subr.mxu0 0.0
      %1704 = vmatpush1.xpose.msra.mxu0 0.0
      %1705 = vmatprep.subr.mxu0 0.0
      %1706 = vmatpush1.xpose.msra.mxu0 0.0
      %1707 = vmatprep.subr.mxu0 0.0
      %1708 = vmatpush1.xpose.msra.mxu0 0.0
      %1709 = vmatprep.subr.mxu0 0.0
      %1710 = vmatpush1.xpose.msra.mxu0 0.0
      %1711 = vmatprep.subr.mxu0 0.0
      %1712 = vmatpush1.xpose.msra.mxu0 0.0
      %1713 = vmatprep.subr.mxu0 0.0
      %1714 = vmatpush1.xpose.msra.mxu0 0.0
      %1715 = vmatprep.subr.mxu0 0.0
      %1716 = vmatpush1.xpose.msra.mxu0 0.0
      %1717 = vmatprep.subr.mxu0 0.0
      %1718 = vmatpush1.xpose.msra.mxu0 0.0
      %1719 = vmatprep.subr.mxu0 0.0
      %1720 = vmatpush1.xpose.msra.mxu0 0.0
      %1721 = vmatprep.subr.mxu0 0.0
      %1722 = vmatpush1.xpose.msra.mxu0 0.0
      %1723 = vmatprep.subr.mxu0 0.0
      %1724 = vmatpush1.xpose.msra.mxu0 0.0
      %1725 = vmatprep.subr.mxu0 0.0
      %1726 = vmatpush1.xpose.msra.mxu0 0.0
      %1727 = vmatprep.subr.mxu0 0.0
      %1728 = vmatpush1.xpose.msra.mxu0 0.0
      %1729 = vmatprep.subr.mxu0 0.0
      %1730 = vmatpush1.xpose.msra.mxu0 0.0
      %1731 = vmatprep.subr.mxu0 0.0
      %1732 = vmatpush1.xpose.msra.mxu0 0.0
      %1733 = vmatprep.subr.mxu0 0.0
      %1734 = vmatpush1.xpose.msra.mxu0 0.0
      %1735 = vmatprep.subr.mxu0 0.0
      %1736 = vmatpush1.xpose.msra.mxu0 0.0
      %1737 = vmatprep.subr.mxu0 0.0
      %1738 = vmatpush1.xpose.msra.mxu0 0.0
      %1739 = vmatprep.subr.mxu0 0.0
      %1740 = vmatpush1.xpose.msra.mxu0 0.0
      %1741 = vmatprep.mubr.f32.mxu0 0.0
      %1742 = vmatmul.mubr.f32.gmra.mrb[0].mxu0 %v1638
      %v1743 = vpop.f32.mrb[0].mxu0
      %v1744 = vadd.f32 %v1011, %v1743
      %v1745 = vpop.f32.mrb[0].mxu0
      %1746 = vmatprep.mubr.f32.mxu0 0.0
      %1747 = vmatmul.mubr.f32.gmra.mrb[0].mxu0 %v1641
      %v1748 = vpop.f32.mrb[0].mxu0
      %v1749 = vadd.f32 %v1012, %v1748
      %v1750 = vpop.f32.mrb[0].mxu0
      %1751 = vmatprep.mubr.f32.mxu0 0.0
      %1752 = vmatmul.mubr.f32.gmra.mrb[0].mxu0 %v1644
      %v1753 = vpop.f32.mrb[0].mxu0
      %v1754 = vadd.f32 %v1013, %v1753
      %v1755 = vpop.f32.mrb[0].mxu0
      %1756 = vmatprep.mubr.f32.mxu0 0.0
      %1757 = vmatmul.mubr.f32.gmra.mrb[0].mxu0 %v1647
      %v1758 = vpop.f32.mrb[0].mxu0
      %v1759 = vadd.f32 %v1014, %v1758
      %v1760 = vpop.f32.mrb[0].mxu0
      %1761 = vmatprep.mubr.f32.mxu0 0.0
      %1762 = vmatmul.mubr.f32.gmra.mrb[0].mxu0 %v1650
      %v1763 = vpop.f32.mrb[0].mxu0
      %v1764 = vadd.f32 %v1015, %v1763
      %v1765 = vpop.f32.mrb[0].mxu0
      %1766 = vmatprep.mubr.f32.mxu0 0.0
      %1767 = vmatmul.mubr.f32.gmra.mrb[0].mxu0 %v1653
      %v1768 = vpop.f32.mrb[0].mxu0
      %v1769 = vadd.f32 %v1016, %v1768
      %v1770 = vpop.f32.mrb[0].mxu0
      %1771 = vmatprep.mubr.f32.mxu0 0.0
      %1772 = vmatmul.mubr.f32.gmra.mrb[0].mxu0 %v1656
      %v1773 = vpop.f32.mrb[0].mxu0
      %v1774 = vadd.f32 %v1017, %v1773
      %v1775 = vpop.f32.mrb[0].mxu0
      %1776 = vmatprep.mubr.f32.mxu0 0.0
      %1777 = vmatmul.mubr.f32.gmra.mrb[0].mxu0 %v1659
      %v1778 = vpop.f32.mrb[0].mxu0
      %v1779 = vadd.f32 %v1018, %v1778
      %v1780 = vpop.f32.mrb[0].mxu0
      %1781 = vdwg.mxu0
      %1790 = vrot.lane.b32.xlu0 %v1171, 64
      %v1791 = vpop.permute.xlu0 %1790
      %1792 = vrot.lane.b32.xlu0 %v1172, 64
      %v1793 = vpop.permute.xlu0 %1792
      %1794 = vrot.lane.b32.xlu0 %v1173, 64
      %v1795 = vpop.permute.xlu0 %1794
      %1796 = vrot.lane.b32.xlu0 %v1174, 64
      %v1797 = vpop.permute.xlu0 %1796
      %1798 = vrot.lane.b32.xlu0 %v1175, 64
      %v1799 = vpop.permute.xlu0 %1798
      %1800 = vrot.lane.b32.xlu0 %v1176, 64
      %v1801 = vpop.permute.xlu0 %1800
      %1802 = vrot.lane.b32.xlu0 %v1177, 64
      %v1803 = vpop.permute.xlu0 %1802
      %1804 = vrot.lane.b32.xlu0 %v1178, 64
      %v1805 = vpop.permute.xlu0 %1804
      %v1807 = vsel %vm440, %v1083, 0
      %v1810 = vsel %vm440, %v1084, 0
      %v1813 = vsel %vm440, %v1085, 0
      %v1816 = vsel %vm440, %v1086, 0
      %v1819 = vsel %vm440, %v1087, 0
      %v1822 = vsel %vm440, %v1088, 0
      %v1825 = vsel %vm440, %v1089, 0
      %v1828 = vsel %vm440, %v1090, 0
      %v1830 = vsel %vm440, %v1791, 0
      %v1832 = vsel %vm440, %v1793, 0
      %v1834 = vsel %vm440, %v1795, 0
      %v1836 = vsel %vm440, %v1797, 0
      %v1838 = vsel %vm440, %v1799, 0
      %v1840 = vsel %vm440, %v1801, 0
      %v1842 = vsel %vm440, %v1803, 0
      %v1844 = vsel %vm440, %v1805, 0
      %1846 = vmatprep.subr.mxu0 0.0
      %1847 = vmatpush1.xpose.msra.mxu0 %v1830
      %1848 = vmatprep.subr.mxu0 0.0
      %1849 = vmatpush1.xpose.msra.mxu0 %v1832
      %1850 = vmatprep.subr.mxu0 0.0
      %1851 = vmatpush1.xpose.msra.mxu0 %v1834
      %1852 = vmatprep.subr.mxu0 0.0
      %1853 = vmatpush1.xpose.msra.mxu0 %v1836
      %1854 = vmatprep.subr.mxu0 0.0
      %1855 = vmatpush1.xpose.msra.mxu0 %v1838
      %1856 = vmatprep.subr.mxu0 0.0
      %1857 = vmatpush1.xpose.msra.mxu0 %v1840
      %1858 = vmatprep.subr.mxu0 0.0
      %1859 = vmatpush1.xpose.msra.mxu0 %v1842
      %1860 = vmatprep.subr.mxu0 0.0
      %1861 = vmatpush1.xpose.msra.mxu0 %v1844
      %1862 = vmatprep.subr.mxu0 0.0
      %1863 = vmatpush1.xpose.msra.mxu0 0.0
      %1864 = vmatprep.subr.mxu0 0.0
      %1865 = vmatpush1.xpose.msra.mxu0 0.0
      %1866 = vmatprep.subr.mxu0 0.0
      %1867 = vmatpush1.xpose.msra.mxu0 0.0
      %1868 = vmatprep.subr.mxu0 0.0
      %1869 = vmatpush1.xpose.msra.mxu0 0.0
      %1870 = vmatprep.subr.mxu0 0.0
      %1871 = vmatpush1.xpose.msra.mxu0 0.0
      %1872 = vmatprep.subr.mxu0 0.0
      %1873 = vmatpush1.xpose.msra.mxu0 0.0
      %1874 = vmatprep.subr.mxu0 0.0
      %1875 = vmatpush1.xpose.msra.mxu0 0.0
      %1876 = vmatprep.subr.mxu0 0.0
      %1877 = vmatpush1.xpose.msra.mxu0 0.0
      %1878 = vmatprep.subr.mxu0 0.0
      %1879 = vmatpush1.xpose.msra.mxu0 0.0
      %1880 = vmatprep.subr.mxu0 0.0
      %1881 = vmatpush1.xpose.msra.mxu0 0.0
      %1882 = vmatprep.subr.mxu0 0.0
      %1883 = vmatpush1.xpose.msra.mxu0 0.0
      %1884 = vmatprep.subr.mxu0 0.0
      %1885 = vmatpush1.xpose.msra.mxu0 0.0
      %1886 = vmatprep.subr.mxu0 0.0
      %1887 = vmatpush1.xpose.msra.mxu0 0.0
      %1888 = vmatprep.subr.mxu0 0.0
      %1889 = vmatpush1.xpose.msra.mxu0 0.0
      %1890 = vmatprep.subr.mxu0 0.0
      %1891 = vmatpush1.xpose.msra.mxu0 0.0
      %1892 = vmatprep.subr.mxu0 0.0
      %1893 = vmatpush1.xpose.msra.mxu0 0.0
      %1894 = vmatprep.subr.mxu0 0.0
      %1895 = vmatpush1.xpose.msra.mxu0 0.0
      %1896 = vmatprep.subr.mxu0 0.0
      %1897 = vmatpush1.xpose.msra.mxu0 0.0
      %1898 = vmatprep.subr.mxu0 0.0
      %1899 = vmatpush1.xpose.msra.mxu0 0.0
      %1900 = vmatprep.subr.mxu0 0.0
      %1901 = vmatpush1.xpose.msra.mxu0 0.0
      %1902 = vmatprep.subr.mxu0 0.0
      %1903 = vmatpush1.xpose.msra.mxu0 0.0
      %1904 = vmatprep.subr.mxu0 0.0
      %1905 = vmatpush1.xpose.msra.mxu0 0.0
      %1906 = vmatprep.subr.mxu0 0.0
      %1907 = vmatpush1.xpose.msra.mxu0 0.0
      %1908 = vmatprep.subr.mxu0 0.0
      %1909 = vmatpush1.xpose.msra.mxu0 0.0
      %1910 = vmatprep.mubr.f32.mxu0 0.0
      %1911 = vmatmul.mubr.f32.gmra.mrb[0].mxu0 %v1807
      %v1912 = vpop.f32.mrb[0].mxu0
      %v1913 = vadd.f32 %v1011, %v1912
      %v1914 = vpop.f32.mrb[0].mxu0
      %1915 = vmatprep.mubr.f32.mxu0 0.0
      %1916 = vmatmul.mubr.f32.gmra.mrb[0].mxu0 %v1810
      %v1917 = vpop.f32.mrb[0].mxu0
      %v1918 = vadd.f32 %v1012, %v1917
      %v1919 = vpop.f32.mrb[0].mxu0
      %1920 = vmatprep.mubr.f32.mxu0 0.0
      %1921 = vmatmul.mubr.f32.gmra.mrb[0].mxu0 %v1813
      %v1922 = vpop.f32.mrb[0].mxu0
      %v1923 = vadd.f32 %v1013, %v1922
      %v1924 = vpop.f32.mrb[0].mxu0
      %1925 = vmatprep.mubr.f32.mxu0 0.0
      %1926 = vmatmul.mubr.f32.gmra.mrb[0].mxu0 %v1816
      %v1927 = vpop.f32.mrb[0].mxu0
      %v1928 = vadd.f32 %v1014, %v1927
      %v1929 = vpop.f32.mrb[0].mxu0
      %1930 = vmatprep.mubr.f32.mxu0 0.0
      %1931 = vmatmul.mubr.f32.gmra.mrb[0].mxu0 %v1819
      %v1932 = vpop.f32.mrb[0].mxu0
      %v1933 = vadd.f32 %v1015, %v1932
      %v1934 = vpop.f32.mrb[0].mxu0
      %1935 = vmatprep.mubr.f32.mxu0 0.0
      %1936 = vmatmul.mubr.f32.gmra.mrb[0].mxu0 %v1822
      %v1937 = vpop.f32.mrb[0].mxu0
      %v1938 = vadd.f32 %v1016, %v1937
      %v1939 = vpop.f32.mrb[0].mxu0
      %1940 = vmatprep.mubr.f32.mxu0 0.0
      %1941 = vmatmul.mubr.f32.gmra.mrb[0].mxu0 %v1825
      %v1942 = vpop.f32.mrb[0].mxu0
      %v1943 = vadd.f32 %v1017, %v1942
      %v1944 = vpop.f32.mrb[0].mxu0
      %1945 = vmatprep.mubr.f32.mxu0 0.0
      %1946 = vmatmul.mubr.f32.gmra.mrb[0].mxu0 %v1828
      %v1947 = vpop.f32.mrb[0].mxu0
      %v1948 = vadd.f32 %v1018, %v1947
      %v1949 = vpop.f32.mrb[0].mxu0
      %1950 = vdwg.mxu0
      %1959 = vrot.lane.b32.xlu0 %v1179, 64
      %v1960 = vpop.permute.xlu0 %1959
      %1961 = vrot.lane.b32.xlu0 %v1180, 64
      %v1962 = vpop.permute.xlu0 %1961
      %1963 = vrot.lane.b32.xlu0 %v1181, 64
      %v1964 = vpop.permute.xlu0 %1963
      %1965 = vrot.lane.b32.xlu0 %v1182, 64
      %v1966 = vpop.permute.xlu0 %1965
      %1967 = vrot.lane.b32.xlu0 %v1183, 64
      %v1968 = vpop.permute.xlu0 %1967
      %1969 = vrot.lane.b32.xlu0 %v1184, 64
      %v1970 = vpop.permute.xlu0 %1969
      %1971 = vrot.lane.b32.xlu0 %v1185, 64
      %v1972 = vpop.permute.xlu0 %1971
      %1973 = vrot.lane.b32.xlu0 %v1186, 64
      %v1974 = vpop.permute.xlu0 %1973
      %v1976 = vsel %vm440, %v1091, 0
      %v1979 = vsel %vm440, %v1092, 0
      %v1982 = vsel %vm440, %v1093, 0
      %v1985 = vsel %vm440, %v1094, 0
      %v1988 = vsel %vm440, %v1095, 0
      %v1991 = vsel %vm440, %v1096, 0
      %v1994 = vsel %vm440, %v1097, 0
      %v1997 = vsel %vm440, %v1098, 0
      %v1999 = vsel %vm440, %v1960, 0
      %v2001 = vsel %vm440, %v1962, 0
      %v2003 = vsel %vm440, %v1964, 0
      %v2005 = vsel %vm440, %v1966, 0
      %v2007 = vsel %vm440, %v1968, 0
      %v2009 = vsel %vm440, %v1970, 0
      %v2011 = vsel %vm440, %v1972, 0
      %v2013 = vsel %vm440, %v1974, 0
      %2015 = vmatprep.subr.mxu0 0.0
      %2016 = vmatpush1.xpose.msra.mxu0 %v1999
      %2017 = vmatprep.subr.mxu0 0.0
      %2018 = vmatpush1.xpose.msra.mxu0 %v2001
      %2019 = vmatprep.subr.mxu0 0.0
      %2020 = vmatpush1.xpose.msra.mxu0 %v2003
      %2021 = vmatprep.subr.mxu0 0.0
      %2022 = vmatpush1.xpose.msra.mxu0 %v2005
      %2023 = vmatprep.subr.mxu0 0.0
      %2024 = vmatpush1.xpose.msra.mxu0 %v2007
      %2025 = vmatprep.subr.mxu0 0.0
      %2026 = vmatpush1.xpose.msra.mxu0 %v2009
      %2027 = vmatprep.subr.mxu0 0.0
      %2028 = vmatpush1.xpose.msra.mxu0 %v2011
      %2029 = vmatprep.subr.mxu0 0.0
      %2030 = vmatpush1.xpose.msra.mxu0 %v2013
      %2031 = vmatprep.subr.mxu0 0.0
      %2032 = vmatpush1.xpose.msra.mxu0 0.0
      %2033 = vmatprep.subr.mxu0 0.0
      %2034 = vmatpush1.xpose.msra.mxu0 0.0
      %2035 = vmatprep.subr.mxu0 0.0
      %2036 = vmatpush1.xpose.msra.mxu0 0.0
      %2037 = vmatprep.subr.mxu0 0.0
      %2038 = vmatpush1.xpose.msra.mxu0 0.0
      %2039 = vmatprep.subr.mxu0 0.0
      %2040 = vmatpush1.xpose.msra.mxu0 0.0
      %2041 = vmatprep.subr.mxu0 0.0
      %2042 = vmatpush1.xpose.msra.mxu0 0.0
      %2043 = vmatprep.subr.mxu0 0.0
      %2044 = vmatpush1.xpose.msra.mxu0 0.0
      %2045 = vmatprep.subr.mxu0 0.0
      %2046 = vmatpush1.xpose.msra.mxu0 0.0
      %2047 = vmatprep.subr.mxu0 0.0
      %2048 = vmatpush1.xpose.msra.mxu0 0.0
      %2049 = vmatprep.subr.mxu0 0.0
      %2050 = vmatpush1.xpose.msra.mxu0 0.0
      %2051 = vmatprep.subr.mxu0 0.0
      %2052 = vmatpush1.xpose.msra.mxu0 0.0
      %2053 = vmatprep.subr.mxu0 0.0
      %2054 = vmatpush1.xpose.msra.mxu0 0.0
      %2055 = vmatprep.subr.mxu0 0.0
      %2056 = vmatpush1.xpose.msra.mxu0 0.0
      %2057 = vmatprep.subr.mxu0 0.0
      %2058 = vmatpush1.xpose.msra.mxu0 0.0
      %2059 = vmatprep.subr.mxu0 0.0
      %2060 = vmatpush1.xpose.msra.mxu0 0.0
      %2061 = vmatprep.subr.mxu0 0.0
      %2062 = vmatpush1.xpose.msra.mxu0 0.0
      %2063 = vmatprep.subr.mxu0 0.0
      %2064 = vmatpush1.xpose.msra.mxu0 0.0
      %2065 = vmatprep.subr.mxu0 0.0
      %2066 = vmatpush1.xpose.msra.mxu0 0.0
      %2067 = vmatprep.subr.mxu0 0.0
      %2068 = vmatpush1.xpose.msra.mxu0 0.0
      %2069 = vmatprep.subr.mxu0 0.0
      %2070 = vmatpush1.xpose.msra.mxu0 0.0
      %2071 = vmatprep.subr.mxu0 0.0
      %2072 = vmatpush1.xpose.msra.mxu0 0.0
      %2073 = vmatprep.subr.mxu0 0.0
      %2074 = vmatpush1.xpose.msra.mxu0 0.0
      %2075 = vmatprep.subr.mxu0 0.0
      %2076 = vmatpush1.xpose.msra.mxu0 0.0
      %2077 = vmatprep.subr.mxu0 0.0
      %2078 = vmatpush1.xpose.msra.mxu0 0.0
      %2079 = vmatprep.mubr.f32.mxu0 0.0
      %2080 = vmatmul.mubr.f32.gmra.mrb[0].mxu0 %v1976
      %v2081 = vpop.f32.mrb[0].mxu0
      %v2082 = vadd.f32 %v1011, %v2081
      %v2083 = vpop.f32.mrb[0].mxu0
      %2084 = vmatprep.mubr.f32.mxu0 0.0
      %2085 = vmatmul.mubr.f32.gmra.mrb[0].mxu0 %v1979
      %v2086 = vpop.f32.mrb[0].mxu0
      %v2087 = vadd.f32 %v1012, %v2086
      %v2088 = vpop.f32.mrb[0].mxu0
      %2089 = vmatprep.mubr.f32.mxu0 0.0
      %2090 = vmatmul.mubr.f32.gmra.mrb[0].mxu0 %v1982
      %v2091 = vpop.f32.mrb[0].mxu0
      %v2092 = vadd.f32 %v1013, %v2091
      %v2093 = vpop.f32.mrb[0].mxu0
      %2094 = vmatprep.mubr.f32.mxu0 0.0
      %2095 = vmatmul.mubr.f32.gmra.mrb[0].mxu0 %v1985
      %v2096 = vpop.f32.mrb[0].mxu0
      %v2097 = vadd.f32 %v1014, %v2096
      %v2098 = vpop.f32.mrb[0].mxu0
      %2099 = vmatprep.mubr.f32.mxu0 0.0
      %2100 = vmatmul.mubr.f32.gmra.mrb[0].mxu0 %v1988
      %v2101 = vpop.f32.mrb[0].mxu0
      %v2102 = vadd.f32 %v1015, %v2101
      %v2103 = vpop.f32.mrb[0].mxu0
      %2104 = vmatprep.mubr.f32.mxu0 0.0
      %2105 = vmatmul.mubr.f32.gmra.mrb[0].mxu0 %v1991
      %v2106 = vpop.f32.mrb[0].mxu0
      %v2107 = vadd.f32 %v1016, %v2106
      %v2108 = vpop.f32.mrb[0].mxu0
      %2109 = vmatprep.mubr.f32.mxu0 0.0
      %2110 = vmatmul.mubr.f32.gmra.mrb[0].mxu0 %v1994
      %v2111 = vpop.f32.mrb[0].mxu0
      %v2112 = vadd.f32 %v1017, %v2111
      %v2113 = vpop.f32.mrb[0].mxu0
      %2114 = vmatprep.mubr.f32.mxu0 0.0
      %2115 = vmatmul.mubr.f32.gmra.mrb[0].mxu0 %v1997
      %v2116 = vpop.f32.mrb[0].mxu0
      %v2117 = vadd.f32 %v1018, %v2116
      %v2118 = vpop.f32.mrb[0].mxu0
      %2119 = vdwg.mxu0
      %2128 = vrot.lane.b32.xlu0 %v1187, 64
      %v2129 = vpop.permute.xlu0 %2128
      %2130 = vrot.lane.b32.xlu0 %v1188, 64
      %v2131 = vpop.permute.xlu0 %2130
      %2132 = vrot.lane.b32.xlu0 %v1189, 64
      %v2133 = vpop.permute.xlu0 %2132
      %2134 = vrot.lane.b32.xlu0 %v1190, 64
      %v2135 = vpop.permute.xlu0 %2134
      %2136 = vrot.lane.b32.xlu0 %v1191, 64
      %v2137 = vpop.permute.xlu0 %2136
      %2138 = vrot.lane.b32.xlu0 %v1192, 64
      %v2139 = vpop.permute.xlu0 %2138
      %2140 = vrot.lane.b32.xlu0 %v1193, 64
      %v2141 = vpop.permute.xlu0 %2140
      %2142 = vrot.lane.b32.xlu0 %v1194, 64
      %v2143 = vpop.permute.xlu0 %2142
      %v2145 = vsel %vm440, %v1099, 0
      %v2148 = vsel %vm440, %v1100, 0
      %v2151 = vsel %vm440, %v1101, 0
      %v2154 = vsel %vm440, %v1102, 0
      %v2157 = vsel %vm440, %v1103, 0
      %v2160 = vsel %vm440, %v1104, 0
      %v2163 = vsel %vm440, %v1105, 0
      %v2166 = vsel %vm440, %v1106, 0
      %v2168 = vsel %vm440, %v2129, 0
      %v2170 = vsel %vm440, %v2131, 0
      %v2172 = vsel %vm440, %v2133, 0
      %v2174 = vsel %vm440, %v2135, 0
      %v2176 = vsel %vm440, %v2137, 0
      %v2178 = vsel %vm440, %v2139, 0
      %v2180 = vsel %vm440, %v2141, 0
      %v2182 = vsel %vm440, %v2143, 0
      %2184 = vmatprep.subr.mxu0 0.0
      %2185 = vmatpush1.xpose.msra.mxu0 %v2168
      %2186 = vmatprep.subr.mxu0 0.0
      %2187 = vmatpush1.xpose.msra.mxu0 %v2170
      %2188 = vmatprep.subr.mxu0 0.0
      %2189 = vmatpush1.xpose.msra.mxu0 %v2172
      %2190 = vmatprep.subr.mxu0 0.0
      %2191 = vmatpush1.xpose.msra.mxu0 %v2174
      %2192 = vmatprep.subr.mxu0 0.0
      %2193 = vmatpush1.xpose.msra.mxu0 %v2176
      %2194 = vmatprep.subr.mxu0 0.0
      %2195 = vmatpush1.xpose.msra.mxu0 %v2178
      %2196 = vmatprep.subr.mxu0 0.0
      %2197 = vmatpush1.xpose.msra.mxu0 %v2180
      %2198 = vmatprep.subr.mxu0 0.0
      %2199 = vmatpush1.xpose.msra.mxu0 %v2182
      %2200 = vmatprep.subr.mxu0 0.0
      %2201 = vmatpush1.xpose.msra.mxu0 0.0
      %2202 = vmatprep.subr.mxu0 0.0
      %2203 = vmatpush1.xpose.msra.mxu0 0.0
      %2204 = vmatprep.subr.mxu0 0.0
      %2205 = vmatpush1.xpose.msra.mxu0 0.0
      %2206 = vmatprep.subr.mxu0 0.0
      %2207 = vmatpush1.xpose.msra.mxu0 0.0
      %2208 = vmatprep.subr.mxu0 0.0
      %2209 = vmatpush1.xpose.msra.mxu0 0.0
      %2210 = vmatprep.subr.mxu0 0.0
      %2211 = vmatpush1.xpose.msra.mxu0 0.0
      %2212 = vmatprep.subr.mxu0 0.0
      %2213 = vmatpush1.xpose.msra.mxu0 0.0
      %2214 = vmatprep.subr.mxu0 0.0
      %2215 = vmatpush1.xpose.msra.mxu0 0.0
      %2216 = vmatprep.subr.mxu0 0.0
      %2217 = vmatpush1.xpose.msra.mxu0 0.0
      %2218 = vmatprep.subr.mxu0 0.0
      %2219 = vmatpush1.xpose.msra.mxu0 0.0
      %2220 = vmatprep.subr.mxu0 0.0
      %2221 = vmatpush1.xpose.msra.mxu0 0.0
      %2222 = vmatprep.subr.mxu0 0.0
      %2223 = vmatpush1.xpose.msra.mxu0 0.0
      %2224 = vmatprep.subr.mxu0 0.0
      %2225 = vmatpush1.xpose.msra.mxu0 0.0
      %2226 = vmatprep.subr.mxu0 0.0
      %2227 = vmatpush1.xpose.msra.mxu0 0.0
      %2228 = vmatprep.subr.mxu0 0.0
      %2229 = vmatpush1.xpose.msra.mxu0 0.0
      %2230 = vmatprep.subr.mxu0 0.0
      %2231 = vmatpush1.xpose.msra.mxu0 0.0
      %2232 = vmatprep.subr.mxu0 0.0
      %2233 = vmatpush1.xpose.msra.mxu0 0.0
      %2234 = vmatprep.subr.mxu0 0.0
      %2235 = vmatpush1.xpose.msra.mxu0 0.0
      %2236 = vmatprep.subr.mxu0 0.0
      %2237 = vmatpush1.xpose.msra.mxu0 0.0
      %2238 = vmatprep.subr.mxu0 0.0
      %2239 = vmatpush1.xpose.msra.mxu0 0.0
      %2240 = vmatprep.subr.mxu0 0.0
      %2241 = vmatpush1.xpose.msra.mxu0 0.0
      %2242 = vmatprep.subr.mxu0 0.0
      %2243 = vmatpush1.xpose.msra.mxu0 0.0
      %2244 = vmatprep.subr.mxu0 0.0
      %2245 = vmatpush1.xpose.msra.mxu0 0.0
      %2246 = vmatprep.subr.mxu0 0.0
      %2247 = vmatpush1.xpose.msra.mxu0 0.0
      %2248 = vmatprep.mubr.f32.mxu0 0.0
      %2249 = vmatmul.mubr.f32.gmra.mrb[0].mxu0 %v2145
      %v2250 = vpop.f32.mrb[0].mxu0
      %v2251 = vadd.f32 %v1011, %v2250
      %v2252 = vpop.f32.mrb[0].mxu0
      %2253 = vmatprep.mubr.f32.mxu0 0.0
      %2254 = vmatmul.mubr.f32.gmra.mrb[0].mxu0 %v2148
      %v2255 = vpop.f32.mrb[0].mxu0
      %v2256 = vadd.f32 %v1012, %v2255
      %v2257 = vpop.f32.mrb[0].mxu0
      %2258 = vmatprep.mubr.f32.mxu0 0.0
      %2259 = vmatmul.mubr.f32.gmra.mrb[0].mxu0 %v2151
      %v2260 = vpop.f32.mrb[0].mxu0
      %v2261 = vadd.f32 %v1013, %v2260
      %v2262 = vpop.f32.mrb[0].mxu0
      %2263 = vmatprep.mubr.f32.mxu0 0.0
      %2264 = vmatmul.mubr.f32.gmra.mrb[0].mxu0 %v2154
      %v2265 = vpop.f32.mrb[0].mxu0
      %v2266 = vadd.f32 %v1014, %v2265
      %v2267 = vpop.f32.mrb[0].mxu0
      %2268 = vmatprep.mubr.f32.mxu0 0.0
      %2269 = vmatmul.mubr.f32.gmra.mrb[0].mxu0 %v2157
      %v2270 = vpop.f32.mrb[0].mxu0
      %v2271 = vadd.f32 %v1015, %v2270
      %v2272 = vpop.f32.mrb[0].mxu0
      %2273 = vmatprep.mubr.f32.mxu0 0.0
      %2274 = vmatmul.mubr.f32.gmra.mrb[0].mxu0 %v2160
      %v2275 = vpop.f32.mrb[0].mxu0
      %v2276 = vadd.f32 %v1016, %v2275
      %v2277 = vpop.f32.mrb[0].mxu0
      %2278 = vmatprep.mubr.f32.mxu0 0.0
      %2279 = vmatmul.mubr.f32.gmra.mrb[0].mxu0 %v2163
      %v2280 = vpop.f32.mrb[0].mxu0
      %v2281 = vadd.f32 %v1017, %v2280
      %v2282 = vpop.f32.mrb[0].mxu0
      %2283 = vmatprep.mubr.f32.mxu0 0.0
      %2284 = vmatmul.mubr.f32.gmra.mrb[0].mxu0 %v2166
      %v2285 = vpop.f32.mrb[0].mxu0
      %v2286 = vadd.f32 %v1018, %v2285
      %v2287 = vpop.f32.mrb[0].mxu0
      %2288 = vdwg.mxu0
      %2297 = vrot.lane.b32.xlu0 %v1195, 64
      %v2298 = vpop.permute.xlu0 %2297
      %2299 = vrot.lane.b32.xlu0 %v1196, 64
      %v2300 = vpop.permute.xlu0 %2299
      %2301 = vrot.lane.b32.xlu0 %v1197, 64
      %v2302 = vpop.permute.xlu0 %2301
      %2303 = vrot.lane.b32.xlu0 %v1198, 64
      %v2304 = vpop.permute.xlu0 %2303
      %2305 = vrot.lane.b32.xlu0 %v1199, 64
      %v2306 = vpop.permute.xlu0 %2305
      %2307 = vrot.lane.b32.xlu0 %v1200, 64
      %v2308 = vpop.permute.xlu0 %2307
      %2309 = vrot.lane.b32.xlu0 %v1201, 64
      %v2310 = vpop.permute.xlu0 %2309
      %2311 = vrot.lane.b32.xlu0 %v1202, 64
      %v2312 = vpop.permute.xlu0 %2311
      %v2314 = vsel %vm440, %v1107, 0
      %v2317 = vsel %vm440, %v1108, 0
      %v2320 = vsel %vm440, %v1109, 0
      %v2323 = vsel %vm440, %v1110, 0
      %v2326 = vsel %vm440, %v1111, 0
      %v2329 = vsel %vm440, %v1112, 0
      %v2332 = vsel %vm440, %v1113, 0
      %v2335 = vsel %vm440, %v1114, 0
      %v2337 = vsel %vm440, %v2298, 0
      %v2339 = vsel %vm440, %v2300, 0
      %v2341 = vsel %vm440, %v2302, 0
      %v2343 = vsel %vm440, %v2304, 0
      %v2345 = vsel %vm440, %v2306, 0
      %v2347 = vsel %vm440, %v2308, 0
      %v2349 = vsel %vm440, %v2310, 0
      %v2351 = vsel %vm440, %v2312, 0
      %2353 = vmatprep.subr.mxu0 0.0
      %2354 = vmatpush1.xpose.msra.mxu0 %v2337
      %2355 = vmatprep.subr.mxu0 0.0
      %2356 = vmatpush1.xpose.msra.mxu0 %v2339
      %2357 = vmatprep.subr.mxu0 0.0
      %2358 = vmatpush1.xpose.msra.mxu0 %v2341
      %2359 = vmatprep.subr.mxu0 0.0
      %2360 = vmatpush1.xpose.msra.mxu0 %v2343
      %2361 = vmatprep.subr.mxu0 0.0
      %2362 = vmatpush1.xpose.msra.mxu0 %v2345
      %2363 = vmatprep.subr.mxu0 0.0
      %2364 = vmatpush1.xpose.msra.mxu0 %v2347
      %2365 = vmatprep.subr.mxu0 0.0
      %2366 = vmatpush1.xpose.msra.mxu0 %v2349
      %2367 = vmatprep.subr.mxu0 0.0
      %2368 = vmatpush1.xpose.msra.mxu0 %v2351
      %2369 = vmatprep.subr.mxu0 0.0
      %2370 = vmatpush1.xpose.msra.mxu0 0.0
      %2371 = vmatprep.subr.mxu0 0.0
      %2372 = vmatpush1.xpose.msra.mxu0 0.0
      %2373 = vmatprep.subr.mxu0 0.0
      %2374 = vmatpush1.xpose.msra.mxu0 0.0
      %2375 = vmatprep.subr.mxu0 0.0
      %2376 = vmatpush1.xpose.msra.mxu0 0.0
      %2377 = vmatprep.subr.mxu0 0.0
      %2378 = vmatpush1.xpose.msra.mxu0 0.0
      %2379 = vmatprep.subr.mxu0 0.0
      %2380 = vmatpush1.xpose.msra.mxu0 0.0
      %2381 = vmatprep.subr.mxu0 0.0
      %2382 = vmatpush1.xpose.msra.mxu0 0.0
      %2383 = vmatprep.subr.mxu0 0.0
      %2384 = vmatpush1.xpose.msra.mxu0 0.0
      %2385 = vmatprep.subr.mxu0 0.0
      %2386 = vmatpush1.xpose.msra.mxu0 0.0
      %2387 = vmatprep.subr.mxu0 0.0
      %2388 = vmatpush1.xpose.msra.mxu0 0.0
      %2389 = vmatprep.subr.mxu0 0.0
      %2390 = vmatpush1.xpose.msra.mxu0 0.0
      %2391 = vmatprep.subr.mxu0 0.0
      %2392 = vmatpush1.xpose.msra.mxu0 0.0
      %2393 = vmatprep.subr.mxu0 0.0
      %2394 = vmatpush1.xpose.msra.mxu0 0.0
      %2395 = vmatprep.subr.mxu0 0.0
      %2396 = vmatpush1.xpose.msra.mxu0 0.0
      %2397 = vmatprep.subr.mxu0 0.0
      %2398 = vmatpush1.xpose.msra.mxu0 0.0
      %2399 = vmatprep.subr.mxu0 0.0
      %2400 = vmatpush1.xpose.msra.mxu0 0.0
      %2401 = vmatprep.subr.mxu0 0.0
      %2402 = vmatpush1.xpose.msra.mxu0 0.0
      %2403 = vmatprep.subr.mxu0 0.0
      %2404 = vmatpush1.xpose.msra.mxu0 0.0
      %2405 = vmatprep.subr.mxu0 0.0
      %2406 = vmatpush1.xpose.msra.mxu0 0.0
      %2407 = vmatprep.subr.mxu0 0.0
      %2408 = vmatpush1.xpose.msra.mxu0 0.0
      %2409 = vmatprep.subr.mxu0 0.0
      %2410 = vmatpush1.xpose.msra.mxu0 0.0
      %2411 = vmatprep.subr.mxu0 0.0
      %2412 = vmatpush1.xpose.msra.mxu0 0.0
      %2413 = vmatprep.subr.mxu0 0.0
      %2414 = vmatpush1.xpose.msra.mxu0 0.0
      %2415 = vmatprep.subr.mxu0 0.0
      %2416 = vmatpush1.xpose.msra.mxu0 0.0
      %2417 = vmatprep.mubr.f32.mxu0 0.0
      %2418 = vmatmul.mubr.f32.gmra.mrb[0].mxu0 %v2314
      %v2419 = vpop.f32.mrb[0].mxu0
      %v2420 = vadd.f32 %v1011, %v2419
      %v2421 = vpop.f32.mrb[0].mxu0
      %2422 = vmatprep.mubr.f32.mxu0 0.0
      %2423 = vmatmul.mubr.f32.gmra.mrb[0].mxu0 %v2317
      %v2424 = vpop.f32.mrb[0].mxu0
      %v2425 = vadd.f32 %v1012, %v2424
      %v2426 = vpop.f32.mrb[0].mxu0
      %2427 = vmatprep.mubr.f32.mxu0 0.0
      %2428 = vmatmul.mubr.f32.gmra.mrb[0].mxu0 %v2320
      %v2429 = vpop.f32.mrb[0].mxu0
      %v2430 = vadd.f32 %v1013, %v2429
      %v2431 = vpop.f32.mrb[0].mxu0
      %2432 = vmatprep.mubr.f32.mxu0 0.0
      %2433 = vmatmul.mubr.f32.gmra.mrb[0].mxu0 %v2323
      %v2434 = vpop.f32.mrb[0].mxu0
      %v2435 = vadd.f32 %v1014, %v2434
      %v2436 = vpop.f32.mrb[0].mxu0
      %2437 = vmatprep.mubr.f32.mxu0 0.0
      %2438 = vmatmul.mubr.f32.gmra.mrb[0].mxu0 %v2326
      %v2439 = vpop.f32.mrb[0].mxu0
      %v2440 = vadd.f32 %v1015, %v2439
      %v2441 = vpop.f32.mrb[0].mxu0
      %2442 = vmatprep.mubr.f32.mxu0 0.0
      %2443 = vmatmul.mubr.f32.gmra.mrb[0].mxu0 %v2329
      %v2444 = vpop.f32.mrb[0].mxu0
      %v2445 = vadd.f32 %v1016, %v2444
      %v2446 = vpop.f32.mrb[0].mxu0
      %2447 = vmatprep.mubr.f32.mxu0 0.0
      %2448 = vmatmul.mubr.f32.gmra.mrb[0].mxu0 %v2332
      %v2449 = vpop.f32.mrb[0].mxu0
      %v2450 = vadd.f32 %v1017, %v2449
      %v2451 = vpop.f32.mrb[0].mxu0
      %2452 = vmatprep.mubr.f32.mxu0 0.0
      %2453 = vmatmul.mubr.f32.gmra.mrb[0].mxu0 %v2335
      %v2454 = vpop.f32.mrb[0].mxu0
      %v2455 = vadd.f32 %v1018, %v2454
      %v2456 = vpop.f32.mrb[0].mxu0
      %2457 = vdwg.mxu0
      %2466 = vrot.lane.b32.xlu0 %v1203, 64
      %v2467 = vpop.permute.xlu0 %2466
      %2468 = vrot.lane.b32.xlu0 %v1204, 64
      %v2469 = vpop.permute.xlu0 %2468
      %2470 = vrot.lane.b32.xlu0 %v1205, 64
      %v2471 = vpop.permute.xlu0 %2470
      %2472 = vrot.lane.b32.xlu0 %v1206, 64
      %v2473 = vpop.permute.xlu0 %2472
      %2474 = vrot.lane.b32.xlu0 %v1207, 64
      %v2475 = vpop.permute.xlu0 %2474
      %2476 = vrot.lane.b32.xlu0 %v1208, 64
      %v2477 = vpop.permute.xlu0 %2476
      %2478 = vrot.lane.b32.xlu0 %v1209, 64
      %v2479 = vpop.permute.xlu0 %2478
      %2480 = vrot.lane.b32.xlu0 %v1210, 64
      %v2481 = vpop.permute.xlu0 %2480
      %v2483 = vsel %vm440, %v1115, 0
      %v2486 = vsel %vm440, %v1116, 0
      %v2489 = vsel %vm440, %v1117, 0
      %v2492 = vsel %vm440, %v1118, 0
      %v2495 = vsel %vm440, %v1119, 0
      %v2498 = vsel %vm440, %v1120, 0
      %v2501 = vsel %vm440, %v1121, 0
      %v2504 = vsel %vm440, %v1122, 0
      %v2506 = vsel %vm440, %v2467, 0
      %v2508 = vsel %vm440, %v2469, 0
      %v2510 = vsel %vm440, %v2471, 0
      %v2512 = vsel %vm440, %v2473, 0
      %v2514 = vsel %vm440, %v2475, 0
      %v2516 = vsel %vm440, %v2477, 0
      %v2518 = vsel %vm440, %v2479, 0
      %v2520 = vsel %vm440, %v2481, 0
      %2522 = vmatprep.subr.mxu0 0.0
      %2523 = vmatpush1.xpose.msra.mxu0 %v2506
      %2524 = vmatprep.subr.mxu0 0.0
      %2525 = vmatpush1.xpose.msra.mxu0 %v2508
      %2526 = vmatprep.subr.mxu0 0.0
      %2527 = vmatpush1.xpose.msra.mxu0 %v2510
      %2528 = vmatprep.subr.mxu0 0.0
      %2529 = vmatpush1.xpose.msra.mxu0 %v2512
      %2530 = vmatprep.subr.mxu0 0.0
      %2531 = vmatpush1.xpose.msra.mxu0 %v2514
      %2532 = vmatprep.subr.mxu0 0.0
      %2533 = vmatpush1.xpose.msra.mxu0 %v2516
      %2534 = vmatprep.subr.mxu0 0.0
      %2535 = vmatpush1.xpose.msra.mxu0 %v2518
      %2536 = vmatprep.subr.mxu0 0.0
      %2537 = vmatpush1.xpose.msra.mxu0 %v2520
      %2538 = vmatprep.subr.mxu0 0.0
      %2539 = vmatpush1.xpose.msra.mxu0 0.0
      %2540 = vmatprep.subr.mxu0 0.0
      %2541 = vmatpush1.xpose.msra.mxu0 0.0
      %2542 = vmatprep.subr.mxu0 0.0
      %2543 = vmatpush1.xpose.msra.mxu0 0.0
      %2544 = vmatprep.subr.mxu0 0.0
      %2545 = vmatpush1.xpose.msra.mxu0 0.0
      %2546 = vmatprep.subr.mxu0 0.0
      %2547 = vmatpush1.xpose.msra.mxu0 0.0
      %2548 = vmatprep.subr.mxu0 0.0
      %2549 = vmatpush1.xpose.msra.mxu0 0.0
      %2550 = vmatprep.subr.mxu0 0.0
      %2551 = vmatpush1.xpose.msra.mxu0 0.0
      %2552 = vmatprep.subr.mxu0 0.0
      %2553 = vmatpush1.xpose.msra.mxu0 0.0
      %2554 = vmatprep.subr.mxu0 0.0
      %2555 = vmatpush1.xpose.msra.mxu0 0.0
      %2556 = vmatprep.subr.mxu0 0.0
      %2557 = vmatpush1.xpose.msra.mxu0 0.0
      %2558 = vmatprep.subr.mxu0 0.0
      %2559 = vmatpush1.xpose.msra.mxu0 0.0
      %2560 = vmatprep.subr.mxu0 0.0
      %2561 = vmatpush1.xpose.msra.mxu0 0.0
      %2562 = vmatprep.subr.mxu0 0.0
      %2563 = vmatpush1.xpose.msra.mxu0 0.0
      %2564 = vmatprep.subr.mxu0 0.0
      %2565 = vmatpush1.xpose.msra.mxu0 0.0
      %2566 = vmatprep.subr.mxu0 0.0
      %2567 = vmatpush1.xpose.msra.mxu0 0.0
      %2568 = vmatprep.subr.mxu0 0.0
      %2569 = vmatpush1.xpose.msra.mxu0 0.0
      %2570 = vmatprep.subr.mxu0 0.0
      %2571 = vmatpush1.xpose.msra.mxu0 0.0
      %2572 = vmatprep.subr.mxu0 0.0
      %2573 = vmatpush1.xpose.msra.mxu0 0.0
      %2574 = vmatprep.subr.mxu0 0.0
      %2575 = vmatpush1.xpose.msra.mxu0 0.0
      %2576 = vmatprep.subr.mxu0 0.0
      %2577 = vmatpush1.xpose.msra.mxu0 0.0
      %2578 = vmatprep.subr.mxu0 0.0
      %2579 = vmatpush1.xpose.msra.mxu0 0.0
      %2580 = vmatprep.subr.mxu0 0.0
      %2581 = vmatpush1.xpose.msra.mxu0 0.0
      %2582 = vmatprep.subr.mxu0 0.0
      %2583 = vmatpush1.xpose.msra.mxu0 0.0
      %2584 = vmatprep.subr.mxu0 0.0
      %2585 = vmatpush1.xpose.msra.mxu0 0.0
      %2586 = vmatprep.mubr.f32.mxu0 0.0
      %2587 = vmatmul.mubr.f32.gmra.mrb[0].mxu0 %v2483
      %v2588 = vpop.f32.mrb[0].mxu0
      %v2589 = vadd.f32 %v1011, %v2588
      %v2590 = vpop.f32.mrb[0].mxu0
      %2591 = vmatprep.mubr.f32.mxu0 0.0
      %2592 = vmatmul.mubr.f32.gmra.mrb[0].mxu0 %v2486
      %v2593 = vpop.f32.mrb[0].mxu0
      %v2594 = vadd.f32 %v1012, %v2593
      %v2595 = vpop.f32.mrb[0].mxu0
      %2596 = vmatprep.mubr.f32.mxu0 0.0
      %2597 = vmatmul.mubr.f32.gmra.mrb[0].mxu0 %v2489
      %v2598 = vpop.f32.mrb[0].mxu0
      %v2599 = vadd.f32 %v1013, %v2598
      %v2600 = vpop.f32.mrb[0].mxu0
      %2601 = vmatprep.mubr.f32.mxu0 0.0
      %2602 = vmatmul.mubr.f32.gmra.mrb[0].mxu0 %v2492
      %v2603 = vpop.f32.mrb[0].mxu0
      %v2604 = vadd.f32 %v1014, %v2603
      %v2605 = vpop.f32.mrb[0].mxu0
      %2606 = vmatprep.mubr.f32.mxu0 0.0
      %2607 = vmatmul.mubr.f32.gmra.mrb[0].mxu0 %v2495
      %v2608 = vpop.f32.mrb[0].mxu0
      %v2609 = vadd.f32 %v1015, %v2608
      %v2610 = vpop.f32.mrb[0].mxu0
      %2611 = vmatprep.mubr.f32.mxu0 0.0
      %2612 = vmatmul.mubr.f32.gmra.mrb[0].mxu0 %v2498
      %v2613 = vpop.f32.mrb[0].mxu0
      %v2614 = vadd.f32 %v1016, %v2613
      %v2615 = vpop.f32.mrb[0].mxu0
      %2616 = vmatprep.mubr.f32.mxu0 0.0
      %2617 = vmatmul.mubr.f32.gmra.mrb[0].mxu0 %v2501
      %v2618 = vpop.f32.mrb[0].mxu0
      %v2619 = vadd.f32 %v1017, %v2618
      %v2620 = vpop.f32.mrb[0].mxu0
      %2621 = vmatprep.mubr.f32.mxu0 0.0
      %2622 = vmatmul.mubr.f32.gmra.mrb[0].mxu0 %v2504
      %v2623 = vpop.f32.mrb[0].mxu0
      %v2624 = vadd.f32 %v1018, %v2623
      %v2625 = vpop.f32.mrb[0].mxu0
      %2626 = vdwg.mxu0
      %v2627 = vsel %vm440, %v1406, -inf
      %2628 = vmax.xlane.f32.xlu0 %v2627
      %v2629 = vpop.xlane.xlu0 %2628
      %v2630 = vsel %vm440, %v1411, -inf
      %2631 = vmax.xlane.f32.xlu0 %v2630
      %v2632 = vpop.xlane.xlu0 %2631
      %v2633 = vsel %vm440, %v1416, -inf
      %2634 = vmax.xlane.f32.xlu0 %v2633
      %v2635 = vpop.xlane.xlu0 %2634
      %v2636 = vsel %vm440, %v1421, -inf
      %2637 = vmax.xlane.f32.xlu0 %v2636
      %v2638 = vpop.xlane.xlu0 %2637
      %v2639 = vsel %vm440, %v1426, -inf
      %2640 = vmax.xlane.f32.xlu0 %v2639
      %v2641 = vpop.xlane.xlu0 %2640
      %v2642 = vsel %vm440, %v1431, -inf
      %2643 = vmax.xlane.f32.xlu0 %v2642
      %v2644 = vpop.xlane.xlu0 %2643
      %v2645 = vsel %vm440, %v1436, -inf
      %2646 = vmax.xlane.f32.xlu0 %v2645
      %v2647 = vpop.xlane.xlu0 %2646
      %v2648 = vsel %vm440, %v1441, -inf
      %2649 = vmax.xlane.f32.xlu0 %v2648
      %v2650 = vpop.xlane.xlu0 %2649
      %v2651 = vsel %vm440, %v1575, -inf
      %2652 = vmax.xlane.f32.xlu0 %v2651
      %v2653 = vpop.xlane.xlu0 %2652
      %v2654 = vsel %vm440, %v1580, -inf
      %2655 = vmax.xlane.f32.xlu0 %v2654
      %v2656 = vpop.xlane.xlu0 %2655
      %v2657 = vsel %vm440, %v1585, -inf
      %2658 = vmax.xlane.f32.xlu0 %v2657
      %v2659 = vpop.xlane.xlu0 %2658
      %v2660 = vsel %vm440, %v1590, -inf
      %2661 = vmax.xlane.f32.xlu0 %v2660
      %v2662 = vpop.xlane.xlu0 %2661
      %v2663 = vsel %vm440, %v1595, -inf
      %2664 = vmax.xlane.f32.xlu0 %v2663
      %v2665 = vpop.xlane.xlu0 %2664
      %v2666 = vsel %vm440, %v1600, -inf
      %2667 = vmax.xlane.f32.xlu0 %v2666
      %v2668 = vpop.xlane.xlu0 %2667
      %v2669 = vsel %vm440, %v1605, -inf
      %2670 = vmax.xlane.f32.xlu0 %v2669
      %v2671 = vpop.xlane.xlu0 %2670
      %v2672 = vsel %vm440, %v1610, -inf
      %2673 = vmax.xlane.f32.xlu0 %v2672
      %v2674 = vpop.xlane.xlu0 %2673
      %v2675 = vsel %vm440, %v1744, -inf
      %2676 = vmax.xlane.f32.xlu0 %v2675
      %v2677 = vpop.xlane.xlu0 %2676
      %v2678 = vsel %vm440, %v1749, -inf
      %2679 = vmax.xlane.f32.xlu0 %v2678
      %v2680 = vpop.xlane.xlu0 %2679
      %v2681 = vsel %vm440, %v1754, -inf
      %2682 = vmax.xlane.f32.xlu0 %v2681
      %v2683 = vpop.xlane.xlu0 %2682
      %v2684 = vsel %vm440, %v1759, -inf
      %2685 = vmax.xlane.f32.xlu0 %v2684
      %v2686 = vpop.xlane.xlu0 %2685
      %v2687 = vsel %vm440, %v1764, -inf
      %2688 = vmax.xlane.f32.xlu0 %v2687
      %v2689 = vpop.xlane.xlu0 %2688
      %v2690 = vsel %vm440, %v1769, -inf
      %2691 = vmax.xlane.f32.xlu0 %v2690
      %v2692 = vpop.xlane.xlu0 %2691
      %v2693 = vsel %vm440, %v1774, -inf
      %2694 = vmax.xlane.f32.xlu0 %v2693
      %v2695 = vpop.xlane.xlu0 %2694
      %v2696 = vsel %vm440, %v1779, -inf
      %2697 = vmax.xlane.f32.xlu0 %v2696
      %v2698 = vpop.xlane.xlu0 %2697
      %v2699 = vsel %vm440, %v1913, -inf
      %2700 = vmax.xlane.f32.xlu0 %v2699
      %v2701 = vpop.xlane.xlu0 %2700
      %v2702 = vsel %vm440, %v1918, -inf
      %2703 = vmax.xlane.f32.xlu0 %v2702
      %v2704 = vpop.xlane.xlu0 %2703
      %v2705 = vsel %vm440, %v1923, -inf
      %2706 = vmax.xlane.f32.xlu0 %v2705
      %v2707 = vpop.xlane.xlu0 %2706
      %v2708 = vsel %vm440, %v1928, -inf
      %2709 = vmax.xlane.f32.xlu0 %v2708
      %v2710 = vpop.xlane.xlu0 %2709
      %v2711 = vsel %vm440, %v1933, -inf
      %2712 = vmax.xlane.f32.xlu0 %v2711
      %v2713 = vpop.xlane.xlu0 %2712
      %v2714 = vsel %vm440, %v1938, -inf
      %2715 = vmax.xlane.f32.xlu0 %v2714
      %v2716 = vpop.xlane.xlu0 %2715
      %v2717 = vsel %vm440, %v1943, -inf
      %2718 = vmax.xlane.f32.xlu0 %v2717
      %v2719 = vpop.xlane.xlu0 %2718
      %v2720 = vsel %vm440, %v1948, -inf
      %2721 = vmax.xlane.f32.xlu0 %v2720
      %v2722 = vpop.xlane.xlu0 %2721
      %v2723 = vsel %vm440, %v2082, -inf
      %2724 = vmax.xlane.f32.xlu0 %v2723
      %v2725 = vpop.xlane.xlu0 %2724
      %v2726 = vsel %vm440, %v2087, -inf
      %2727 = vmax.xlane.f32.xlu0 %v2726
      %v2728 = vpop.xlane.xlu0 %2727
      %v2729 = vsel %vm440, %v2092, -inf
      %2730 = vmax.xlane.f32.xlu0 %v2729
      %v2731 = vpop.xlane.xlu0 %2730
      %v2732 = vsel %vm440, %v2097, -inf
      %2733 = vmax.xlane.f32.xlu0 %v2732
      %v2734 = vpop.xlane.xlu0 %2733
      %v2735 = vsel %vm440, %v2102, -inf
      %2736 = vmax.xlane.f32.xlu0 %v2735
      %v2737 = vpop.xlane.xlu0 %2736
      %v2738 = vsel %vm440, %v2107, -inf
      %2739 = vmax.xlane.f32.xlu0 %v2738
      %v2740 = vpop.xlane.xlu0 %2739
      %v2741 = vsel %vm440, %v2112, -inf
      %2742 = vmax.xlane.f32.xlu0 %v2741
      %v2743 = vpop.xlane.xlu0 %2742
      %v2744 = vsel %vm440, %v2117, -inf
      %2745 = vmax.xlane.f32.xlu0 %v2744
      %v2746 = vpop.xlane.xlu0 %2745
      %v2747 = vsel %vm440, %v2251, -inf
      %2748 = vmax.xlane.f32.xlu0 %v2747
      %v2749 = vpop.xlane.xlu0 %2748
      %v2750 = vsel %vm440, %v2256, -inf
      %2751 = vmax.xlane.f32.xlu0 %v2750
      %v2752 = vpop.xlane.xlu0 %2751
      %v2753 = vsel %vm440, %v2261, -inf
      %2754 = vmax.xlane.f32.xlu0 %v2753
      %v2755 = vpop.xlane.xlu0 %2754
      %v2756 = vsel %vm440, %v2266, -inf
      %2757 = vmax.xlane.f32.xlu0 %v2756
      %v2758 = vpop.xlane.xlu0 %2757
      %v2759 = vsel %vm440, %v2271, -inf
      %2760 = vmax.xlane.f32.xlu0 %v2759
      %v2761 = vpop.xlane.xlu0 %2760
      %v2762 = vsel %vm440, %v2276, -inf
      %2763 = vmax.xlane.f32.xlu0 %v2762
      %v2764 = vpop.xlane.xlu0 %2763
      %v2765 = vsel %vm440, %v2281, -inf
      %2766 = vmax.xlane.f32.xlu0 %v2765
      %v2767 = vpop.xlane.xlu0 %2766
      %v2768 = vsel %vm440, %v2286, -inf
      %2769 = vmax.xlane.f32.xlu0 %v2768
      %v2770 = vpop.xlane.xlu0 %2769
      %v2771 = vsel %vm440, %v2420, -inf
      %2772 = vmax.xlane.f32.xlu0 %v2771
      %v2773 = vpop.xlane.xlu0 %2772
      %v2774 = vsel %vm440, %v2425, -inf
      %2775 = vmax.xlane.f32.xlu0 %v2774
      %v2776 = vpop.xlane.xlu0 %2775
      %v2777 = vsel %vm440, %v2430, -inf
      %2778 = vmax.xlane.f32.xlu0 %v2777
      %v2779 = vpop.xlane.xlu0 %2778
      %v2780 = vsel %vm440, %v2435, -inf
      %2781 = vmax.xlane.f32.xlu0 %v2780
      %v2782 = vpop.xlane.xlu0 %2781
      %v2783 = vsel %vm440, %v2440, -inf
      %2784 = vmax.xlane.f32.xlu0 %v2783
      %v2785 = vpop.xlane.xlu0 %2784
      %v2786 = vsel %vm440, %v2445, -inf
      %2787 = vmax.xlane.f32.xlu0 %v2786
      %v2788 = vpop.xlane.xlu0 %2787
      %v2789 = vsel %vm440, %v2450, -inf
      %2790 = vmax.xlane.f32.xlu0 %v2789
      %v2791 = vpop.xlane.xlu0 %2790
      %v2792 = vsel %vm440, %v2455, -inf
      %2793 = vmax.xlane.f32.xlu0 %v2792
      %v2794 = vpop.xlane.xlu0 %2793
      %v2795 = vsel %vm440, %v2589, -inf
      %2796 = vmax.xlane.f32.xlu0 %v2795
      %v2797 = vpop.xlane.xlu0 %2796
      %v2798 = vsel %vm440, %v2594, -inf
      %2799 = vmax.xlane.f32.xlu0 %v2798
      %v2800 = vpop.xlane.xlu0 %2799
      %v2801 = vsel %vm440, %v2599, -inf
      %2802 = vmax.xlane.f32.xlu0 %v2801
      %v2803 = vpop.xlane.xlu0 %2802
      %v2804 = vsel %vm440, %v2604, -inf
      %2805 = vmax.xlane.f32.xlu0 %v2804
      %v2806 = vpop.xlane.xlu0 %2805
      %v2807 = vsel %vm440, %v2609, -inf
      %2808 = vmax.xlane.f32.xlu0 %v2807
      %v2809 = vpop.xlane.xlu0 %2808
      %v2810 = vsel %vm440, %v2614, -inf
      %2811 = vmax.xlane.f32.xlu0 %v2810
      %v2812 = vpop.xlane.xlu0 %2811
      %v2813 = vsel %vm440, %v2619, -inf
      %2814 = vmax.xlane.f32.xlu0 %v2813
      %v2815 = vpop.xlane.xlu0 %2814
      %v2816 = vsel %vm440, %v2624, -inf
      %2817 = vmax.xlane.f32.xlu0 %v2816
      %v2818 = vpop.xlane.xlu0 %2817
      %v2819 = vsub.f32 %v1406, %v2629
      %v2820 = vsub.f32 %v1411, %v2632
      %v2821 = vsub.f32 %v1416, %v2635
      %v2822 = vsub.f32 %v1421, %v2638
      %v2823 = vsub.f32 %v1426, %v2641
      %v2824 = vsub.f32 %v1431, %v2644
      %v2825 = vsub.f32 %v1436, %v2647
      %v2826 = vsub.f32 %v1441, %v2650
      %v2827 = vsub.f32 %v1575, %v2653
      %v2828 = vsub.f32 %v1580, %v2656
      %v2829 = vsub.f32 %v1585, %v2659
      %v2830 = vsub.f32 %v1590, %v2662
      %v2831 = vsub.f32 %v1595, %v2665
      %v2832 = vsub.f32 %v1600, %v2668
      %v2833 = vsub.f32 %v1605, %v2671
      %v2834 = vsub.f32 %v1610, %v2674
      %v2835 = vsub.f32 %v1744, %v2677
      %v2836 = vsub.f32 %v1749, %v2680
      %v2837 = vsub.f32 %v1754, %v2683
      %v2838 = vsub.f32 %v1759, %v2686
      %v2839 = vsub.f32 %v1764, %v2689
      %v2840 = vsub.f32 %v1769, %v2692
      %v2841 = vsub.f32 %v1774, %v2695
      %v2842 = vsub.f32 %v1779, %v2698
      %v2843 = vsub.f32 %v1913, %v2701
      %v2844 = vsub.f32 %v1918, %v2704
      %v2845 = vsub.f32 %v1923, %v2707
      %v2846 = vsub.f32 %v1928, %v2710
      %v2847 = vsub.f32 %v1933, %v2713
      %v2848 = vsub.f32 %v1938, %v2716
      %v2849 = vsub.f32 %v1943, %v2719
      %v2850 = vsub.f32 %v1948, %v2722
      %v2851 = vsub.f32 %v2082, %v2725
      %v2852 = vsub.f32 %v2087, %v2728
      %v2853 = vsub.f32 %v2092, %v2731
      %v2854 = vsub.f32 %v2097, %v2734
      %v2855 = vsub.f32 %v2102, %v2737
      %v2856 = vsub.f32 %v2107, %v2740
      %v2857 = vsub.f32 %v2112, %v2743
      %v2858 = vsub.f32 %v2117, %v2746
      %v2859 = vsub.f32 %v2251, %v2749
      %v2860 = vsub.f32 %v2256, %v2752
      %v2861 = vsub.f32 %v2261, %v2755
      %v2862 = vsub.f32 %v2266, %v2758
      %v2863 = vsub.f32 %v2271, %v2761
      %v2864 = vsub.f32 %v2276, %v2764
      %v2865 = vsub.f32 %v2281, %v2767
      %v2866 = vsub.f32 %v2286, %v2770
      %v2867 = vsub.f32 %v2420, %v2773
      %v2868 = vsub.f32 %v2425, %v2776
      %v2869 = vsub.f32 %v2430, %v2779
      %v2870 = vsub.f32 %v2435, %v2782
      %v2871 = vsub.f32 %v2440, %v2785
      %v2872 = vsub.f32 %v2445, %v2788
      %v2873 = vsub.f32 %v2450, %v2791
      %v2874 = vsub.f32 %v2455, %v2794
      %v2875 = vsub.f32 %v2589, %v2797
      %v2876 = vsub.f32 %v2594, %v2800
      %v2877 = vsub.f32 %v2599, %v2803
      %v2878 = vsub.f32 %v2604, %v2806
      %v2879 = vsub.f32 %v2609, %v2809
      %v2880 = vsub.f32 %v2614, %v2812
      %v2881 = vsub.f32 %v2619, %v2815
      %v2882 = vsub.f32 %v2624, %v2818
      %v2883 = vmul.f32 %v2819, 1.442695
      %v2884 = vpow.pop %v2883
      %v2885 = vmul.f32 %v2820, 1.442695
      %v2886 = vpow.pop %v2885
      %v2887 = vmul.f32 %v2821, 1.442695
      %v2888 = vpow.pop %v2887
      %v2889 = vmul.f32 %v2822, 1.442695
      %v2890 = vpow.pop %v2889
      %v2891 = vmul.f32 %v2823, 1.442695
      %v2892 = vpow.pop %v2891
      %v2893 = vmul.f32 %v2824, 1.442695
      %v2894 = vpow.pop %v2893
      %v2895 = vmul.f32 %v2825, 1.442695
      %v2896 = vpow.pop %v2895
      %v2897 = vmul.f32 %v2826, 1.442695
      %v2898 = vpow.pop %v2897
      %v2899 = vmul.f32 %v2827, 1.442695
      %v2900 = vpow.pop %v2899
      %v2901 = vmul.f32 %v2828, 1.442695
      %v2902 = vpow.pop %v2901
      %v2903 = vmul.f32 %v2829, 1.442695
      %v2904 = vpow.pop %v2903
      %v2905 = vmul.f32 %v2830, 1.442695
      %v2906 = vpow.pop %v2905
      %v2907 = vmul.f32 %v2831, 1.442695
      %v2908 = vpow.pop %v2907
      %v2909 = vmul.f32 %v2832, 1.442695
      %v2910 = vpow.pop %v2909
      %v2911 = vmul.f32 %v2833, 1.442695
      %v2912 = vpow.pop %v2911
      %v2913 = vmul.f32 %v2834, 1.442695
      %v2914 = vpow.pop %v2913
      %v2915 = vmul.f32 %v2835, 1.442695
      %v2916 = vpow.pop %v2915
      %v2917 = vmul.f32 %v2836, 1.442695
      %v2918 = vpow.pop %v2917
      %v2919 = vmul.f32 %v2837, 1.442695
      %v2920 = vpow.pop %v2919
      %v2921 = vmul.f32 %v2838, 1.442695
      %v2922 = vpow.pop %v2921
      %v2923 = vmul.f32 %v2839, 1.442695
      %v2924 = vpow.pop %v2923
      %v2925 = vmul.f32 %v2840, 1.442695
      %v2926 = vpow.pop %v2925
      %v2927 = vmul.f32 %v2841, 1.442695
      %v2928 = vpow.pop %v2927
      %v2929 = vmul.f32 %v2842, 1.442695
      %v2930 = vpow.pop %v2929
      %v2931 = vmul.f32 %v2843, 1.442695
      %v2932 = vpow.pop %v2931
      %v2933 = vmul.f32 %v2844, 1.442695
      %v2934 = vpow.pop %v2933
      %v2935 = vmul.f32 %v2845, 1.442695
      %v2936 = vpow.pop %v2935
      %v2937 = vmul.f32 %v2846, 1.442695
      %v2938 = vpow.pop %v2937
      %v2939 = vmul.f32 %v2847, 1.442695
      %v2940 = vpow.pop %v2939
      %v2941 = vmul.f32 %v2848, 1.442695
      %v2942 = vpow.pop %v2941
      %v2943 = vmul.f32 %v2849, 1.442695
      %v2944 = vpow.pop %v2943
      %v2945 = vmul.f32 %v2850, 1.442695
      %v2946 = vpow.pop %v2945
      %v2947 = vmul.f32 %v2851, 1.442695
      %v2948 = vpow.pop %v2947
      %v2949 = vmul.f32 %v2852, 1.442695
      %v2950 = vpow.pop %v2949
      %v2951 = vmul.f32 %v2853, 1.442695
      %v2952 = vpow.pop %v2951
      %v2953 = vmul.f32 %v2854, 1.442695
      %v2954 = vpow.pop %v2953
      %v2955 = vmul.f32 %v2855, 1.442695
      %v2956 = vpow.pop %v2955
      %v2957 = vmul.f32 %v2856, 1.442695
      %v2958 = vpow.pop %v2957
      %v2959 = vmul.f32 %v2857, 1.442695
      %v2960 = vpow.pop %v2959
      %v2961 = vmul.f32 %v2858, 1.442695
      %v2962 = vpow.pop %v2961
      %v2963 = vmul.f32 %v2859, 1.442695
      %v2964 = vpow.pop %v2963
      %v2965 = vmul.f32 %v2860, 1.442695
      %v2966 = vpow.pop %v2965
      %v2967 = vmul.f32 %v2861, 1.442695
      %v2968 = vpow.pop %v2967
      %v2969 = vmul.f32 %v2862, 1.442695
      %v2970 = vpow.pop %v2969
      %v2971 = vmul.f32 %v2863, 1.442695
      %v2972 = vpow.pop %v2971
      %v2973 = vmul.f32 %v2864, 1.442695
      %v2974 = vpow.pop %v2973
      %v2975 = vmul.f32 %v2865, 1.442695
      %v2976 = vpow.pop %v2975
      %v2977 = vmul.f32 %v2866, 1.442695
      %v2978 = vpow.pop %v2977
      %v2979 = vmul.f32 %v2867, 1.442695
      %v2980 = vpow.pop %v2979
      %v2981 = vmul.f32 %v2868, 1.442695
      %v2982 = vpow.pop %v2981
      %v2983 = vmul.f32 %v2869, 1.442695
      %v2984 = vpow.pop %v2983
      %v2985 = vmul.f32 %v2870, 1.442695
      %v2986 = vpow.pop %v2985
      %v2987 = vmul.f32 %v2871, 1.442695
      %v2988 = vpow.pop %v2987
      %v2989 = vmul.f32 %v2872, 1.442695
      %v2990 = vpow.pop %v2989
      %v2991 = vmul.f32 %v2873, 1.442695
      %v2992 = vpow.pop %v2991
      %v2993 = vmul.f32 %v2874, 1.442695
      %v2994 = vpow.pop %v2993
      %v2995 = vmul.f32 %v2875, 1.442695
      %v2996 = vpow.pop %v2995
      %v2997 = vmul.f32 %v2876, 1.442695
      %v2998 = vpow.pop %v2997
      %v2999 = vmul.f32 %v2877, 1.442695
      %v3000 = vpow.pop %v2999
      %v3001 = vmul.f32 %v2878, 1.442695
      %v3002 = vpow.pop %v3001
      %v3003 = vmul.f32 %v2879, 1.442695
      %v3004 = vpow.pop %v3003
      %v3005 = vmul.f32 %v2880, 1.442695
      %v3006 = vpow.pop %v3005
      %v3007 = vmul.f32 %v2881, 1.442695
      %v3008 = vpow.pop %v3007
      %v3009 = vmul.f32 %v2882, 1.442695
      %v3010 = vpow.pop %v3009
      %v3011 = vsel %vm440, %v2884, 0.0
      %3012 = vadd.xlane.f32.xlu0 %v3011
      %v3013 = vpop.xlane.xlu0 %3012
      %v3014 = vsel %vm440, %v2886, 0.0
      %3015 = vadd.xlane.f32.xlu0 %v3014
      %v3016 = vpop.xlane.xlu0 %3015
      %v3017 = vsel %vm440, %v2888, 0.0
      %3018 = vadd.xlane.f32.xlu0 %v3017
      %v3019 = vpop.xlane.xlu0 %3018
      %v3020 = vsel %vm440, %v2890, 0.0
      %3021 = vadd.xlane.f32.xlu0 %v3020
      %v3022 = vpop.xlane.xlu0 %3021
      %v3023 = vsel %vm440, %v2892, 0.0
      %3024 = vadd.xlane.f32.xlu0 %v3023
      %v3025 = vpop.xlane.xlu0 %3024
      %v3026 = vsel %vm440, %v2894, 0.0
      %3027 = vadd.xlane.f32.xlu0 %v3026
      %v3028 = vpop.xlane.xlu0 %3027
      %v3029 = vsel %vm440, %v2896, 0.0
      %3030 = vadd.xlane.f32.xlu0 %v3029
      %v3031 = vpop.xlane.xlu0 %3030
      %v3032 = vsel %vm440, %v2898, 0.0
      %3033 = vadd.xlane.f32.xlu0 %v3032
      %v3034 = vpop.xlane.xlu0 %3033
      %v3035 = vsel %vm440, %v2900, 0.0
      %3036 = vadd.xlane.f32.xlu0 %v3035
      %v3037 = vpop.xlane.xlu0 %3036
      %v3038 = vsel %vm440, %v2902, 0.0
      %3039 = vadd.xlane.f32.xlu0 %v3038
      %v3040 = vpop.xlane.xlu0 %3039
      %v3041 = vsel %vm440, %v2904, 0.0
      %3042 = vadd.xlane.f32.xlu0 %v3041
      %v3043 = vpop.xlane.xlu0 %3042
      %v3044 = vsel %vm440, %v2906, 0.0
      %3045 = vadd.xlane.f32.xlu0 %v3044
      %v3046 = vpop.xlane.xlu0 %3045
      %v3047 = vsel %vm440, %v2908, 0.0
      %3048 = vadd.xlane.f32.xlu0 %v3047
      %v3049 = vpop.xlane.xlu0 %3048
      %v3050 = vsel %vm440, %v2910, 0.0
      %3051 = vadd.xlane.f32.xlu0 %v3050
      %v3052 = vpop.xlane.xlu0 %3051
      %v3053 = vsel %vm440, %v2912, 0.0
      %3054 = vadd.xlane.f32.xlu0 %v3053
      %v3055 = vpop.xlane.xlu0 %3054
      %v3056 = vsel %vm440, %v2914, 0.0
      %3057 = vadd.xlane.f32.xlu0 %v3056
      %v3058 = vpop.xlane.xlu0 %3057
      %v3059 = vsel %vm440, %v2916, 0.0
      %3060 = vadd.xlane.f32.xlu0 %v3059
      %v3061 = vpop.xlane.xlu0 %3060
      %v3062 = vsel %vm440, %v2918, 0.0
      %3063 = vadd.xlane.f32.xlu0 %v3062
      %v3064 = vpop.xlane.xlu0 %3063
      %v3065 = vsel %vm440, %v2920, 0.0
      %3066 = vadd.xlane.f32.xlu0 %v3065
      %v3067 = vpop.xlane.xlu0 %3066
      %v3068 = vsel %vm440, %v2922, 0.0
      %3069 = vadd.xlane.f32.xlu0 %v3068
      %v3070 = vpop.xlane.xlu0 %3069
      %v3071 = vsel %vm440, %v2924, 0.0
      %3072 = vadd.xlane.f32.xlu0 %v3071
      %v3073 = vpop.xlane.xlu0 %3072
      %v3074 = vsel %vm440, %v2926, 0.0
      %3075 = vadd.xlane.f32.xlu0 %v3074
      %v3076 = vpop.xlane.xlu0 %3075
      %v3077 = vsel %vm440, %v2928, 0.0
      %3078 = vadd.xlane.f32.xlu0 %v3077
      %v3079 = vpop.xlane.xlu0 %3078
      %v3080 = vsel %vm440, %v2930, 0.0
      %3081 = vadd.xlane.f32.xlu0 %v3080
      %v3082 = vpop.xlane.xlu0 %3081
      %v3083 = vsel %vm440, %v2932, 0.0
      %3084 = vadd.xlane.f32.xlu0 %v3083
      %v3085 = vpop.xlane.xlu0 %3084
      %v3086 = vsel %vm440, %v2934, 0.0
      %3087 = vadd.xlane.f32.xlu0 %v3086
      %v3088 = vpop.xlane.xlu0 %3087
      %v3089 = vsel %vm440, %v2936, 0.0
      %3090 = vadd.xlane.f32.xlu0 %v3089
      %v3091 = vpop.xlane.xlu0 %3090
      %v3092 = vsel %vm440, %v2938, 0.0
      %3093 = vadd.xlane.f32.xlu0 %v3092
      %v3094 = vpop.xlane.xlu0 %3093
      %v3095 = vsel %vm440, %v2940, 0.0
      %3096 = vadd.xlane.f32.xlu0 %v3095
      %v3097 = vpop.xlane.xlu0 %3096
      %v3098 = vsel %vm440, %v2942, 0.0
      %3099 = vadd.xlane.f32.xlu0 %v3098
      %v3100 = vpop.xlane.xlu0 %3099
      %v3101 = vsel %vm440, %v2944, 0.0
      %3102 = vadd.xlane.f32.xlu0 %v3101
      %v3103 = vpop.xlane.xlu0 %3102
      %v3104 = vsel %vm440, %v2946, 0.0
      %3105 = vadd.xlane.f32.xlu0 %v3104
      %v3106 = vpop.xlane.xlu0 %3105
      %v3107 = vsel %vm440, %v2948, 0.0
      %3108 = vadd.xlane.f32.xlu0 %v3107
      %v3109 = vpop.xlane.xlu0 %3108
      %v3110 = vsel %vm440, %v2950, 0.0
      %3111 = vadd.xlane.f32.xlu0 %v3110
      %v3112 = vpop.xlane.xlu0 %3111
      %v3113 = vsel %vm440, %v2952, 0.0
      %3114 = vadd.xlane.f32.xlu0 %v3113
      %v3115 = vpop.xlane.xlu0 %3114
      %v3116 = vsel %vm440, %v2954, 0.0
      %3117 = vadd.xlane.f32.xlu0 %v3116
      %v3118 = vpop.xlane.xlu0 %3117
      %v3119 = vsel %vm440, %v2956, 0.0
      %3120 = vadd.xlane.f32.xlu0 %v3119
      %v3121 = vpop.xlane.xlu0 %3120
      %v3122 = vsel %vm440, %v2958, 0.0
      %3123 = vadd.xlane.f32.xlu0 %v3122
      %v3124 = vpop.xlane.xlu0 %3123
      %v3125 = vsel %vm440, %v2960, 0.0
      %3126 = vadd.xlane.f32.xlu0 %v3125
      %v3127 = vpop.xlane.xlu0 %3126
      %v3128 = vsel %vm440, %v2962, 0.0
      %3129 = vadd.xlane.f32.xlu0 %v3128
      %v3130 = vpop.xlane.xlu0 %3129
      %v3131 = vsel %vm440, %v2964, 0.0
      %3132 = vadd.xlane.f32.xlu0 %v3131
      %v3133 = vpop.xlane.xlu0 %3132
      %v3134 = vsel %vm440, %v2966, 0.0
      %3135 = vadd.xlane.f32.xlu0 %v3134
      %v3136 = vpop.xlane.xlu0 %3135
      %v3137 = vsel %vm440, %v2968, 0.0
      %3138 = vadd.xlane.f32.xlu0 %v3137
      %v3139 = vpop.xlane.xlu0 %3138
      %v3140 = vsel %vm440, %v2970, 0.0
      %3141 = vadd.xlane.f32.xlu0 %v3140
      %v3142 = vpop.xlane.xlu0 %3141
      %v3143 = vsel %vm440, %v2972, 0.0
      %3144 = vadd.xlane.f32.xlu0 %v3143
      %v3145 = vpop.xlane.xlu0 %3144
      %v3146 = vsel %vm440, %v2974, 0.0
      %3147 = vadd.xlane.f32.xlu0 %v3146
      %v3148 = vpop.xlane.xlu0 %3147
      %v3149 = vsel %vm440, %v2976, 0.0
      %3150 = vadd.xlane.f32.xlu0 %v3149
      %v3151 = vpop.xlane.xlu0 %3150
      %v3152 = vsel %vm440, %v2978, 0.0
      %3153 = vadd.xlane.f32.xlu0 %v3152
      %v3154 = vpop.xlane.xlu0 %3153
      %v3155 = vsel %vm440, %v2980, 0.0
      %3156 = vadd.xlane.f32.xlu0 %v3155
      %v3157 = vpop.xlane.xlu0 %3156
      %v3158 = vsel %vm440, %v2982, 0.0
      %3159 = vadd.xlane.f32.xlu0 %v3158
      %v3160 = vpop.xlane.xlu0 %3159
      %v3161 = vsel %vm440, %v2984, 0.0
      %3162 = vadd.xlane.f32.xlu0 %v3161
      %v3163 = vpop.xlane.xlu0 %3162
      %v3164 = vsel %vm440, %v2986, 0.0
      %3165 = vadd.xlane.f32.xlu0 %v3164
      %v3166 = vpop.xlane.xlu0 %3165
      %v3167 = vsel %vm440, %v2988, 0.0
      %3168 = vadd.xlane.f32.xlu0 %v3167
      %v3169 = vpop.xlane.xlu0 %3168
      %v3170 = vsel %vm440, %v2990, 0.0
      %3171 = vadd.xlane.f32.xlu0 %v3170
      %v3172 = vpop.xlane.xlu0 %3171
      %v3173 = vsel %vm440, %v2992, 0.0
      %3174 = vadd.xlane.f32.xlu0 %v3173
      %v3175 = vpop.xlane.xlu0 %3174
      %v3176 = vsel %vm440, %v2994, 0.0
      %3177 = vadd.xlane.f32.xlu0 %v3176
      %v3178 = vpop.xlane.xlu0 %3177
      %v3179 = vsel %vm440, %v2996, 0.0
      %3180 = vadd.xlane.f32.xlu0 %v3179
      %v3181 = vpop.xlane.xlu0 %3180
      %v3182 = vsel %vm440, %v2998, 0.0
      %3183 = vadd.xlane.f32.xlu0 %v3182
      %v3184 = vpop.xlane.xlu0 %3183
      %v3185 = vsel %vm440, %v3000, 0.0
      %3186 = vadd.xlane.f32.xlu0 %v3185
      %v3187 = vpop.xlane.xlu0 %3186
      %v3188 = vsel %vm440, %v3002, 0.0
      %3189 = vadd.xlane.f32.xlu0 %v3188
      %v3190 = vpop.xlane.xlu0 %3189
      %v3191 = vsel %vm440, %v3004, 0.0
      %3192 = vadd.xlane.f32.xlu0 %v3191
      %v3193 = vpop.xlane.xlu0 %3192
      %v3194 = vsel %vm440, %v3006, 0.0
      %3195 = vadd.xlane.f32.xlu0 %v3194
      %v3196 = vpop.xlane.xlu0 %3195
      %v3197 = vsel %vm440, %v3008, 0.0
      %3198 = vadd.xlane.f32.xlu0 %v3197
      %v3199 = vpop.xlane.xlu0 %3198
      %v3200 = vsel %vm440, %v3010, 0.0
      %3201 = vadd.xlane.f32.xlu0 %v3200
      %v3202 = vpop.xlane.xlu0 %3201
      %v3203 = vrcp.pop %v3013
      %v3204 = vrcp.pop %v3016
      %v3205 = vrcp.pop %v3019
      %v3206 = vrcp.pop %v3022
      %v3207 = vrcp.pop %v3025
      %v3208 = vrcp.pop %v3028
      %v3209 = vrcp.pop %v3031
      %v3210 = vrcp.pop %v3034
      %v3211 = vrcp.pop %v3037
      %v3212 = vrcp.pop %v3040
      %v3213 = vrcp.pop %v3043
      %v3214 = vrcp.pop %v3046
      %v3215 = vrcp.pop %v3049
      %v3216 = vrcp.pop %v3052
      %v3217 = vrcp.pop %v3055
      %v3218 = vrcp.pop %v3058
      %v3219 = vrcp.pop %v3061
      %v3220 = vrcp.pop %v3064
      %v3221 = vrcp.pop %v3067
      %v3222 = vrcp.pop %v3070
      %v3223 = vrcp.pop %v3073
      %v3224 = vrcp.pop %v3076
      %v3225 = vrcp.pop %v3079
      %v3226 = vrcp.pop %v3082
      %v3227 = vrcp.pop %v3085
      %v3228 = vrcp.pop %v3088
      %v3229 = vrcp.pop %v3091
      %v3230 = vrcp.pop %v3094
      %v3231 = vrcp.pop %v3097
      %v3232 = vrcp.pop %v3100
      %v3233 = vrcp.pop %v3103
      %v3234 = vrcp.pop %v3106
      %v3235 = vrcp.pop %v3109
      %v3236 = vrcp.pop %v3112
      %v3237 = vrcp.pop %v3115
      %v3238 = vrcp.pop %v3118
      %v3239 = vrcp.pop %v3121
      %v3240 = vrcp.pop %v3124
      %v3241 = vrcp.pop %v3127
      %v3242 = vrcp.pop %v3130
      %v3243 = vrcp.pop %v3133
      %v3244 = vrcp.pop %v3136
      %v3245 = vrcp.pop %v3139
      %v3246 = vrcp.pop %v3142
      %v3247 = vrcp.pop %v3145
      %v3248 = vrcp.pop %v3148
      %v3249 = vrcp.pop %v3151
      %v3250 = vrcp.pop %v3154
      %v3251 = vrcp.pop %v3157
      %v3252 = vrcp.pop %v3160
      %v3253 = vrcp.pop %v3163
      %v3254 = vrcp.pop %v3166
      %v3255 = vrcp.pop %v3169
      %v3256 = vrcp.pop %v3172
      %v3257 = vrcp.pop %v3175
      %v3258 = vrcp.pop %v3178
      %v3259 = vrcp.pop %v3181
      %v3260 = vrcp.pop %v3184
      %v3261 = vrcp.pop %v3187
      %v3262 = vrcp.pop %v3190
      %v3263 = vrcp.pop %v3193
      %v3264 = vrcp.pop %v3196
      %v3265 = vrcp.pop %v3199
      %v3266 = vrcp.pop %v3202
      %v3267 = vmul.f32 %v2884, %v3203
      %v3268 = vmul.f32 %v2886, %v3204
      %v3269 = vmul.f32 %v2888, %v3205
      %v3270 = vmul.f32 %v2890, %v3206
      %v3271 = vmul.f32 %v2892, %v3207
      %v3272 = vmul.f32 %v2894, %v3208
      %v3273 = vmul.f32 %v2896, %v3209
      %v3274 = vmul.f32 %v2898, %v3210
      %v3275 = vmul.f32 %v2900, %v3211
      %v3276 = vmul.f32 %v2902, %v3212
      %v3277 = vmul.f32 %v2904, %v3213
      %v3278 = vmul.f32 %v2906, %v3214
      %v3279 = vmul.f32 %v2908, %v3215
      %v3280 = vmul.f32 %v2910, %v3216
      %v3281 = vmul.f32 %v2912, %v3217
      %v3282 = vmul.f32 %v2914, %v3218
      %v3283 = vmul.f32 %v2916, %v3219
      %v3284 = vmul.f32 %v2918, %v3220
      %v3285 = vmul.f32 %v2920, %v3221
      %v3286 = vmul.f32 %v2922, %v3222
      %v3287 = vmul.f32 %v2924, %v3223
      %v3288 = vmul.f32 %v2926, %v3224
      %v3289 = vmul.f32 %v2928, %v3225
      %v3290 = vmul.f32 %v2930, %v3226
      %v3291 = vmul.f32 %v2932, %v3227
      %v3292 = vmul.f32 %v2934, %v3228
      %v3293 = vmul.f32 %v2936, %v3229
      %v3294 = vmul.f32 %v2938, %v3230
      %v3295 = vmul.f32 %v2940, %v3231
      %v3296 = vmul.f32 %v2942, %v3232
      %v3297 = vmul.f32 %v2944, %v3233
      %v3298 = vmul.f32 %v2946, %v3234
      %v3299 = vmul.f32 %v2948, %v3235
      %v3300 = vmul.f32 %v2950, %v3236
      %v3301 = vmul.f32 %v2952, %v3237
      %v3302 = vmul.f32 %v2954, %v3238
      %v3303 = vmul.f32 %v2956, %v3239
      %v3304 = vmul.f32 %v2958, %v3240
      %v3305 = vmul.f32 %v2960, %v3241
      %v3306 = vmul.f32 %v2962, %v3242
      %v3307 = vmul.f32 %v2964, %v3243
      %v3308 = vmul.f32 %v2966, %v3244
      %v3309 = vmul.f32 %v2968, %v3245
      %v3310 = vmul.f32 %v2970, %v3246
      %v3311 = vmul.f32 %v2972, %v3247
      %v3312 = vmul.f32 %v2974, %v3248
      %v3313 = vmul.f32 %v2976, %v3249
      %v3314 = vmul.f32 %v2978, %v3250
      %v3315 = vmul.f32 %v2980, %v3251
      %v3316 = vmul.f32 %v2982, %v3252
      %v3317 = vmul.f32 %v2984, %v3253
      %v3318 = vmul.f32 %v2986, %v3254
      %v3319 = vmul.f32 %v2988, %v3255
      %v3320 = vmul.f32 %v2990, %v3256
      %v3321 = vmul.f32 %v2992, %v3257
      %v3322 = vmul.f32 %v2994, %v3258
      %v3323 = vmul.f32 %v2996, %v3259
      %v3324 = vmul.f32 %v2998, %v3260
      %v3325 = vmul.f32 %v3000, %v3261
      %v3326 = vmul.f32 %v3002, %v3262
      %v3327 = vmul.f32 %v3004, %v3263
      %v3328 = vmul.f32 %v3006, %v3264
      %v3329 = vmul.f32 %v3008, %v3265
      %v3330 = vmul.f32 %v3010, %v3266
      %v3332 = vsel %vm440, %v3267, 0
      %v3335 = vsel %vm440, %v3268, 0
      %v3338 = vsel %vm440, %v3269, 0
      %v3341 = vsel %vm440, %v3270, 0
      %v3344 = vsel %vm440, %v3271, 0
      %v3347 = vsel %vm440, %v3272, 0
      %v3350 = vsel %vm440, %v3273, 0
      %v3353 = vsel %vm440, %v3274, 0
      %3355 = vmatprep.subr.mxu0 0.0
      %3356 = vmatpush1.msra.mxu0 %v1211
      %3357 = vmatprep.subr.mxu0 0.0
      %3358 = vmatpush1.msra.mxu0 %v1212
      %3359 = vmatprep.subr.mxu0 0.0
      %3360 = vmatpush1.msra.mxu0 %v1213
      %3361 = vmatprep.subr.mxu0 0.0
      %3362 = vmatpush1.msra.mxu0 %v1214
      %3363 = vmatprep.subr.mxu0 0.0
      %3364 = vmatpush1.msra.mxu0 %v1215
      %3365 = vmatprep.subr.mxu0 0.0
      %3366 = vmatpush1.msra.mxu0 %v1216
      %3367 = vmatprep.subr.mxu0 0.0
      %3368 = vmatpush1.msra.mxu0 %v1217
      %3369 = vmatprep.subr.mxu0 0.0
      %3370 = vmatpush1.msra.mxu0 %v1218
      %3371 = vmatprep.subr.mxu0 0.0
      %3372 = vmatpush1.msra.mxu0 0.0
      %3373 = vmatprep.subr.mxu0 0.0
      %3374 = vmatpush1.msra.mxu0 0.0
      %3375 = vmatprep.subr.mxu0 0.0
      %3376 = vmatpush1.msra.mxu0 0.0
      %3377 = vmatprep.subr.mxu0 0.0
      %3378 = vmatpush1.msra.mxu0 0.0
      %3379 = vmatprep.subr.mxu0 0.0
      %3380 = vmatpush1.msra.mxu0 0.0
      %3381 = vmatprep.subr.mxu0 0.0
      %3382 = vmatpush1.msra.mxu0 0.0
      %3383 = vmatprep.subr.mxu0 0.0
      %3384 = vmatpush1.msra.mxu0 0.0
      %3385 = vmatprep.subr.mxu0 0.0
      %3386 = vmatpush1.msra.mxu0 0.0
      %3387 = vmatprep.subr.mxu0 0.0
      %3388 = vmatpush1.msra.mxu0 0.0
      %3389 = vmatprep.subr.mxu0 0.0
      %3390 = vmatpush1.msra.mxu0 0.0
      %3391 = vmatprep.subr.mxu0 0.0
      %3392 = vmatpush1.msra.mxu0 0.0
      %3393 = vmatprep.subr.mxu0 0.0
      %3394 = vmatpush1.msra.mxu0 0.0
      %3395 = vmatprep.subr.mxu0 0.0
      %3396 = vmatpush1.msra.mxu0 0.0
      %3397 = vmatprep.subr.mxu0 0.0
      %3398 = vmatpush1.msra.mxu0 0.0
      %3399 = vmatprep.subr.mxu0 0.0
      %3400 = vmatpush1.msra.mxu0 0.0
      %3401 = vmatprep.subr.mxu0 0.0
      %3402 = vmatpush1.msra.mxu0 0.0
      %3403 = vmatprep.subr.mxu0 0.0
      %3404 = vmatpush1.msra.mxu0 0.0
      %3405 = vmatprep.subr.mxu0 0.0
      %3406 = vmatpush1.msra.mxu0 0.0
      %3407 = vmatprep.subr.mxu0 0.0
      %3408 = vmatpush1.msra.mxu0 0.0
      %3409 = vmatprep.subr.mxu0 0.0
      %3410 = vmatpush1.msra.mxu0 0.0
      %3411 = vmatprep.subr.mxu0 0.0
      %3412 = vmatpush1.msra.mxu0 0.0
      %3413 = vmatprep.subr.mxu0 0.0
      %3414 = vmatpush1.msra.mxu0 0.0
      %3415 = vmatprep.subr.mxu0 0.0
      %3416 = vmatpush1.msra.mxu0 0.0
      %3417 = vmatprep.subr.mxu0 0.0
      %3418 = vmatpush1.msra.mxu0 0.0
      %3419 = vmatprep.mubr.f32.mxu0 0.0
      %3420 = vmatmul.mubr.f32.gmra.mrb[0].mxu0 %v3332
      %v3421 = vpop.f32.mrb[0].mxu0
      %v3422 = vadd.f32 0.0, %v3421
      %v3423 = vpop.f32.mrb[0].mxu0
      %3424 = vmatprep.mubr.f32.mxu0 0.0
      %3425 = vmatmul.mubr.f32.gmra.mrb[0].mxu0 %v3335
      %v3426 = vpop.f32.mrb[0].mxu0
      %v3427 = vadd.f32 0.0, %v3426
      %v3428 = vpop.f32.mrb[0].mxu0
      %3429 = vmatprep.mubr.f32.mxu0 0.0
      %3430 = vmatmul.mubr.f32.gmra.mrb[0].mxu0 %v3338
      %v3431 = vpop.f32.mrb[0].mxu0
      %v3432 = vadd.f32 0.0, %v3431
      %v3433 = vpop.f32.mrb[0].mxu0
      %3434 = vmatprep.mubr.f32.mxu0 0.0
      %3435 = vmatmul.mubr.f32.gmra.mrb[0].mxu0 %v3341
      %v3436 = vpop.f32.mrb[0].mxu0
      %v3437 = vadd.f32 0.0, %v3436
      %v3438 = vpop.f32.mrb[0].mxu0
      %3439 = vmatprep.mubr.f32.mxu0 0.0
      %3440 = vmatmul.mubr.f32.gmra.mrb[0].mxu0 %v3344
      %v3441 = vpop.f32.mrb[0].mxu0
      %v3442 = vadd.f32 0.0, %v3441
      %v3443 = vpop.f32.mrb[0].mxu0
      %3444 = vmatprep.mubr.f32.mxu0 0.0
      %3445 = vmatmul.mubr.f32.gmra.mrb[0].mxu0 %v3347
      %v3446 = vpop.f32.mrb[0].mxu0
      %v3447 = vadd.f32 0.0, %v3446
      %v3448 = vpop.f32.mrb[0].mxu0
      %3449 = vmatprep.mubr.f32.mxu0 0.0
      %3450 = vmatmul.mubr.f32.gmra.mrb[0].mxu0 %v3350
      %v3451 = vpop.f32.mrb[0].mxu0
      %v3452 = vadd.f32 0.0, %v3451
      %v3453 = vpop.f32.mrb[0].mxu0
      %3454 = vmatprep.mubr.f32.mxu0 0.0
      %3455 = vmatmul.mubr.f32.gmra.mrb[0].mxu0 %v3353
      %v3456 = vpop.f32.mrb[0].mxu0
      %v3457 = vadd.f32 0.0, %v3456
      %v3458 = vpop.f32.mrb[0].mxu0
      %3459 = vdwg.mxu0
      %v3461 = vsel %vm440, %v3275, 0
      %v3464 = vsel %vm440, %v3276, 0
      %v3467 = vsel %vm440, %v3277, 0
      %v3470 = vsel %vm440, %v3278, 0
      %v3473 = vsel %vm440, %v3279, 0
      %v3476 = vsel %vm440, %v3280, 0
      %v3479 = vsel %vm440, %v3281, 0
      %v3482 = vsel %vm440, %v3282, 0
      %3484 = vmatprep.subr.mxu0 0.0
      %3485 = vmatpush1.msra.mxu0 %v1219
      %3486 = vmatprep.subr.mxu0 0.0
      %3487 = vmatpush1.msra.mxu0 %v1220
      %3488 = vmatprep.subr.mxu0 0.0
      %3489 = vmatpush1.msra.mxu0 %v1221
      %3490 = vmatprep.subr.mxu0 0.0
      %3491 = vmatpush1.msra.mxu0 %v1222
      %3492 = vmatprep.subr.mxu0 0.0
      %3493 = vmatpush1.msra.mxu0 %v1223
      %3494 = vmatprep.subr.mxu0 0.0
      %3495 = vmatpush1.msra.mxu0 %v1224
      %3496 = vmatprep.subr.mxu0 0.0
      %3497 = vmatpush1.msra.mxu0 %v1225
      %3498 = vmatprep.subr.mxu0 0.0
      %3499 = vmatpush1.msra.mxu0 %v1226
      %3500 = vmatprep.subr.mxu0 0.0
      %3501 = vmatpush1.msra.mxu0 0.0
      %3502 = vmatprep.subr.mxu0 0.0
      %3503 = vmatpush1.msra.mxu0 0.0
      %3504 = vmatprep.subr.mxu0 0.0
      %3505 = vmatpush1.msra.mxu0 0.0
      %3506 = vmatprep.subr.mxu0 0.0
      %3507 = vmatpush1.msra.mxu0 0.0
      %3508 = vmatprep.subr.mxu0 0.0
      %3509 = vmatpush1.msra.mxu0 0.0
      %3510 = vmatprep.subr.mxu0 0.0
      %3511 = vmatpush1.msra.mxu0 0.0
      %3512 = vmatprep.subr.mxu0 0.0
      %3513 = vmatpush1.msra.mxu0 0.0
      %3514 = vmatprep.subr.mxu0 0.0
      %3515 = vmatpush1.msra.mxu0 0.0
      %3516 = vmatprep.subr.mxu0 0.0
      %3517 = vmatpush1.msra.mxu0 0.0
      %3518 = vmatprep.subr.mxu0 0.0
      %3519 = vmatpush1.msra.mxu0 0.0
      %3520 = vmatprep.subr.mxu0 0.0
      %3521 = vmatpush1.msra.mxu0 0.0
      %3522 = vmatprep.subr.mxu0 0.0
      %3523 = vmatpush1.msra.mxu0 0.0
      %3524 = vmatprep.subr.mxu0 0.0
      %3525 = vmatpush1.msra.mxu0 0.0
      %3526 = vmatprep.subr.mxu0 0.0
      %3527 = vmatpush1.msra.mxu0 0.0
      %3528 = vmatprep.subr.mxu0 0.0
      %3529 = vmatpush1.msra.mxu0 0.0
      %3530 = vmatprep.subr.mxu0 0.0
      %3531 = vmatpush1.msra.mxu0 0.0
      %3532 = vmatprep.subr.mxu0 0.0
      %3533 = vmatpush1.msra.mxu0 0.0
      %3534 = vmatprep.subr.mxu0 0.0
      %3535 = vmatpush1.msra.mxu0 0.0
      %3536 = vmatprep.subr.mxu0 0.0
      %3537 = vmatpush1.msra.mxu0 0.0
      %3538 = vmatprep.subr.mxu0 0.0
      %3539 = vmatpush1.msra.mxu0 0.0
      %3540 = vmatprep.subr.mxu0 0.0
      %3541 = vmatpush1.msra.mxu0 0.0
      %3542 = vmatprep.subr.mxu0 0.0
      %3543 = vmatpush1.msra.mxu0 0.0
      %3544 = vmatprep.subr.mxu0 0.0
      %3545 = vmatpush1.msra.mxu0 0.0
      %3546 = vmatprep.subr.mxu0 0.0
      %3547 = vmatpush1.msra.mxu0 0.0
      %3548 = vmatprep.mubr.f32.mxu0 0.0
      %3549 = vmatmul.mubr.f32.gmra.mrb[0].mxu0 %v3461
      %v3550 = vpop.f32.mrb[0].mxu0
      %v3551 = vadd.f32 0.0, %v3550
      %v3552 = vpop.f32.mrb[0].mxu0
      %3553 = vmatprep.mubr.f32.mxu0 0.0
      %3554 = vmatmul.mubr.f32.gmra.mrb[0].mxu0 %v3464
      %v3555 = vpop.f32.mrb[0].mxu0
      %v3556 = vadd.f32 0.0, %v3555
      %v3557 = vpop.f32.mrb[0].mxu0
      %3558 = vmatprep.mubr.f32.mxu0 0.0
      %3559 = vmatmul.mubr.f32.gmra.mrb[0].mxu0 %v3467
      %v3560 = vpop.f32.mrb[0].mxu0
      %v3561 = vadd.f32 0.0, %v3560
      %v3562 = vpop.f32.mrb[0].mxu0
      %3563 = vmatprep.mubr.f32.mxu0 0.0
      %3564 = vmatmul.mubr.f32.gmra.mrb[0].mxu0 %v3470
      %v3565 = vpop.f32.mrb[0].mxu0
      %v3566 = vadd.f32 0.0, %v3565
      %v3567 = vpop.f32.mrb[0].mxu0
      %3568 = vmatprep.mubr.f32.mxu0 0.0
      %3569 = vmatmul.mubr.f32.gmra.mrb[0].mxu0 %v3473
      %v3570 = vpop.f32.mrb[0].mxu0
      %v3571 = vadd.f32 0.0, %v3570
      %v3572 = vpop.f32.mrb[0].mxu0
      %3573 = vmatprep.mubr.f32.mxu0 0.0
      %3574 = vmatmul.mubr.f32.gmra.mrb[0].mxu0 %v3476
      %v3575 = vpop.f32.mrb[0].mxu0
      %v3576 = vadd.f32 0.0, %v3575
      %v3577 = vpop.f32.mrb[0].mxu0
      %3578 = vmatprep.mubr.f32.mxu0 0.0
      %3579 = vmatmul.mubr.f32.gmra.mrb[0].mxu0 %v3479
      %v3580 = vpop.f32.mrb[0].mxu0
      %v3581 = vadd.f32 0.0, %v3580
      %v3582 = vpop.f32.mrb[0].mxu0
      %3583 = vmatprep.mubr.f32.mxu0 0.0
      %3584 = vmatmul.mubr.f32.gmra.mrb[0].mxu0 %v3482
      %v3585 = vpop.f32.mrb[0].mxu0
      %v3586 = vadd.f32 0.0, %v3585
      %v3587 = vpop.f32.mrb[0].mxu0
      %3588 = vdwg.mxu0
      %v3590 = vsel %vm440, %v3283, 0
      %v3593 = vsel %vm440, %v3284, 0
      %v3596 = vsel %vm440, %v3285, 0
      %v3599 = vsel %vm440, %v3286, 0
      %v3602 = vsel %vm440, %v3287, 0
      %v3605 = vsel %vm440, %v3288, 0
      %v3608 = vsel %vm440, %v3289, 0
      %v3611 = vsel %vm440, %v3290, 0
      %3613 = vmatprep.subr.mxu0 0.0
      %3614 = vmatpush1.msra.mxu0 %v1227
      %3615 = vmatprep.subr.mxu0 0.0
      %3616 = vmatpush1.msra.mxu0 %v1228
      %3617 = vmatprep.subr.mxu0 0.0
      %3618 = vmatpush1.msra.mxu0 %v1229
      %3619 = vmatprep.subr.mxu0 0.0
      %3620 = vmatpush1.msra.mxu0 %v1230
      %3621 = vmatprep.subr.mxu0 0.0
      %3622 = vmatpush1.msra.mxu0 %v1231
      %3623 = vmatprep.subr.mxu0 0.0
      %3624 = vmatpush1.msra.mxu0 %v1232
      %3625 = vmatprep.subr.mxu0 0.0
      %3626 = vmatpush1.msra.mxu0 %v1233
      %3627 = vmatprep.subr.mxu0 0.0
      %3628 = vmatpush1.msra.mxu0 %v1234
      %3629 = vmatprep.subr.mxu0 0.0
      %3630 = vmatpush1.msra.mxu0 0.0
      %3631 = vmatprep.subr.mxu0 0.0
      %3632 = vmatpush1.msra.mxu0 0.0
      %3633 = vmatprep.subr.mxu0 0.0
      %3634 = vmatpush1.msra.mxu0 0.0
      %3635 = vmatprep.subr.mxu0 0.0
      %3636 = vmatpush1.msra.mxu0 0.0
      %3637 = vmatprep.subr.mxu0 0.0
      %3638 = vmatpush1.msra.mxu0 0.0
      %3639 = vmatprep.subr.mxu0 0.0
      %3640 = vmatpush1.msra.mxu0 0.0
      %3641 = vmatprep.subr.mxu0 0.0
      %3642 = vmatpush1.msra.mxu0 0.0
      %3643 = vmatprep.subr.mxu0 0.0
      %3644 = vmatpush1.msra.mxu0 0.0
      %3645 = vmatprep.subr.mxu0 0.0
      %3646 = vmatpush1.msra.mxu0 0.0
      %3647 = vmatprep.subr.mxu0 0.0
      %3648 = vmatpush1.msra.mxu0 0.0
      %3649 = vmatprep.subr.mxu0 0.0
      %3650 = vmatpush1.msra.mxu0 0.0
      %3651 = vmatprep.subr.mxu0 0.0
      %3652 = vmatpush1.msra.mxu0 0.0
      %3653 = vmatprep.subr.mxu0 0.0
      %3654 = vmatpush1.msra.mxu0 0.0
      %3655 = vmatprep.subr.mxu0 0.0
      %3656 = vmatpush1.msra.mxu0 0.0
      %3657 = vmatprep.subr.mxu0 0.0
      %3658 = vmatpush1.msra.mxu0 0.0
      %3659 = vmatprep.subr.mxu0 0.0
      %3660 = vmatpush1.msra.mxu0 0.0
      %3661 = vmatprep.subr.mxu0 0.0
      %3662 = vmatpush1.msra.mxu0 0.0
      %3663 = vmatprep.subr.mxu0 0.0
      %3664 = vmatpush1.msra.mxu0 0.0
      %3665 = vmatprep.subr.mxu0 0.0
      %3666 = vmatpush1.msra.mxu0 0.0
      %3667 = vmatprep.subr.mxu0 0.0
      %3668 = vmatpush1.msra.mxu0 0.0
      %3669 = vmatprep.subr.mxu0 0.0
      %3670 = vmatpush1.msra.mxu0 0.0
      %3671 = vmatprep.subr.mxu0 0.0
      %3672 = vmatpush1.msra.mxu0 0.0
      %3673 = vmatprep.subr.mxu0 0.0
      %3674 = vmatpush1.msra.mxu0 0.0
      %3675 = vmatprep.subr.mxu0 0.0
      %3676 = vmatpush1.msra.mxu0 0.0
      %3677 = vmatprep.mubr.f32.mxu0 0.0
      %3678 = vmatmul.mubr.f32.gmra.mrb[0].mxu0 %v3590
      %v3679 = vpop.f32.mrb[0].mxu0
      %v3680 = vadd.f32 0.0, %v3679
      %v3681 = vpop.f32.mrb[0].mxu0
      %3682 = vmatprep.mubr.f32.mxu0 0.0
      %3683 = vmatmul.mubr.f32.gmra.mrb[0].mxu0 %v3593
      %v3684 = vpop.f32.mrb[0].mxu0
      %v3685 = vadd.f32 0.0, %v3684
      %v3686 = vpop.f32.mrb[0].mxu0
      %3687 = vmatprep.mubr.f32.mxu0 0.0
      %3688 = vmatmul.mubr.f32.gmra.mrb[0].mxu0 %v3596
      %v3689 = vpop.f32.mrb[0].mxu0
      %v3690 = vadd.f32 0.0, %v3689
      %v3691 = vpop.f32.mrb[0].mxu0
      %3692 = vmatprep.mubr.f32.mxu0 0.0
      %3693 = vmatmul.mubr.f32.gmra.mrb[0].mxu0 %v3599
      %v3694 = vpop.f32.mrb[0].mxu0
      %v3695 = vadd.f32 0.0, %v3694
      %v3696 = vpop.f32.mrb[0].mxu0
      %3697 = vmatprep.mubr.f32.mxu0 0.0
      %3698 = vmatmul.mubr.f32.gmra.mrb[0].mxu0 %v3602
      %v3699 = vpop.f32.mrb[0].mxu0
      %v3700 = vadd.f32 0.0, %v3699
      %v3701 = vpop.f32.mrb[0].mxu0
      %3702 = vmatprep.mubr.f32.mxu0 0.0
      %3703 = vmatmul.mubr.f32.gmra.mrb[0].mxu0 %v3605
      %v3704 = vpop.f32.mrb[0].mxu0
      %v3705 = vadd.f32 0.0, %v3704
      %v3706 = vpop.f32.mrb[0].mxu0
      %3707 = vmatprep.mubr.f32.mxu0 0.0
      %3708 = vmatmul.mubr.f32.gmra.mrb[0].mxu0 %v3608
      %v3709 = vpop.f32.mrb[0].mxu0
      %v3710 = vadd.f32 0.0, %v3709
      %v3711 = vpop.f32.mrb[0].mxu0
      %3712 = vmatprep.mubr.f32.mxu0 0.0
      %3713 = vmatmul.mubr.f32.gmra.mrb[0].mxu0 %v3611
      %v3714 = vpop.f32.mrb[0].mxu0
      %v3715 = vadd.f32 0.0, %v3714
      %v3716 = vpop.f32.mrb[0].mxu0
      %3717 = vdwg.mxu0
      %v3719 = vsel %vm440, %v3291, 0
      %v3722 = vsel %vm440, %v3292, 0
      %v3725 = vsel %vm440, %v3293, 0
      %v3728 = vsel %vm440, %v3294, 0
      %v3731 = vsel %vm440, %v3295, 0
      %v3734 = vsel %vm440, %v3296, 0
      %v3737 = vsel %vm440, %v3297, 0
      %v3740 = vsel %vm440, %v3298, 0
      %3742 = vmatprep.subr.mxu0 0.0
      %3743 = vmatpush1.msra.mxu0 %v1235
      %3744 = vmatprep.subr.mxu0 0.0
      %3745 = vmatpush1.msra.mxu0 %v1236
      %3746 = vmatprep.subr.mxu0 0.0
      %3747 = vmatpush1.msra.mxu0 %v1237
      %3748 = vmatprep.subr.mxu0 0.0
      %3749 = vmatpush1.msra.mxu0 %v1238
      %3750 = vmatprep.subr.mxu0 0.0
      %3751 = vmatpush1.msra.mxu0 %v1239
      %3752 = vmatprep.subr.mxu0 0.0
      %3753 = vmatpush1.msra.mxu0 %v1240
      %3754 = vmatprep.subr.mxu0 0.0
      %3755 = vmatpush1.msra.mxu0 %v1241
      %3756 = vmatprep.subr.mxu0 0.0
      %3757 = vmatpush1.msra.mxu0 %v1242
      %3758 = vmatprep.subr.mxu0 0.0
      %3759 = vmatpush1.msra.mxu0 0.0
      %3760 = vmatprep.subr.mxu0 0.0
      %3761 = vmatpush1.msra.mxu0 0.0
      %3762 = vmatprep.subr.mxu0 0.0
      %3763 = vmatpush1.msra.mxu0 0.0
      %3764 = vmatprep.subr.mxu0 0.0
      %3765 = vmatpush1.msra.mxu0 0.0
      %3766 = vmatprep.subr.mxu0 0.0
      %3767 = vmatpush1.msra.mxu0 0.0
      %3768 = vmatprep.subr.mxu0 0.0
      %3769 = vmatpush1.msra.mxu0 0.0
      %3770 = vmatprep.subr.mxu0 0.0
      %3771 = vmatpush1.msra.mxu0 0.0
      %3772 = vmatprep.subr.mxu0 0.0
      %3773 = vmatpush1.msra.mxu0 0.0
      %3774 = vmatprep.subr.mxu0 0.0
      %3775 = vmatpush1.msra.mxu0 0.0
      %3776 = vmatprep.subr.mxu0 0.0
      %3777 = vmatpush1.msra.mxu0 0.0
      %3778 = vmatprep.subr.mxu0 0.0
      %3779 = vmatpush1.msra.mxu0 0.0
      %3780 = vmatprep.subr.mxu0 0.0
      %3781 = vmatpush1.msra.mxu0 0.0
      %3782 = vmatprep.subr.mxu0 0.0
      %3783 = vmatpush1.msra.mxu0 0.0
      %3784 = vmatprep.subr.mxu0 0.0
      %3785 = vmatpush1.msra.mxu0 0.0
      %3786 = vmatprep.subr.mxu0 0.0
      %3787 = vmatpush1.msra.mxu0 0.0
      %3788 = vmatprep.subr.mxu0 0.0
      %3789 = vmatpush1.msra.mxu0 0.0
      %3790 = vmatprep.subr.mxu0 0.0
      %3791 = vmatpush1.msra.mxu0 0.0
      %3792 = vmatprep.subr.mxu0 0.0
      %3793 = vmatpush1.msra.mxu0 0.0
      %3794 = vmatprep.subr.mxu0 0.0
      %3795 = vmatpush1.msra.mxu0 0.0
      %3796 = vmatprep.subr.mxu0 0.0
      %3797 = vmatpush1.msra.mxu0 0.0
      %3798 = vmatprep.subr.mxu0 0.0
      %3799 = vmatpush1.msra.mxu0 0.0
      %3800 = vmatprep.subr.mxu0 0.0
      %3801 = vmatpush1.msra.mxu0 0.0
      %3802 = vmatprep.subr.mxu0 0.0
      %3803 = vmatpush1.msra.mxu0 0.0
      %3804 = vmatprep.subr.mxu0 0.0
      %3805 = vmatpush1.msra.mxu0 0.0
      %3806 = vmatprep.mubr.f32.mxu0 0.0
      %3807 = vmatmul.mubr.f32.gmra.mrb[0].mxu0 %v3719
      %v3808 = vpop.f32.mrb[0].mxu0
      %v3809 = vadd.f32 0.0, %v3808
      %v3810 = vpop.f32.mrb[0].mxu0
      %3811 = vmatprep.mubr.f32.mxu0 0.0
      %3812 = vmatmul.mubr.f32.gmra.mrb[0].mxu0 %v3722
      %v3813 = vpop.f32.mrb[0].mxu0
      %v3814 = vadd.f32 0.0, %v3813
      %v3815 = vpop.f32.mrb[0].mxu0
      %3816 = vmatprep.mubr.f32.mxu0 0.0
      %3817 = vmatmul.mubr.f32.gmra.mrb[0].mxu0 %v3725
      %v3818 = vpop.f32.mrb[0].mxu0
      %v3819 = vadd.f32 0.0, %v3818
      %v3820 = vpop.f32.mrb[0].mxu0
      %3821 = vmatprep.mubr.f32.mxu0 0.0
      %3822 = vmatmul.mubr.f32.gmra.mrb[0].mxu0 %v3728
      %v3823 = vpop.f32.mrb[0].mxu0
      %v3824 = vadd.f32 0.0, %v3823
      %v3825 = vpop.f32.mrb[0].mxu0
      %3826 = vmatprep.mubr.f32.mxu0 0.0
      %3827 = vmatmul.mubr.f32.gmra.mrb[0].mxu0 %v3731
      %v3828 = vpop.f32.mrb[0].mxu0
      %v3829 = vadd.f32 0.0, %v3828
      %v3830 = vpop.f32.mrb[0].mxu0
      %3831 = vmatprep.mubr.f32.mxu0 0.0
      %3832 = vmatmul.mubr.f32.gmra.mrb[0].mxu0 %v3734
      %v3833 = vpop.f32.mrb[0].mxu0
      %v3834 = vadd.f32 0.0, %v3833
      %v3835 = vpop.f32.mrb[0].mxu0
      %3836 = vmatprep.mubr.f32.mxu0 0.0
      %3837 = vmatmul.mubr.f32.gmra.mrb[0].mxu0 %v3737
      %v3838 = vpop.f32.mrb[0].mxu0
      %v3839 = vadd.f32 0.0, %v3838
      %v3840 = vpop.f32.mrb[0].mxu0
      %3841 = vmatprep.mubr.f32.mxu0 0.0
      %3842 = vmatmul.mubr.f32.gmra.mrb[0].mxu0 %v3740
      %v3843 = vpop.f32.mrb[0].mxu0
      %v3844 = vadd.f32 0.0, %v3843
      %v3845 = vpop.f32.mrb[0].mxu0
      %3846 = vdwg.mxu0
      %v3848 = vsel %vm440, %v3299, 0
      %v3851 = vsel %vm440, %v3300, 0
      %v3854 = vsel %vm440, %v3301, 0
      %v3857 = vsel %vm440, %v3302, 0
      %v3860 = vsel %vm440, %v3303, 0
      %v3863 = vsel %vm440, %v3304, 0
      %v3866 = vsel %vm440, %v3305, 0
      %v3869 = vsel %vm440, %v3306, 0
      %3871 = vmatprep.subr.mxu0 0.0
      %3872 = vmatpush1.msra.mxu0 %v1243
      %3873 = vmatprep.subr.mxu0 0.0
      %3874 = vmatpush1.msra.mxu0 %v1244
      %3875 = vmatprep.subr.mxu0 0.0
      %3876 = vmatpush1.msra.mxu0 %v1245
      %3877 = vmatprep.subr.mxu0 0.0
      %3878 = vmatpush1.msra.mxu0 %v1246
      %3879 = vmatprep.subr.mxu0 0.0
      %3880 = vmatpush1.msra.mxu0 %v1247
      %3881 = vmatprep.subr.mxu0 0.0
      %3882 = vmatpush1.msra.mxu0 %v1248
      %3883 = vmatprep.subr.mxu0 0.0
      %3884 = vmatpush1.msra.mxu0 %v1249
      %3885 = vmatprep.subr.mxu0 0.0
      %3886 = vmatpush1.msra.mxu0 %v1250
      %3887 = vmatprep.subr.mxu0 0.0
      %3888 = vmatpush1.msra.mxu0 0.0
      %3889 = vmatprep.subr.mxu0 0.0
      %3890 = vmatpush1.msra.mxu0 0.0
      %3891 = vmatprep.subr.mxu0 0.0
      %3892 = vmatpush1.msra.mxu0 0.0
      %3893 = vmatprep.subr.mxu0 0.0
      %3894 = vmatpush1.msra.mxu0 0.0
      %3895 = vmatprep.subr.mxu0 0.0
      %3896 = vmatpush1.msra.mxu0 0.0
      %3897 = vmatprep.subr.mxu0 0.0
      %3898 = vmatpush1.msra.mxu0 0.0
      %3899 = vmatprep.subr.mxu0 0.0
      %3900 = vmatpush1.msra.mxu0 0.0
      %3901 = vmatprep.subr.mxu0 0.0
      %3902 = vmatpush1.msra.mxu0 0.0
      %3903 = vmatprep.subr.mxu0 0.0
      %3904 = vmatpush1.msra.mxu0 0.0
      %3905 = vmatprep.subr.mxu0 0.0
      %3906 = vmatpush1.msra.mxu0 0.0
      %3907 = vmatprep.subr.mxu0 0.0
      %3908 = vmatpush1.msra.mxu0 0.0
      %3909 = vmatprep.subr.mxu0 0.0
      %3910 = vmatpush1.msra.mxu0 0.0
      %3911 = vmatprep.subr.mxu0 0.0
      %3912 = vmatpush1.msra.mxu0 0.0
      %3913 = vmatprep.subr.mxu0 0.0
      %3914 = vmatpush1.msra.mxu0 0.0
      %3915 = vmatprep.subr.mxu0 0.0
      %3916 = vmatpush1.msra.mxu0 0.0
      %3917 = vmatprep.subr.mxu0 0.0
      %3918 = vmatpush1.msra.mxu0 0.0
      %3919 = vmatprep.subr.mxu0 0.0
      %3920 = vmatpush1.msra.mxu0 0.0
      %3921 = vmatprep.subr.mxu0 0.0
      %3922 = vmatpush1.msra.mxu0 0.0
      %3923 = vmatprep.subr.mxu0 0.0
      %3924 = vmatpush1.msra.mxu0 0.0
      %3925 = vmatprep.subr.mxu0 0.0
      %3926 = vmatpush1.msra.mxu0 0.0
      %3927 = vmatprep.subr.mxu0 0.0
      %3928 = vmatpush1.msra.mxu0 0.0
      %3929 = vmatprep.subr.mxu0 0.0
      %3930 = vmatpush1.msra.mxu0 0.0
      %3931 = vmatprep.subr.mxu0 0.0
      %3932 = vmatpush1.msra.mxu0 0.0
      %3933 = vmatprep.subr.mxu0 0.0
      %3934 = vmatpush1.msra.mxu0 0.0
      %3935 = vmatprep.mubr.f32.mxu0 0.0
      %3936 = vmatmul.mubr.f32.gmra.mrb[0].mxu0 %v3848
      %v3937 = vpop.f32.mrb[0].mxu0
      %v3938 = vadd.f32 0.0, %v3937
      %v3939 = vpop.f32.mrb[0].mxu0
      %3940 = vmatprep.mubr.f32.mxu0 0.0
      %3941 = vmatmul.mubr.f32.gmra.mrb[0].mxu0 %v3851
      %v3942 = vpop.f32.mrb[0].mxu0
      %v3943 = vadd.f32 0.0, %v3942
      %v3944 = vpop.f32.mrb[0].mxu0
      %3945 = vmatprep.mubr.f32.mxu0 0.0
      %3946 = vmatmul.mubr.f32.gmra.mrb[0].mxu0 %v3854
      %v3947 = vpop.f32.mrb[0].mxu0
      %v3948 = vadd.f32 0.0, %v3947
      %v3949 = vpop.f32.mrb[0].mxu0
      %3950 = vmatprep.mubr.f32.mxu0 0.0
      %3951 = vmatmul.mubr.f32.gmra.mrb[0].mxu0 %v3857
      %v3952 = vpop.f32.mrb[0].mxu0
      %v3953 = vadd.f32 0.0, %v3952
      %v3954 = vpop.f32.mrb[0].mxu0
      %3955 = vmatprep.mubr.f32.mxu0 0.0
      %3956 = vmatmul.mubr.f32.gmra.mrb[0].mxu0 %v3860
      %v3957 = vpop.f32.mrb[0].mxu0
      %v3958 = vadd.f32 0.0, %v3957
      %v3959 = vpop.f32.mrb[0].mxu0
      %3960 = vmatprep.mubr.f32.mxu0 0.0
      %3961 = vmatmul.mubr.f32.gmra.mrb[0].mxu0 %v3863
      %v3962 = vpop.f32.mrb[0].mxu0
      %v3963 = vadd.f32 0.0, %v3962
      %v3964 = vpop.f32.mrb[0].mxu0
      %3965 = vmatprep.mubr.f32.mxu0 0.0
      %3966 = vmatmul.mubr.f32.gmra.mrb[0].mxu0 %v3866
      %v3967 = vpop.f32.mrb[0].mxu0
      %v3968 = vadd.f32 0.0, %v3967
      %v3969 = vpop.f32.mrb[0].mxu0
      %3970 = vmatprep.mubr.f32.mxu0 0.0
      %3971 = vmatmul.mubr.f32.gmra.mrb[0].mxu0 %v3869
      %v3972 = vpop.f32.mrb[0].mxu0
      %v3973 = vadd.f32 0.0, %v3972
      %v3974 = vpop.f32.mrb[0].mxu0
      %3975 = vdwg.mxu0
      %v3977 = vsel %vm440, %v3307, 0
      %v3980 = vsel %vm440, %v3308, 0
      %v3983 = vsel %vm440, %v3309, 0
      %v3986 = vsel %vm440, %v3310, 0
      %v3989 = vsel %vm440, %v3311, 0
      %v3992 = vsel %vm440, %v3312, 0
      %v3995 = vsel %vm440, %v3313, 0
      %v3998 = vsel %vm440, %v3314, 0
      %4000 = vmatprep.subr.mxu0 0.0
      %4001 = vmatpush1.msra.mxu0 %v1251
      %4002 = vmatprep.subr.mxu0 0.0
      %4003 = vmatpush1.msra.mxu0 %v1252
      %4004 = vmatprep.subr.mxu0 0.0
      %4005 = vmatpush1.msra.mxu0 %v1253
      %4006 = vmatprep.subr.mxu0 0.0
      %4007 = vmatpush1.msra.mxu0 %v1254
      %4008 = vmatprep.subr.mxu0 0.0
      %4009 = vmatpush1.msra.mxu0 %v1255
      %4010 = vmatprep.subr.mxu0 0.0
      %4011 = vmatpush1.msra.mxu0 %v1256
      %4012 = vmatprep.subr.mxu0 0.0
      %4013 = vmatpush1.msra.mxu0 %v1257
      %4014 = vmatprep.subr.mxu0 0.0
      %4015 = vmatpush1.msra.mxu0 %v1258
      %4016 = vmatprep.subr.mxu0 0.0
      %4017 = vmatpush1.msra.mxu0 0.0
      %4018 = vmatprep.subr.mxu0 0.0
      %4019 = vmatpush1.msra.mxu0 0.0
      %4020 = vmatprep.subr.mxu0 0.0
      %4021 = vmatpush1.msra.mxu0 0.0
      %4022 = vmatprep.subr.mxu0 0.0
      %4023 = vmatpush1.msra.mxu0 0.0
      %4024 = vmatprep.subr.mxu0 0.0
      %4025 = vmatpush1.msra.mxu0 0.0
      %4026 = vmatprep.subr.mxu0 0.0
      %4027 = vmatpush1.msra.mxu0 0.0
      %4028 = vmatprep.subr.mxu0 0.0
      %4029 = vmatpush1.msra.mxu0 0.0
      %4030 = vmatprep.subr.mxu0 0.0
      %4031 = vmatpush1.msra.mxu0 0.0
      %4032 = vmatprep.subr.mxu0 0.0
      %4033 = vmatpush1.msra.mxu0 0.0
      %4034 = vmatprep.subr.mxu0 0.0
      %4035 = vmatpush1.msra.mxu0 0.0
      %4036 = vmatprep.subr.mxu0 0.0
      %4037 = vmatpush1.msra.mxu0 0.0
      %4038 = vmatprep.subr.mxu0 0.0
      %4039 = vmatpush1.msra.mxu0 0.0
      %4040 = vmatprep.subr.mxu0 0.0
      %4041 = vmatpush1.msra.mxu0 0.0
      %4042 = vmatprep.subr.mxu0 0.0
      %4043 = vmatpush1.msra.mxu0 0.0
      %4044 = vmatprep.subr.mxu0 0.0
      %4045 = vmatpush1.msra.mxu0 0.0
      %4046 = vmatprep.subr.mxu0 0.0
      %4047 = vmatpush1.msra.mxu0 0.0
      %4048 = vmatprep.subr.mxu0 0.0
      %4049 = vmatpush1.msra.mxu0 0.0
      %4050 = vmatprep.subr.mxu0 0.0
      %4051 = vmatpush1.msra.mxu0 0.0
      %4052 = vmatprep.subr.mxu0 0.0
      %4053 = vmatpush1.msra.mxu0 0.0
      %4054 = vmatprep.subr.mxu0 0.0
      %4055 = vmatpush1.msra.mxu0 0.0
      %4056 = vmatprep.subr.mxu0 0.0
      %4057 = vmatpush1.msra.mxu0 0.0
      %4058 = vmatprep.subr.mxu0 0.0
      %4059 = vmatpush1.msra.mxu0 0.0
      %4060 = vmatprep.subr.mxu0 0.0
      %4061 = vmatpush1.msra.mxu0 0.0
      %4062 = vmatprep.subr.mxu0 0.0
      %4063 = vmatpush1.msra.mxu0 0.0
      %4064 = vmatprep.mubr.f32.mxu0 0.0
      %4065 = vmatmul.mubr.f32.gmra.mrb[0].mxu0 %v3977
      %v4066 = vpop.f32.mrb[0].mxu0
      %v4067 = vadd.f32 0.0, %v4066
      %v4068 = vpop.f32.mrb[0].mxu0
      %4069 = vmatprep.mubr.f32.mxu0 0.0
      %4070 = vmatmul.mubr.f32.gmra.mrb[0].mxu0 %v3980
      %v4071 = vpop.f32.mrb[0].mxu0
      %v4072 = vadd.f32 0.0, %v4071
      %v4073 = vpop.f32.mrb[0].mxu0
      %4074 = vmatprep.mubr.f32.mxu0 0.0
      %4075 = vmatmul.mubr.f32.gmra.mrb[0].mxu0 %v3983
      %v4076 = vpop.f32.mrb[0].mxu0
      %v4077 = vadd.f32 0.0, %v4076
      %v4078 = vpop.f32.mrb[0].mxu0
      %4079 = vmatprep.mubr.f32.mxu0 0.0
      %4080 = vmatmul.mubr.f32.gmra.mrb[0].mxu0 %v3986
      %v4081 = vpop.f32.mrb[0].mxu0
      %v4082 = vadd.f32 0.0, %v4081
      %v4083 = vpop.f32.mrb[0].mxu0
      %4084 = vmatprep.mubr.f32.mxu0 0.0
      %4085 = vmatmul.mubr.f32.gmra.mrb[0].mxu0 %v3989
      %v4086 = vpop.f32.mrb[0].mxu0
      %v4087 = vadd.f32 0.0, %v4086
      %v4088 = vpop.f32.mrb[0].mxu0
      %4089 = vmatprep.mubr.f32.mxu0 0.0
      %4090 = vmatmul.mubr.f32.gmra.mrb[0].mxu0 %v3992
      %v4091 = vpop.f32.mrb[0].mxu0
      %v4092 = vadd.f32 0.0, %v4091
      %v4093 = vpop.f32.mrb[0].mxu0
      %4094 = vmatprep.mubr.f32.mxu0 0.0
      %4095 = vmatmul.mubr.f32.gmra.mrb[0].mxu0 %v3995
      %v4096 = vpop.f32.mrb[0].mxu0
      %v4097 = vadd.f32 0.0, %v4096
      %v4098 = vpop.f32.mrb[0].mxu0
      %4099 = vmatprep.mubr.f32.mxu0 0.0
      %4100 = vmatmul.mubr.f32.gmra.mrb[0].mxu0 %v3998
      %v4101 = vpop.f32.mrb[0].mxu0
      %v4102 = vadd.f32 0.0, %v4101
      %v4103 = vpop.f32.mrb[0].mxu0
      %4104 = vdwg.mxu0
      %v4106 = vsel %vm440, %v3315, 0
      %v4109 = vsel %vm440, %v3316, 0
      %v4112 = vsel %vm440, %v3317, 0
      %v4115 = vsel %vm440, %v3318, 0
      %v4118 = vsel %vm440, %v3319, 0
      %v4121 = vsel %vm440, %v3320, 0
      %v4124 = vsel %vm440, %v3321, 0
      %v4127 = vsel %vm440, %v3322, 0
      %4129 = vmatprep.subr.mxu0 0.0
      %4130 = vmatpush1.msra.mxu0 %v1259
      %4131 = vmatprep.subr.mxu0 0.0
      %4132 = vmatpush1.msra.mxu0 %v1260
      %4133 = vmatprep.subr.mxu0 0.0
      %4134 = vmatpush1.msra.mxu0 %v1261
      %4135 = vmatprep.subr.mxu0 0.0
      %4136 = vmatpush1.msra.mxu0 %v1262
      %4137 = vmatprep.subr.mxu0 0.0
      %4138 = vmatpush1.msra.mxu0 %v1263
      %4139 = vmatprep.subr.mxu0 0.0
      %4140 = vmatpush1.msra.mxu0 %v1264
      %4141 = vmatprep.subr.mxu0 0.0
      %4142 = vmatpush1.msra.mxu0 %v1265
      %4143 = vmatprep.subr.mxu0 0.0
      %4144 = vmatpush1.msra.mxu0 %v1266
      %4145 = vmatprep.subr.mxu0 0.0
      %4146 = vmatpush1.msra.mxu0 0.0
      %4147 = vmatprep.subr.mxu0 0.0
      %4148 = vmatpush1.msra.mxu0 0.0
      %4149 = vmatprep.subr.mxu0 0.0
      %4150 = vmatpush1.msra.mxu0 0.0
      %4151 = vmatprep.subr.mxu0 0.0
      %4152 = vmatpush1.msra.mxu0 0.0
      %4153 = vmatprep.subr.mxu0 0.0
      %4154 = vmatpush1.msra.mxu0 0.0
      %4155 = vmatprep.subr.mxu0 0.0
      %4156 = vmatpush1.msra.mxu0 0.0
      %4157 = vmatprep.subr.mxu0 0.0
      %4158 = vmatpush1.msra.mxu0 0.0
      %4159 = vmatprep.subr.mxu0 0.0
      %4160 = vmatpush1.msra.mxu0 0.0
      %4161 = vmatprep.subr.mxu0 0.0
      %4162 = vmatpush1.msra.mxu0 0.0
      %4163 = vmatprep.subr.mxu0 0.0
      %4164 = vmatpush1.msra.mxu0 0.0
      %4165 = vmatprep.subr.mxu0 0.0
      %4166 = vmatpush1.msra.mxu0 0.0
      %4167 = vmatprep.subr.mxu0 0.0
      %4168 = vmatpush1.msra.mxu0 0.0
      %4169 = vmatprep.subr.mxu0 0.0
      %4170 = vmatpush1.msra.mxu0 0.0
      %4171 = vmatprep.subr.mxu0 0.0
      %4172 = vmatpush1.msra.mxu0 0.0
      %4173 = vmatprep.subr.mxu0 0.0
      %4174 = vmatpush1.msra.mxu0 0.0
      %4175 = vmatprep.subr.mxu0 0.0
      %4176 = vmatpush1.msra.mxu0 0.0
      %4177 = vmatprep.subr.mxu0 0.0
      %4178 = vmatpush1.msra.mxu0 0.0
      %4179 = vmatprep.subr.mxu0 0.0
      %4180 = vmatpush1.msra.mxu0 0.0
      %4181 = vmatprep.subr.mxu0 0.0
      %4182 = vmatpush1.msra.mxu0 0.0
      %4183 = vmatprep.subr.mxu0 0.0
      %4184 = vmatpush1.msra.mxu0 0.0
      %4185 = vmatprep.subr.mxu0 0.0
      %4186 = vmatpush1.msra.mxu0 0.0
      %4187 = vmatprep.subr.mxu0 0.0
      %4188 = vmatpush1.msra.mxu0 0.0
      %4189 = vmatprep.subr.mxu0 0.0
      %4190 = vmatpush1.msra.mxu0 0.0
      %4191 = vmatprep.subr.mxu0 0.0
      %4192 = vmatpush1.msra.mxu0 0.0
      %4193 = vmatprep.mubr.f32.mxu0 0.0
      %4194 = vmatmul.mubr.f32.gmra.mrb[0].mxu0 %v4106
      %v4195 = vpop.f32.mrb[0].mxu0
      %v4196 = vadd.f32 0.0, %v4195
      %v4197 = vpop.f32.mrb[0].mxu0
      %4198 = vmatprep.mubr.f32.mxu0 0.0
      %4199 = vmatmul.mubr.f32.gmra.mrb[0].mxu0 %v4109
      %v4200 = vpop.f32.mrb[0].mxu0
      %v4201 = vadd.f32 0.0, %v4200
      %v4202 = vpop.f32.mrb[0].mxu0
      %4203 = vmatprep.mubr.f32.mxu0 0.0
      %4204 = vmatmul.mubr.f32.gmra.mrb[0].mxu0 %v4112
      %v4205 = vpop.f32.mrb[0].mxu0
      %v4206 = vadd.f32 0.0, %v4205
      %v4207 = vpop.f32.mrb[0].mxu0
      %4208 = vmatprep.mubr.f32.mxu0 0.0
      %4209 = vmatmul.mubr.f32.gmra.mrb[0].mxu0 %v4115
      %v4210 = vpop.f32.mrb[0].mxu0
      %v4211 = vadd.f32 0.0, %v4210
      %v4212 = vpop.f32.mrb[0].mxu0
      %4213 = vmatprep.mubr.f32.mxu0 0.0
      %4214 = vmatmul.mubr.f32.gmra.mrb[0].mxu0 %v4118
      %v4215 = vpop.f32.mrb[0].mxu0
      %v4216 = vadd.f32 0.0, %v4215
      %v4217 = vpop.f32.mrb[0].mxu0
      %4218 = vmatprep.mubr.f32.mxu0 0.0
      %4219 = vmatmul.mubr.f32.gmra.mrb[0].mxu0 %v4121
      %v4220 = vpop.f32.mrb[0].mxu0
      %v4221 = vadd.f32 0.0, %v4220
      %v4222 = vpop.f32.mrb[0].mxu0
      %4223 = vmatprep.mubr.f32.mxu0 0.0
      %4224 = vmatmul.mubr.f32.gmra.mrb[0].mxu0 %v4124
      %v4225 = vpop.f32.mrb[0].mxu0
      %v4226 = vadd.f32 0.0, %v4225
      %v4227 = vpop.f32.mrb[0].mxu0
      %4228 = vmatprep.mubr.f32.mxu0 0.0
      %4229 = vmatmul.mubr.f32.gmra.mrb[0].mxu0 %v4127
      %v4230 = vpop.f32.mrb[0].mxu0
      %v4231 = vadd.f32 0.0, %v4230
      %v4232 = vpop.f32.mrb[0].mxu0
      %4233 = vdwg.mxu0
      %v4235 = vsel %vm440, %v3323, 0
      %v4238 = vsel %vm440, %v3324, 0
      %v4241 = vsel %vm440, %v3325, 0
      %v4244 = vsel %vm440, %v3326, 0
      %v4247 = vsel %vm440, %v3327, 0
      %v4250 = vsel %vm440, %v3328, 0
      %v4253 = vsel %vm440, %v3329, 0
      %v4256 = vsel %vm440, %v3330, 0
      %4258 = vmatprep.subr.mxu0 0.0
      %4259 = vmatpush1.msra.mxu0 %v1267
      %4260 = vmatprep.subr.mxu0 0.0
      %4261 = vmatpush1.msra.mxu0 %v1268
      %4262 = vmatprep.subr.mxu0 0.0
      %4263 = vmatpush1.msra.mxu0 %v1269
      %4264 = vmatprep.subr.mxu0 0.0
      %4265 = vmatpush1.msra.mxu0 %v1270
      %4266 = vmatprep.subr.mxu0 0.0
      %4267 = vmatpush1.msra.mxu0 %v1271
      %4268 = vmatprep.subr.mxu0 0.0
      %4269 = vmatpush1.msra.mxu0 %v1272
      %4270 = vmatprep.subr.mxu0 0.0
      %4271 = vmatpush1.msra.mxu0 %v1273
      %4272 = vmatprep.subr.mxu0 0.0
      %4273 = vmatpush1.msra.mxu0 %v1274
      %4274 = vmatprep.subr.mxu0 0.0
      %4275 = vmatpush1.msra.mxu0 0.0
      %4276 = vmatprep.subr.mxu0 0.0
      %4277 = vmatpush1.msra.mxu0 0.0
      %4278 = vmatprep.subr.mxu0 0.0
      %4279 = vmatpush1.msra.mxu0 0.0
      %4280 = vmatprep.subr.mxu0 0.0
      %4281 = vmatpush1.msra.mxu0 0.0
      %4282 = vmatprep.subr.mxu0 0.0
      %4283 = vmatpush1.msra.mxu0 0.0
      %4284 = vmatprep.subr.mxu0 0.0
      %4285 = vmatpush1.msra.mxu0 0.0
      %4286 = vmatprep.subr.mxu0 0.0
      %4287 = vmatpush1.msra.mxu0 0.0
      %4288 = vmatprep.subr.mxu0 0.0
      %4289 = vmatpush1.msra.mxu0 0.0
      %4290 = vmatprep.subr.mxu0 0.0
      %4291 = vmatpush1.msra.mxu0 0.0
      %4292 = vmatprep.subr.mxu0 0.0
      %4293 = vmatpush1.msra.mxu0 0.0
      %4294 = vmatprep.subr.mxu0 0.0
      %4295 = vmatpush1.msra.mxu0 0.0
      %4296 = vmatprep.subr.mxu0 0.0
      %4297 = vmatpush1.msra.mxu0 0.0
      %4298 = vmatprep.subr.mxu0 0.0
      %4299 = vmatpush1.msra.mxu0 0.0
      %4300 = vmatprep.subr.mxu0 0.0
      %4301 = vmatpush1.msra.mxu0 0.0
      %4302 = vmatprep.subr.mxu0 0.0
      %4303 = vmatpush1.msra.mxu0 0.0
      %4304 = vmatprep.subr.mxu0 0.0
      %4305 = vmatpush1.msra.mxu0 0.0
      %4306 = vmatprep.subr.mxu0 0.0
      %4307 = vmatpush1.msra.mxu0 0.0
      %4308 = vmatprep.subr.mxu0 0.0
      %4309 = vmatpush1.msra.mxu0 0.0
      %4310 = vmatprep.subr.mxu0 0.0
      %4311 = vmatpush1.msra.mxu0 0.0
      %4312 = vmatprep.subr.mxu0 0.0
      %4313 = vmatpush1.msra.mxu0 0.0
      %4314 = vmatprep.subr.mxu0 0.0
      %4315 = vmatpush1.msra.mxu0 0.0
      %4316 = vmatprep.subr.mxu0 0.0
      %4317 = vmatpush1.msra.mxu0 0.0
      %4318 = vmatprep.subr.mxu0 0.0
      %4319 = vmatpush1.msra.mxu0 0.0
      %4320 = vmatprep.subr.mxu0 0.0
      %4321 = vmatpush1.msra.mxu0 0.0
      %4322 = vmatprep.mubr.f32.mxu0 0.0
      %4323 = vmatmul.mubr.f32.gmra.mrb[0].mxu0 %v4235
      %v4324 = vpop.f32.mrb[0].mxu0
      %v4325 = vadd.f32 0.0, %v4324
      %v4326 = vpop.f32.mrb[0].mxu0
      %4327 = vmatprep.mubr.f32.mxu0 0.0
      %4328 = vmatmul.mubr.f32.gmra.mrb[0].mxu0 %v4238
      %v4329 = vpop.f32.mrb[0].mxu0
      %v4330 = vadd.f32 0.0, %v4329
      %v4331 = vpop.f32.mrb[0].mxu0
      %4332 = vmatprep.mubr.f32.mxu0 0.0
      %4333 = vmatmul.mubr.f32.gmra.mrb[0].mxu0 %v4241
      %v4334 = vpop.f32.mrb[0].mxu0
      %v4335 = vadd.f32 0.0, %v4334
      %v4336 = vpop.f32.mrb[0].mxu0
      %4337 = vmatprep.mubr.f32.mxu0 0.0
      %4338 = vmatmul.mubr.f32.gmra.mrb[0].mxu0 %v4244
      %v4339 = vpop.f32.mrb[0].mxu0
      %v4340 = vadd.f32 0.0, %v4339
      %v4341 = vpop.f32.mrb[0].mxu0
      %4342 = vmatprep.mubr.f32.mxu0 0.0
      %4343 = vmatmul.mubr.f32.gmra.mrb[0].mxu0 %v4247
      %v4344 = vpop.f32.mrb[0].mxu0
      %v4345 = vadd.f32 0.0, %v4344
      %v4346 = vpop.f32.mrb[0].mxu0
      %4347 = vmatprep.mubr.f32.mxu0 0.0
      %4348 = vmatmul.mubr.f32.gmra.mrb[0].mxu0 %v4250
      %v4349 = vpop.f32.mrb[0].mxu0
      %v4350 = vadd.f32 0.0, %v4349
      %v4351 = vpop.f32.mrb[0].mxu0
      %4352 = vmatprep.mubr.f32.mxu0 0.0
      %4353 = vmatmul.mubr.f32.gmra.mrb[0].mxu0 %v4253
      %v4354 = vpop.f32.mrb[0].mxu0
      %v4355 = vadd.f32 0.0, %v4354
      %v4356 = vpop.f32.mrb[0].mxu0
      %4357 = vmatprep.mubr.f32.mxu0 0.0
      %4358 = vmatmul.mubr.f32.gmra.mrb[0].mxu0 %v4256
      %v4359 = vpop.f32.mrb[0].mxu0
      %v4360 = vadd.f32 0.0, %v4359
      %v4361 = vpop.f32.mrb[0].mxu0
      %4362 = vdwg.mxu0
      %v4363 = vsel %vm440, %v3422, 0.0
      %v4364 = vsel %vm440, %v3551, 0.0
      %v4365 = vadd.f32 %v4363, %v4364
      %v4366 = vsel %vm440, %v3680, 0.0
      %v4367 = vadd.f32 %v4365, %v4366
      %v4368 = vsel %vm440, %v3809, 0.0
      %v4369 = vadd.f32 %v4367, %v4368
      %v4370 = vsel %vm440, %v3938, 0.0
      %v4371 = vadd.f32 %v4369, %v4370
      %v4372 = vsel %vm440, %v4067, 0.0
      %v4373 = vadd.f32 %v4371, %v4372
      %v4374 = vsel %vm440, %v4196, 0.0
      %v4375 = vadd.f32 %v4373, %v4374
      %v4376 = vsel %vm440, %v4325, 0.0
      %v4377 = vadd.f32 %v4375, %v4376
      %v4378 = vsel %vm440, %v3427, 0.0
      %v4379 = vsel %vm440, %v3556, 0.0
      %v4380 = vadd.f32 %v4378, %v4379
      %v4381 = vsel %vm440, %v3685, 0.0
      %v4382 = vadd.f32 %v4380, %v4381
      %v4383 = vsel %vm440, %v3814, 0.0
      %v4384 = vadd.f32 %v4382, %v4383
      %v4385 = vsel %vm440, %v3943, 0.0
      %v4386 = vadd.f32 %v4384, %v4385
      %v4387 = vsel %vm440, %v4072, 0.0
      %v4388 = vadd.f32 %v4386, %v4387
      %v4389 = vsel %vm440, %v4201, 0.0
      %v4390 = vadd.f32 %v4388, %v4389
      %v4391 = vsel %vm440, %v4330, 0.0
      %v4392 = vadd.f32 %v4390, %v4391
      %v4393 = vsel %vm440, %v3432, 0.0
      %v4394 = vsel %vm440, %v3561, 0.0
      %v4395 = vadd.f32 %v4393, %v4394
      %v4396 = vsel %vm440, %v3690, 0.0
      %v4397 = vadd.f32 %v4395, %v4396
      %v4398 = vsel %vm440, %v3819, 0.0
      %v4399 = vadd.f32 %v4397, %v4398
      %v4400 = vsel %vm440, %v3948, 0.0
      %v4401 = vadd.f32 %v4399, %v4400
      %v4402 = vsel %vm440, %v4077, 0.0
      %v4403 = vadd.f32 %v4401, %v4402
      %v4404 = vsel %vm440, %v4206, 0.0
      %v4405 = vadd.f32 %v4403, %v4404
      %v4406 = vsel %vm440, %v4335, 0.0
      %v4407 = vadd.f32 %v4405, %v4406
      %v4408 = vsel %vm440, %v3437, 0.0
      %v4409 = vsel %vm440, %v3566, 0.0
      %v4410 = vadd.f32 %v4408, %v4409
      %v4411 = vsel %vm440, %v3695, 0.0
      %v4412 = vadd.f32 %v4410, %v4411
      %v4413 = vsel %vm440, %v3824, 0.0
      %v4414 = vadd.f32 %v4412, %v4413
      %v4415 = vsel %vm440, %v3953, 0.0
      %v4416 = vadd.f32 %v4414, %v4415
      %v4417 = vsel %vm440, %v4082, 0.0
      %v4418 = vadd.f32 %v4416, %v4417
      %v4419 = vsel %vm440, %v4211, 0.0
      %v4420 = vadd.f32 %v4418, %v4419
      %v4421 = vsel %vm440, %v4340, 0.0
      %v4422 = vadd.f32 %v4420, %v4421
      %v4423 = vsel %vm440, %v3442, 0.0
      %v4424 = vsel %vm440, %v3571, 0.0
      %v4425 = vadd.f32 %v4423, %v4424
      %v4426 = vsel %vm440, %v3700, 0.0
      %v4427 = vadd.f32 %v4425, %v4426
      %v4428 = vsel %vm440, %v3829, 0.0
      %v4429 = vadd.f32 %v4427, %v4428
      %v4430 = vsel %vm440, %v3958, 0.0
      %v4431 = vadd.f32 %v4429, %v4430
      %v4432 = vsel %vm440, %v4087, 0.0
      %v4433 = vadd.f32 %v4431, %v4432
      %v4434 = vsel %vm440, %v4216, 0.0
      %v4435 = vadd.f32 %v4433, %v4434
      %v4436 = vsel %vm440, %v4345, 0.0
      %v4437 = vadd.f32 %v4435, %v4436
      %v4438 = vsel %vm440, %v3447, 0.0
      %v4439 = vsel %vm440, %v3576, 0.0
      %v4440 = vadd.f32 %v4438, %v4439
      %v4441 = vsel %vm440, %v3705, 0.0
      %v4442 = vadd.f32 %v4440, %v4441
      %v4443 = vsel %vm440, %v3834, 0.0
      %v4444 = vadd.f32 %v4442, %v4443
      %v4445 = vsel %vm440, %v3963, 0.0
      %v4446 = vadd.f32 %v4444, %v4445
      %v4447 = vsel %vm440, %v4092, 0.0
      %v4448 = vadd.f32 %v4446, %v4447
      %v4449 = vsel %vm440, %v4221, 0.0
      %v4450 = vadd.f32 %v4448, %v4449
      %v4451 = vsel %vm440, %v4350, 0.0
      %v4452 = vadd.f32 %v4450, %v4451
      %v4453 = vsel %vm440, %v3452, 0.0
      %v4454 = vsel %vm440, %v3581, 0.0
      %v4455 = vadd.f32 %v4453, %v4454
      %v4456 = vsel %vm440, %v3710, 0.0
      %v4457 = vadd.f32 %v4455, %v4456
      %v4458 = vsel %vm440, %v3839, 0.0
      %v4459 = vadd.f32 %v4457, %v4458
      %v4460 = vsel %vm440, %v3968, 0.0
      %v4461 = vadd.f32 %v4459, %v4460
      %v4462 = vsel %vm440, %v4097, 0.0
      %v4463 = vadd.f32 %v4461, %v4462
      %v4464 = vsel %vm440, %v4226, 0.0
      %v4465 = vadd.f32 %v4463, %v4464
      %v4466 = vsel %vm440, %v4355, 0.0
      %v4467 = vadd.f32 %v4465, %v4466
      %v4468 = vsel %vm440, %v3457, 0.0
      %v4469 = vsel %vm440, %v3586, 0.0
      %v4470 = vadd.f32 %v4468, %v4469
      %v4471 = vsel %vm440, %v3715, 0.0
      %v4472 = vadd.f32 %v4470, %v4471
      %v4473 = vsel %vm440, %v3844, 0.0
      %v4474 = vadd.f32 %v4472, %v4473
      %v4475 = vsel %vm440, %v3973, 0.0
      %v4476 = vadd.f32 %v4474, %v4475
      %v4477 = vsel %vm440, %v4102, 0.0
      %v4478 = vadd.f32 %v4476, %v4477
      %v4479 = vsel %vm440, %v4231, 0.0
      %v4480 = vadd.f32 %v4478, %v4479
      %v4481 = vsel %vm440, %v4360, 0.0
      %v4482 = vadd.f32 %v4480, %v4481
      %v4483 = vmul.f32 %v927, %v1022
      %v4484 = vmul.f32 %v928, %v1022
      %v4485 = vmul.f32 %v929, %v1022
      %v4486 = vmul.f32 %v930, %v1022
      %v4487 = vmul.f32 %v931, %v1022
      %v4488 = vmul.f32 %v932, %v1022
      %v4489 = vmul.f32 %v933, %v1022
      %v4490 = vmul.f32 %v934, %v1022
      %v4491 = vmul.f32 %v927, %v1026
      %v4492 = vmul.f32 %v928, %v1026
      %v4493 = vmul.f32 %v929, %v1026
      %v4494 = vmul.f32 %v930, %v1026
      %v4495 = vmul.f32 %v931, %v1026
      %v4496 = vmul.f32 %v932, %v1026
      %v4497 = vmul.f32 %v933, %v1026
      %v4498 = vmul.f32 %v934, %v1026
      %v4499 = vmul.f32 %v927, %v1030
      %v4500 = vmul.f32 %v928, %v1030
      %v4501 = vmul.f32 %v929, %v1030
      %v4502 = vmul.f32 %v930, %v1030
      %v4503 = vmul.f32 %v931, %v1030
      %v4504 = vmul.f32 %v932, %v1030
      %v4505 = vmul.f32 %v933, %v1030
      %v4506 = vmul.f32 %v934, %v1030
      %v4507 = vmul.f32 %v927, %v1034
      %v4508 = vmul.f32 %v928, %v1034
      %v4509 = vmul.f32 %v929, %v1034
      %v4510 = vmul.f32 %v930, %v1034
      %v4511 = vmul.f32 %v931, %v1034
      %v4512 = vmul.f32 %v932, %v1034
      %v4513 = vmul.f32 %v933, %v1034
      %v4514 = vmul.f32 %v934, %v1034
      %v4515 = vmul.f32 %v927, %v1038
      %v4516 = vmul.f32 %v928, %v1038
      %v4517 = vmul.f32 %v929, %v1038
      %v4518 = vmul.f32 %v930, %v1038
      %v4519 = vmul.f32 %v931, %v1038
      %v4520 = vmul.f32 %v932, %v1038
      %v4521 = vmul.f32 %v933, %v1038
      %v4522 = vmul.f32 %v934, %v1038
      %v4523 = vmul.f32 %v927, %v1042
      %v4524 = vmul.f32 %v928, %v1042
      %v4525 = vmul.f32 %v929, %v1042
      %v4526 = vmul.f32 %v930, %v1042
      %v4527 = vmul.f32 %v931, %v1042
      %v4528 = vmul.f32 %v932, %v1042
      %v4529 = vmul.f32 %v933, %v1042
      %v4530 = vmul.f32 %v934, %v1042
      %v4531 = vmul.f32 %v927, %v1046
      %v4532 = vmul.f32 %v928, %v1046
      %v4533 = vmul.f32 %v929, %v1046
      %v4534 = vmul.f32 %v930, %v1046
      %v4535 = vmul.f32 %v931, %v1046
      %v4536 = vmul.f32 %v932, %v1046
      %v4537 = vmul.f32 %v933, %v1046
      %v4538 = vmul.f32 %v934, %v1046
      %v4539 = vmul.f32 %v927, %v1050
      %v4540 = vmul.f32 %v928, %v1050
      %v4541 = vmul.f32 %v929, %v1050
      %v4542 = vmul.f32 %v930, %v1050
      %v4543 = vmul.f32 %v931, %v1050
      %v4544 = vmul.f32 %v932, %v1050
      %v4545 = vmul.f32 %v933, %v1050
      %v4546 = vmul.f32 %v934, %v1050
      %v4547 = vmul.f32 %v873, %v1124
      %v4548 = vmul.f32 %v879, %v1124
      %v4549 = vmul.f32 %v885, %v1124
      %v4550 = vmul.f32 %v891, %v1124
      %v4551 = vmul.f32 %v897, %v1124
      %v4552 = vmul.f32 %v903, %v1124
      %v4553 = vmul.f32 %v909, %v1124
      %v4554 = vmul.f32 %v915, %v1124
      %v4555 = vmul.f32 %v873, %v1126
      %v4556 = vmul.f32 %v879, %v1126
      %v4557 = vmul.f32 %v885, %v1126
      %v4558 = vmul.f32 %v891, %v1126
      %v4559 = vmul.f32 %v897, %v1126
      %v4560 = vmul.f32 %v903, %v1126
      %v4561 = vmul.f32 %v909, %v1126
      %v4562 = vmul.f32 %v915, %v1126
      %v4563 = vmul.f32 %v873, %v1128
      %v4564 = vmul.f32 %v879, %v1128
      %v4565 = vmul.f32 %v885, %v1128
      %v4566 = vmul.f32 %v891, %v1128
      %v4567 = vmul.f32 %v897, %v1128
      %v4568 = vmul.f32 %v903, %v1128
      %v4569 = vmul.f32 %v909, %v1128
      %v4570 = vmul.f32 %v915, %v1128
      %v4571 = vmul.f32 %v873, %v1130
      %v4572 = vmul.f32 %v879, %v1130
      %v4573 = vmul.f32 %v885, %v1130
      %v4574 = vmul.f32 %v891, %v1130
      %v4575 = vmul.f32 %v897, %v1130
      %v4576 = vmul.f32 %v903, %v1130
      %v4577 = vmul.f32 %v909, %v1130
      %v4578 = vmul.f32 %v915, %v1130
      %v4579 = vmul.f32 %v873, %v1132
      %v4580 = vmul.f32 %v879, %v1132
      %v4581 = vmul.f32 %v885, %v1132
      %v4582 = vmul.f32 %v891, %v1132
      %v4583 = vmul.f32 %v897, %v1132
      %v4584 = vmul.f32 %v903, %v1132
      %v4585 = vmul.f32 %v909, %v1132
      %v4586 = vmul.f32 %v915, %v1132
      %v4587 = vmul.f32 %v873, %v1134
      %v4588 = vmul.f32 %v879, %v1134
      %v4589 = vmul.f32 %v885, %v1134
      %v4590 = vmul.f32 %v891, %v1134
      %v4591 = vmul.f32 %v897, %v1134
      %v4592 = vmul.f32 %v903, %v1134
      %v4593 = vmul.f32 %v909, %v1134
      %v4594 = vmul.f32 %v915, %v1134
      %v4595 = vmul.f32 %v873, %v1136
      %v4596 = vmul.f32 %v879, %v1136
      %v4597 = vmul.f32 %v885, %v1136
      %v4598 = vmul.f32 %v891, %v1136
      %v4599 = vmul.f32 %v897, %v1136
      %v4600 = vmul.f32 %v903, %v1136
      %v4601 = vmul.f32 %v909, %v1136
      %v4602 = vmul.f32 %v915, %v1136
      %v4603 = vmul.f32 %v873, %v1138
      %v4604 = vmul.f32 %v879, %v1138
      %v4605 = vmul.f32 %v885, %v1138
      %v4606 = vmul.f32 %v891, %v1138
      %v4607 = vmul.f32 %v897, %v1138
      %v4608 = vmul.f32 %v903, %v1138
      %v4609 = vmul.f32 %v909, %v1138
      %v4610 = vmul.f32 %v915, %v1138
      %v4611 = vmul.f32 %v875, %v1022
      %v4612 = vmul.f32 %v881, %v1022
      %v4613 = vmul.f32 %v887, %v1022
      %v4614 = vmul.f32 %v893, %v1022
      %v4615 = vmul.f32 %v899, %v1022
      %v4616 = vmul.f32 %v905, %v1022
      %v4617 = vmul.f32 %v911, %v1022
      %v4618 = vmul.f32 %v917, %v1022
      %v4619 = vmul.f32 %v875, %v1026
      %v4620 = vmul.f32 %v881, %v1026
      %v4621 = vmul.f32 %v887, %v1026
      %v4622 = vmul.f32 %v893, %v1026
      %v4623 = vmul.f32 %v899, %v1026
      %v4624 = vmul.f32 %v905, %v1026
      %v4625 = vmul.f32 %v911, %v1026
      %v4626 = vmul.f32 %v917, %v1026
      %v4627 = vmul.f32 %v875, %v1030
      %v4628 = vmul.f32 %v881, %v1030
      %v4629 = vmul.f32 %v887, %v1030
      %v4630 = vmul.f32 %v893, %v1030
      %v4631 = vmul.f32 %v899, %v1030
      %v4632 = vmul.f32 %v905, %v1030
      %v4633 = vmul.f32 %v911, %v1030
      %v4634 = vmul.f32 %v917, %v1030
      %v4635 = vmul.f32 %v875, %v1034
      %v4636 = vmul.f32 %v881, %v1034
      %v4637 = vmul.f32 %v887, %v1034
      %v4638 = vmul.f32 %v893, %v1034
      %v4639 = vmul.f32 %v899, %v1034
      %v4640 = vmul.f32 %v905, %v1034
      %v4641 = vmul.f32 %v911, %v1034
      %v4642 = vmul.f32 %v917, %v1034
      %v4643 = vmul.f32 %v875, %v1038
      %v4644 = vmul.f32 %v881, %v1038
      %v4645 = vmul.f32 %v887, %v1038
      %v4646 = vmul.f32 %v893, %v1038
      %v4647 = vmul.f32 %v899, %v1038
      %v4648 = vmul.f32 %v905, %v1038
      %v4649 = vmul.f32 %v911, %v1038
      %v4650 = vmul.f32 %v917, %v1038
      %v4651 = vmul.f32 %v875, %v1042
      %v4652 = vmul.f32 %v881, %v1042
      %v4653 = vmul.f32 %v887, %v1042
      %v4654 = vmul.f32 %v893, %v1042
      %v4655 = vmul.f32 %v899, %v1042
      %v4656 = vmul.f32 %v905, %v1042
      %v4657 = vmul.f32 %v911, %v1042
      %v4658 = vmul.f32 %v917, %v1042
      %v4659 = vmul.f32 %v875, %v1046
      %v4660 = vmul.f32 %v881, %v1046
      %v4661 = vmul.f32 %v887, %v1046
      %v4662 = vmul.f32 %v893, %v1046
      %v4663 = vmul.f32 %v899, %v1046
      %v4664 = vmul.f32 %v905, %v1046
      %v4665 = vmul.f32 %v911, %v1046
      %v4666 = vmul.f32 %v917, %v1046
      %v4667 = vmul.f32 %v875, %v1050
      %v4668 = vmul.f32 %v881, %v1050
      %v4669 = vmul.f32 %v887, %v1050
      %v4670 = vmul.f32 %v893, %v1050
      %v4671 = vmul.f32 %v899, %v1050
      %v4672 = vmul.f32 %v905, %v1050
      %v4673 = vmul.f32 %v911, %v1050
      %v4674 = vmul.f32 %v917, %v1050
      %4683 = vrot.lane.b32.xlu0 %v4547, 64
      %v4684 = vpop.permute.xlu0 %4683
      %4685 = vrot.lane.b32.xlu0 %v4548, 64
      %v4686 = vpop.permute.xlu0 %4685
      %4687 = vrot.lane.b32.xlu0 %v4549, 64
      %v4688 = vpop.permute.xlu0 %4687
      %4689 = vrot.lane.b32.xlu0 %v4550, 64
      %v4690 = vpop.permute.xlu0 %4689
      %4691 = vrot.lane.b32.xlu0 %v4551, 64
      %v4692 = vpop.permute.xlu0 %4691
      %4693 = vrot.lane.b32.xlu0 %v4552, 64
      %v4694 = vpop.permute.xlu0 %4693
      %4695 = vrot.lane.b32.xlu0 %v4553, 64
      %v4696 = vpop.permute.xlu0 %4695
      %4697 = vrot.lane.b32.xlu0 %v4554, 64
      %v4698 = vpop.permute.xlu0 %4697
      %v4700 = vsel %vm440, %v4483, 0
      %v4703 = vsel %vm440, %v4484, 0
      %v4706 = vsel %vm440, %v4485, 0
      %v4709 = vsel %vm440, %v4486, 0
      %v4712 = vsel %vm440, %v4487, 0
      %v4715 = vsel %vm440, %v4488, 0
      %v4718 = vsel %vm440, %v4489, 0
      %v4721 = vsel %vm440, %v4490, 0
      %v4723 = vsel %vm440, %v4684, 0
      %v4725 = vsel %vm440, %v4686, 0
      %v4727 = vsel %vm440, %v4688, 0
      %v4729 = vsel %vm440, %v4690, 0
      %v4731 = vsel %vm440, %v4692, 0
      %v4733 = vsel %vm440, %v4694, 0
      %v4735 = vsel %vm440, %v4696, 0
      %v4737 = vsel %vm440, %v4698, 0
      %4739 = vmatprep.subr.mxu0 0.0
      %4740 = vmatpush1.xpose.msra.mxu0 %v4723
      %4741 = vmatprep.subr.mxu0 0.0
      %4742 = vmatpush1.xpose.msra.mxu0 %v4725
      %4743 = vmatprep.subr.mxu0 0.0
      %4744 = vmatpush1.xpose.msra.mxu0 %v4727
      %4745 = vmatprep.subr.mxu0 0.0
      %4746 = vmatpush1.xpose.msra.mxu0 %v4729
      %4747 = vmatprep.subr.mxu0 0.0
      %4748 = vmatpush1.xpose.msra.mxu0 %v4731
      %4749 = vmatprep.subr.mxu0 0.0
      %4750 = vmatpush1.xpose.msra.mxu0 %v4733
      %4751 = vmatprep.subr.mxu0 0.0
      %4752 = vmatpush1.xpose.msra.mxu0 %v4735
      %4753 = vmatprep.subr.mxu0 0.0
      %4754 = vmatpush1.xpose.msra.mxu0 %v4737
      %4755 = vmatprep.subr.mxu0 0.0
      %4756 = vmatpush1.xpose.msra.mxu0 0.0
      %4757 = vmatprep.subr.mxu0 0.0
      %4758 = vmatpush1.xpose.msra.mxu0 0.0
      %4759 = vmatprep.subr.mxu0 0.0
      %4760 = vmatpush1.xpose.msra.mxu0 0.0
      %4761 = vmatprep.subr.mxu0 0.0
      %4762 = vmatpush1.xpose.msra.mxu0 0.0
      %4763 = vmatprep.subr.mxu0 0.0
      %4764 = vmatpush1.xpose.msra.mxu0 0.0
      %4765 = vmatprep.subr.mxu0 0.0
      %4766 = vmatpush1.xpose.msra.mxu0 0.0
      %4767 = vmatprep.subr.mxu0 0.0
      %4768 = vmatpush1.xpose.msra.mxu0 0.0
      %4769 = vmatprep.subr.mxu0 0.0
      %4770 = vmatpush1.xpose.msra.mxu0 0.0
      %4771 = vmatprep.subr.mxu0 0.0
      %4772 = vmatpush1.xpose.msra.mxu0 0.0
      %4773 = vmatprep.subr.mxu0 0.0
      %4774 = vmatpush1.xpose.msra.mxu0 0.0
      %4775 = vmatprep.subr.mxu0 0.0
      %4776 = vmatpush1.xpose.msra.mxu0 0.0
      %4777 = vmatprep.subr.mxu0 0.0
      %4778 = vmatpush1.xpose.msra.mxu0 0.0
      %4779 = vmatprep.subr.mxu0 0.0
      %4780 = vmatpush1.xpose.msra.mxu0 0.0
      %4781 = vmatprep.subr.mxu0 0.0
      %4782 = vmatpush1.xpose.msra.mxu0 0.0
      %4783 = vmatprep.subr.mxu0 0.0
      %4784 = vmatpush1.xpose.msra.mxu0 0.0
      %4785 = vmatprep.subr.mxu0 0.0
      %4786 = vmatpush1.xpose.msra.mxu0 0.0
      %4787 = vmatprep.subr.mxu0 0.0
      %4788 = vmatpush1.xpose.msra.mxu0 0.0
      %4789 = vmatprep.subr.mxu0 0.0
      %4790 = vmatpush1.xpose.msra.mxu0 0.0
      %4791 = vmatprep.subr.mxu0 0.0
      %4792 = vmatpush1.xpose.msra.mxu0 0.0
      %4793 = vmatprep.subr.mxu0 0.0
      %4794 = vmatpush1.xpose.msra.mxu0 0.0
      %4795 = vmatprep.subr.mxu0 0.0
      %4796 = vmatpush1.xpose.msra.mxu0 0.0
      %4797 = vmatprep.subr.mxu0 0.0
      %4798 = vmatpush1.xpose.msra.mxu0 0.0
      %4799 = vmatprep.subr.mxu0 0.0
      %4800 = vmatpush1.xpose.msra.mxu0 0.0
      %4801 = vmatprep.subr.mxu0 0.0
      %4802 = vmatpush1.xpose.msra.mxu0 0.0
      %4803 = vmatprep.mubr.f32.mxu0 0.0
      %4804 = vmatmul.mubr.f32.gmra.mrb[0].mxu0 %v4700
      %v4805 = vpop.f32.mrb[0].mxu0
      %v4806 = vadd.f32 %v1011, %v4805
      %v4807 = vpop.f32.mrb[0].mxu0
      %4808 = vmatprep.mubr.f32.mxu0 0.0
      %4809 = vmatmul.mubr.f32.gmra.mrb[0].mxu0 %v4703
      %v4810 = vpop.f32.mrb[0].mxu0
      %v4811 = vadd.f32 %v1012, %v4810
      %v4812 = vpop.f32.mrb[0].mxu0
      %4813 = vmatprep.mubr.f32.mxu0 0.0
      %4814 = vmatmul.mubr.f32.gmra.mrb[0].mxu0 %v4706
      %v4815 = vpop.f32.mrb[0].mxu0
      %v4816 = vadd.f32 %v1013, %v4815
      %v4817 = vpop.f32.mrb[0].mxu0
      %4818 = vmatprep.mubr.f32.mxu0 0.0
      %4819 = vmatmul.mubr.f32.gmra.mrb[0].mxu0 %v4709
      %v4820 = vpop.f32.mrb[0].mxu0
      %v4821 = vadd.f32 %v1014, %v4820
      %v4822 = vpop.f32.mrb[0].mxu0
      %4823 = vmatprep.mubr.f32.mxu0 0.0
      %4824 = vmatmul.mubr.f32.gmra.mrb[0].mxu0 %v4712
      %v4825 = vpop.f32.mrb[0].mxu0
      %v4826 = vadd.f32 %v1015, %v4825
      %v4827 = vpop.f32.mrb[0].mxu0
      %4828 = vmatprep.mubr.f32.mxu0 0.0
      %4829 = vmatmul.mubr.f32.gmra.mrb[0].mxu0 %v4715
      %v4830 = vpop.f32.mrb[0].mxu0
      %v4831 = vadd.f32 %v1016, %v4830
      %v4832 = vpop.f32.mrb[0].mxu0
      %4833 = vmatprep.mubr.f32.mxu0 0.0
      %4834 = vmatmul.mubr.f32.gmra.mrb[0].mxu0 %v4718
      %v4835 = vpop.f32.mrb[0].mxu0
      %v4836 = vadd.f32 %v1017, %v4835
      %v4837 = vpop.f32.mrb[0].mxu0
      %4838 = vmatprep.mubr.f32.mxu0 0.0
      %4839 = vmatmul.mubr.f32.gmra.mrb[0].mxu0 %v4721
      %v4840 = vpop.f32.mrb[0].mxu0
      %v4841 = vadd.f32 %v1018, %v4840
      %v4842 = vpop.f32.mrb[0].mxu0
      %4843 = vdwg.mxu0
      %4852 = vrot.lane.b32.xlu0 %v4555, 64
      %v4853 = vpop.permute.xlu0 %4852
      %4854 = vrot.lane.b32.xlu0 %v4556, 64
      %v4855 = vpop.permute.xlu0 %4854
      %4856 = vrot.lane.b32.xlu0 %v4557, 64
      %v4857 = vpop.permute.xlu0 %4856
      %4858 = vrot.lane.b32.xlu0 %v4558, 64
      %v4859 = vpop.permute.xlu0 %4858
      %4860 = vrot.lane.b32.xlu0 %v4559, 64
      %v4861 = vpop.permute.xlu0 %4860
      %4862 = vrot.lane.b32.xlu0 %v4560, 64
      %v4863 = vpop.permute.xlu0 %4862
      %4864 = vrot.lane.b32.xlu0 %v4561, 64
      %v4865 = vpop.permute.xlu0 %4864
      %4866 = vrot.lane.b32.xlu0 %v4562, 64
      %v4867 = vpop.permute.xlu0 %4866
      %v4869 = vsel %vm440, %v4491, 0
      %v4872 = vsel %vm440, %v4492, 0
      %v4875 = vsel %vm440, %v4493, 0
      %v4878 = vsel %vm440, %v4494, 0
      %v4881 = vsel %vm440, %v4495, 0
      %v4884 = vsel %vm440, %v4496, 0
      %v4887 = vsel %vm440, %v4497, 0
      %v4890 = vsel %vm440, %v4498, 0
      %v4892 = vsel %vm440, %v4853, 0
      %v4894 = vsel %vm440, %v4855, 0
      %v4896 = vsel %vm440, %v4857, 0
      %v4898 = vsel %vm440, %v4859, 0
      %v4900 = vsel %vm440, %v4861, 0
      %v4902 = vsel %vm440, %v4863, 0
      %v4904 = vsel %vm440, %v4865, 0
      %v4906 = vsel %vm440, %v4867, 0
      %4908 = vmatprep.subr.mxu0 0.0
      %4909 = vmatpush1.xpose.msra.mxu0 %v4892
      %4910 = vmatprep.subr.mxu0 0.0
      %4911 = vmatpush1.xpose.msra.mxu0 %v4894
      %4912 = vmatprep.subr.mxu0 0.0
      %4913 = vmatpush1.xpose.msra.mxu0 %v4896
      %4914 = vmatprep.subr.mxu0 0.0
      %4915 = vmatpush1.xpose.msra.mxu0 %v4898
      %4916 = vmatprep.subr.mxu0 0.0
      %4917 = vmatpush1.xpose.msra.mxu0 %v4900
      %4918 = vmatprep.subr.mxu0 0.0
      %4919 = vmatpush1.xpose.msra.mxu0 %v4902
      %4920 = vmatprep.subr.mxu0 0.0
      %4921 = vmatpush1.xpose.msra.mxu0 %v4904
      %4922 = vmatprep.subr.mxu0 0.0
      %4923 = vmatpush1.xpose.msra.mxu0 %v4906
      %4924 = vmatprep.subr.mxu0 0.0
      %4925 = vmatpush1.xpose.msra.mxu0 0.0
      %4926 = vmatprep.subr.mxu0 0.0
      %4927 = vmatpush1.xpose.msra.mxu0 0.0
      %4928 = vmatprep.subr.mxu0 0.0
      %4929 = vmatpush1.xpose.msra.mxu0 0.0
      %4930 = vmatprep.subr.mxu0 0.0
      %4931 = vmatpush1.xpose.msra.mxu0 0.0
      %4932 = vmatprep.subr.mxu0 0.0
      %4933 = vmatpush1.xpose.msra.mxu0 0.0
      %4934 = vmatprep.subr.mxu0 0.0
      %4935 = vmatpush1.xpose.msra.mxu0 0.0
      %4936 = vmatprep.subr.mxu0 0.0
      %4937 = vmatpush1.xpose.msra.mxu0 0.0
      %4938 = vmatprep.subr.mxu0 0.0
      %4939 = vmatpush1.xpose.msra.mxu0 0.0
      %4940 = vmatprep.subr.mxu0 0.0
      %4941 = vmatpush1.xpose.msra.mxu0 0.0
      %4942 = vmatprep.subr.mxu0 0.0
      %4943 = vmatpush1.xpose.msra.mxu0 0.0
      %4944 = vmatprep.subr.mxu0 0.0
      %4945 = vmatpush1.xpose.msra.mxu0 0.0
      %4946 = vmatprep.subr.mxu0 0.0
      %4947 = vmatpush1.xpose.msra.mxu0 0.0
      %4948 = vmatprep.subr.mxu0 0.0
      %4949 = vmatpush1.xpose.msra.mxu0 0.0
      %4950 = vmatprep.subr.mxu0 0.0
      %4951 = vmatpush1.xpose.msra.mxu0 0.0
      %4952 = vmatprep.subr.mxu0 0.0
      %4953 = vmatpush1.xpose.msra.mxu0 0.0
      %4954 = vmatprep.subr.mxu0 0.0
      %4955 = vmatpush1.xpose.msra.mxu0 0.0
      %4956 = vmatprep.subr.mxu0 0.0
      %4957 = vmatpush1.xpose.msra.mxu0 0.0
      %4958 = vmatprep.subr.mxu0 0.0
      %4959 = vmatpush1.xpose.msra.mxu0 0.0
      %4960 = vmatprep.subr.mxu0 0.0
      %4961 = vmatpush1.xpose.msra.mxu0 0.0
      %4962 = vmatprep.subr.mxu0 0.0
      %4963 = vmatpush1.xpose.msra.mxu0 0.0
      %4964 = vmatprep.subr.mxu0 0.0
      %4965 = vmatpush1.xpose.msra.mxu0 0.0
      %4966 = vmatprep.subr.mxu0 0.0
      %4967 = vmatpush1.xpose.msra.mxu0 0.0
      %4968 = vmatprep.subr.mxu0 0.0
      %4969 = vmatpush1.xpose.msra.mxu0 0.0
      %4970 = vmatprep.subr.mxu0 0.0
      %4971 = vmatpush1.xpose.msra.mxu0 0.0
      %4972 = vmatprep.mubr.f32.mxu0 0.0
      %4973 = vmatmul.mubr.f32.gmra.mrb[0].mxu0 %v4869
      %v4974 = vpop.f32.mrb[0].mxu0
      %v4975 = vadd.f32 %v1011, %v4974
      %v4976 = vpop.f32.mrb[0].mxu0
      %4977 = vmatprep.mubr.f32.mxu0 0.0
      %4978 = vmatmul.mubr.f32.gmra.mrb[0].mxu0 %v4872
      %v4979 = vpop.f32.mrb[0].mxu0
      %v4980 = vadd.f32 %v1012, %v4979
      %v4981 = vpop.f32.mrb[0].mxu0
      %4982 = vmatprep.mubr.f32.mxu0 0.0
      %4983 = vmatmul.mubr.f32.gmra.mrb[0].mxu0 %v4875
      %v4984 = vpop.f32.mrb[0].mxu0
      %v4985 = vadd.f32 %v1013, %v4984
      %v4986 = vpop.f32.mrb[0].mxu0
      %4987 = vmatprep.mubr.f32.mxu0 0.0
      %4988 = vmatmul.mubr.f32.gmra.mrb[0].mxu0 %v4878
      %v4989 = vpop.f32.mrb[0].mxu0
      %v4990 = vadd.f32 %v1014, %v4989
      %v4991 = vpop.f32.mrb[0].mxu0
      %4992 = vmatprep.mubr.f32.mxu0 0.0
      %4993 = vmatmul.mubr.f32.gmra.mrb[0].mxu0 %v4881
      %v4994 = vpop.f32.mrb[0].mxu0
      %v4995 = vadd.f32 %v1015, %v4994
      %v4996 = vpop.f32.mrb[0].mxu0
      %4997 = vmatprep.mubr.f32.mxu0 0.0
      %4998 = vmatmul.mubr.f32.gmra.mrb[0].mxu0 %v4884
      %v4999 = vpop.f32.mrb[0].mxu0
      %v5000 = vadd.f32 %v1016, %v4999
      %v5001 = vpop.f32.mrb[0].mxu0
      %5002 = vmatprep.mubr.f32.mxu0 0.0
      %5003 = vmatmul.mubr.f32.gmra.mrb[0].mxu0 %v4887
      %v5004 = vpop.f32.mrb[0].mxu0
      %v5005 = vadd.f32 %v1017, %v5004
      %v5006 = vpop.f32.mrb[0].mxu0
      %5007 = vmatprep.mubr.f32.mxu0 0.0
      %5008 = vmatmul.mubr.f32.gmra.mrb[0].mxu0 %v4890
      %v5009 = vpop.f32.mrb[0].mxu0
      %v5010 = vadd.f32 %v1018, %v5009
      %v5011 = vpop.f32.mrb[0].mxu0
      %5012 = vdwg.mxu0
      %5021 = vrot.lane.b32.xlu0 %v4563, 64
      %v5022 = vpop.permute.xlu0 %5021
      %5023 = vrot.lane.b32.xlu0 %v4564, 64
      %v5024 = vpop.permute.xlu0 %5023
      %5025 = vrot.lane.b32.xlu0 %v4565, 64
      %v5026 = vpop.permute.xlu0 %5025
      %5027 = vrot.lane.b32.xlu0 %v4566, 64
      %v5028 = vpop.permute.xlu0 %5027
      %5029 = vrot.lane.b32.xlu0 %v4567, 64
      %v5030 = vpop.permute.xlu0 %5029
      %5031 = vrot.lane.b32.xlu0 %v4568, 64
      %v5032 = vpop.permute.xlu0 %5031
      %5033 = vrot.lane.b32.xlu0 %v4569, 64
      %v5034 = vpop.permute.xlu0 %5033
      %5035 = vrot.lane.b32.xlu0 %v4570, 64
      %v5036 = vpop.permute.xlu0 %5035
      %v5038 = vsel %vm440, %v4499, 0
      %v5041 = vsel %vm440, %v4500, 0
      %v5044 = vsel %vm440, %v4501, 0
      %v5047 = vsel %vm440, %v4502, 0
      %v5050 = vsel %vm440, %v4503, 0
      %v5053 = vsel %vm440, %v4504, 0
      %v5056 = vsel %vm440, %v4505, 0
      %v5059 = vsel %vm440, %v4506, 0
      %v5061 = vsel %vm440, %v5022, 0
      %v5063 = vsel %vm440, %v5024, 0
      %v5065 = vsel %vm440, %v5026, 0
      %v5067 = vsel %vm440, %v5028, 0
      %v5069 = vsel %vm440, %v5030, 0
      %v5071 = vsel %vm440, %v5032, 0
      %v5073 = vsel %vm440, %v5034, 0
      %v5075 = vsel %vm440, %v5036, 0
      %5077 = vmatprep.subr.mxu0 0.0
      %5078 = vmatpush1.xpose.msra.mxu0 %v5061
      %5079 = vmatprep.subr.mxu0 0.0
      %5080 = vmatpush1.xpose.msra.mxu0 %v5063
      %5081 = vmatprep.subr.mxu0 0.0
      %5082 = vmatpush1.xpose.msra.mxu0 %v5065
      %5083 = vmatprep.subr.mxu0 0.0
      %5084 = vmatpush1.xpose.msra.mxu0 %v5067
      %5085 = vmatprep.subr.mxu0 0.0
      %5086 = vmatpush1.xpose.msra.mxu0 %v5069
      %5087 = vmatprep.subr.mxu0 0.0
      %5088 = vmatpush1.xpose.msra.mxu0 %v5071
      %5089 = vmatprep.subr.mxu0 0.0
      %5090 = vmatpush1.xpose.msra.mxu0 %v5073
      %5091 = vmatprep.subr.mxu0 0.0
      %5092 = vmatpush1.xpose.msra.mxu0 %v5075
      %5093 = vmatprep.subr.mxu0 0.0
      %5094 = vmatpush1.xpose.msra.mxu0 0.0
      %5095 = vmatprep.subr.mxu0 0.0
      %5096 = vmatpush1.xpose.msra.mxu0 0.0
      %5097 = vmatprep.subr.mxu0 0.0
      %5098 = vmatpush1.xpose.msra.mxu0 0.0
      %5099 = vmatprep.subr.mxu0 0.0
      %5100 = vmatpush1.xpose.msra.mxu0 0.0
      %5101 = vmatprep.subr.mxu0 0.0
      %5102 = vmatpush1.xpose.msra.mxu0 0.0
      %5103 = vmatprep.subr.mxu0 0.0
      %5104 = vmatpush1.xpose.msra.mxu0 0.0
      %5105 = vmatprep.subr.mxu0 0.0
      %5106 = vmatpush1.xpose.msra.mxu0 0.0
      %5107 = vmatprep.subr.mxu0 0.0
      %5108 = vmatpush1.xpose.msra.mxu0 0.0
      %5109 = vmatprep.subr.mxu0 0.0
      %5110 = vmatpush1.xpose.msra.mxu0 0.0
      %5111 = vmatprep.subr.mxu0 0.0
      %5112 = vmatpush1.xpose.msra.mxu0 0.0
      %5113 = vmatprep.subr.mxu0 0.0
      %5114 = vmatpush1.xpose.msra.mxu0 0.0
      %5115 = vmatprep.subr.mxu0 0.0
      %5116 = vmatpush1.xpose.msra.mxu0 0.0
      %5117 = vmatprep.subr.mxu0 0.0
      %5118 = vmatpush1.xpose.msra.mxu0 0.0
      %5119 = vmatprep.subr.mxu0 0.0
      %5120 = vmatpush1.xpose.msra.mxu0 0.0
      %5121 = vmatprep.subr.mxu0 0.0
      %5122 = vmatpush1.xpose.msra.mxu0 0.0
      %5123 = vmatprep.subr.mxu0 0.0
      %5124 = vmatpush1.xpose.msra.mxu0 0.0
      %5125 = vmatprep.subr.mxu0 0.0
      %5126 = vmatpush1.xpose.msra.mxu0 0.0
      %5127 = vmatprep.subr.mxu0 0.0
      %5128 = vmatpush1.xpose.msra.mxu0 0.0
      %5129 = vmatprep.subr.mxu0 0.0
      %5130 = vmatpush1.xpose.msra.mxu0 0.0
      %5131 = vmatprep.subr.mxu0 0.0
      %5132 = vmatpush1.xpose.msra.mxu0 0.0
      %5133 = vmatprep.subr.mxu0 0.0
      %5134 = vmatpush1.xpose.msra.mxu0 0.0
      %5135 = vmatprep.subr.mxu0 0.0
      %5136 = vmatpush1.xpose.msra.mxu0 0.0
      %5137 = vmatprep.subr.mxu0 0.0
      %5138 = vmatpush1.xpose.msra.mxu0 0.0
      %5139 = vmatprep.subr.mxu0 0.0
      %5140 = vmatpush1.xpose.msra.mxu0 0.0
      %5141 = vmatprep.mubr.f32.mxu0 0.0
      %5142 = vmatmul.mubr.f32.gmra.mrb[0].mxu0 %v5038
      %v5143 = vpop.f32.mrb[0].mxu0
      %v5144 = vadd.f32 %v1011, %v5143
      %v5145 = vpop.f32.mrb[0].mxu0
      %5146 = vmatprep.mubr.f32.mxu0 0.0
      %5147 = vmatmul.mubr.f32.gmra.mrb[0].mxu0 %v5041
      %v5148 = vpop.f32.mrb[0].mxu0
      %v5149 = vadd.f32 %v1012, %v5148
      %v5150 = vpop.f32.mrb[0].mxu0
      %5151 = vmatprep.mubr.f32.mxu0 0.0
      %5152 = vmatmul.mubr.f32.gmra.mrb[0].mxu0 %v5044
      %v5153 = vpop.f32.mrb[0].mxu0
      %v5154 = vadd.f32 %v1013, %v5153
      %v5155 = vpop.f32.mrb[0].mxu0
      %5156 = vmatprep.mubr.f32.mxu0 0.0
      %5157 = vmatmul.mubr.f32.gmra.mrb[0].mxu0 %v5047
      %v5158 = vpop.f32.mrb[0].mxu0
      %v5159 = vadd.f32 %v1014, %v5158
      %v5160 = vpop.f32.mrb[0].mxu0
      %5161 = vmatprep.mubr.f32.mxu0 0.0
      %5162 = vmatmul.mubr.f32.gmra.mrb[0].mxu0 %v5050
      %v5163 = vpop.f32.mrb[0].mxu0
      %v5164 = vadd.f32 %v1015, %v5163
      %v5165 = vpop.f32.mrb[0].mxu0
      %5166 = vmatprep.mubr.f32.mxu0 0.0
      %5167 = vmatmul.mubr.f32.gmra.mrb[0].mxu0 %v5053
      %v5168 = vpop.f32.mrb[0].mxu0
      %v5169 = vadd.f32 %v1016, %v5168
      %v5170 = vpop.f32.mrb[0].mxu0
      %5171 = vmatprep.mubr.f32.mxu0 0.0
      %5172 = vmatmul.mubr.f32.gmra.mrb[0].mxu0 %v5056
      %v5173 = vpop.f32.mrb[0].mxu0
      %v5174 = vadd.f32 %v1017, %v5173
      %v5175 = vpop.f32.mrb[0].mxu0
      %5176 = vmatprep.mubr.f32.mxu0 0.0
      %5177 = vmatmul.mubr.f32.gmra.mrb[0].mxu0 %v5059
      %v5178 = vpop.f32.mrb[0].mxu0
      %v5179 = vadd.f32 %v1018, %v5178
      %v5180 = vpop.f32.mrb[0].mxu0
      %5181 = vdwg.mxu0
      %5190 = vrot.lane.b32.xlu0 %v4571, 64
      %v5191 = vpop.permute.xlu0 %5190
      %5192 = vrot.lane.b32.xlu0 %v4572, 64
      %v5193 = vpop.permute.xlu0 %5192
      %5194 = vrot.lane.b32.xlu0 %v4573, 64
      %v5195 = vpop.permute.xlu0 %5194
      %5196 = vrot.lane.b32.xlu0 %v4574, 64
      %v5197 = vpop.permute.xlu0 %5196
      %5198 = vrot.lane.b32.xlu0 %v4575, 64
      %v5199 = vpop.permute.xlu0 %5198
      %5200 = vrot.lane.b32.xlu0 %v4576, 64
      %v5201 = vpop.permute.xlu0 %5200
      %5202 = vrot.lane.b32.xlu0 %v4577, 64
      %v5203 = vpop.permute.xlu0 %5202
      %5204 = vrot.lane.b32.xlu0 %v4578, 64
      %v5205 = vpop.permute.xlu0 %5204
      %v5207 = vsel %vm440, %v4507, 0
      %v5210 = vsel %vm440, %v4508, 0
      %v5213 = vsel %vm440, %v4509, 0
      %v5216 = vsel %vm440, %v4510, 0
      %v5219 = vsel %vm440, %v4511, 0
      %v5222 = vsel %vm440, %v4512, 0
      %v5225 = vsel %vm440, %v4513, 0
      %v5228 = vsel %vm440, %v4514, 0
      %v5230 = vsel %vm440, %v5191, 0
      %v5232 = vsel %vm440, %v5193, 0
      %v5234 = vsel %vm440, %v5195, 0
      %v5236 = vsel %vm440, %v5197, 0
      %v5238 = vsel %vm440, %v5199, 0
      %v5240 = vsel %vm440, %v5201, 0
      %v5242 = vsel %vm440, %v5203, 0
      %v5244 = vsel %vm440, %v5205, 0
      %5246 = vmatprep.subr.mxu0 0.0
      %5247 = vmatpush1.xpose.msra.mxu0 %v5230
      %5248 = vmatprep.subr.mxu0 0.0
      %5249 = vmatpush1.xpose.msra.mxu0 %v5232
      %5250 = vmatprep.subr.mxu0 0.0
      %5251 = vmatpush1.xpose.msra.mxu0 %v5234
      %5252 = vmatprep.subr.mxu0 0.0
      %5253 = vmatpush1.xpose.msra.mxu0 %v5236
      %5254 = vmatprep.subr.mxu0 0.0
      %5255 = vmatpush1.xpose.msra.mxu0 %v5238
      %5256 = vmatprep.subr.mxu0 0.0
      %5257 = vmatpush1.xpose.msra.mxu0 %v5240
      %5258 = vmatprep.subr.mxu0 0.0
      %5259 = vmatpush1.xpose.msra.mxu0 %v5242
      %5260 = vmatprep.subr.mxu0 0.0
      %5261 = vmatpush1.xpose.msra.mxu0 %v5244
      %5262 = vmatprep.subr.mxu0 0.0
      %5263 = vmatpush1.xpose.msra.mxu0 0.0
      %5264 = vmatprep.subr.mxu0 0.0
      %5265 = vmatpush1.xpose.msra.mxu0 0.0
      %5266 = vmatprep.subr.mxu0 0.0
      %5267 = vmatpush1.xpose.msra.mxu0 0.0
      %5268 = vmatprep.subr.mxu0 0.0
      %5269 = vmatpush1.xpose.msra.mxu0 0.0
      %5270 = vmatprep.subr.mxu0 0.0
      %5271 = vmatpush1.xpose.msra.mxu0 0.0
      %5272 = vmatprep.subr.mxu0 0.0
      %5273 = vmatpush1.xpose.msra.mxu0 0.0
      %5274 = vmatprep.subr.mxu0 0.0
      %5275 = vmatpush1.xpose.msra.mxu0 0.0
      %5276 = vmatprep.subr.mxu0 0.0
      %5277 = vmatpush1.xpose.msra.mxu0 0.0
      %5278 = vmatprep.subr.mxu0 0.0
      %5279 = vmatpush1.xpose.msra.mxu0 0.0
      %5280 = vmatprep.subr.mxu0 0.0
      %5281 = vmatpush1.xpose.msra.mxu0 0.0
      %5282 = vmatprep.subr.mxu0 0.0
      %5283 = vmatpush1.xpose.msra.mxu0 0.0
      %5284 = vmatprep.subr.mxu0 0.0
      %5285 = vmatpush1.xpose.msra.mxu0 0.0
      %5286 = vmatprep.subr.mxu0 0.0
      %5287 = vmatpush1.xpose.msra.mxu0 0.0
      %5288 = vmatprep.subr.mxu0 0.0
      %5289 = vmatpush1.xpose.msra.mxu0 0.0
      %5290 = vmatprep.subr.mxu0 0.0
      %5291 = vmatpush1.xpose.msra.mxu0 0.0
      %5292 = vmatprep.subr.mxu0 0.0
      %5293 = vmatpush1.xpose.msra.mxu0 0.0
      %5294 = vmatprep.subr.mxu0 0.0
      %5295 = vmatpush1.xpose.msra.mxu0 0.0
      %5296 = vmatprep.subr.mxu0 0.0
      %5297 = vmatpush1.xpose.msra.mxu0 0.0
      %5298 = vmatprep.subr.mxu0 0.0
      %5299 = vmatpush1.xpose.msra.mxu0 0.0
      %5300 = vmatprep.subr.mxu0 0.0
      %5301 = vmatpush1.xpose.msra.mxu0 0.0
      %5302 = vmatprep.subr.mxu0 0.0
      %5303 = vmatpush1.xpose.msra.mxu0 0.0
      %5304 = vmatprep.subr.mxu0 0.0
      %5305 = vmatpush1.xpose.msra.mxu0 0.0
      %5306 = vmatprep.subr.mxu0 0.0
      %5307 = vmatpush1.xpose.msra.mxu0 0.0
      %5308 = vmatprep.subr.mxu0 0.0
      %5309 = vmatpush1.xpose.msra.mxu0 0.0
      %5310 = vmatprep.mubr.f32.mxu0 0.0
      %5311 = vmatmul.mubr.f32.gmra.mrb[0].mxu0 %v5207
      %v5312 = vpop.f32.mrb[0].mxu0
      %v5313 = vadd.f32 %v1011, %v5312
      %v5314 = vpop.f32.mrb[0].mxu0
      %5315 = vmatprep.mubr.f32.mxu0 0.0
      %5316 = vmatmul.mubr.f32.gmra.mrb[0].mxu0 %v5210
      %v5317 = vpop.f32.mrb[0].mxu0
      %v5318 = vadd.f32 %v1012, %v5317
      %v5319 = vpop.f32.mrb[0].mxu0
      %5320 = vmatprep.mubr.f32.mxu0 0.0
      %5321 = vmatmul.mubr.f32.gmra.mrb[0].mxu0 %v5213
      %v5322 = vpop.f32.mrb[0].mxu0
      %v5323 = vadd.f32 %v1013, %v5322
      %v5324 = vpop.f32.mrb[0].mxu0
      %5325 = vmatprep.mubr.f32.mxu0 0.0
      %5326 = vmatmul.mubr.f32.gmra.mrb[0].mxu0 %v5216
      %v5327 = vpop.f32.mrb[0].mxu0
      %v5328 = vadd.f32 %v1014, %v5327
      %v5329 = vpop.f32.mrb[0].mxu0
      %5330 = vmatprep.mubr.f32.mxu0 0.0
      %5331 = vmatmul.mubr.f32.gmra.mrb[0].mxu0 %v5219
      %v5332 = vpop.f32.mrb[0].mxu0
      %v5333 = vadd.f32 %v1015, %v5332
      %v5334 = vpop.f32.mrb[0].mxu0
      %5335 = vmatprep.mubr.f32.mxu0 0.0
      %5336 = vmatmul.mubr.f32.gmra.mrb[0].mxu0 %v5222
      %v5337 = vpop.f32.mrb[0].mxu0
      %v5338 = vadd.f32 %v1016, %v5337
      %v5339 = vpop.f32.mrb[0].mxu0
      %5340 = vmatprep.mubr.f32.mxu0 0.0
      %5341 = vmatmul.mubr.f32.gmra.mrb[0].mxu0 %v5225
      %v5342 = vpop.f32.mrb[0].mxu0
      %v5343 = vadd.f32 %v1017, %v5342
      %v5344 = vpop.f32.mrb[0].mxu0
      %5345 = vmatprep.mubr.f32.mxu0 0.0
      %5346 = vmatmul.mubr.f32.gmra.mrb[0].mxu0 %v5228
      %v5347 = vpop.f32.mrb[0].mxu0
      %v5348 = vadd.f32 %v1018, %v5347
      %v5349 = vpop.f32.mrb[0].mxu0
      %5350 = vdwg.mxu0
      %5359 = vrot.lane.b32.xlu0 %v4579, 64
      %v5360 = vpop.permute.xlu0 %5359
      %5361 = vrot.lane.b32.xlu0 %v4580, 64
      %v5362 = vpop.permute.xlu0 %5361
      %5363 = vrot.lane.b32.xlu0 %v4581, 64
      %v5364 = vpop.permute.xlu0 %5363
      %5365 = vrot.lane.b32.xlu0 %v4582, 64
      %v5366 = vpop.permute.xlu0 %5365
      %5367 = vrot.lane.b32.xlu0 %v4583, 64
      %v5368 = vpop.permute.xlu0 %5367
      %5369 = vrot.lane.b32.xlu0 %v4584, 64
      %v5370 = vpop.permute.xlu0 %5369
      %5371 = vrot.lane.b32.xlu0 %v4585, 64
      %v5372 = vpop.permute.xlu0 %5371
      %5373 = vrot.lane.b32.xlu0 %v4586, 64
      %v5374 = vpop.permute.xlu0 %5373
      %v5376 = vsel %vm440, %v4515, 0
      %v5379 = vsel %vm440, %v4516, 0
      %v5382 = vsel %vm440, %v4517, 0
      %v5385 = vsel %vm440, %v4518, 0
      %v5388 = vsel %vm440, %v4519, 0
      %v5391 = vsel %vm440, %v4520, 0
      %v5394 = vsel %vm440, %v4521, 0
      %v5397 = vsel %vm440, %v4522, 0
      %v5399 = vsel %vm440, %v5360, 0
      %v5401 = vsel %vm440, %v5362, 0
      %v5403 = vsel %vm440, %v5364, 0
      %v5405 = vsel %vm440, %v5366, 0
      %v5407 = vsel %vm440, %v5368, 0
      %v5409 = vsel %vm440, %v5370, 0
      %v5411 = vsel %vm440, %v5372, 0
      %v5413 = vsel %vm440, %v5374, 0
      %5415 = vmatprep.subr.mxu0 0.0
      %5416 = vmatpush1.xpose.msra.mxu0 %v5399
      %5417 = vmatprep.subr.mxu0 0.0
      %5418 = vmatpush1.xpose.msra.mxu0 %v5401
      %5419 = vmatprep.subr.mxu0 0.0
      %5420 = vmatpush1.xpose.msra.mxu0 %v5403
      %5421 = vmatprep.subr.mxu0 0.0
      %5422 = vmatpush1.xpose.msra.mxu0 %v5405
      %5423 = vmatprep.subr.mxu0 0.0
      %5424 = vmatpush1.xpose.msra.mxu0 %v5407
      %5425 = vmatprep.subr.mxu0 0.0
      %5426 = vmatpush1.xpose.msra.mxu0 %v5409
      %5427 = vmatprep.subr.mxu0 0.0
      %5428 = vmatpush1.xpose.msra.mxu0 %v5411
      %5429 = vmatprep.subr.mxu0 0.0
      %5430 = vmatpush1.xpose.msra.mxu0 %v5413
      %5431 = vmatprep.subr.mxu0 0.0
      %5432 = vmatpush1.xpose.msra.mxu0 0.0
      %5433 = vmatprep.subr.mxu0 0.0
      %5434 = vmatpush1.xpose.msra.mxu0 0.0
      %5435 = vmatprep.subr.mxu0 0.0
      %5436 = vmatpush1.xpose.msra.mxu0 0.0
      %5437 = vmatprep.subr.mxu0 0.0
      %5438 = vmatpush1.xpose.msra.mxu0 0.0
      %5439 = vmatprep.subr.mxu0 0.0
      %5440 = vmatpush1.xpose.msra.mxu0 0.0
      %5441 = vmatprep.subr.mxu0 0.0
      %5442 = vmatpush1.xpose.msra.mxu0 0.0
      %5443 = vmatprep.subr.mxu0 0.0
      %5444 = vmatpush1.xpose.msra.mxu0 0.0
      %5445 = vmatprep.subr.mxu0 0.0
      %5446 = vmatpush1.xpose.msra.mxu0 0.0
      %5447 = vmatprep.subr.mxu0 0.0
      %5448 = vmatpush1.xpose.msra.mxu0 0.0
      %5449 = vmatprep.subr.mxu0 0.0
      %5450 = vmatpush1.xpose.msra.mxu0 0.0
      %5451 = vmatprep.subr.mxu0 0.0
      %5452 = vmatpush1.xpose.msra.mxu0 0.0
      %5453 = vmatprep.subr.mxu0 0.0
      %5454 = vmatpush1.xpose.msra.mxu0 0.0
      %5455 = vmatprep.subr.mxu0 0.0
      %5456 = vmatpush1.xpose.msra.mxu0 0.0
      %5457 = vmatprep.subr.mxu0 0.0
      %5458 = vmatpush1.xpose.msra.mxu0 0.0
      %5459 = vmatprep.subr.mxu0 0.0
      %5460 = vmatpush1.xpose.msra.mxu0 0.0
      %5461 = vmatprep.subr.mxu0 0.0
      %5462 = vmatpush1.xpose.msra.mxu0 0.0
      %5463 = vmatprep.subr.mxu0 0.0
      %5464 = vmatpush1.xpose.msra.mxu0 0.0
      %5465 = vmatprep.subr.mxu0 0.0
      %5466 = vmatpush1.xpose.msra.mxu0 0.0
      %5467 = vmatprep.subr.mxu0 0.0
      %5468 = vmatpush1.xpose.msra.mxu0 0.0
      %5469 = vmatprep.subr.mxu0 0.0
      %5470 = vmatpush1.xpose.msra.mxu0 0.0
      %5471 = vmatprep.subr.mxu0 0.0
      %5472 = vmatpush1.xpose.msra.mxu0 0.0
      %5473 = vmatprep.subr.mxu0 0.0
      %5474 = vmatpush1.xpose.msra.mxu0 0.0
      %5475 = vmatprep.subr.mxu0 0.0
      %5476 = vmatpush1.xpose.msra.mxu0 0.0
      %5477 = vmatprep.subr.mxu0 0.0
      %5478 = vmatpush1.xpose.msra.mxu0 0.0
      %5479 = vmatprep.mubr.f32.mxu0 0.0
      %5480 = vmatmul.mubr.f32.gmra.mrb[0].mxu0 %v5376
      %v5481 = vpop.f32.mrb[0].mxu0
      %v5482 = vadd.f32 %v1011, %v5481
      %v5483 = vpop.f32.mrb[0].mxu0
      %5484 = vmatprep.mubr.f32.mxu0 0.0
      %5485 = vmatmul.mubr.f32.gmra.mrb[0].mxu0 %v5379
      %v5486 = vpop.f32.mrb[0].mxu0
      %v5487 = vadd.f32 %v1012, %v5486
      %v5488 = vpop.f32.mrb[0].mxu0
      %5489 = vmatprep.mubr.f32.mxu0 0.0
      %5490 = vmatmul.mubr.f32.gmra.mrb[0].mxu0 %v5382
      %v5491 = vpop.f32.mrb[0].mxu0
      %v5492 = vadd.f32 %v1013, %v5491
      %v5493 = vpop.f32.mrb[0].mxu0
      %5494 = vmatprep.mubr.f32.mxu0 0.0
      %5495 = vmatmul.mubr.f32.gmra.mrb[0].mxu0 %v5385
      %v5496 = vpop.f32.mrb[0].mxu0
      %v5497 = vadd.f32 %v1014, %v5496
      %v5498 = vpop.f32.mrb[0].mxu0
      %5499 = vmatprep.mubr.f32.mxu0 0.0
      %5500 = vmatmul.mubr.f32.gmra.mrb[0].mxu0 %v5388
      %v5501 = vpop.f32.mrb[0].mxu0
      %v5502 = vadd.f32 %v1015, %v5501
      %v5503 = vpop.f32.mrb[0].mxu0
      %5504 = vmatprep.mubr.f32.mxu0 0.0
      %5505 = vmatmul.mubr.f32.gmra.mrb[0].mxu0 %v5391
      %v5506 = vpop.f32.mrb[0].mxu0
      %v5507 = vadd.f32 %v1016, %v5506
      %v5508 = vpop.f32.mrb[0].mxu0
      %5509 = vmatprep.mubr.f32.mxu0 0.0
      %5510 = vmatmul.mubr.f32.gmra.mrb[0].mxu0 %v5394
      %v5511 = vpop.f32.mrb[0].mxu0
      %v5512 = vadd.f32 %v1017, %v5511
      %v5513 = vpop.f32.mrb[0].mxu0
      %5514 = vmatprep.mubr.f32.mxu0 0.0
      %5515 = vmatmul.mubr.f32.gmra.mrb[0].mxu0 %v5397
      %v5516 = vpop.f32.mrb[0].mxu0
      %v5517 = vadd.f32 %v1018, %v5516
      %v5518 = vpop.f32.mrb[0].mxu0
      %5519 = vdwg.mxu0
      %5528 = vrot.lane.b32.xlu0 %v4587, 64
      %v5529 = vpop.permute.xlu0 %5528
      %5530 = vrot.lane.b32.xlu0 %v4588, 64
      %v5531 = vpop.permute.xlu0 %5530
      %5532 = vrot.lane.b32.xlu0 %v4589, 64
      %v5533 = vpop.permute.xlu0 %5532
      %5534 = vrot.lane.b32.xlu0 %v4590, 64
      %v5535 = vpop.permute.xlu0 %5534
      %5536 = vrot.lane.b32.xlu0 %v4591, 64
      %v5537 = vpop.permute.xlu0 %5536
      %5538 = vrot.lane.b32.xlu0 %v4592, 64
      %v5539 = vpop.permute.xlu0 %5538
      %5540 = vrot.lane.b32.xlu0 %v4593, 64
      %v5541 = vpop.permute.xlu0 %5540
      %5542 = vrot.lane.b32.xlu0 %v4594, 64
      %v5543 = vpop.permute.xlu0 %5542
      %v5545 = vsel %vm440, %v4523, 0
      %v5548 = vsel %vm440, %v4524, 0
      %v5551 = vsel %vm440, %v4525, 0
      %v5554 = vsel %vm440, %v4526, 0
      %v5557 = vsel %vm440, %v4527, 0
      %v5560 = vsel %vm440, %v4528, 0
      %v5563 = vsel %vm440, %v4529, 0
      %v5566 = vsel %vm440, %v4530, 0
      %v5568 = vsel %vm440, %v5529, 0
      %v5570 = vsel %vm440, %v5531, 0
      %v5572 = vsel %vm440, %v5533, 0
      %v5574 = vsel %vm440, %v5535, 0
      %v5576 = vsel %vm440, %v5537, 0
      %v5578 = vsel %vm440, %v5539, 0
      %v5580 = vsel %vm440, %v5541, 0
      %v5582 = vsel %vm440, %v5543, 0
      %5584 = vmatprep.subr.mxu0 0.0
      %5585 = vmatpush1.xpose.msra.mxu0 %v5568
      %5586 = vmatprep.subr.mxu0 0.0
      %5587 = vmatpush1.xpose.msra.mxu0 %v5570
      %5588 = vmatprep.subr.mxu0 0.0
      %5589 = vmatpush1.xpose.msra.mxu0 %v5572
      %5590 = vmatprep.subr.mxu0 0.0
      %5591 = vmatpush1.xpose.msra.mxu0 %v5574
      %5592 = vmatprep.subr.mxu0 0.0
      %5593 = vmatpush1.xpose.msra.mxu0 %v5576
      %5594 = vmatprep.subr.mxu0 0.0
      %5595 = vmatpush1.xpose.msra.mxu0 %v5578
      %5596 = vmatprep.subr.mxu0 0.0
      %5597 = vmatpush1.xpose.msra.mxu0 %v5580
      %5598 = vmatprep.subr.mxu0 0.0
      %5599 = vmatpush1.xpose.msra.mxu0 %v5582
      %5600 = vmatprep.subr.mxu0 0.0
      %5601 = vmatpush1.xpose.msra.mxu0 0.0
      %5602 = vmatprep.subr.mxu0 0.0
      %5603 = vmatpush1.xpose.msra.mxu0 0.0
      %5604 = vmatprep.subr.mxu0 0.0
      %5605 = vmatpush1.xpose.msra.mxu0 0.0
      %5606 = vmatprep.subr.mxu0 0.0
      %5607 = vmatpush1.xpose.msra.mxu0 0.0
      %5608 = vmatprep.subr.mxu0 0.0
      %5609 = vmatpush1.xpose.msra.mxu0 0.0
      %5610 = vmatprep.subr.mxu0 0.0
      %5611 = vmatpush1.xpose.msra.mxu0 0.0
      %5612 = vmatprep.subr.mxu0 0.0
      %5613 = vmatpush1.xpose.msra.mxu0 0.0
      %5614 = vmatprep.subr.mxu0 0.0
      %5615 = vmatpush1.xpose.msra.mxu0 0.0
      %5616 = vmatprep.subr.mxu0 0.0
      %5617 = vmatpush1.xpose.msra.mxu0 0.0
      %5618 = vmatprep.subr.mxu0 0.0
      %5619 = vmatpush1.xpose.msra.mxu0 0.0
      %5620 = vmatprep.subr.mxu0 0.0
      %5621 = vmatpush1.xpose.msra.mxu0 0.0
      %5622 = vmatprep.subr.mxu0 0.0
      %5623 = vmatpush1.xpose.msra.mxu0 0.0
      %5624 = vmatprep.subr.mxu0 0.0
      %5625 = vmatpush1.xpose.msra.mxu0 0.0
      %5626 = vmatprep.subr.mxu0 0.0
      %5627 = vmatpush1.xpose.msra.mxu0 0.0
      %5628 = vmatprep.subr.mxu0 0.0
      %5629 = vmatpush1.xpose.msra.mxu0 0.0
      %5630 = vmatprep.subr.mxu0 0.0
      %5631 = vmatpush1.xpose.msra.mxu0 0.0
      %5632 = vmatprep.subr.mxu0 0.0
      %5633 = vmatpush1.xpose.msra.mxu0 0.0
      %5634 = vmatprep.subr.mxu0 0.0
      %5635 = vmatpush1.xpose.msra.mxu0 0.0
      %5636 = vmatprep.subr.mxu0 0.0
      %5637 = vmatpush1.xpose.msra.mxu0 0.0
      %5638 = vmatprep.subr.mxu0 0.0
      %5639 = vmatpush1.xpose.msra.mxu0 0.0
      %5640 = vmatprep.subr.mxu0 0.0
      %5641 = vmatpush1.xpose.msra.mxu0 0.0
      %5642 = vmatprep.subr.mxu0 0.0
      %5643 = vmatpush1.xpose.msra.mxu0 0.0
      %5644 = vmatprep.subr.mxu0 0.0
      %5645 = vmatpush1.xpose.msra.mxu0 0.0
      %5646 = vmatprep.subr.mxu0 0.0
      %5647 = vmatpush1.xpose.msra.mxu0 0.0
      %5648 = vmatprep.mubr.f32.mxu0 0.0
      %5649 = vmatmul.mubr.f32.gmra.mrb[0].mxu0 %v5545
      %v5650 = vpop.f32.mrb[0].mxu0
      %v5651 = vadd.f32 %v1011, %v5650
      %v5652 = vpop.f32.mrb[0].mxu0
      %5653 = vmatprep.mubr.f32.mxu0 0.0
      %5654 = vmatmul.mubr.f32.gmra.mrb[0].mxu0 %v5548
      %v5655 = vpop.f32.mrb[0].mxu0
      %v5656 = vadd.f32 %v1012, %v5655
      %v5657 = vpop.f32.mrb[0].mxu0
      %5658 = vmatprep.mubr.f32.mxu0 0.0
      %5659 = vmatmul.mubr.f32.gmra.mrb[0].mxu0 %v5551
      %v5660 = vpop.f32.mrb[0].mxu0
      %v5661 = vadd.f32 %v1013, %v5660
      %v5662 = vpop.f32.mrb[0].mxu0
      %5663 = vmatprep.mubr.f32.mxu0 0.0
      %5664 = vmatmul.mubr.f32.gmra.mrb[0].mxu0 %v5554
      %v5665 = vpop.f32.mrb[0].mxu0
      %v5666 = vadd.f32 %v1014, %v5665
      %v5667 = vpop.f32.mrb[0].mxu0
      %5668 = vmatprep.mubr.f32.mxu0 0.0
      %5669 = vmatmul.mubr.f32.gmra.mrb[0].mxu0 %v5557
      %v5670 = vpop.f32.mrb[0].mxu0
      %v5671 = vadd.f32 %v1015, %v5670
      %v5672 = vpop.f32.mrb[0].mxu0
      %5673 = vmatprep.mubr.f32.mxu0 0.0
      %5674 = vmatmul.mubr.f32.gmra.mrb[0].mxu0 %v5560
      %v5675 = vpop.f32.mrb[0].mxu0
      %v5676 = vadd.f32 %v1016, %v5675
      %v5677 = vpop.f32.mrb[0].mxu0
      %5678 = vmatprep.mubr.f32.mxu0 0.0
      %5679 = vmatmul.mubr.f32.gmra.mrb[0].mxu0 %v5563
      %v5680 = vpop.f32.mrb[0].mxu0
      %v5681 = vadd.f32 %v1017, %v5680
      %v5682 = vpop.f32.mrb[0].mxu0
      %5683 = vmatprep.mubr.f32.mxu0 0.0
      %5684 = vmatmul.mubr.f32.gmra.mrb[0].mxu0 %v5566
      %v5685 = vpop.f32.mrb[0].mxu0
      %v5686 = vadd.f32 %v1018, %v5685
      %v5687 = vpop.f32.mrb[0].mxu0
      %5688 = vdwg.mxu0
      %5697 = vrot.lane.b32.xlu0 %v4595, 64
      %v5698 = vpop.permute.xlu0 %5697
      %5699 = vrot.lane.b32.xlu0 %v4596, 64
      %v5700 = vpop.permute.xlu0 %5699
      %5701 = vrot.lane.b32.xlu0 %v4597, 64
      %v5702 = vpop.permute.xlu0 %5701
      %5703 = vrot.lane.b32.xlu0 %v4598, 64
      %v5704 = vpop.permute.xlu0 %5703
      %5705 = vrot.lane.b32.xlu0 %v4599, 64
      %v5706 = vpop.permute.xlu0 %5705
      %5707 = vrot.lane.b32.xlu0 %v4600, 64
      %v5708 = vpop.permute.xlu0 %5707
      %5709 = vrot.lane.b32.xlu0 %v4601, 64
      %v5710 = vpop.permute.xlu0 %5709
      %5711 = vrot.lane.b32.xlu0 %v4602, 64
      %v5712 = vpop.permute.xlu0 %5711
      %v5714 = vsel %vm440, %v4531, 0
      %v5717 = vsel %vm440, %v4532, 0
      %v5720 = vsel %vm440, %v4533, 0
      %v5723 = vsel %vm440, %v4534, 0
      %v5726 = vsel %vm440, %v4535, 0
      %v5729 = vsel %vm440, %v4536, 0
      %v5732 = vsel %vm440, %v4537, 0
      %v5735 = vsel %vm440, %v4538, 0
      %v5737 = vsel %vm440, %v5698, 0
      %v5739 = vsel %vm440, %v5700, 0
      %v5741 = vsel %vm440, %v5702, 0
      %v5743 = vsel %vm440, %v5704, 0
      %v5745 = vsel %vm440, %v5706, 0
      %v5747 = vsel %vm440, %v5708, 0
      %v5749 = vsel %vm440, %v5710, 0
      %v5751 = vsel %vm440, %v5712, 0
      %5753 = vmatprep.subr.mxu0 0.0
      %5754 = vmatpush1.xpose.msra.mxu0 %v5737
      %5755 = vmatprep.subr.mxu0 0.0
      %5756 = vmatpush1.xpose.msra.mxu0 %v5739
      %5757 = vmatprep.subr.mxu0 0.0
      %5758 = vmatpush1.xpose.msra.mxu0 %v5741
      %5759 = vmatprep.subr.mxu0 0.0
      %5760 = vmatpush1.xpose.msra.mxu0 %v5743
      %5761 = vmatprep.subr.mxu0 0.0
      %5762 = vmatpush1.xpose.msra.mxu0 %v5745
      %5763 = vmatprep.subr.mxu0 0.0
      %5764 = vmatpush1.xpose.msra.mxu0 %v5747
      %5765 = vmatprep.subr.mxu0 0.0
      %5766 = vmatpush1.xpose.msra.mxu0 %v5749
      %5767 = vmatprep.subr.mxu0 0.0
      %5768 = vmatpush1.xpose.msra.mxu0 %v5751
      %5769 = vmatprep.subr.mxu0 0.0
      %5770 = vmatpush1.xpose.msra.mxu0 0.0
      %5771 = vmatprep.subr.mxu0 0.0
      %5772 = vmatpush1.xpose.msra.mxu0 0.0
      %5773 = vmatprep.subr.mxu0 0.0
      %5774 = vmatpush1.xpose.msra.mxu0 0.0
      %5775 = vmatprep.subr.mxu0 0.0
      %5776 = vmatpush1.xpose.msra.mxu0 0.0
      %5777 = vmatprep.subr.mxu0 0.0
      %5778 = vmatpush1.xpose.msra.mxu0 0.0
      %5779 = vmatprep.subr.mxu0 0.0
      %5780 = vmatpush1.xpose.msra.mxu0 0.0
      %5781 = vmatprep.subr.mxu0 0.0
      %5782 = vmatpush1.xpose.msra.mxu0 0.0
      %5783 = vmatprep.subr.mxu0 0.0
      %5784 = vmatpush1.xpose.msra.mxu0 0.0
      %5785 = vmatprep.subr.mxu0 0.0
      %5786 = vmatpush1.xpose.msra.mxu0 0.0
      %5787 = vmatprep.subr.mxu0 0.0
      %5788 = vmatpush1.xpose.msra.mxu0 0.0
      %5789 = vmatprep.subr.mxu0 0.0
      %5790 = vmatpush1.xpose.msra.mxu0 0.0
      %5791 = vmatprep.subr.mxu0 0.0
      %5792 = vmatpush1.xpose.msra.mxu0 0.0
      %5793 = vmatprep.subr.mxu0 0.0
      %5794 = vmatpush1.xpose.msra.mxu0 0.0
      %5795 = vmatprep.subr.mxu0 0.0
      %5796 = vmatpush1.xpose.msra.mxu0 0.0
      %5797 = vmatprep.subr.mxu0 0.0
      %5798 = vmatpush1.xpose.msra.mxu0 0.0
      %5799 = vmatprep.subr.mxu0 0.0
      %5800 = vmatpush1.xpose.msra.mxu0 0.0
      %5801 = vmatprep.subr.mxu0 0.0
      %5802 = vmatpush1.xpose.msra.mxu0 0.0
      %5803 = vmatprep.subr.mxu0 0.0
      %5804 = vmatpush1.xpose.msra.mxu0 0.0
      %5805 = vmatprep.subr.mxu0 0.0
      %5806 = vmatpush1.xpose.msra.mxu0 0.0
      %5807 = vmatprep.subr.mxu0 0.0
      %5808 = vmatpush1.xpose.msra.mxu0 0.0
      %5809 = vmatprep.subr.mxu0 0.0
      %5810 = vmatpush1.xpose.msra.mxu0 0.0
      %5811 = vmatprep.subr.mxu0 0.0
      %5812 = vmatpush1.xpose.msra.mxu0 0.0
      %5813 = vmatprep.subr.mxu0 0.0
      %5814 = vmatpush1.xpose.msra.mxu0 0.0
      %5815 = vmatprep.subr.mxu0 0.0
      %5816 = vmatpush1.xpose.msra.mxu0 0.0
      %5817 = vmatprep.mubr.f32.mxu0 0.0
      %5818 = vmatmul.mubr.f32.gmra.mrb[0].mxu0 %v5714
      %v5819 = vpop.f32.mrb[0].mxu0
      %v5820 = vadd.f32 %v1011, %v5819
      %v5821 = vpop.f32.mrb[0].mxu0
      %5822 = vmatprep.mubr.f32.mxu0 0.0
      %5823 = vmatmul.mubr.f32.gmra.mrb[0].mxu0 %v5717
      %v5824 = vpop.f32.mrb[0].mxu0
      %v5825 = vadd.f32 %v1012, %v5824
      %v5826 = vpop.f32.mrb[0].mxu0
      %5827 = vmatprep.mubr.f32.mxu0 0.0
      %5828 = vmatmul.mubr.f32.gmra.mrb[0].mxu0 %v5720
      %v5829 = vpop.f32.mrb[0].mxu0
      %v5830 = vadd.f32 %v1013, %v5829
      %v5831 = vpop.f32.mrb[0].mxu0
      %5832 = vmatprep.mubr.f32.mxu0 0.0
      %5833 = vmatmul.mubr.f32.gmra.mrb[0].mxu0 %v5723
      %v5834 = vpop.f32.mrb[0].mxu0
      %v5835 = vadd.f32 %v1014, %v5834
      %v5836 = vpop.f32.mrb[0].mxu0
      %5837 = vmatprep.mubr.f32.mxu0 0.0
      %5838 = vmatmul.mubr.f32.gmra.mrb[0].mxu0 %v5726
      %v5839 = vpop.f32.mrb[0].mxu0
      %v5840 = vadd.f32 %v1015, %v5839
      %v5841 = vpop.f32.mrb[0].mxu0
      %5842 = vmatprep.mubr.f32.mxu0 0.0
      %5843 = vmatmul.mubr.f32.gmra.mrb[0].mxu0 %v5729
      %v5844 = vpop.f32.mrb[0].mxu0
      %v5845 = vadd.f32 %v1016, %v5844
      %v5846 = vpop.f32.mrb[0].mxu0
      %5847 = vmatprep.mubr.f32.mxu0 0.0
      %5848 = vmatmul.mubr.f32.gmra.mrb[0].mxu0 %v5732
      %v5849 = vpop.f32.mrb[0].mxu0
      %v5850 = vadd.f32 %v1017, %v5849
      %v5851 = vpop.f32.mrb[0].mxu0
      %5852 = vmatprep.mubr.f32.mxu0 0.0
      %5853 = vmatmul.mubr.f32.gmra.mrb[0].mxu0 %v5735
      %v5854 = vpop.f32.mrb[0].mxu0
      %v5855 = vadd.f32 %v1018, %v5854
      %v5856 = vpop.f32.mrb[0].mxu0
      %5857 = vdwg.mxu0
      %5866 = vrot.lane.b32.xlu0 %v4603, 64
      %v5867 = vpop.permute.xlu0 %5866
      %5868 = vrot.lane.b32.xlu0 %v4604, 64
      %v5869 = vpop.permute.xlu0 %5868
      %5870 = vrot.lane.b32.xlu0 %v4605, 64
      %v5871 = vpop.permute.xlu0 %5870
      %5872 = vrot.lane.b32.xlu0 %v4606, 64
      %v5873 = vpop.permute.xlu0 %5872
      %5874 = vrot.lane.b32.xlu0 %v4607, 64
      %v5875 = vpop.permute.xlu0 %5874
      %5876 = vrot.lane.b32.xlu0 %v4608, 64
      %v5877 = vpop.permute.xlu0 %5876
      %5878 = vrot.lane.b32.xlu0 %v4609, 64
      %v5879 = vpop.permute.xlu0 %5878
      %5880 = vrot.lane.b32.xlu0 %v4610, 64
      %v5881 = vpop.permute.xlu0 %5880
      %v5883 = vsel %vm440, %v4539, 0
      %v5886 = vsel %vm440, %v4540, 0
      %v5889 = vsel %vm440, %v4541, 0
      %v5892 = vsel %vm440, %v4542, 0
      %v5895 = vsel %vm440, %v4543, 0
      %v5898 = vsel %vm440, %v4544, 0
      %v5901 = vsel %vm440, %v4545, 0
      %v5904 = vsel %vm440, %v4546, 0
      %v5906 = vsel %vm440, %v5867, 0
      %v5908 = vsel %vm440, %v5869, 0
      %v5910 = vsel %vm440, %v5871, 0
      %v5912 = vsel %vm440, %v5873, 0
      %v5914 = vsel %vm440, %v5875, 0
      %v5916 = vsel %vm440, %v5877, 0
      %v5918 = vsel %vm440, %v5879, 0
      %v5920 = vsel %vm440, %v5881, 0
      %5922 = vmatprep.subr.mxu0 0.0
      %5923 = vmatpush1.xpose.msra.mxu0 %v5906
      %5924 = vmatprep.subr.mxu0 0.0
      %5925 = vmatpush1.xpose.msra.mxu0 %v5908
      %5926 = vmatprep.subr.mxu0 0.0
      %5927 = vmatpush1.xpose.msra.mxu0 %v5910
      %5928 = vmatprep.subr.mxu0 0.0
      %5929 = vmatpush1.xpose.msra.mxu0 %v5912
      %5930 = vmatprep.subr.mxu0 0.0
      %5931 = vmatpush1.xpose.msra.mxu0 %v5914
      %5932 = vmatprep.subr.mxu0 0.0
      %5933 = vmatpush1.xpose.msra.mxu0 %v5916
      %5934 = vmatprep.subr.mxu0 0.0
      %5935 = vmatpush1.xpose.msra.mxu0 %v5918
      %5936 = vmatprep.subr.mxu0 0.0
      %5937 = vmatpush1.xpose.msra.mxu0 %v5920
      %5938 = vmatprep.subr.mxu0 0.0
      %5939 = vmatpush1.xpose.msra.mxu0 0.0
      %5940 = vmatprep.subr.mxu0 0.0
      %5941 = vmatpush1.xpose.msra.mxu0 0.0
      %5942 = vmatprep.subr.mxu0 0.0
      %5943 = vmatpush1.xpose.msra.mxu0 0.0
      %5944 = vmatprep.subr.mxu0 0.0
      %5945 = vmatpush1.xpose.msra.mxu0 0.0
      %5946 = vmatprep.subr.mxu0 0.0
      %5947 = vmatpush1.xpose.msra.mxu0 0.0
      %5948 = vmatprep.subr.mxu0 0.0
      %5949 = vmatpush1.xpose.msra.mxu0 0.0
      %5950 = vmatprep.subr.mxu0 0.0
      %5951 = vmatpush1.xpose.msra.mxu0 0.0
      %5952 = vmatprep.subr.mxu0 0.0
      %5953 = vmatpush1.xpose.msra.mxu0 0.0
      %5954 = vmatprep.subr.mxu0 0.0
      %5955 = vmatpush1.xpose.msra.mxu0 0.0
      %5956 = vmatprep.subr.mxu0 0.0
      %5957 = vmatpush1.xpose.msra.mxu0 0.0
      %5958 = vmatprep.subr.mxu0 0.0
      %5959 = vmatpush1.xpose.msra.mxu0 0.0
      %5960 = vmatprep.subr.mxu0 0.0
      %5961 = vmatpush1.xpose.msra.mxu0 0.0
      %5962 = vmatprep.subr.mxu0 0.0
      %5963 = vmatpush1.xpose.msra.mxu0 0.0
      %5964 = vmatprep.subr.mxu0 0.0
      %5965 = vmatpush1.xpose.msra.mxu0 0.0
      %5966 = vmatprep.subr.mxu0 0.0
      %5967 = vmatpush1.xpose.msra.mxu0 0.0
      %5968 = vmatprep.subr.mxu0 0.0
      %5969 = vmatpush1.xpose.msra.mxu0 0.0
      %5970 = vmatprep.subr.mxu0 0.0
      %5971 = vmatpush1.xpose.msra.mxu0 0.0
      %5972 = vmatprep.subr.mxu0 0.0
      %5973 = vmatpush1.xpose.msra.mxu0 0.0
      %5974 = vmatprep.subr.mxu0 0.0
      %5975 = vmatpush1.xpose.msra.mxu0 0.0
      %5976 = vmatprep.subr.mxu0 0.0
      %5977 = vmatpush1.xpose.msra.mxu0 0.0
      %5978 = vmatprep.subr.mxu0 0.0
      %5979 = vmatpush1.xpose.msra.mxu0 0.0
      %5980 = vmatprep.subr.mxu0 0.0
      %5981 = vmatpush1.xpose.msra.mxu0 0.0
      %5982 = vmatprep.subr.mxu0 0.0
      %5983 = vmatpush1.xpose.msra.mxu0 0.0
      %5984 = vmatprep.subr.mxu0 0.0
      %5985 = vmatpush1.xpose.msra.mxu0 0.0
      %5986 = vmatprep.mubr.f32.mxu0 0.0
      %5987 = vmatmul.mubr.f32.gmra.mrb[0].mxu0 %v5883
      %v5988 = vpop.f32.mrb[0].mxu0
      %v5989 = vadd.f32 %v1011, %v5988
      %v5990 = vpop.f32.mrb[0].mxu0
      %5991 = vmatprep.mubr.f32.mxu0 0.0
      %5992 = vmatmul.mubr.f32.gmra.mrb[0].mxu0 %v5886
      %v5993 = vpop.f32.mrb[0].mxu0
      %v5994 = vadd.f32 %v1012, %v5993
      %v5995 = vpop.f32.mrb[0].mxu0
      %5996 = vmatprep.mubr.f32.mxu0 0.0
      %5997 = vmatmul.mubr.f32.gmra.mrb[0].mxu0 %v5889
      %v5998 = vpop.f32.mrb[0].mxu0
      %v5999 = vadd.f32 %v1013, %v5998
      %v6000 = vpop.f32.mrb[0].mxu0
      %6001 = vmatprep.mubr.f32.mxu0 0.0
      %6002 = vmatmul.mubr.f32.gmra.mrb[0].mxu0 %v5892
      %v6003 = vpop.f32.mrb[0].mxu0
      %v6004 = vadd.f32 %v1014, %v6003
      %v6005 = vpop.f32.mrb[0].mxu0
      %6006 = vmatprep.mubr.f32.mxu0 0.0
      %6007 = vmatmul.mubr.f32.gmra.mrb[0].mxu0 %v5895
      %v6008 = vpop.f32.mrb[0].mxu0
      %v6009 = vadd.f32 %v1015, %v6008
      %v6010 = vpop.f32.mrb[0].mxu0
      %6011 = vmatprep.mubr.f32.mxu0 0.0
      %6012 = vmatmul.mubr.f32.gmra.mrb[0].mxu0 %v5898
      %v6013 = vpop.f32.mrb[0].mxu0
      %v6014 = vadd.f32 %v1016, %v6013
      %v6015 = vpop.f32.mrb[0].mxu0
      %6016 = vmatprep.mubr.f32.mxu0 0.0
      %6017 = vmatmul.mubr.f32.gmra.mrb[0].mxu0 %v5901
      %v6018 = vpop.f32.mrb[0].mxu0
      %v6019 = vadd.f32 %v1017, %v6018
      %v6020 = vpop.f32.mrb[0].mxu0
      %6021 = vmatprep.mubr.f32.mxu0 0.0
      %6022 = vmatmul.mubr.f32.gmra.mrb[0].mxu0 %v5904
      %v6023 = vpop.f32.mrb[0].mxu0
      %v6024 = vadd.f32 %v1018, %v6023
      %v6025 = vpop.f32.mrb[0].mxu0
      %6026 = vdwg.mxu0
      %v6027 = vsel %vm440, %v4806, -inf
      %6028 = vmax.xlane.f32.xlu0 %v6027
      %v6029 = vpop.xlane.xlu0 %6028
      %v6030 = vsel %vm440, %v4811, -inf
      %6031 = vmax.xlane.f32.xlu0 %v6030
      %v6032 = vpop.xlane.xlu0 %6031
      %v6033 = vsel %vm440, %v4816, -inf
      %6034 = vmax.xlane.f32.xlu0 %v6033
      %v6035 = vpop.xlane.xlu0 %6034
      %v6036 = vsel %vm440, %v4821, -inf
      %6037 = vmax.xlane.f32.xlu0 %v6036
      %v6038 = vpop.xlane.xlu0 %6037
      %v6039 = vsel %vm440, %v4826, -inf
      %6040 = vmax.xlane.f32.xlu0 %v6039
      %v6041 = vpop.xlane.xlu0 %6040
      %v6042 = vsel %vm440, %v4831, -inf
      %6043 = vmax.xlane.f32.xlu0 %v6042
      %v6044 = vpop.xlane.xlu0 %6043
      %v6045 = vsel %vm440, %v4836, -inf
      %6046 = vmax.xlane.f32.xlu0 %v6045
      %v6047 = vpop.xlane.xlu0 %6046
      %v6048 = vsel %vm440, %v4841, -inf
      %6049 = vmax.xlane.f32.xlu0 %v6048
      %v6050 = vpop.xlane.xlu0 %6049
      %v6051 = vsel %vm440, %v4975, -inf
      %6052 = vmax.xlane.f32.xlu0 %v6051
      %v6053 = vpop.xlane.xlu0 %6052
      %v6054 = vsel %vm440, %v4980, -inf
      %6055 = vmax.xlane.f32.xlu0 %v6054
      %v6056 = vpop.xlane.xlu0 %6055
      %v6057 = vsel %vm440, %v4985, -inf
      %6058 = vmax.xlane.f32.xlu0 %v6057
      %v6059 = vpop.xlane.xlu0 %6058
      %v6060 = vsel %vm440, %v4990, -inf
      %6061 = vmax.xlane.f32.xlu0 %v6060
      %v6062 = vpop.xlane.xlu0 %6061
      %v6063 = vsel %vm440, %v4995, -inf
      %6064 = vmax.xlane.f32.xlu0 %v6063
      %v6065 = vpop.xlane.xlu0 %6064
      %v6066 = vsel %vm440, %v5000, -inf
      %6067 = vmax.xlane.f32.xlu0 %v6066
      %v6068 = vpop.xlane.xlu0 %6067
      %v6069 = vsel %vm440, %v5005, -inf
      %6070 = vmax.xlane.f32.xlu0 %v6069
      %v6071 = vpop.xlane.xlu0 %6070
      %v6072 = vsel %vm440, %v5010, -inf
      %6073 = vmax.xlane.f32.xlu0 %v6072
      %v6074 = vpop.xlane.xlu0 %6073
      %v6075 = vsel %vm440, %v5144, -inf
      %6076 = vmax.xlane.f32.xlu0 %v6075
      %v6077 = vpop.xlane.xlu0 %6076
      %v6078 = vsel %vm440, %v5149, -inf
      %6079 = vmax.xlane.f32.xlu0 %v6078
      %v6080 = vpop.xlane.xlu0 %6079
      %v6081 = vsel %vm440, %v5154, -inf
      %6082 = vmax.xlane.f32.xlu0 %v6081
      %v6083 = vpop.xlane.xlu0 %6082
      %v6084 = vsel %vm440, %v5159, -inf
      %6085 = vmax.xlane.f32.xlu0 %v6084
      %v6086 = vpop.xlane.xlu0 %6085
      %v6087 = vsel %vm440, %v5164, -inf
      %6088 = vmax.xlane.f32.xlu0 %v6087
      %v6089 = vpop.xlane.xlu0 %6088
      %v6090 = vsel %vm440, %v5169, -inf
      %6091 = vmax.xlane.f32.xlu0 %v6090
      %v6092 = vpop.xlane.xlu0 %6091
      %v6093 = vsel %vm440, %v5174, -inf
      %6094 = vmax.xlane.f32.xlu0 %v6093
      %v6095 = vpop.xlane.xlu0 %6094
      %v6096 = vsel %vm440, %v5179, -inf
      %6097 = vmax.xlane.f32.xlu0 %v6096
      %v6098 = vpop.xlane.xlu0 %6097
      %v6099 = vsel %vm440, %v5313, -inf
      %6100 = vmax.xlane.f32.xlu0 %v6099
      %v6101 = vpop.xlane.xlu0 %6100
      %v6102 = vsel %vm440, %v5318, -inf
      %6103 = vmax.xlane.f32.xlu0 %v6102
      %v6104 = vpop.xlane.xlu0 %6103
      %v6105 = vsel %vm440, %v5323, -inf
      %6106 = vmax.xlane.f32.xlu0 %v6105
      %v6107 = vpop.xlane.xlu0 %6106
      %v6108 = vsel %vm440, %v5328, -inf
      %6109 = vmax.xlane.f32.xlu0 %v6108
      %v6110 = vpop.xlane.xlu0 %6109
      %v6111 = vsel %vm440, %v5333, -inf
      %6112 = vmax.xlane.f32.xlu0 %v6111
      %v6113 = vpop.xlane.xlu0 %6112
      %v6114 = vsel %vm440, %v5338, -inf
      %6115 = vmax.xlane.f32.xlu0 %v6114
      %v6116 = vpop.xlane.xlu0 %6115
      %v6117 = vsel %vm440, %v5343, -inf
      %6118 = vmax.xlane.f32.xlu0 %v6117
      %v6119 = vpop.xlane.xlu0 %6118
      %v6120 = vsel %vm440, %v5348, -inf
      %6121 = vmax.xlane.f32.xlu0 %v6120
      %v6122 = vpop.xlane.xlu0 %6121
      %v6123 = vsel %vm440, %v5482, -inf
      %6124 = vmax.xlane.f32.xlu0 %v6123
      %v6125 = vpop.xlane.xlu0 %6124
      %v6126 = vsel %vm440, %v5487, -inf
      %6127 = vmax.xlane.f32.xlu0 %v6126
      %v6128 = vpop.xlane.xlu0 %6127
      %v6129 = vsel %vm440, %v5492, -inf
      %6130 = vmax.xlane.f32.xlu0 %v6129
      %v6131 = vpop.xlane.xlu0 %6130
      %v6132 = vsel %vm440, %v5497, -inf
      %6133 = vmax.xlane.f32.xlu0 %v6132
      %v6134 = vpop.xlane.xlu0 %6133
      %v6135 = vsel %vm440, %v5502, -inf
      %6136 = vmax.xlane.f32.xlu0 %v6135
      %v6137 = vpop.xlane.xlu0 %6136
      %v6138 = vsel %vm440, %v5507, -inf
      %6139 = vmax.xlane.f32.xlu0 %v6138
      %v6140 = vpop.xlane.xlu0 %6139
      %v6141 = vsel %vm440, %v5512, -inf
      %6142 = vmax.xlane.f32.xlu0 %v6141
      %v6143 = vpop.xlane.xlu0 %6142
      %v6144 = vsel %vm440, %v5517, -inf
      %6145 = vmax.xlane.f32.xlu0 %v6144
      %v6146 = vpop.xlane.xlu0 %6145
      %v6147 = vsel %vm440, %v5651, -inf
      %6148 = vmax.xlane.f32.xlu0 %v6147
      %v6149 = vpop.xlane.xlu0 %6148
      %v6150 = vsel %vm440, %v5656, -inf
      %6151 = vmax.xlane.f32.xlu0 %v6150
      %v6152 = vpop.xlane.xlu0 %6151
      %v6153 = vsel %vm440, %v5661, -inf
      %6154 = vmax.xlane.f32.xlu0 %v6153
      %v6155 = vpop.xlane.xlu0 %6154
      %v6156 = vsel %vm440, %v5666, -inf
      %6157 = vmax.xlane.f32.xlu0 %v6156
      %v6158 = vpop.xlane.xlu0 %6157
      %v6159 = vsel %vm440, %v5671, -inf
      %6160 = vmax.xlane.f32.xlu0 %v6159
      %v6161 = vpop.xlane.xlu0 %6160
      %v6162 = vsel %vm440, %v5676, -inf
      %6163 = vmax.xlane.f32.xlu0 %v6162
      %v6164 = vpop.xlane.xlu0 %6163
      %v6165 = vsel %vm440, %v5681, -inf
      %6166 = vmax.xlane.f32.xlu0 %v6165
      %v6167 = vpop.xlane.xlu0 %6166
      %v6168 = vsel %vm440, %v5686, -inf
      %6169 = vmax.xlane.f32.xlu0 %v6168
      %v6170 = vpop.xlane.xlu0 %6169
      %v6171 = vsel %vm440, %v5820, -inf
      %6172 = vmax.xlane.f32.xlu0 %v6171
      %v6173 = vpop.xlane.xlu0 %6172
      %v6174 = vsel %vm440, %v5825, -inf
      %6175 = vmax.xlane.f32.xlu0 %v6174
      %v6176 = vpop.xlane.xlu0 %6175
      %v6177 = vsel %vm440, %v5830, -inf
      %6178 = vmax.xlane.f32.xlu0 %v6177
      %v6179 = vpop.xlane.xlu0 %6178
      %v6180 = vsel %vm440, %v5835, -inf
      %6181 = vmax.xlane.f32.xlu0 %v6180
      %v6182 = vpop.xlane.xlu0 %6181
      %v6183 = vsel %vm440, %v5840, -inf
      %6184 = vmax.xlane.f32.xlu0 %v6183
      %v6185 = vpop.xlane.xlu0 %6184
      %v6186 = vsel %vm440, %v5845, -inf
      %6187 = vmax.xlane.f32.xlu0 %v6186
      %v6188 = vpop.xlane.xlu0 %6187
      %v6189 = vsel %vm440, %v5850, -inf
      %6190 = vmax.xlane.f32.xlu0 %v6189
      %v6191 = vpop.xlane.xlu0 %6190
      %v6192 = vsel %vm440, %v5855, -inf
      %6193 = vmax.xlane.f32.xlu0 %v6192
      %v6194 = vpop.xlane.xlu0 %6193
      %v6195 = vsel %vm440, %v5989, -inf
      %6196 = vmax.xlane.f32.xlu0 %v6195
      %v6197 = vpop.xlane.xlu0 %6196
      %v6198 = vsel %vm440, %v5994, -inf
      %6199 = vmax.xlane.f32.xlu0 %v6198
      %v6200 = vpop.xlane.xlu0 %6199
      %v6201 = vsel %vm440, %v5999, -inf
      %6202 = vmax.xlane.f32.xlu0 %v6201
      %v6203 = vpop.xlane.xlu0 %6202
      %v6204 = vsel %vm440, %v6004, -inf
      %6205 = vmax.xlane.f32.xlu0 %v6204
      %v6206 = vpop.xlane.xlu0 %6205
      %v6207 = vsel %vm440, %v6009, -inf
      %6208 = vmax.xlane.f32.xlu0 %v6207
      %v6209 = vpop.xlane.xlu0 %6208
      %v6210 = vsel %vm440, %v6014, -inf
      %6211 = vmax.xlane.f32.xlu0 %v6210
      %v6212 = vpop.xlane.xlu0 %6211
      %v6213 = vsel %vm440, %v6019, -inf
      %6214 = vmax.xlane.f32.xlu0 %v6213
      %v6215 = vpop.xlane.xlu0 %6214
      %v6216 = vsel %vm440, %v6024, -inf
      %6217 = vmax.xlane.f32.xlu0 %v6216
      %v6218 = vpop.xlane.xlu0 %6217
      %v6219 = vsub.f32 %v4806, %v6029
      %v6220 = vsub.f32 %v4811, %v6032
      %v6221 = vsub.f32 %v4816, %v6035
      %v6222 = vsub.f32 %v4821, %v6038
      %v6223 = vsub.f32 %v4826, %v6041
      %v6224 = vsub.f32 %v4831, %v6044
      %v6225 = vsub.f32 %v4836, %v6047
      %v6226 = vsub.f32 %v4841, %v6050
      %v6227 = vsub.f32 %v4975, %v6053
      %v6228 = vsub.f32 %v4980, %v6056
      %v6229 = vsub.f32 %v4985, %v6059
      %v6230 = vsub.f32 %v4990, %v6062
      %v6231 = vsub.f32 %v4995, %v6065
      %v6232 = vsub.f32 %v5000, %v6068
      %v6233 = vsub.f32 %v5005, %v6071
      %v6234 = vsub.f32 %v5010, %v6074
      %v6235 = vsub.f32 %v5144, %v6077
      %v6236 = vsub.f32 %v5149, %v6080
      %v6237 = vsub.f32 %v5154, %v6083
      %v6238 = vsub.f32 %v5159, %v6086
      %v6239 = vsub.f32 %v5164, %v6089
      %v6240 = vsub.f32 %v5169, %v6092
      %v6241 = vsub.f32 %v5174, %v6095
      %v6242 = vsub.f32 %v5179, %v6098
      %v6243 = vsub.f32 %v5313, %v6101
      %v6244 = vsub.f32 %v5318, %v6104
      %v6245 = vsub.f32 %v5323, %v6107
      %v6246 = vsub.f32 %v5328, %v6110
      %v6247 = vsub.f32 %v5333, %v6113
      %v6248 = vsub.f32 %v5338, %v6116
      %v6249 = vsub.f32 %v5343, %v6119
      %v6250 = vsub.f32 %v5348, %v6122
      %v6251 = vsub.f32 %v5482, %v6125
      %v6252 = vsub.f32 %v5487, %v6128
      %v6253 = vsub.f32 %v5492, %v6131
      %v6254 = vsub.f32 %v5497, %v6134
      %v6255 = vsub.f32 %v5502, %v6137
      %v6256 = vsub.f32 %v5507, %v6140
      %v6257 = vsub.f32 %v5512, %v6143
      %v6258 = vsub.f32 %v5517, %v6146
      %v6259 = vsub.f32 %v5651, %v6149
      %v6260 = vsub.f32 %v5656, %v6152
      %v6261 = vsub.f32 %v5661, %v6155
      %v6262 = vsub.f32 %v5666, %v6158
      %v6263 = vsub.f32 %v5671, %v6161
      %v6264 = vsub.f32 %v5676, %v6164
      %v6265 = vsub.f32 %v5681, %v6167
      %v6266 = vsub.f32 %v5686, %v6170
      %v6267 = vsub.f32 %v5820, %v6173
      %v6268 = vsub.f32 %v5825, %v6176
      %v6269 = vsub.f32 %v5830, %v6179
      %v6270 = vsub.f32 %v5835, %v6182
      %v6271 = vsub.f32 %v5840, %v6185
      %v6272 = vsub.f32 %v5845, %v6188
      %v6273 = vsub.f32 %v5850, %v6191
      %v6274 = vsub.f32 %v5855, %v6194
      %v6275 = vsub.f32 %v5989, %v6197
      %v6276 = vsub.f32 %v5994, %v6200
      %v6277 = vsub.f32 %v5999, %v6203
      %v6278 = vsub.f32 %v6004, %v6206
      %v6279 = vsub.f32 %v6009, %v6209
      %v6280 = vsub.f32 %v6014, %v6212
      %v6281 = vsub.f32 %v6019, %v6215
      %v6282 = vsub.f32 %v6024, %v6218
      %v6283 = vmul.f32 %v6219, 1.442695
      %v6284 = vpow.pop %v6283
      %v6285 = vmul.f32 %v6220, 1.442695
      %v6286 = vpow.pop %v6285
      %v6287 = vmul.f32 %v6221, 1.442695
      %v6288 = vpow.pop %v6287
      %v6289 = vmul.f32 %v6222, 1.442695
      %v6290 = vpow.pop %v6289
      %v6291 = vmul.f32 %v6223, 1.442695
      %v6292 = vpow.pop %v6291
      %v6293 = vmul.f32 %v6224, 1.442695
      %v6294 = vpow.pop %v6293
      %v6295 = vmul.f32 %v6225, 1.442695
      %v6296 = vpow.pop %v6295
      %v6297 = vmul.f32 %v6226, 1.442695
      %v6298 = vpow.pop %v6297
      %v6299 = vmul.f32 %v6227, 1.442695
      %v6300 = vpow.pop %v6299
      %v6301 = vmul.f32 %v6228, 1.442695
      %v6302 = vpow.pop %v6301
      %v6303 = vmul.f32 %v6229, 1.442695
      %v6304 = vpow.pop %v6303
      %v6305 = vmul.f32 %v6230, 1.442695
      %v6306 = vpow.pop %v6305
      %v6307 = vmul.f32 %v6231, 1.442695
      %v6308 = vpow.pop %v6307
      %v6309 = vmul.f32 %v6232, 1.442695
      %v6310 = vpow.pop %v6309
      %v6311 = vmul.f32 %v6233, 1.442695
      %v6312 = vpow.pop %v6311
      %v6313 = vmul.f32 %v6234, 1.442695
      %v6314 = vpow.pop %v6313
      %v6315 = vmul.f32 %v6235, 1.442695
      %v6316 = vpow.pop %v6315
      %v6317 = vmul.f32 %v6236, 1.442695
      %v6318 = vpow.pop %v6317
      %v6319 = vmul.f32 %v6237, 1.442695
      %v6320 = vpow.pop %v6319
      %v6321 = vmul.f32 %v6238, 1.442695
      %v6322 = vpow.pop %v6321
      %v6323 = vmul.f32 %v6239, 1.442695
      %v6324 = vpow.pop %v6323
      %v6325 = vmul.f32 %v6240, 1.442695
      %v6326 = vpow.pop %v6325
      %v6327 = vmul.f32 %v6241, 1.442695
      %v6328 = vpow.pop %v6327
      %v6329 = vmul.f32 %v6242, 1.442695
      %v6330 = vpow.pop %v6329
      %v6331 = vmul.f32 %v6243, 1.442695
      %v6332 = vpow.pop %v6331
      %v6333 = vmul.f32 %v6244, 1.442695
      %v6334 = vpow.pop %v6333
      %v6335 = vmul.f32 %v6245, 1.442695
      %v6336 = vpow.pop %v6335
      %v6337 = vmul.f32 %v6246, 1.442695
      %v6338 = vpow.pop %v6337
      %v6339 = vmul.f32 %v6247, 1.442695
      %v6340 = vpow.pop %v6339
      %v6341 = vmul.f32 %v6248, 1.442695
      %v6342 = vpow.pop %v6341
      %v6343 = vmul.f32 %v6249, 1.442695
      %v6344 = vpow.pop %v6343
      %v6345 = vmul.f32 %v6250, 1.442695
      %v6346 = vpow.pop %v6345
      %v6347 = vmul.f32 %v6251, 1.442695
      %v6348 = vpow.pop %v6347
      %v6349 = vmul.f32 %v6252, 1.442695
      %v6350 = vpow.pop %v6349
      %v6351 = vmul.f32 %v6253, 1.442695
      %v6352 = vpow.pop %v6351
      %v6353 = vmul.f32 %v6254, 1.442695
      %v6354 = vpow.pop %v6353
      %v6355 = vmul.f32 %v6255, 1.442695
      %v6356 = vpow.pop %v6355
      %v6357 = vmul.f32 %v6256, 1.442695
      %v6358 = vpow.pop %v6357
      %v6359 = vmul.f32 %v6257, 1.442695
      %v6360 = vpow.pop %v6359
      %v6361 = vmul.f32 %v6258, 1.442695
      %v6362 = vpow.pop %v6361
      %v6363 = vmul.f32 %v6259, 1.442695
      %v6364 = vpow.pop %v6363
      %v6365 = vmul.f32 %v6260, 1.442695
      %v6366 = vpow.pop %v6365
      %v6367 = vmul.f32 %v6261, 1.442695
      %v6368 = vpow.pop %v6367
      %v6369 = vmul.f32 %v6262, 1.442695
      %v6370 = vpow.pop %v6369
      %v6371 = vmul.f32 %v6263, 1.442695
      %v6372 = vpow.pop %v6371
      %v6373 = vmul.f32 %v6264, 1.442695
      %v6374 = vpow.pop %v6373
      %v6375 = vmul.f32 %v6265, 1.442695
      %v6376 = vpow.pop %v6375
      %v6377 = vmul.f32 %v6266, 1.442695
      %v6378 = vpow.pop %v6377
      %v6379 = vmul.f32 %v6267, 1.442695
      %v6380 = vpow.pop %v6379
      %v6381 = vmul.f32 %v6268, 1.442695
      %v6382 = vpow.pop %v6381
      %v6383 = vmul.f32 %v6269, 1.442695
      %v6384 = vpow.pop %v6383
      %v6385 = vmul.f32 %v6270, 1.442695
      %v6386 = vpow.pop %v6385
      %v6387 = vmul.f32 %v6271, 1.442695
      %v6388 = vpow.pop %v6387
      %v6389 = vmul.f32 %v6272, 1.442695
      %v6390 = vpow.pop %v6389
      %v6391 = vmul.f32 %v6273, 1.442695
      %v6392 = vpow.pop %v6391
      %v6393 = vmul.f32 %v6274, 1.442695
      %v6394 = vpow.pop %v6393
      %v6395 = vmul.f32 %v6275, 1.442695
      %v6396 = vpow.pop %v6395
      %v6397 = vmul.f32 %v6276, 1.442695
      %v6398 = vpow.pop %v6397
      %v6399 = vmul.f32 %v6277, 1.442695
      %v6400 = vpow.pop %v6399
      %v6401 = vmul.f32 %v6278, 1.442695
      %v6402 = vpow.pop %v6401
      %v6403 = vmul.f32 %v6279, 1.442695
      %v6404 = vpow.pop %v6403
      %v6405 = vmul.f32 %v6280, 1.442695
      %v6406 = vpow.pop %v6405
      %v6407 = vmul.f32 %v6281, 1.442695
      %v6408 = vpow.pop %v6407
      %v6409 = vmul.f32 %v6282, 1.442695
      %v6410 = vpow.pop %v6409
      %v6411 = vsel %vm440, %v6284, 0.0
      %6412 = vadd.xlane.f32.xlu0 %v6411
      %v6413 = vpop.xlane.xlu0 %6412
      %v6414 = vsel %vm440, %v6286, 0.0
      %6415 = vadd.xlane.f32.xlu0 %v6414
      %v6416 = vpop.xlane.xlu0 %6415
      %v6417 = vsel %vm440, %v6288, 0.0
      %6418 = vadd.xlane.f32.xlu0 %v6417
      %v6419 = vpop.xlane.xlu0 %6418
      %v6420 = vsel %vm440, %v6290, 0.0
      %6421 = vadd.xlane.f32.xlu0 %v6420
      %v6422 = vpop.xlane.xlu0 %6421
      %v6423 = vsel %vm440, %v6292, 0.0
      %6424 = vadd.xlane.f32.xlu0 %v6423
      %v6425 = vpop.xlane.xlu0 %6424
      %v6426 = vsel %vm440, %v6294, 0.0
      %6427 = vadd.xlane.f32.xlu0 %v6426
      %v6428 = vpop.xlane.xlu0 %6427
      %v6429 = vsel %vm440, %v6296, 0.0
      %6430 = vadd.xlane.f32.xlu0 %v6429
      %v6431 = vpop.xlane.xlu0 %6430
      %v6432 = vsel %vm440, %v6298, 0.0
      %6433 = vadd.xlane.f32.xlu0 %v6432
      %v6434 = vpop.xlane.xlu0 %6433
      %v6435 = vsel %vm440, %v6300, 0.0
      %6436 = vadd.xlane.f32.xlu0 %v6435
      %v6437 = vpop.xlane.xlu0 %6436
      %v6438 = vsel %vm440, %v6302, 0.0
      %6439 = vadd.xlane.f32.xlu0 %v6438
      %v6440 = vpop.xlane.xlu0 %6439
      %v6441 = vsel %vm440, %v6304, 0.0
      %6442 = vadd.xlane.f32.xlu0 %v6441
      %v6443 = vpop.xlane.xlu0 %6442
      %v6444 = vsel %vm440, %v6306, 0.0
      %6445 = vadd.xlane.f32.xlu0 %v6444
      %v6446 = vpop.xlane.xlu0 %6445
      %v6447 = vsel %vm440, %v6308, 0.0
      %6448 = vadd.xlane.f32.xlu0 %v6447
      %v6449 = vpop.xlane.xlu0 %6448
      %v6450 = vsel %vm440, %v6310, 0.0
      %6451 = vadd.xlane.f32.xlu0 %v6450
      %v6452 = vpop.xlane.xlu0 %6451
      %v6453 = vsel %vm440, %v6312, 0.0
      %6454 = vadd.xlane.f32.xlu0 %v6453
      %v6455 = vpop.xlane.xlu0 %6454
      %v6456 = vsel %vm440, %v6314, 0.0
      %6457 = vadd.xlane.f32.xlu0 %v6456
      %v6458 = vpop.xlane.xlu0 %6457
      %v6459 = vsel %vm440, %v6316, 0.0
      %6460 = vadd.xlane.f32.xlu0 %v6459
      %v6461 = vpop.xlane.xlu0 %6460
      %v6462 = vsel %vm440, %v6318, 0.0
      %6463 = vadd.xlane.f32.xlu0 %v6462
      %v6464 = vpop.xlane.xlu0 %6463
      %v6465 = vsel %vm440, %v6320, 0.0
      %6466 = vadd.xlane.f32.xlu0 %v6465
      %v6467 = vpop.xlane.xlu0 %6466
      %v6468 = vsel %vm440, %v6322, 0.0
      %6469 = vadd.xlane.f32.xlu0 %v6468
      %v6470 = vpop.xlane.xlu0 %6469
      %v6471 = vsel %vm440, %v6324, 0.0
      %6472 = vadd.xlane.f32.xlu0 %v6471
      %v6473 = vpop.xlane.xlu0 %6472
      %v6474 = vsel %vm440, %v6326, 0.0
      %6475 = vadd.xlane.f32.xlu0 %v6474
      %v6476 = vpop.xlane.xlu0 %6475
      %v6477 = vsel %vm440, %v6328, 0.0
      %6478 = vadd.xlane.f32.xlu0 %v6477
      %v6479 = vpop.xlane.xlu0 %6478
      %v6480 = vsel %vm440, %v6330, 0.0
      %6481 = vadd.xlane.f32.xlu0 %v6480
      %v6482 = vpop.xlane.xlu0 %6481
      %v6483 = vsel %vm440, %v6332, 0.0
      %6484 = vadd.xlane.f32.xlu0 %v6483
      %v6485 = vpop.xlane.xlu0 %6484
      %v6486 = vsel %vm440, %v6334, 0.0
      %6487 = vadd.xlane.f32.xlu0 %v6486
      %v6488 = vpop.xlane.xlu0 %6487
      %v6489 = vsel %vm440, %v6336, 0.0
      %6490 = vadd.xlane.f32.xlu0 %v6489
      %v6491 = vpop.xlane.xlu0 %6490
      %v6492 = vsel %vm440, %v6338, 0.0
      %6493 = vadd.xlane.f32.xlu0 %v6492
      %v6494 = vpop.xlane.xlu0 %6493
      %v6495 = vsel %vm440, %v6340, 0.0
      %6496 = vadd.xlane.f32.xlu0 %v6495
      %v6497 = vpop.xlane.xlu0 %6496
      %v6498 = vsel %vm440, %v6342, 0.0
      %6499 = vadd.xlane.f32.xlu0 %v6498
      %v6500 = vpop.xlane.xlu0 %6499
      %v6501 = vsel %vm440, %v6344, 0.0
      %6502 = vadd.xlane.f32.xlu0 %v6501
      %v6503 = vpop.xlane.xlu0 %6502
      %v6504 = vsel %vm440, %v6346, 0.0
      %6505 = vadd.xlane.f32.xlu0 %v6504
      %v6506 = vpop.xlane.xlu0 %6505
      %v6507 = vsel %vm440, %v6348, 0.0
      %6508 = vadd.xlane.f32.xlu0 %v6507
      %v6509 = vpop.xlane.xlu0 %6508
      %v6510 = vsel %vm440, %v6350, 0.0
      %6511 = vadd.xlane.f32.xlu0 %v6510
      %v6512 = vpop.xlane.xlu0 %6511
      %v6513 = vsel %vm440, %v6352, 0.0
      %6514 = vadd.xlane.f32.xlu0 %v6513
      %v6515 = vpop.xlane.xlu0 %6514
      %v6516 = vsel %vm440, %v6354, 0.0
      %6517 = vadd.xlane.f32.xlu0 %v6516
      %v6518 = vpop.xlane.xlu0 %6517
      %v6519 = vsel %vm440, %v6356, 0.0
      %6520 = vadd.xlane.f32.xlu0 %v6519
      %v6521 = vpop.xlane.xlu0 %6520
      %v6522 = vsel %vm440, %v6358, 0.0
      %6523 = vadd.xlane.f32.xlu0 %v6522
      %v6524 = vpop.xlane.xlu0 %6523
      %v6525 = vsel %vm440, %v6360, 0.0
      %6526 = vadd.xlane.f32.xlu0 %v6525
      %v6527 = vpop.xlane.xlu0 %6526
      %v6528 = vsel %vm440, %v6362, 0.0
      %6529 = vadd.xlane.f32.xlu0 %v6528
      %v6530 = vpop.xlane.xlu0 %6529
      %v6531 = vsel %vm440, %v6364, 0.0
      %6532 = vadd.xlane.f32.xlu0 %v6531
      %v6533 = vpop.xlane.xlu0 %6532
      %v6534 = vsel %vm440, %v6366, 0.0
      %6535 = vadd.xlane.f32.xlu0 %v6534
      %v6536 = vpop.xlane.xlu0 %6535
      %v6537 = vsel %vm440, %v6368, 0.0
      %6538 = vadd.xlane.f32.xlu0 %v6537
      %v6539 = vpop.xlane.xlu0 %6538
      %v6540 = vsel %vm440, %v6370, 0.0
      %6541 = vadd.xlane.f32.xlu0 %v6540
      %v6542 = vpop.xlane.xlu0 %6541
      %v6543 = vsel %vm440, %v6372, 0.0
      %6544 = vadd.xlane.f32.xlu0 %v6543
      %v6545 = vpop.xlane.xlu0 %6544
      %v6546 = vsel %vm440, %v6374, 0.0
      %6547 = vadd.xlane.f32.xlu0 %v6546
      %v6548 = vpop.xlane.xlu0 %6547
      %v6549 = vsel %vm440, %v6376, 0.0
      %6550 = vadd.xlane.f32.xlu0 %v6549
      %v6551 = vpop.xlane.xlu0 %6550
      %v6552 = vsel %vm440, %v6378, 0.0
      %6553 = vadd.xlane.f32.xlu0 %v6552
      %v6554 = vpop.xlane.xlu0 %6553
      %v6555 = vsel %vm440, %v6380, 0.0
      %6556 = vadd.xlane.f32.xlu0 %v6555
      %v6557 = vpop.xlane.xlu0 %6556
      %v6558 = vsel %vm440, %v6382, 0.0
      %6559 = vadd.xlane.f32.xlu0 %v6558
      %v6560 = vpop.xlane.xlu0 %6559
      %v6561 = vsel %vm440, %v6384, 0.0
      %6562 = vadd.xlane.f32.xlu0 %v6561
      %v6563 = vpop.xlane.xlu0 %6562
      %v6564 = vsel %vm440, %v6386, 0.0
      %6565 = vadd.xlane.f32.xlu0 %v6564
      %v6566 = vpop.xlane.xlu0 %6565
      %v6567 = vsel %vm440, %v6388, 0.0
      %6568 = vadd.xlane.f32.xlu0 %v6567
      %v6569 = vpop.xlane.xlu0 %6568
      %v6570 = vsel %vm440, %v6390, 0.0
      %6571 = vadd.xlane.f32.xlu0 %v6570
      %v6572 = vpop.xlane.xlu0 %6571
      %v6573 = vsel %vm440, %v6392, 0.0
      %6574 = vadd.xlane.f32.xlu0 %v6573
      %v6575 = vpop.xlane.xlu0 %6574
      %v6576 = vsel %vm440, %v6394, 0.0
      %6577 = vadd.xlane.f32.xlu0 %v6576
      %v6578 = vpop.xlane.xlu0 %6577
      %v6579 = vsel %vm440, %v6396, 0.0
      %6580 = vadd.xlane.f32.xlu0 %v6579
      %v6581 = vpop.xlane.xlu0 %6580
      %v6582 = vsel %vm440, %v6398, 0.0
      %6583 = vadd.xlane.f32.xlu0 %v6582
      %v6584 = vpop.xlane.xlu0 %6583
      %v6585 = vsel %vm440, %v6400, 0.0
      %6586 = vadd.xlane.f32.xlu0 %v6585
      %v6587 = vpop.xlane.xlu0 %6586
      %v6588 = vsel %vm440, %v6402, 0.0
      %6589 = vadd.xlane.f32.xlu0 %v6588
      %v6590 = vpop.xlane.xlu0 %6589
      %v6591 = vsel %vm440, %v6404, 0.0
      %6592 = vadd.xlane.f32.xlu0 %v6591
      %v6593 = vpop.xlane.xlu0 %6592
      %v6594 = vsel %vm440, %v6406, 0.0
      %6595 = vadd.xlane.f32.xlu0 %v6594
      %v6596 = vpop.xlane.xlu0 %6595
      %v6597 = vsel %vm440, %v6408, 0.0
      %6598 = vadd.xlane.f32.xlu0 %v6597
      %v6599 = vpop.xlane.xlu0 %6598
      %v6600 = vsel %vm440, %v6410, 0.0
      %6601 = vadd.xlane.f32.xlu0 %v6600
      %v6602 = vpop.xlane.xlu0 %6601
      %v6603 = vrcp.pop %v6413
      %v6604 = vrcp.pop %v6416
      %v6605 = vrcp.pop %v6419
      %v6606 = vrcp.pop %v6422
      %v6607 = vrcp.pop %v6425
      %v6608 = vrcp.pop %v6428
      %v6609 = vrcp.pop %v6431
      %v6610 = vrcp.pop %v6434
      %v6611 = vrcp.pop %v6437
      %v6612 = vrcp.pop %v6440
      %v6613 = vrcp.pop %v6443
      %v6614 = vrcp.pop %v6446
      %v6615 = vrcp.pop %v6449
      %v6616 = vrcp.pop %v6452
      %v6617 = vrcp.pop %v6455
      %v6618 = vrcp.pop %v6458
      %v6619 = vrcp.pop %v6461
      %v6620 = vrcp.pop %v6464
      %v6621 = vrcp.pop %v6467
      %v6622 = vrcp.pop %v6470
      %v6623 = vrcp.pop %v6473
      %v6624 = vrcp.pop %v6476
      %v6625 = vrcp.pop %v6479
      %v6626 = vrcp.pop %v6482
      %v6627 = vrcp.pop %v6485
      %v6628 = vrcp.pop %v6488
      %v6629 = vrcp.pop %v6491
      %v6630 = vrcp.pop %v6494
      %v6631 = vrcp.pop %v6497
      %v6632 = vrcp.pop %v6500
      %v6633 = vrcp.pop %v6503
      %v6634 = vrcp.pop %v6506
      %v6635 = vrcp.pop %v6509
      %v6636 = vrcp.pop %v6512
      %v6637 = vrcp.pop %v6515
      %v6638 = vrcp.pop %v6518
      %v6639 = vrcp.pop %v6521
      %v6640 = vrcp.pop %v6524
      %v6641 = vrcp.pop %v6527
      %v6642 = vrcp.pop %v6530
      %v6643 = vrcp.pop %v6533
      %v6644 = vrcp.pop %v6536
      %v6645 = vrcp.pop %v6539
      %v6646 = vrcp.pop %v6542
      %v6647 = vrcp.pop %v6545
      %v6648 = vrcp.pop %v6548
      %v6649 = vrcp.pop %v6551
      %v6650 = vrcp.pop %v6554
      %v6651 = vrcp.pop %v6557
      %v6652 = vrcp.pop %v6560
      %v6653 = vrcp.pop %v6563
      %v6654 = vrcp.pop %v6566
      %v6655 = vrcp.pop %v6569
      %v6656 = vrcp.pop %v6572
      %v6657 = vrcp.pop %v6575
      %v6658 = vrcp.pop %v6578
      %v6659 = vrcp.pop %v6581
      %v6660 = vrcp.pop %v6584
      %v6661 = vrcp.pop %v6587
      %v6662 = vrcp.pop %v6590
      %v6663 = vrcp.pop %v6593
      %v6664 = vrcp.pop %v6596
      %v6665 = vrcp.pop %v6599
      %v6666 = vrcp.pop %v6602
      %v6667 = vmul.f32 %v6284, %v6603
      %v6668 = vmul.f32 %v6286, %v6604
      %v6669 = vmul.f32 %v6288, %v6605
      %v6670 = vmul.f32 %v6290, %v6606
      %v6671 = vmul.f32 %v6292, %v6607
      %v6672 = vmul.f32 %v6294, %v6608
      %v6673 = vmul.f32 %v6296, %v6609
      %v6674 = vmul.f32 %v6298, %v6610
      %v6675 = vmul.f32 %v6300, %v6611
      %v6676 = vmul.f32 %v6302, %v6612
      %v6677 = vmul.f32 %v6304, %v6613
      %v6678 = vmul.f32 %v6306, %v6614
      %v6679 = vmul.f32 %v6308, %v6615
      %v6680 = vmul.f32 %v6310, %v6616
      %v6681 = vmul.f32 %v6312, %v6617
      %v6682 = vmul.f32 %v6314, %v6618
      %v6683 = vmul.f32 %v6316, %v6619
      %v6684 = vmul.f32 %v6318, %v6620
      %v6685 = vmul.f32 %v6320, %v6621
      %v6686 = vmul.f32 %v6322, %v6622
      %v6687 = vmul.f32 %v6324, %v6623
      %v6688 = vmul.f32 %v6326, %v6624
      %v6689 = vmul.f32 %v6328, %v6625
      %v6690 = vmul.f32 %v6330, %v6626
      %v6691 = vmul.f32 %v6332, %v6627
      %v6692 = vmul.f32 %v6334, %v6628
      %v6693 = vmul.f32 %v6336, %v6629
      %v6694 = vmul.f32 %v6338, %v6630
      %v6695 = vmul.f32 %v6340, %v6631
      %v6696 = vmul.f32 %v6342, %v6632
      %v6697 = vmul.f32 %v6344, %v6633
      %v6698 = vmul.f32 %v6346, %v6634
      %v6699 = vmul.f32 %v6348, %v6635
      %v6700 = vmul.f32 %v6350, %v6636
      %v6701 = vmul.f32 %v6352, %v6637
      %v6702 = vmul.f32 %v6354, %v6638
      %v6703 = vmul.f32 %v6356, %v6639
      %v6704 = vmul.f32 %v6358, %v6640
      %v6705 = vmul.f32 %v6360, %v6641
      %v6706 = vmul.f32 %v6362, %v6642
      %v6707 = vmul.f32 %v6364, %v6643
      %v6708 = vmul.f32 %v6366, %v6644
      %v6709 = vmul.f32 %v6368, %v6645
      %v6710 = vmul.f32 %v6370, %v6646
      %v6711 = vmul.f32 %v6372, %v6647
      %v6712 = vmul.f32 %v6374, %v6648
      %v6713 = vmul.f32 %v6376, %v6649
      %v6714 = vmul.f32 %v6378, %v6650
      %v6715 = vmul.f32 %v6380, %v6651
      %v6716 = vmul.f32 %v6382, %v6652
      %v6717 = vmul.f32 %v6384, %v6653
      %v6718 = vmul.f32 %v6386, %v6654
      %v6719 = vmul.f32 %v6388, %v6655
      %v6720 = vmul.f32 %v6390, %v6656
      %v6721 = vmul.f32 %v6392, %v6657
      %v6722 = vmul.f32 %v6394, %v6658
      %v6723 = vmul.f32 %v6396, %v6659
      %v6724 = vmul.f32 %v6398, %v6660
      %v6725 = vmul.f32 %v6400, %v6661
      %v6726 = vmul.f32 %v6402, %v6662
      %v6727 = vmul.f32 %v6404, %v6663
      %v6728 = vmul.f32 %v6406, %v6664
      %v6729 = vmul.f32 %v6408, %v6665
      %v6730 = vmul.f32 %v6410, %v6666
      %v6732 = vsel %vm440, %v6667, 0
      %v6735 = vsel %vm440, %v6668, 0
      %v6738 = vsel %vm440, %v6669, 0
      %v6741 = vsel %vm440, %v6670, 0
      %v6744 = vsel %vm440, %v6671, 0
      %v6747 = vsel %vm440, %v6672, 0
      %v6750 = vsel %vm440, %v6673, 0
      %v6753 = vsel %vm440, %v6674, 0
      %6755 = vmatprep.subr.mxu0 0.0
      %6756 = vmatpush1.msra.mxu0 %v4611
      %6757 = vmatprep.subr.mxu0 0.0
      %6758 = vmatpush1.msra.mxu0 %v4612
      %6759 = vmatprep.subr.mxu0 0.0
      %6760 = vmatpush1.msra.mxu0 %v4613
      %6761 = vmatprep.subr.mxu0 0.0
      %6762 = vmatpush1.msra.mxu0 %v4614
      %6763 = vmatprep.subr.mxu0 0.0
      %6764 = vmatpush1.msra.mxu0 %v4615
      %6765 = vmatprep.subr.mxu0 0.0
      %6766 = vmatpush1.msra.mxu0 %v4616
      %6767 = vmatprep.subr.mxu0 0.0
      %6768 = vmatpush1.msra.mxu0 %v4617
      %6769 = vmatprep.subr.mxu0 0.0
      %6770 = vmatpush1.msra.mxu0 %v4618
      %6771 = vmatprep.subr.mxu0 0.0
      %6772 = vmatpush1.msra.mxu0 0.0
      %6773 = vmatprep.subr.mxu0 0.0
      %6774 = vmatpush1.msra.mxu0 0.0
      %6775 = vmatprep.subr.mxu0 0.0
      %6776 = vmatpush1.msra.mxu0 0.0
      %6777 = vmatprep.subr.mxu0 0.0
      %6778 = vmatpush1.msra.mxu0 0.0
      %6779 = vmatprep.subr.mxu0 0.0
      %6780 = vmatpush1.msra.mxu0 0.0
      %6781 = vmatprep.subr.mxu0 0.0
      %6782 = vmatpush1.msra.mxu0 0.0
      %6783 = vmatprep.subr.mxu0 0.0
      %6784 = vmatpush1.msra.mxu0 0.0
      %6785 = vmatprep.subr.mxu0 0.0
      %6786 = vmatpush1.msra.mxu0 0.0
      %6787 = vmatprep.subr.mxu0 0.0
      %6788 = vmatpush1.msra.mxu0 0.0
      %6789 = vmatprep.subr.mxu0 0.0
      %6790 = vmatpush1.msra.mxu0 0.0
      %6791 = vmatprep.subr.mxu0 0.0
      %6792 = vmatpush1.msra.mxu0 0.0
      %6793 = vmatprep.subr.mxu0 0.0
      %6794 = vmatpush1.msra.mxu0 0.0
      %6795 = vmatprep.subr.mxu0 0.0
      %6796 = vmatpush1.msra.mxu0 0.0
      %6797 = vmatprep.subr.mxu0 0.0
      %6798 = vmatpush1.msra.mxu0 0.0
      %6799 = vmatprep.subr.mxu0 0.0
      %6800 = vmatpush1.msra.mxu0 0.0
      %6801 = vmatprep.subr.mxu0 0.0
      %6802 = vmatpush1.msra.mxu0 0.0
      %6803 = vmatprep.subr.mxu0 0.0
      %6804 = vmatpush1.msra.mxu0 0.0
      %6805 = vmatprep.subr.mxu0 0.0
      %6806 = vmatpush1.msra.mxu0 0.0
      %6807 = vmatprep.subr.mxu0 0.0
      %6808 = vmatpush1.msra.mxu0 0.0
      %6809 = vmatprep.subr.mxu0 0.0
      %6810 = vmatpush1.msra.mxu0 0.0
      %6811 = vmatprep.subr.mxu0 0.0
      %6812 = vmatpush1.msra.mxu0 0.0
      %6813 = vmatprep.subr.mxu0 0.0
      %6814 = vmatpush1.msra.mxu0 0.0
      %6815 = vmatprep.subr.mxu0 0.0
      %6816 = vmatpush1.msra.mxu0 0.0
      %6817 = vmatprep.subr.mxu0 0.0
      %6818 = vmatpush1.msra.mxu0 0.0
      %6819 = vmatprep.mubr.f32.mxu0 0.0
      %6820 = vmatmul.mubr.f32.gmra.mrb[0].mxu0 %v6732
      %v6821 = vpop.f32.mrb[0].mxu0
      %v6822 = vadd.f32 0.0, %v6821
      %v6823 = vpop.f32.mrb[0].mxu0
      %6824 = vmatprep.mubr.f32.mxu0 0.0
      %6825 = vmatmul.mubr.f32.gmra.mrb[0].mxu0 %v6735
      %v6826 = vpop.f32.mrb[0].mxu0
      %v6827 = vadd.f32 0.0, %v6826
      %v6828 = vpop.f32.mrb[0].mxu0
      %6829 = vmatprep.mubr.f32.mxu0 0.0
      %6830 = vmatmul.mubr.f32.gmra.mrb[0].mxu0 %v6738
      %v6831 = vpop.f32.mrb[0].mxu0
      %v6832 = vadd.f32 0.0, %v6831
      %v6833 = vpop.f32.mrb[0].mxu0
      %6834 = vmatprep.mubr.f32.mxu0 0.0
      %6835 = vmatmul.mubr.f32.gmra.mrb[0].mxu0 %v6741
      %v6836 = vpop.f32.mrb[0].mxu0
      %v6837 = vadd.f32 0.0, %v6836
      %v6838 = vpop.f32.mrb[0].mxu0
      %6839 = vmatprep.mubr.f32.mxu0 0.0
      %6840 = vmatmul.mubr.f32.gmra.mrb[0].mxu0 %v6744
      %v6841 = vpop.f32.mrb[0].mxu0
      %v6842 = vadd.f32 0.0, %v6841
      %v6843 = vpop.f32.mrb[0].mxu0
      %6844 = vmatprep.mubr.f32.mxu0 0.0
      %6845 = vmatmul.mubr.f32.gmra.mrb[0].mxu0 %v6747
      %v6846 = vpop.f32.mrb[0].mxu0
      %v6847 = vadd.f32 0.0, %v6846
      %v6848 = vpop.f32.mrb[0].mxu0
      %6849 = vmatprep.mubr.f32.mxu0 0.0
      %6850 = vmatmul.mubr.f32.gmra.mrb[0].mxu0 %v6750
      %v6851 = vpop.f32.mrb[0].mxu0
      %v6852 = vadd.f32 0.0, %v6851
      %v6853 = vpop.f32.mrb[0].mxu0
      %6854 = vmatprep.mubr.f32.mxu0 0.0
      %6855 = vmatmul.mubr.f32.gmra.mrb[0].mxu0 %v6753
      %v6856 = vpop.f32.mrb[0].mxu0
      %v6857 = vadd.f32 0.0, %v6856
      %v6858 = vpop.f32.mrb[0].mxu0
      %6859 = vdwg.mxu0
      %v6861 = vsel %vm440, %v6675, 0
      %v6864 = vsel %vm440, %v6676, 0
      %v6867 = vsel %vm440, %v6677, 0
      %v6870 = vsel %vm440, %v6678, 0
      %v6873 = vsel %vm440, %v6679, 0
      %v6876 = vsel %vm440, %v6680, 0
      %v6879 = vsel %vm440, %v6681, 0
      %v6882 = vsel %vm440, %v6682, 0
      %6884 = vmatprep.subr.mxu0 0.0
      %6885 = vmatpush1.msra.mxu0 %v4619
      %6886 = vmatprep.subr.mxu0 0.0
      %6887 = vmatpush1.msra.mxu0 %v4620
      %6888 = vmatprep.subr.mxu0 0.0
      %6889 = vmatpush1.msra.mxu0 %v4621
      %6890 = vmatprep.subr.mxu0 0.0
      %6891 = vmatpush1.msra.mxu0 %v4622
      %6892 = vmatprep.subr.mxu0 0.0
      %6893 = vmatpush1.msra.mxu0 %v4623
      %6894 = vmatprep.subr.mxu0 0.0
      %6895 = vmatpush1.msra.mxu0 %v4624
      %6896 = vmatprep.subr.mxu0 0.0
      %6897 = vmatpush1.msra.mxu0 %v4625
      %6898 = vmatprep.subr.mxu0 0.0
      %6899 = vmatpush1.msra.mxu0 %v4626
      %6900 = vmatprep.subr.mxu0 0.0
      %6901 = vmatpush1.msra.mxu0 0.0
      %6902 = vmatprep.subr.mxu0 0.0
      %6903 = vmatpush1.msra.mxu0 0.0
      %6904 = vmatprep.subr.mxu0 0.0
      %6905 = vmatpush1.msra.mxu0 0.0
      %6906 = vmatprep.subr.mxu0 0.0
      %6907 = vmatpush1.msra.mxu0 0.0
      %6908 = vmatprep.subr.mxu0 0.0
      %6909 = vmatpush1.msra.mxu0 0.0
      %6910 = vmatprep.subr.mxu0 0.0
      %6911 = vmatpush1.msra.mxu0 0.0
      %6912 = vmatprep.subr.mxu0 0.0
      %6913 = vmatpush1.msra.mxu0 0.0
      %6914 = vmatprep.subr.mxu0 0.0
      %6915 = vmatpush1.msra.mxu0 0.0
      %6916 = vmatprep.subr.mxu0 0.0
      %6917 = vmatpush1.msra.mxu0 0.0
      %6918 = vmatprep.subr.mxu0 0.0
      %6919 = vmatpush1.msra.mxu0 0.0
      %6920 = vmatprep.subr.mxu0 0.0
      %6921 = vmatpush1.msra.mxu0 0.0
      %6922 = vmatprep.subr.mxu0 0.0
      %6923 = vmatpush1.msra.mxu0 0.0
      %6924 = vmatprep.subr.mxu0 0.0
      %6925 = vmatpush1.msra.mxu0 0.0
      %6926 = vmatprep.subr.mxu0 0.0
      %6927 = vmatpush1.msra.mxu0 0.0
      %6928 = vmatprep.subr.mxu0 0.0
      %6929 = vmatpush1.msra.mxu0 0.0
      %6930 = vmatprep.subr.mxu0 0.0
      %6931 = vmatpush1.msra.mxu0 0.0
      %6932 = vmatprep.subr.mxu0 0.0
      %6933 = vmatpush1.msra.mxu0 0.0
      %6934 = vmatprep.subr.mxu0 0.0
      %6935 = vmatpush1.msra.mxu0 0.0
      %6936 = vmatprep.subr.mxu0 0.0
      %6937 = vmatpush1.msra.mxu0 0.0
      %6938 = vmatprep.subr.mxu0 0.0
      %6939 = vmatpush1.msra.mxu0 0.0
      %6940 = vmatprep.subr.mxu0 0.0
      %6941 = vmatpush1.msra.mxu0 0.0
      %6942 = vmatprep.subr.mxu0 0.0
      %6943 = vmatpush1.msra.mxu0 0.0
      %6944 = vmatprep.subr.mxu0 0.0
      %6945 = vmatpush1.msra.mxu0 0.0
      %6946 = vmatprep.subr.mxu0 0.0
      %6947 = vmatpush1.msra.mxu0 0.0
      %6948 = vmatprep.mubr.f32.mxu0 0.0
      %6949 = vmatmul.mubr.f32.gmra.mrb[0].mxu0 %v6861
      %v6950 = vpop.f32.mrb[0].mxu0
      %v6951 = vadd.f32 0.0, %v6950
      %v6952 = vpop.f32.mrb[0].mxu0
      %6953 = vmatprep.mubr.f32.mxu0 0.0
      %6954 = vmatmul.mubr.f32.gmra.mrb[0].mxu0 %v6864
      %v6955 = vpop.f32.mrb[0].mxu0
      %v6956 = vadd.f32 0.0, %v6955
      %v6957 = vpop.f32.mrb[0].mxu0
      %6958 = vmatprep.mubr.f32.mxu0 0.0
      %6959 = vmatmul.mubr.f32.gmra.mrb[0].mxu0 %v6867
      %v6960 = vpop.f32.mrb[0].mxu0
      %v6961 = vadd.f32 0.0, %v6960
      %v6962 = vpop.f32.mrb[0].mxu0
      %6963 = vmatprep.mubr.f32.mxu0 0.0
      %6964 = vmatmul.mubr.f32.gmra.mrb[0].mxu0 %v6870
      %v6965 = vpop.f32.mrb[0].mxu0
      %v6966 = vadd.f32 0.0, %v6965
      %v6967 = vpop.f32.mrb[0].mxu0
      %6968 = vmatprep.mubr.f32.mxu0 0.0
      %6969 = vmatmul.mubr.f32.gmra.mrb[0].mxu0 %v6873
      %v6970 = vpop.f32.mrb[0].mxu0
      %v6971 = vadd.f32 0.0, %v6970
      %v6972 = vpop.f32.mrb[0].mxu0
      %6973 = vmatprep.mubr.f32.mxu0 0.0
      %6974 = vmatmul.mubr.f32.gmra.mrb[0].mxu0 %v6876
      %v6975 = vpop.f32.mrb[0].mxu0
      %v6976 = vadd.f32 0.0, %v6975
      %v6977 = vpop.f32.mrb[0].mxu0
      %6978 = vmatprep.mubr.f32.mxu0 0.0
      %6979 = vmatmul.mubr.f32.gmra.mrb[0].mxu0 %v6879
      %v6980 = vpop.f32.mrb[0].mxu0
      %v6981 = vadd.f32 0.0, %v6980
      %v6982 = vpop.f32.mrb[0].mxu0
      %6983 = vmatprep.mubr.f32.mxu0 0.0
      %6984 = vmatmul.mubr.f32.gmra.mrb[0].mxu0 %v6882
      %v6985 = vpop.f32.mrb[0].mxu0
      %v6986 = vadd.f32 0.0, %v6985
      %v6987 = vpop.f32.mrb[0].mxu0
      %6988 = vdwg.mxu0
      %v6990 = vsel %vm440, %v6683, 0
      %v6993 = vsel %vm440, %v6684, 0
      %v6996 = vsel %vm440, %v6685, 0
      %v6999 = vsel %vm440, %v6686, 0
      %v7002 = vsel %vm440, %v6687, 0
      %v7005 = vsel %vm440, %v6688, 0
      %v7008 = vsel %vm440, %v6689, 0
      %v7011 = vsel %vm440, %v6690, 0
      %7013 = vmatprep.subr.mxu0 0.0
      %7014 = vmatpush1.msra.mxu0 %v4627
      %7015 = vmatprep.subr.mxu0 0.0
      %7016 = vmatpush1.msra.mxu0 %v4628
      %7017 = vmatprep.subr.mxu0 0.0
      %7018 = vmatpush1.msra.mxu0 %v4629
      %7019 = vmatprep.subr.mxu0 0.0
      %7020 = vmatpush1.msra.mxu0 %v4630
      %7021 = vmatprep.subr.mxu0 0.0
      %7022 = vmatpush1.msra.mxu0 %v4631
      %7023 = vmatprep.subr.mxu0 0.0
      %7024 = vmatpush1.msra.mxu0 %v4632
      %7025 = vmatprep.subr.mxu0 0.0
      %7026 = vmatpush1.msra.mxu0 %v4633
      %7027 = vmatprep.subr.mxu0 0.0
      %7028 = vmatpush1.msra.mxu0 %v4634
      %7029 = vmatprep.subr.mxu0 0.0
      %7030 = vmatpush1.msra.mxu0 0.0
      %7031 = vmatprep.subr.mxu0 0.0
      %7032 = vmatpush1.msra.mxu0 0.0
      %7033 = vmatprep.subr.mxu0 0.0
      %7034 = vmatpush1.msra.mxu0 0.0
      %7035 = vmatprep.subr.mxu0 0.0
      %7036 = vmatpush1.msra.mxu0 0.0
      %7037 = vmatprep.subr.mxu0 0.0
      %7038 = vmatpush1.msra.mxu0 0.0
      %7039 = vmatprep.subr.mxu0 0.0
      %7040 = vmatpush1.msra.mxu0 0.0
      %7041 = vmatprep.subr.mxu0 0.0
      %7042 = vmatpush1.msra.mxu0 0.0
      %7043 = vmatprep.subr.mxu0 0.0
      %7044 = vmatpush1.msra.mxu0 0.0
      %7045 = vmatprep.subr.mxu0 0.0
      %7046 = vmatpush1.msra.mxu0 0.0
      %7047 = vmatprep.subr.mxu0 0.0
      %7048 = vmatpush1.msra.mxu0 0.0
      %7049 = vmatprep.subr.mxu0 0.0
      %7050 = vmatpush1.msra.mxu0 0.0
      %7051 = vmatprep.subr.mxu0 0.0
      %7052 = vmatpush1.msra.mxu0 0.0
      %7053 = vmatprep.subr.mxu0 0.0
      %7054 = vmatpush1.msra.mxu0 0.0
      %7055 = vmatprep.subr.mxu0 0.0
      %7056 = vmatpush1.msra.mxu0 0.0
      %7057 = vmatprep.subr.mxu0 0.0
      %7058 = vmatpush1.msra.mxu0 0.0
      %7059 = vmatprep.subr.mxu0 0.0
      %7060 = vmatpush1.msra.mxu0 0.0
      %7061 = vmatprep.subr.mxu0 0.0
      %7062 = vmatpush1.msra.mxu0 0.0
      %7063 = vmatprep.subr.mxu0 0.0
      %7064 = vmatpush1.msra.mxu0 0.0
      %7065 = vmatprep.subr.mxu0 0.0
      %7066 = vmatpush1.msra.mxu0 0.0
      %7067 = vmatprep.subr.mxu0 0.0
      %7068 = vmatpush1.msra.mxu0 0.0
      %7069 = vmatprep.subr.mxu0 0.0
      %7070 = vmatpush1.msra.mxu0 0.0
      %7071 = vmatprep.subr.mxu0 0.0
      %7072 = vmatpush1.msra.mxu0 0.0
      %7073 = vmatprep.subr.mxu0 0.0
      %7074 = vmatpush1.msra.mxu0 0.0
      %7075 = vmatprep.subr.mxu0 0.0
      %7076 = vmatpush1.msra.mxu0 0.0
      %7077 = vmatprep.mubr.f32.mxu0 0.0
      %7078 = vmatmul.mubr.f32.gmra.mrb[0].mxu0 %v6990
      %v7079 = vpop.f32.mrb[0].mxu0
      %v7080 = vadd.f32 0.0, %v7079
      %v7081 = vpop.f32.mrb[0].mxu0
      %7082 = vmatprep.mubr.f32.mxu0 0.0
      %7083 = vmatmul.mubr.f32.gmra.mrb[0].mxu0 %v6993
      %v7084 = vpop.f32.mrb[0].mxu0
      %v7085 = vadd.f32 0.0, %v7084
      %v7086 = vpop.f32.mrb[0].mxu0
      %7087 = vmatprep.mubr.f32.mxu0 0.0
      %7088 = vmatmul.mubr.f32.gmra.mrb[0].mxu0 %v6996
      %v7089 = vpop.f32.mrb[0].mxu0
      %v7090 = vadd.f32 0.0, %v7089
      %v7091 = vpop.f32.mrb[0].mxu0
      %7092 = vmatprep.mubr.f32.mxu0 0.0
      %7093 = vmatmul.mubr.f32.gmra.mrb[0].mxu0 %v6999
      %v7094 = vpop.f32.mrb[0].mxu0
      %v7095 = vadd.f32 0.0, %v7094
      %v7096 = vpop.f32.mrb[0].mxu0
      %7097 = vmatprep.mubr.f32.mxu0 0.0
      %7098 = vmatmul.mubr.f32.gmra.mrb[0].mxu0 %v7002
      %v7099 = vpop.f32.mrb[0].mxu0
      %v7100 = vadd.f32 0.0, %v7099
      %v7101 = vpop.f32.mrb[0].mxu0
      %7102 = vmatprep.mubr.f32.mxu0 0.0
      %7103 = vmatmul.mubr.f32.gmra.mrb[0].mxu0 %v7005
      %v7104 = vpop.f32.mrb[0].mxu0
      %v7105 = vadd.f32 0.0, %v7104
      %v7106 = vpop.f32.mrb[0].mxu0
      %7107 = vmatprep.mubr.f32.mxu0 0.0
      %7108 = vmatmul.mubr.f32.gmra.mrb[0].mxu0 %v7008
      %v7109 = vpop.f32.mrb[0].mxu0
      %v7110 = vadd.f32 0.0, %v7109
      %v7111 = vpop.f32.mrb[0].mxu0
      %7112 = vmatprep.mubr.f32.mxu0 0.0
      %7113 = vmatmul.mubr.f32.gmra.mrb[0].mxu0 %v7011
      %v7114 = vpop.f32.mrb[0].mxu0
      %v7115 = vadd.f32 0.0, %v7114
      %v7116 = vpop.f32.mrb[0].mxu0
      %7117 = vdwg.mxu0
      %v7119 = vsel %vm440, %v6691, 0
      %v7122 = vsel %vm440, %v6692, 0
      %v7125 = vsel %vm440, %v6693, 0
      %v7128 = vsel %vm440, %v6694, 0
      %v7131 = vsel %vm440, %v6695, 0
      %v7134 = vsel %vm440, %v6696, 0
      %v7137 = vsel %vm440, %v6697, 0
      %v7140 = vsel %vm440, %v6698, 0
      %7142 = vmatprep.subr.mxu0 0.0
      %7143 = vmatpush1.msra.mxu0 %v4635
      %7144 = vmatprep.subr.mxu0 0.0
      %7145 = vmatpush1.msra.mxu0 %v4636
      %7146 = vmatprep.subr.mxu0 0.0
      %7147 = vmatpush1.msra.mxu0 %v4637
      %7148 = vmatprep.subr.mxu0 0.0
      %7149 = vmatpush1.msra.mxu0 %v4638
      %7150 = vmatprep.subr.mxu0 0.0
      %7151 = vmatpush1.msra.mxu0 %v4639
      %7152 = vmatprep.subr.mxu0 0.0
      %7153 = vmatpush1.msra.mxu0 %v4640
      %7154 = vmatprep.subr.mxu0 0.0
      %7155 = vmatpush1.msra.mxu0 %v4641
      %7156 = vmatprep.subr.mxu0 0.0
      %7157 = vmatpush1.msra.mxu0 %v4642
      %7158 = vmatprep.subr.mxu0 0.0
      %7159 = vmatpush1.msra.mxu0 0.0
      %7160 = vmatprep.subr.mxu0 0.0
      %7161 = vmatpush1.msra.mxu0 0.0
      %7162 = vmatprep.subr.mxu0 0.0
      %7163 = vmatpush1.msra.mxu0 0.0
      %7164 = vmatprep.subr.mxu0 0.0
      %7165 = vmatpush1.msra.mxu0 0.0
      %7166 = vmatprep.subr.mxu0 0.0
      %7167 = vmatpush1.msra.mxu0 0.0
      %7168 = vmatprep.subr.mxu0 0.0
      %7169 = vmatpush1.msra.mxu0 0.0
      %7170 = vmatprep.subr.mxu0 0.0
      %7171 = vmatpush1.msra.mxu0 0.0
      %7172 = vmatprep.subr.mxu0 0.0
      %7173 = vmatpush1.msra.mxu0 0.0
      %7174 = vmatprep.subr.mxu0 0.0
      %7175 = vmatpush1.msra.mxu0 0.0
      %7176 = vmatprep.subr.mxu0 0.0
      %7177 = vmatpush1.msra.mxu0 0.0
      %7178 = vmatprep.subr.mxu0 0.0
      %7179 = vmatpush1.msra.mxu0 0.0
      %7180 = vmatprep.subr.mxu0 0.0
      %7181 = vmatpush1.msra.mxu0 0.0
      %7182 = vmatprep.subr.mxu0 0.0
      %7183 = vmatpush1.msra.mxu0 0.0
      %7184 = vmatprep.subr.mxu0 0.0
      %7185 = vmatpush1.msra.mxu0 0.0
      %7186 = vmatprep.subr.mxu0 0.0
      %7187 = vmatpush1.msra.mxu0 0.0
      %7188 = vmatprep.subr.mxu0 0.0
      %7189 = vmatpush1.msra.mxu0 0.0
      %7190 = vmatprep.subr.mxu0 0.0
      %7191 = vmatpush1.msra.mxu0 0.0
      %7192 = vmatprep.subr.mxu0 0.0
      %7193 = vmatpush1.msra.mxu0 0.0
      %7194 = vmatprep.subr.mxu0 0.0
      %7195 = vmatpush1.msra.mxu0 0.0
      %7196 = vmatprep.subr.mxu0 0.0
      %7197 = vmatpush1.msra.mxu0 0.0
      %7198 = vmatprep.subr.mxu0 0.0
      %7199 = vmatpush1.msra.mxu0 0.0
      %7200 = vmatprep.subr.mxu0 0.0
      %7201 = vmatpush1.msra.mxu0 0.0
      %7202 = vmatprep.subr.mxu0 0.0
      %7203 = vmatpush1.msra.mxu0 0.0
      %7204 = vmatprep.subr.mxu0 0.0
      %7205 = vmatpush1.msra.mxu0 0.0
      %7206 = vmatprep.mubr.f32.mxu0 0.0
      %7207 = vmatmul.mubr.f32.gmra.mrb[0].mxu0 %v7119
      %v7208 = vpop.f32.mrb[0].mxu0
      %v7209 = vadd.f32 0.0, %v7208
      %v7210 = vpop.f32.mrb[0].mxu0
      %7211 = vmatprep.mubr.f32.mxu0 0.0
      %7212 = vmatmul.mubr.f32.gmra.mrb[0].mxu0 %v7122
      %v7213 = vpop.f32.mrb[0].mxu0
      %v7214 = vadd.f32 0.0, %v7213
      %v7215 = vpop.f32.mrb[0].mxu0
      %7216 = vmatprep.mubr.f32.mxu0 0.0
      %7217 = vmatmul.mubr.f32.gmra.mrb[0].mxu0 %v7125
      %v7218 = vpop.f32.mrb[0].mxu0
      %v7219 = vadd.f32 0.0, %v7218
      %v7220 = vpop.f32.mrb[0].mxu0
      %7221 = vmatprep.mubr.f32.mxu0 0.0
      %7222 = vmatmul.mubr.f32.gmra.mrb[0].mxu0 %v7128
      %v7223 = vpop.f32.mrb[0].mxu0
      %v7224 = vadd.f32 0.0, %v7223
      %v7225 = vpop.f32.mrb[0].mxu0
      %7226 = vmatprep.mubr.f32.mxu0 0.0
      %7227 = vmatmul.mubr.f32.gmra.mrb[0].mxu0 %v7131
      %v7228 = vpop.f32.mrb[0].mxu0
      %v7229 = vadd.f32 0.0, %v7228
      %v7230 = vpop.f32.mrb[0].mxu0
      %7231 = vmatprep.mubr.f32.mxu0 0.0
      %7232 = vmatmul.mubr.f32.gmra.mrb[0].mxu0 %v7134
      %v7233 = vpop.f32.mrb[0].mxu0
      %v7234 = vadd.f32 0.0, %v7233
      %v7235 = vpop.f32.mrb[0].mxu0
      %7236 = vmatprep.mubr.f32.mxu0 0.0
      %7237 = vmatmul.mubr.f32.gmra.mrb[0].mxu0 %v7137
      %v7238 = vpop.f32.mrb[0].mxu0
      %v7239 = vadd.f32 0.0, %v7238
      %v7240 = vpop.f32.mrb[0].mxu0
      %7241 = vmatprep.mubr.f32.mxu0 0.0
      %7242 = vmatmul.mubr.f32.gmra.mrb[0].mxu0 %v7140
      %v7243 = vpop.f32.mrb[0].mxu0
      %v7244 = vadd.f32 0.0, %v7243
      %v7245 = vpop.f32.mrb[0].mxu0
      %7246 = vdwg.mxu0
      %v7248 = vsel %vm440, %v6699, 0
      %v7251 = vsel %vm440, %v6700, 0
      %v7254 = vsel %vm440, %v6701, 0
      %v7257 = vsel %vm440, %v6702, 0
      %v7260 = vsel %vm440, %v6703, 0
      %v7263 = vsel %vm440, %v6704, 0
      %v7266 = vsel %vm440, %v6705, 0
      %v7269 = vsel %vm440, %v6706, 0
      %7271 = vmatprep.subr.mxu0 0.0
      %7272 = vmatpush1.msra.mxu0 %v4643
      %7273 = vmatprep.subr.mxu0 0.0
      %7274 = vmatpush1.msra.mxu0 %v4644
      %7275 = vmatprep.subr.mxu0 0.0
      %7276 = vmatpush1.msra.mxu0 %v4645
      %7277 = vmatprep.subr.mxu0 0.0
      %7278 = vmatpush1.msra.mxu0 %v4646
      %7279 = vmatprep.subr.mxu0 0.0
      %7280 = vmatpush1.msra.mxu0 %v4647
      %7281 = vmatprep.subr.mxu0 0.0
      %7282 = vmatpush1.msra.mxu0 %v4648
      %7283 = vmatprep.subr.mxu0 0.0
      %7284 = vmatpush1.msra.mxu0 %v4649
      %7285 = vmatprep.subr.mxu0 0.0
      %7286 = vmatpush1.msra.mxu0 %v4650
      %7287 = vmatprep.subr.mxu0 0.0
      %7288 = vmatpush1.msra.mxu0 0.0
      %7289 = vmatprep.subr.mxu0 0.0
      %7290 = vmatpush1.msra.mxu0 0.0
      %7291 = vmatprep.subr.mxu0 0.0
      %7292 = vmatpush1.msra.mxu0 0.0
      %7293 = vmatprep.subr.mxu0 0.0
      %7294 = vmatpush1.msra.mxu0 0.0
      %7295 = vmatprep.subr.mxu0 0.0
      %7296 = vmatpush1.msra.mxu0 0.0
      %7297 = vmatprep.subr.mxu0 0.0
      %7298 = vmatpush1.msra.mxu0 0.0
      %7299 = vmatprep.subr.mxu0 0.0
      %7300 = vmatpush1.msra.mxu0 0.0
      %7301 = vmatprep.subr.mxu0 0.0
      %7302 = vmatpush1.msra.mxu0 0.0
      %7303 = vmatprep.subr.mxu0 0.0
      %7304 = vmatpush1.msra.mxu0 0.0
      %7305 = vmatprep.subr.mxu0 0.0
      %7306 = vmatpush1.msra.mxu0 0.0
      %7307 = vmatprep.subr.mxu0 0.0
      %7308 = vmatpush1.msra.mxu0 0.0
      %7309 = vmatprep.subr.mxu0 0.0
      %7310 = vmatpush1.msra.mxu0 0.0
      %7311 = vmatprep.subr.mxu0 0.0
      %7312 = vmatpush1.msra.mxu0 0.0
      %7313 = vmatprep.subr.mxu0 0.0
      %7314 = vmatpush1.msra.mxu0 0.0
      %7315 = vmatprep.subr.mxu0 0.0
      %7316 = vmatpush1.msra.mxu0 0.0
      %7317 = vmatprep.subr.mxu0 0.0
      %7318 = vmatpush1.msra.mxu0 0.0
      %7319 = vmatprep.subr.mxu0 0.0
      %7320 = vmatpush1.msra.mxu0 0.0
      %7321 = vmatprep.subr.mxu0 0.0
      %7322 = vmatpush1.msra.mxu0 0.0
      %7323 = vmatprep.subr.mxu0 0.0
      %7324 = vmatpush1.msra.mxu0 0.0
      %7325 = vmatprep.subr.mxu0 0.0
      %7326 = vmatpush1.msra.mxu0 0.0
      %7327 = vmatprep.subr.mxu0 0.0
      %7328 = vmatpush1.msra.mxu0 0.0
      %7329 = vmatprep.subr.mxu0 0.0
      %7330 = vmatpush1.msra.mxu0 0.0
      %7331 = vmatprep.subr.mxu0 0.0
      %7332 = vmatpush1.msra.mxu0 0.0
      %7333 = vmatprep.subr.mxu0 0.0
      %7334 = vmatpush1.msra.mxu0 0.0
      %7335 = vmatprep.mubr.f32.mxu0 0.0
      %7336 = vmatmul.mubr.f32.gmra.mrb[0].mxu0 %v7248
      %v7337 = vpop.f32.mrb[0].mxu0
      %v7338 = vadd.f32 0.0, %v7337
      %v7339 = vpop.f32.mrb[0].mxu0
      %7340 = vmatprep.mubr.f32.mxu0 0.0
      %7341 = vmatmul.mubr.f32.gmra.mrb[0].mxu0 %v7251
      %v7342 = vpop.f32.mrb[0].mxu0
      %v7343 = vadd.f32 0.0, %v7342
      %v7344 = vpop.f32.mrb[0].mxu0
      %7345 = vmatprep.mubr.f32.mxu0 0.0
      %7346 = vmatmul.mubr.f32.gmra.mrb[0].mxu0 %v7254
      %v7347 = vpop.f32.mrb[0].mxu0
      %v7348 = vadd.f32 0.0, %v7347
      %v7349 = vpop.f32.mrb[0].mxu0
      %7350 = vmatprep.mubr.f32.mxu0 0.0
      %7351 = vmatmul.mubr.f32.gmra.mrb[0].mxu0 %v7257
      %v7352 = vpop.f32.mrb[0].mxu0
      %v7353 = vadd.f32 0.0, %v7352
      %v7354 = vpop.f32.mrb[0].mxu0
      %7355 = vmatprep.mubr.f32.mxu0 0.0
      %7356 = vmatmul.mubr.f32.gmra.mrb[0].mxu0 %v7260
      %v7357 = vpop.f32.mrb[0].mxu0
      %v7358 = vadd.f32 0.0, %v7357
      %v7359 = vpop.f32.mrb[0].mxu0
      %7360 = vmatprep.mubr.f32.mxu0 0.0
      %7361 = vmatmul.mubr.f32.gmra.mrb[0].mxu0 %v7263
      %v7362 = vpop.f32.mrb[0].mxu0
      %v7363 = vadd.f32 0.0, %v7362
      %v7364 = vpop.f32.mrb[0].mxu0
      %7365 = vmatprep.mubr.f32.mxu0 0.0
      %7366 = vmatmul.mubr.f32.gmra.mrb[0].mxu0 %v7266
      %v7367 = vpop.f32.mrb[0].mxu0
      %v7368 = vadd.f32 0.0, %v7367
      %v7369 = vpop.f32.mrb[0].mxu0
      %7370 = vmatprep.mubr.f32.mxu0 0.0
      %7371 = vmatmul.mubr.f32.gmra.mrb[0].mxu0 %v7269
      %v7372 = vpop.f32.mrb[0].mxu0
      %v7373 = vadd.f32 0.0, %v7372
      %v7374 = vpop.f32.mrb[0].mxu0
      %7375 = vdwg.mxu0
      %v7377 = vsel %vm440, %v6707, 0
      %v7380 = vsel %vm440, %v6708, 0
      %v7383 = vsel %vm440, %v6709, 0
      %v7386 = vsel %vm440, %v6710, 0
      %v7389 = vsel %vm440, %v6711, 0
      %v7392 = vsel %vm440, %v6712, 0
      %v7395 = vsel %vm440, %v6713, 0
      %v7398 = vsel %vm440, %v6714, 0
      %7400 = vmatprep.subr.mxu0 0.0
      %7401 = vmatpush1.msra.mxu0 %v4651
      %7402 = vmatprep.subr.mxu0 0.0
      %7403 = vmatpush1.msra.mxu0 %v4652
      %7404 = vmatprep.subr.mxu0 0.0
      %7405 = vmatpush1.msra.mxu0 %v4653
      %7406 = vmatprep.subr.mxu0 0.0
      %7407 = vmatpush1.msra.mxu0 %v4654
      %7408 = vmatprep.subr.mxu0 0.0
      %7409 = vmatpush1.msra.mxu0 %v4655
      %7410 = vmatprep.subr.mxu0 0.0
      %7411 = vmatpush1.msra.mxu0 %v4656
      %7412 = vmatprep.subr.mxu0 0.0
      %7413 = vmatpush1.msra.mxu0 %v4657
      %7414 = vmatprep.subr.mxu0 0.0
      %7415 = vmatpush1.msra.mxu0 %v4658
      %7416 = vmatprep.subr.mxu0 0.0
      %7417 = vmatpush1.msra.mxu0 0.0
      %7418 = vmatprep.subr.mxu0 0.0
      %7419 = vmatpush1.msra.mxu0 0.0
      %7420 = vmatprep.subr.mxu0 0.0
      %7421 = vmatpush1.msra.mxu0 0.0
      %7422 = vmatprep.subr.mxu0 0.0
      %7423 = vmatpush1.msra.mxu0 0.0
      %7424 = vmatprep.subr.mxu0 0.0
      %7425 = vmatpush1.msra.mxu0 0.0
      %7426 = vmatprep.subr.mxu0 0.0
      %7427 = vmatpush1.msra.mxu0 0.0
      %7428 = vmatprep.subr.mxu0 0.0
      %7429 = vmatpush1.msra.mxu0 0.0
      %7430 = vmatprep.subr.mxu0 0.0
      %7431 = vmatpush1.msra.mxu0 0.0
      %7432 = vmatprep.subr.mxu0 0.0
      %7433 = vmatpush1.msra.mxu0 0.0
      %7434 = vmatprep.subr.mxu0 0.0
      %7435 = vmatpush1.msra.mxu0 0.0
      %7436 = vmatprep.subr.mxu0 0.0
      %7437 = vmatpush1.msra.mxu0 0.0
      %7438 = vmatprep.subr.mxu0 0.0
      %7439 = vmatpush1.msra.mxu0 0.0
      %7440 = vmatprep.subr.mxu0 0.0
      %7441 = vmatpush1.msra.mxu0 0.0
      %7442 = vmatprep.subr.mxu0 0.0
      %7443 = vmatpush1.msra.mxu0 0.0
      %7444 = vmatprep.subr.mxu0 0.0
      %7445 = vmatpush1.msra.mxu0 0.0
      %7446 = vmatprep.subr.mxu0 0.0
      %7447 = vmatpush1.msra.mxu0 0.0
      %7448 = vmatprep.subr.mxu0 0.0
      %7449 = vmatpush1.msra.mxu0 0.0
      %7450 = vmatprep.subr.mxu0 0.0
      %7451 = vmatpush1.msra.mxu0 0.0
      %7452 = vmatprep.subr.mxu0 0.0
      %7453 = vmatpush1.msra.mxu0 0.0
      %7454 = vmatprep.subr.mxu0 0.0
      %7455 = vmatpush1.msra.mxu0 0.0
      %7456 = vmatprep.subr.mxu0 0.0
      %7457 = vmatpush1.msra.mxu0 0.0
      %7458 = vmatprep.subr.mxu0 0.0
      %7459 = vmatpush1.msra.mxu0 0.0
      %7460 = vmatprep.subr.mxu0 0.0
      %7461 = vmatpush1.msra.mxu0 0.0
      %7462 = vmatprep.subr.mxu0 0.0
      %7463 = vmatpush1.msra.mxu0 0.0
      %7464 = vmatprep.mubr.f32.mxu0 0.0
      %7465 = vmatmul.mubr.f32.gmra.mrb[0].mxu0 %v7377
      %v7466 = vpop.f32.mrb[0].mxu0
      %v7467 = vadd.f32 0.0, %v7466
      %v7468 = vpop.f32.mrb[0].mxu0
      %7469 = vmatprep.mubr.f32.mxu0 0.0
      %7470 = vmatmul.mubr.f32.gmra.mrb[0].mxu0 %v7380
      %v7471 = vpop.f32.mrb[0].mxu0
      %v7472 = vadd.f32 0.0, %v7471
      %v7473 = vpop.f32.mrb[0].mxu0
      %7474 = vmatprep.mubr.f32.mxu0 0.0
      %7475 = vmatmul.mubr.f32.gmra.mrb[0].mxu0 %v7383
      %v7476 = vpop.f32.mrb[0].mxu0
      %v7477 = vadd.f32 0.0, %v7476
      %v7478 = vpop.f32.mrb[0].mxu0
      %7479 = vmatprep.mubr.f32.mxu0 0.0
      %7480 = vmatmul.mubr.f32.gmra.mrb[0].mxu0 %v7386
      %v7481 = vpop.f32.mrb[0].mxu0
      %v7482 = vadd.f32 0.0, %v7481
      %v7483 = vpop.f32.mrb[0].mxu0
      %7484 = vmatprep.mubr.f32.mxu0 0.0
      %7485 = vmatmul.mubr.f32.gmra.mrb[0].mxu0 %v7389
      %v7486 = vpop.f32.mrb[0].mxu0
      %v7487 = vadd.f32 0.0, %v7486
      %v7488 = vpop.f32.mrb[0].mxu0
      %7489 = vmatprep.mubr.f32.mxu0 0.0
      %7490 = vmatmul.mubr.f32.gmra.mrb[0].mxu0 %v7392
      %v7491 = vpop.f32.mrb[0].mxu0
      %v7492 = vadd.f32 0.0, %v7491
      %v7493 = vpop.f32.mrb[0].mxu0
      %7494 = vmatprep.mubr.f32.mxu0 0.0
      %7495 = vmatmul.mubr.f32.gmra.mrb[0].mxu0 %v7395
      %v7496 = vpop.f32.mrb[0].mxu0
      %v7497 = vadd.f32 0.0, %v7496
      %v7498 = vpop.f32.mrb[0].mxu0
      %7499 = vmatprep.mubr.f32.mxu0 0.0
      %7500 = vmatmul.mubr.f32.gmra.mrb[0].mxu0 %v7398
      %v7501 = vpop.f32.mrb[0].mxu0
      %v7502 = vadd.f32 0.0, %v7501
      %v7503 = vpop.f32.mrb[0].mxu0
      %7504 = vdwg.mxu0
      %v7506 = vsel %vm440, %v6715, 0
      %v7509 = vsel %vm440, %v6716, 0
      %v7512 = vsel %vm440, %v6717, 0
      %v7515 = vsel %vm440, %v6718, 0
      %v7518 = vsel %vm440, %v6719, 0
      %v7521 = vsel %vm440, %v6720, 0
      %v7524 = vsel %vm440, %v6721, 0
      %v7527 = vsel %vm440, %v6722, 0
      %7529 = vmatprep.subr.mxu0 0.0
      %7530 = vmatpush1.msra.mxu0 %v4659
      %7531 = vmatprep.subr.mxu0 0.0
      %7532 = vmatpush1.msra.mxu0 %v4660
      %7533 = vmatprep.subr.mxu0 0.0
      %7534 = vmatpush1.msra.mxu0 %v4661
      %7535 = vmatprep.subr.mxu0 0.0
      %7536 = vmatpush1.msra.mxu0 %v4662
      %7537 = vmatprep.subr.mxu0 0.0
      %7538 = vmatpush1.msra.mxu0 %v4663
      %7539 = vmatprep.subr.mxu0 0.0
      %7540 = vmatpush1.msra.mxu0 %v4664
      %7541 = vmatprep.subr.mxu0 0.0
      %7542 = vmatpush1.msra.mxu0 %v4665
      %7543 = vmatprep.subr.mxu0 0.0
      %7544 = vmatpush1.msra.mxu0 %v4666
      %7545 = vmatprep.subr.mxu0 0.0
      %7546 = vmatpush1.msra.mxu0 0.0
      %7547 = vmatprep.subr.mxu0 0.0
      %7548 = vmatpush1.msra.mxu0 0.0
      %7549 = vmatprep.subr.mxu0 0.0
      %7550 = vmatpush1.msra.mxu0 0.0
      %7551 = vmatprep.subr.mxu0 0.0
      %7552 = vmatpush1.msra.mxu0 0.0
      %7553 = vmatprep.subr.mxu0 0.0
      %7554 = vmatpush1.msra.mxu0 0.0
      %7555 = vmatprep.subr.mxu0 0.0
      %7556 = vmatpush1.msra.mxu0 0.0
      %7557 = vmatprep.subr.mxu0 0.0
      %7558 = vmatpush1.msra.mxu0 0.0
      %7559 = vmatprep.subr.mxu0 0.0
      %7560 = vmatpush1.msra.mxu0 0.0
      %7561 = vmatprep.subr.mxu0 0.0
      %7562 = vmatpush1.msra.mxu0 0.0
      %7563 = vmatprep.subr.mxu0 0.0
      %7564 = vmatpush1.msra.mxu0 0.0
      %7565 = vmatprep.subr.mxu0 0.0
      %7566 = vmatpush1.msra.mxu0 0.0
      %7567 = vmatprep.subr.mxu0 0.0
      %7568 = vmatpush1.msra.mxu0 0.0
      %7569 = vmatprep.subr.mxu0 0.0
      %7570 = vmatpush1.msra.mxu0 0.0
      %7571 = vmatprep.subr.mxu0 0.0
      %7572 = vmatpush1.msra.mxu0 0.0
      %7573 = vmatprep.subr.mxu0 0.0
      %7574 = vmatpush1.msra.mxu0 0.0
      %7575 = vmatprep.subr.mxu0 0.0
      %7576 = vmatpush1.msra.mxu0 0.0
      %7577 = vmatprep.subr.mxu0 0.0
      %7578 = vmatpush1.msra.mxu0 0.0
      %7579 = vmatprep.subr.mxu0 0.0
      %7580 = vmatpush1.msra.mxu0 0.0
      %7581 = vmatprep.subr.mxu0 0.0
      %7582 = vmatpush1.msra.mxu0 0.0
      %7583 = vmatprep.subr.mxu0 0.0
      %7584 = vmatpush1.msra.mxu0 0.0
      %7585 = vmatprep.subr.mxu0 0.0
      %7586 = vmatpush1.msra.mxu0 0.0
      %7587 = vmatprep.subr.mxu0 0.0
      %7588 = vmatpush1.msra.mxu0 0.0
      %7589 = vmatprep.subr.mxu0 0.0
      %7590 = vmatpush1.msra.mxu0 0.0
      %7591 = vmatprep.subr.mxu0 0.0
      %7592 = vmatpush1.msra.mxu0 0.0
      %7593 = vmatprep.mubr.f32.mxu0 0.0
      %7594 = vmatmul.mubr.f32.gmra.mrb[0].mxu0 %v7506
      %v7595 = vpop.f32.mrb[0].mxu0
      %v7596 = vadd.f32 0.0, %v7595
      %v7597 = vpop.f32.mrb[0].mxu0
      %7598 = vmatprep.mubr.f32.mxu0 0.0
      %7599 = vmatmul.mubr.f32.gmra.mrb[0].mxu0 %v7509
      %v7600 = vpop.f32.mrb[0].mxu0
      %v7601 = vadd.f32 0.0, %v7600
      %v7602 = vpop.f32.mrb[0].mxu0
      %7603 = vmatprep.mubr.f32.mxu0 0.0
      %7604 = vmatmul.mubr.f32.gmra.mrb[0].mxu0 %v7512
      %v7605 = vpop.f32.mrb[0].mxu0
      %v7606 = vadd.f32 0.0, %v7605
      %v7607 = vpop.f32.mrb[0].mxu0
      %7608 = vmatprep.mubr.f32.mxu0 0.0
      %7609 = vmatmul.mubr.f32.gmra.mrb[0].mxu0 %v7515
      %v7610 = vpop.f32.mrb[0].mxu0
      %v7611 = vadd.f32 0.0, %v7610
      %v7612 = vpop.f32.mrb[0].mxu0
      %7613 = vmatprep.mubr.f32.mxu0 0.0
      %7614 = vmatmul.mubr.f32.gmra.mrb[0].mxu0 %v7518
      %v7615 = vpop.f32.mrb[0].mxu0
      %v7616 = vadd.f32 0.0, %v7615
      %v7617 = vpop.f32.mrb[0].mxu0
      %7618 = vmatprep.mubr.f32.mxu0 0.0
      %7619 = vmatmul.mubr.f32.gmra.mrb[0].mxu0 %v7521
      %v7620 = vpop.f32.mrb[0].mxu0
      %v7621 = vadd.f32 0.0, %v7620
      %v7622 = vpop.f32.mrb[0].mxu0
      %7623 = vmatprep.mubr.f32.mxu0 0.0
      %7624 = vmatmul.mubr.f32.gmra.mrb[0].mxu0 %v7524
      %v7625 = vpop.f32.mrb[0].mxu0
      %v7626 = vadd.f32 0.0, %v7625
      %v7627 = vpop.f32.mrb[0].mxu0
      %7628 = vmatprep.mubr.f32.mxu0 0.0
      %7629 = vmatmul.mubr.f32.gmra.mrb[0].mxu0 %v7527
      %v7630 = vpop.f32.mrb[0].mxu0
      %v7631 = vadd.f32 0.0, %v7630
      %v7632 = vpop.f32.mrb[0].mxu0
      %7633 = vdwg.mxu0
      %v7635 = vsel %vm440, %v6723, 0
      %v7638 = vsel %vm440, %v6724, 0
      %v7641 = vsel %vm440, %v6725, 0
      %v7644 = vsel %vm440, %v6726, 0
      %v7647 = vsel %vm440, %v6727, 0
      %v7650 = vsel %vm440, %v6728, 0
      %v7653 = vsel %vm440, %v6729, 0
      %v7656 = vsel %vm440, %v6730, 0
      %7658 = vmatprep.subr.mxu0 0.0
      %7659 = vmatpush1.msra.mxu0 %v4667
      %7660 = vmatprep.subr.mxu0 0.0
      %7661 = vmatpush1.msra.mxu0 %v4668
      %7662 = vmatprep.subr.mxu0 0.0
      %7663 = vmatpush1.msra.mxu0 %v4669
      %7664 = vmatprep.subr.mxu0 0.0
      %7665 = vmatpush1.msra.mxu0 %v4670
      %7666 = vmatprep.subr.mxu0 0.0
      %7667 = vmatpush1.msra.mxu0 %v4671
      %7668 = vmatprep.subr.mxu0 0.0
      %7669 = vmatpush1.msra.mxu0 %v4672
      %7670 = vmatprep.subr.mxu0 0.0
      %7671 = vmatpush1.msra.mxu0 %v4673
      %7672 = vmatprep.subr.mxu0 0.0
      %7673 = vmatpush1.msra.mxu0 %v4674
      %7674 = vmatprep.subr.mxu0 0.0
      %7675 = vmatpush1.msra.mxu0 0.0
      %7676 = vmatprep.subr.mxu0 0.0
      %7677 = vmatpush1.msra.mxu0 0.0
      %7678 = vmatprep.subr.mxu0 0.0
      %7679 = vmatpush1.msra.mxu0 0.0
      %7680 = vmatprep.subr.mxu0 0.0
      %7681 = vmatpush1.msra.mxu0 0.0
      %7682 = vmatprep.subr.mxu0 0.0
      %7683 = vmatpush1.msra.mxu0 0.0
      %7684 = vmatprep.subr.mxu0 0.0
      %7685 = vmatpush1.msra.mxu0 0.0
      %7686 = vmatprep.subr.mxu0 0.0
      %7687 = vmatpush1.msra.mxu0 0.0
      %7688 = vmatprep.subr.mxu0 0.0
      %7689 = vmatpush1.msra.mxu0 0.0
      %7690 = vmatprep.subr.mxu0 0.0
      %7691 = vmatpush1.msra.mxu0 0.0
      %7692 = vmatprep.subr.mxu0 0.0
      %7693 = vmatpush1.msra.mxu0 0.0
      %7694 = vmatprep.subr.mxu0 0.0
      %7695 = vmatpush1.msra.mxu0 0.0
      %7696 = vmatprep.subr.mxu0 0.0
      %7697 = vmatpush1.msra.mxu0 0.0
      %7698 = vmatprep.subr.mxu0 0.0
      %7699 = vmatpush1.msra.mxu0 0.0
      %7700 = vmatprep.subr.mxu0 0.0
      %7701 = vmatpush1.msra.mxu0 0.0
      %7702 = vmatprep.subr.mxu0 0.0
      %7703 = vmatpush1.msra.mxu0 0.0
      %7704 = vmatprep.subr.mxu0 0.0
      %7705 = vmatpush1.msra.mxu0 0.0
      %7706 = vmatprep.subr.mxu0 0.0
      %7707 = vmatpush1.msra.mxu0 0.0
      %7708 = vmatprep.subr.mxu0 0.0
      %7709 = vmatpush1.msra.mxu0 0.0
      %7710 = vmatprep.subr.mxu0 0.0
      %7711 = vmatpush1.msra.mxu0 0.0
      %7712 = vmatprep.subr.mxu0 0.0
      %7713 = vmatpush1.msra.mxu0 0.0
      %7714 = vmatprep.subr.mxu0 0.0
      %7715 = vmatpush1.msra.mxu0 0.0
      %7716 = vmatprep.subr.mxu0 0.0
      %7717 = vmatpush1.msra.mxu0 0.0
      %7718 = vmatprep.subr.mxu0 0.0
      %7719 = vmatpush1.msra.mxu0 0.0
      %7720 = vmatprep.subr.mxu0 0.0
      %7721 = vmatpush1.msra.mxu0 0.0
      %7722 = vmatprep.mubr.f32.mxu0 0.0
      %7723 = vmatmul.mubr.f32.gmra.mrb[0].mxu0 %v7635
      %v7724 = vpop.f32.mrb[0].mxu0
      %v7725 = vadd.f32 0.0, %v7724
      %v7726 = vpop.f32.mrb[0].mxu0
      %7727 = vmatprep.mubr.f32.mxu0 0.0
      %7728 = vmatmul.mubr.f32.gmra.mrb[0].mxu0 %v7638
      %v7729 = vpop.f32.mrb[0].mxu0
      %v7730 = vadd.f32 0.0, %v7729
      %v7731 = vpop.f32.mrb[0].mxu0
      %7732 = vmatprep.mubr.f32.mxu0 0.0
      %7733 = vmatmul.mubr.f32.gmra.mrb[0].mxu0 %v7641
      %v7734 = vpop.f32.mrb[0].mxu0
      %v7735 = vadd.f32 0.0, %v7734
      %v7736 = vpop.f32.mrb[0].mxu0
      %7737 = vmatprep.mubr.f32.mxu0 0.0
      %7738 = vmatmul.mubr.f32.gmra.mrb[0].mxu0 %v7644
      %v7739 = vpop.f32.mrb[0].mxu0
      %v7740 = vadd.f32 0.0, %v7739
      %v7741 = vpop.f32.mrb[0].mxu0
      %7742 = vmatprep.mubr.f32.mxu0 0.0
      %7743 = vmatmul.mubr.f32.gmra.mrb[0].mxu0 %v7647
      %v7744 = vpop.f32.mrb[0].mxu0
      %v7745 = vadd.f32 0.0, %v7744
      %v7746 = vpop.f32.mrb[0].mxu0
      %7747 = vmatprep.mubr.f32.mxu0 0.0
      %7748 = vmatmul.mubr.f32.gmra.mrb[0].mxu0 %v7650
      %v7749 = vpop.f32.mrb[0].mxu0
      %v7750 = vadd.f32 0.0, %v7749
      %v7751 = vpop.f32.mrb[0].mxu0
      %7752 = vmatprep.mubr.f32.mxu0 0.0
      %7753 = vmatmul.mubr.f32.gmra.mrb[0].mxu0 %v7653
      %v7754 = vpop.f32.mrb[0].mxu0
      %v7755 = vadd.f32 0.0, %v7754
      %v7756 = vpop.f32.mrb[0].mxu0
      %7757 = vmatprep.mubr.f32.mxu0 0.0
      %7758 = vmatmul.mubr.f32.gmra.mrb[0].mxu0 %v7656
      %v7759 = vpop.f32.mrb[0].mxu0
      %v7760 = vadd.f32 0.0, %v7759
      %v7761 = vpop.f32.mrb[0].mxu0
      %7762 = vdwg.mxu0
      %v7763 = vsel %vm440, %v6822, 0.0
      %v7764 = vsel %vm440, %v6951, 0.0
      %v7765 = vadd.f32 %v7763, %v7764
      %v7766 = vsel %vm440, %v7080, 0.0
      %v7767 = vadd.f32 %v7765, %v7766
      %v7768 = vsel %vm440, %v7209, 0.0
      %v7769 = vadd.f32 %v7767, %v7768
      %v7770 = vsel %vm440, %v7338, 0.0
      %v7771 = vadd.f32 %v7769, %v7770
      %v7772 = vsel %vm440, %v7467, 0.0
      %v7773 = vadd.f32 %v7771, %v7772
      %v7774 = vsel %vm440, %v7596, 0.0
      %v7775 = vadd.f32 %v7773, %v7774
      %v7776 = vsel %vm440, %v7725, 0.0
      %v7777 = vadd.f32 %v7775, %v7776
      %v7778 = vsel %vm440, %v6827, 0.0
      %v7779 = vsel %vm440, %v6956, 0.0
      %v7780 = vadd.f32 %v7778, %v7779
      %v7781 = vsel %vm440, %v7085, 0.0
      %v7782 = vadd.f32 %v7780, %v7781
      %v7783 = vsel %vm440, %v7214, 0.0
      %v7784 = vadd.f32 %v7782, %v7783
      %v7785 = vsel %vm440, %v7343, 0.0
      %v7786 = vadd.f32 %v7784, %v7785
      %v7787 = vsel %vm440, %v7472, 0.0
      %v7788 = vadd.f32 %v7786, %v7787
      %v7789 = vsel %vm440, %v7601, 0.0
      %v7790 = vadd.f32 %v7788, %v7789
      %v7791 = vsel %vm440, %v7730, 0.0
      %v7792 = vadd.f32 %v7790, %v7791
      %v7793 = vsel %vm440, %v6832, 0.0
      %v7794 = vsel %vm440, %v6961, 0.0
      %v7795 = vadd.f32 %v7793, %v7794
      %v7796 = vsel %vm440, %v7090, 0.0
      %v7797 = vadd.f32 %v7795, %v7796
      %v7798 = vsel %vm440, %v7219, 0.0
      %v7799 = vadd.f32 %v7797, %v7798
      %v7800 = vsel %vm440, %v7348, 0.0
      %v7801 = vadd.f32 %v7799, %v7800
      %v7802 = vsel %vm440, %v7477, 0.0
      %v7803 = vadd.f32 %v7801, %v7802
      %v7804 = vsel %vm440, %v7606, 0.0
      %v7805 = vadd.f32 %v7803, %v7804
      %v7806 = vsel %vm440, %v7735, 0.0
      %v7807 = vadd.f32 %v7805, %v7806
      %v7808 = vsel %vm440, %v6837, 0.0
      %v7809 = vsel %vm440, %v6966, 0.0
      %v7810 = vadd.f32 %v7808, %v7809
      %v7811 = vsel %vm440, %v7095, 0.0
      %v7812 = vadd.f32 %v7810, %v7811
      %v7813 = vsel %vm440, %v7224, 0.0
      %v7814 = vadd.f32 %v7812, %v7813
      %v7815 = vsel %vm440, %v7353, 0.0
      %v7816 = vadd.f32 %v7814, %v7815
      %v7817 = vsel %vm440, %v7482, 0.0
      %v7818 = vadd.f32 %v7816, %v7817
      %v7819 = vsel %vm440, %v7611, 0.0
      %v7820 = vadd.f32 %v7818, %v7819
      %v7821 = vsel %vm440, %v7740, 0.0
      %v7822 = vadd.f32 %v7820, %v7821
      %v7823 = vsel %vm440, %v6842, 0.0
      %v7824 = vsel %vm440, %v6971, 0.0
      %v7825 = vadd.f32 %v7823, %v7824
      %v7826 = vsel %vm440, %v7100, 0.0
      %v7827 = vadd.f32 %v7825, %v7826
      %v7828 = vsel %vm440, %v7229, 0.0
      %v7829 = vadd.f32 %v7827, %v7828
      %v7830 = vsel %vm440, %v7358, 0.0
      %v7831 = vadd.f32 %v7829, %v7830
      %v7832 = vsel %vm440, %v7487, 0.0
      %v7833 = vadd.f32 %v7831, %v7832
      %v7834 = vsel %vm440, %v7616, 0.0
      %v7835 = vadd.f32 %v7833, %v7834
      %v7836 = vsel %vm440, %v7745, 0.0
      %v7837 = vadd.f32 %v7835, %v7836
      %v7838 = vsel %vm440, %v6847, 0.0
      %v7839 = vsel %vm440, %v6976, 0.0
      %v7840 = vadd.f32 %v7838, %v7839
      %v7841 = vsel %vm440, %v7105, 0.0
      %v7842 = vadd.f32 %v7840, %v7841
      %v7843 = vsel %vm440, %v7234, 0.0
      %v7844 = vadd.f32 %v7842, %v7843
      %v7845 = vsel %vm440, %v7363, 0.0
      %v7846 = vadd.f32 %v7844, %v7845
      %v7847 = vsel %vm440, %v7492, 0.0
      %v7848 = vadd.f32 %v7846, %v7847
      %v7849 = vsel %vm440, %v7621, 0.0
      %v7850 = vadd.f32 %v7848, %v7849
      %v7851 = vsel %vm440, %v7750, 0.0
      %v7852 = vadd.f32 %v7850, %v7851
      %v7853 = vsel %vm440, %v6852, 0.0
      %v7854 = vsel %vm440, %v6981, 0.0
      %v7855 = vadd.f32 %v7853, %v7854
      %v7856 = vsel %vm440, %v7110, 0.0
      %v7857 = vadd.f32 %v7855, %v7856
      %v7858 = vsel %vm440, %v7239, 0.0
      %v7859 = vadd.f32 %v7857, %v7858
      %v7860 = vsel %vm440, %v7368, 0.0
      %v7861 = vadd.f32 %v7859, %v7860
      %v7862 = vsel %vm440, %v7497, 0.0
      %v7863 = vadd.f32 %v7861, %v7862
      %v7864 = vsel %vm440, %v7626, 0.0
      %v7865 = vadd.f32 %v7863, %v7864
      %v7866 = vsel %vm440, %v7755, 0.0
      %v7867 = vadd.f32 %v7865, %v7866
      %v7868 = vsel %vm440, %v6857, 0.0
      %v7869 = vsel %vm440, %v6986, 0.0
      %v7870 = vadd.f32 %v7868, %v7869
      %v7871 = vsel %vm440, %v7115, 0.0
      %v7872 = vadd.f32 %v7870, %v7871
      %v7873 = vsel %vm440, %v7244, 0.0
      %v7874 = vadd.f32 %v7872, %v7873
      %v7875 = vsel %vm440, %v7373, 0.0
      %v7876 = vadd.f32 %v7874, %v7875
      %v7877 = vsel %vm440, %v7502, 0.0
      %v7878 = vadd.f32 %v7876, %v7877
      %v7879 = vsel %vm440, %v7631, 0.0
      %v7880 = vadd.f32 %v7878, %v7879
      %v7881 = vsel %vm440, %v7760, 0.0
      %v7882 = vadd.f32 %v7880, %v7881
      %v7883 = vld [vmem:[%s2] sm:$0xff]
      %v7884 = vld [vmem:[%s2 + $0x8] sm:$0xff]
      %v7885 = vld [vmem:[%s2 + $0x10] sm:$0xff]
      %v7886 = vld [vmem:[%s2 + $0x18] sm:$0xff]
      %v7887 = vld [vmem:[%s2 + $0x20] sm:$0xff]
      %v7888 = vld [vmem:[%s2 + $0x28] sm:$0xff]
      %v7889 = vld [vmem:[%s2 + $0x30] sm:$0xff]
      %v7890 = vld [vmem:[%s2 + $0x38] sm:$0xff]
      %v7892 = vsel %vm440, %v4377, 0
      %v7895 = vsel %vm440, %v4392, 0
      %v7898 = vsel %vm440, %v4407, 0
      %v7901 = vsel %vm440, %v4422, 0
      %v7904 = vsel %vm440, %v4437, 0
      %v7907 = vsel %vm440, %v4452, 0
      %v7910 = vsel %vm440, %v4467, 0
      %v7913 = vsel %vm440, %v4482, 0
      %v7916 = vsel %vm440, %v7777, 0
      %v7919 = vsel %vm440, %v7792, 0
      %v7922 = vsel %vm440, %v7807, 0
      %v7925 = vsel %vm440, %v7822, 0
      %v7928 = vsel %vm440, %v7837, 0
      %v7931 = vsel %vm440, %v7852, 0
      %v7934 = vsel %vm440, %v7867, 0
      %v7937 = vsel %vm440, %v7882, 0
      %7939 = vmatprep.subr.mxu0 0.0
      %7940 = vmatpush1.msra.mxu0 %v7883
      %7941 = vmatprep.subr.mxu0 0.0
      %7942 = vmatpush1.msra.mxu0 %v7884
      %7943 = vmatprep.subr.mxu0 0.0
      %7944 = vmatpush1.msra.mxu0 %v7885
      %7945 = vmatprep.subr.mxu0 0.0
      %7946 = vmatpush1.msra.mxu0 %v7886
      %7947 = vmatprep.subr.mxu0 0.0
      %7948 = vmatpush1.msra.mxu0 %v7887
      %7949 = vmatprep.subr.mxu0 0.0
      %7950 = vmatpush1.msra.mxu0 %v7888
      %7951 = vmatprep.subr.mxu0 0.0
      %7952 = vmatpush1.msra.mxu0 %v7889
      %7953 = vmatprep.subr.mxu0 0.0
      %7954 = vmatpush1.msra.mxu0 %v7890
      %7955 = vmatprep.subr.mxu0 0.0
      %7956 = vmatpush1.msra.mxu0 0.0
      %7957 = vmatprep.subr.mxu0 0.0
      %7958 = vmatpush1.msra.mxu0 0.0
      %7959 = vmatprep.subr.mxu0 0.0
      %7960 = vmatpush1.msra.mxu0 0.0
      %7961 = vmatprep.subr.mxu0 0.0
      %7962 = vmatpush1.msra.mxu0 0.0
      %7963 = vmatprep.subr.mxu0 0.0
      %7964 = vmatpush1.msra.mxu0 0.0
      %7965 = vmatprep.subr.mxu0 0.0
      %7966 = vmatpush1.msra.mxu0 0.0
      %7967 = vmatprep.subr.mxu0 0.0
      %7968 = vmatpush1.msra.mxu0 0.0
      %7969 = vmatprep.subr.mxu0 0.0
      %7970 = vmatpush1.msra.mxu0 0.0
      %7971 = vmatprep.subr.mxu0 0.0
      %7972 = vmatpush1.msra.mxu0 0.0
      %7973 = vmatprep.subr.mxu0 0.0
      %7974 = vmatpush1.msra.mxu0 0.0
      %7975 = vmatprep.subr.mxu0 0.0
      %7976 = vmatpush1.msra.mxu0 0.0
      %7977 = vmatprep.subr.mxu0 0.0
      %7978 = vmatpush1.msra.mxu0 0.0
      %7979 = vmatprep.subr.mxu0 0.0
      %7980 = vmatpush1.msra.mxu0 0.0
      %7981 = vmatprep.subr.mxu0 0.0
      %7982 = vmatpush1.msra.mxu0 0.0
      %7983 = vmatprep.subr.mxu0 0.0
      %7984 = vmatpush1.msra.mxu0 0.0
      %7985 = vmatprep.subr.mxu0 0.0
      %7986 = vmatpush1.msra.mxu0 0.0
      %7987 = vmatprep.subr.mxu0 0.0
      %7988 = vmatpush1.msra.mxu0 0.0
      %7989 = vmatprep.subr.mxu0 0.0
      %7990 = vmatpush1.msra.mxu0 0.0
      %7991 = vmatprep.subr.mxu0 0.0
      %7992 = vmatpush1.msra.mxu0 0.0
      %7993 = vmatprep.subr.mxu0 0.0
      %7994 = vmatpush1.msra.mxu0 0.0
      %7995 = vmatprep.subr.mxu0 0.0
      %7996 = vmatpush1.msra.mxu0 0.0
      %7997 = vmatprep.subr.mxu0 0.0
      %7998 = vmatpush1.msra.mxu0 0.0
      %7999 = vmatprep.subr.mxu0 0.0
      %8000 = vmatpush1.msra.mxu0 0.0
      %8001 = vmatprep.subr.mxu0 0.0
      %8002 = vmatpush1.msra.mxu0 0.0
      %8003 = vmatprep.mubr.f32.mxu0 0.0
      %8004 = vmatmul.mubr.f32.gmra.mrb[0].mxu0 %v7892
      %v8005 = vpop.f32.mrb[0].mxu0
      %v8006 = vadd.f32 0.0, %v8005
      %v8007 = vpop.f32.mrb[0].mxu0
      %8008 = vmatprep.mubr.f32.mxu0 0.0
      %8009 = vmatmul.mubr.f32.gmra.mrb[0].mxu0 %v7895
      %v8010 = vpop.f32.mrb[0].mxu0
      %v8011 = vadd.f32 0.0, %v8010
      %v8012 = vpop.f32.mrb[0].mxu0
      %8013 = vmatprep.mubr.f32.mxu0 0.0
      %8014 = vmatmul.mubr.f32.gmra.mrb[0].mxu0 %v7898
      %v8015 = vpop.f32.mrb[0].mxu0
      %v8016 = vadd.f32 0.0, %v8015
      %v8017 = vpop.f32.mrb[0].mxu0
      %8018 = vmatprep.mubr.f32.mxu0 0.0
      %8019 = vmatmul.mubr.f32.gmra.mrb[0].mxu0 %v7901
      %v8020 = vpop.f32.mrb[0].mxu0
      %v8021 = vadd.f32 0.0, %v8020
      %v8022 = vpop.f32.mrb[0].mxu0
      %8023 = vmatprep.mubr.f32.mxu0 0.0
      %8024 = vmatmul.mubr.f32.gmra.mrb[0].mxu0 %v7904
      %v8025 = vpop.f32.mrb[0].mxu0
      %v8026 = vadd.f32 0.0, %v8025
      %v8027 = vpop.f32.mrb[0].mxu0
      %8028 = vmatprep.mubr.f32.mxu0 0.0
      %8029 = vmatmul.mubr.f32.gmra.mrb[0].mxu0 %v7907
      %v8030 = vpop.f32.mrb[0].mxu0
      %v8031 = vadd.f32 0.0, %v8030
      %v8032 = vpop.f32.mrb[0].mxu0
      %8033 = vmatprep.mubr.f32.mxu0 0.0
      %8034 = vmatmul.mubr.f32.gmra.mrb[0].mxu0 %v7910
      %v8035 = vpop.f32.mrb[0].mxu0
      %v8036 = vadd.f32 0.0, %v8035
      %v8037 = vpop.f32.mrb[0].mxu0
      %8038 = vmatprep.mubr.f32.mxu0 0.0
      %8039 = vmatmul.mubr.f32.gmra.mrb[0].mxu0 %v7913
      %v8040 = vpop.f32.mrb[0].mxu0
      %v8041 = vadd.f32 0.0, %v8040
      %v8042 = vpop.f32.mrb[0].mxu0
      %8043 = vmatprep.mubr.f32.mxu0 0.0
      %8044 = vmatmul.mubr.f32.gmra.mrb[0].mxu0 %v7916
      %v8045 = vpop.f32.mrb[0].mxu0
      %v8046 = vadd.f32 0.0, %v8045
      %v8047 = vpop.f32.mrb[0].mxu0
      %8048 = vmatprep.mubr.f32.mxu0 0.0
      %8049 = vmatmul.mubr.f32.gmra.mrb[0].mxu0 %v7919
      %v8050 = vpop.f32.mrb[0].mxu0
      %v8051 = vadd.f32 0.0, %v8050
      %v8052 = vpop.f32.mrb[0].mxu0
      %8053 = vmatprep.mubr.f32.mxu0 0.0
      %8054 = vmatmul.mubr.f32.gmra.mrb[0].mxu0 %v7922
      %v8055 = vpop.f32.mrb[0].mxu0
      %v8056 = vadd.f32 0.0, %v8055
      %v8057 = vpop.f32.mrb[0].mxu0
      %8058 = vmatprep.mubr.f32.mxu0 0.0
      %8059 = vmatmul.mubr.f32.gmra.mrb[0].mxu0 %v7925
      %v8060 = vpop.f32.mrb[0].mxu0
      %v8061 = vadd.f32 0.0, %v8060
      %v8062 = vpop.f32.mrb[0].mxu0
      %8063 = vmatprep.mubr.f32.mxu0 0.0
      %8064 = vmatmul.mubr.f32.gmra.mrb[0].mxu0 %v7928
      %v8065 = vpop.f32.mrb[0].mxu0
      %v8066 = vadd.f32 0.0, %v8065
      %v8067 = vpop.f32.mrb[0].mxu0
      %8068 = vmatprep.mubr.f32.mxu0 0.0
      %8069 = vmatmul.mubr.f32.gmra.mrb[0].mxu0 %v7931
      %v8070 = vpop.f32.mrb[0].mxu0
      %v8071 = vadd.f32 0.0, %v8070
      %v8072 = vpop.f32.mrb[0].mxu0
      %8073 = vmatprep.mubr.f32.mxu0 0.0
      %8074 = vmatmul.mubr.f32.gmra.mrb[0].mxu0 %v7934
      %v8075 = vpop.f32.mrb[0].mxu0
      %v8076 = vadd.f32 0.0, %v8075
      %v8077 = vpop.f32.mrb[0].mxu0
      %8078 = vmatprep.mubr.f32.mxu0 0.0
      %8079 = vmatmul.mubr.f32.gmra.mrb[0].mxu0 %v7937
      %v8080 = vpop.f32.mrb[0].mxu0
      %v8081 = vadd.f32 0.0, %v8080
      %v8082 = vpop.f32.mrb[0].mxu0
      %8083 = vdwg.mxu0
      %v8084 = vadd.f32 %v422, %v8006
      %v8085 = vadd.f32 %v423, %v8011
      %v8086 = vadd.f32 %v424, %v8016
      %v8087 = vadd.f32 %v425, %v8021
      %v8088 = vadd.f32 %v426, %v8026
      %v8089 = vadd.f32 %v427, %v8031
      %v8090 = vadd.f32 %v428, %v8036
      %v8091 = vadd.f32 %v429, %v8041
      %v8092 = vadd.f32 %v430, %v8046
      %v8093 = vadd.f32 %v431, %v8051
      %v8094 = vadd.f32 %v432, %v8056
      %v8095 = vadd.f32 %v433, %v8061
      %v8096 = vadd.f32 %v434, %v8066
      %v8097 = vadd.f32 %v435, %v8071
      %v8098 = vadd.f32 %v436, %v8076
      %v8099 = vadd.f32 %v437, %v8081
      %v8100 = vld [vmem:[%s3] sm:$0x1]
      %v8102 = vlaneseq
      %v8103 = vshrl.u32 %v8102, 7
      %v8104 = vsub.s32 0, %v8103
      %v8105 = vrot.slane %v8100, %v8104
      %v8107 = vadd.f32 %v8084, %v8105
      %v8108 = vadd.f32 %v8085, %v8105
      %v8109 = vadd.f32 %v8086, %v8105
      %v8110 = vadd.f32 %v8087, %v8105
      %v8111 = vadd.f32 %v8088, %v8105
      %v8112 = vadd.f32 %v8089, %v8105
      %v8113 = vadd.f32 %v8090, %v8105
      %v8114 = vadd.f32 %v8091, %v8105
      %v8115 = vadd.f32 %v8092, %v8105
      %v8116 = vadd.f32 %v8093, %v8105
      %v8117 = vadd.f32 %v8094, %v8105
      %v8118 = vadd.f32 %v8095, %v8105
      %v8119 = vadd.f32 %v8096, %v8105
      %v8120 = vadd.f32 %v8097, %v8105
      %v8121 = vadd.f32 %v8098, %v8105
      %v8122 = vadd.f32 %v8099, %v8105
      %v8123 = vld [vmem:[%s6] sm:$0x1]
      %v8124 = vld [vmem:[%s7] sm:$0x1]
      %v8125 = vsel %vm440, %v8107, 0.0
      %8126 = vadd.xlane.f32.xlu0 %v8125
      %v8127 = vpop.xlane.xlu0 %8126
      %v8128 = vsel %vm440, %v8108, 0.0
      %8129 = vadd.xlane.f32.xlu0 %v8128
      %v8130 = vpop.xlane.xlu0 %8129
      %v8131 = vsel %vm440, %v8109, 0.0
      %8132 = vadd.xlane.f32.xlu0 %v8131
      %v8133 = vpop.xlane.xlu0 %8132
      %v8134 = vsel %vm440, %v8110, 0.0
      %8135 = vadd.xlane.f32.xlu0 %v8134
      %v8136 = vpop.xlane.xlu0 %8135
      %v8137 = vsel %vm440, %v8111, 0.0
      %8138 = vadd.xlane.f32.xlu0 %v8137
      %v8139 = vpop.xlane.xlu0 %8138
      %v8140 = vsel %vm440, %v8112, 0.0
      %8141 = vadd.xlane.f32.xlu0 %v8140
      %v8142 = vpop.xlane.xlu0 %8141
      %v8143 = vsel %vm440, %v8113, 0.0
      %8144 = vadd.xlane.f32.xlu0 %v8143
      %v8145 = vpop.xlane.xlu0 %8144
      %v8146 = vsel %vm440, %v8114, 0.0
      %8147 = vadd.xlane.f32.xlu0 %v8146
      %v8148 = vpop.xlane.xlu0 %8147
      %v8149 = vsel %vm440, %v8115, 0.0
      %8150 = vadd.xlane.f32.xlu0 %v8149
      %v8151 = vpop.xlane.xlu0 %8150
      %v8152 = vsel %vm440, %v8116, 0.0
      %8153 = vadd.xlane.f32.xlu0 %v8152
      %v8154 = vpop.xlane.xlu0 %8153
      %v8155 = vsel %vm440, %v8117, 0.0
      %8156 = vadd.xlane.f32.xlu0 %v8155
      %v8157 = vpop.xlane.xlu0 %8156
      %v8158 = vsel %vm440, %v8118, 0.0
      %8159 = vadd.xlane.f32.xlu0 %v8158
      %v8160 = vpop.xlane.xlu0 %8159
      %v8161 = vsel %vm440, %v8119, 0.0
      %8162 = vadd.xlane.f32.xlu0 %v8161
      %v8163 = vpop.xlane.xlu0 %8162
      %v8164 = vsel %vm440, %v8120, 0.0
      %8165 = vadd.xlane.f32.xlu0 %v8164
      %v8166 = vpop.xlane.xlu0 %8165
      %v8167 = vsel %vm440, %v8121, 0.0
      %8168 = vadd.xlane.f32.xlu0 %v8167
      %v8169 = vpop.xlane.xlu0 %8168
      %v8170 = vsel %vm440, %v8122, 0.0
      %8171 = vadd.xlane.f32.xlu0 %v8170
      %v8172 = vpop.xlane.xlu0 %8171
      %v8173 = vmul.f32 %v8127, %v489
      %v8174 = vmul.f32 %v8130, %v489
      %v8175 = vmul.f32 %v8133, %v489
      %v8176 = vmul.f32 %v8136, %v489
      %v8177 = vmul.f32 %v8139, %v489
      %v8178 = vmul.f32 %v8142, %v489
      %v8179 = vmul.f32 %v8145, %v489
      %v8180 = vmul.f32 %v8148, %v489
      %v8181 = vmul.f32 %v8151, %v489
      %v8182 = vmul.f32 %v8154, %v489
      %v8183 = vmul.f32 %v8157, %v489
      %v8184 = vmul.f32 %v8160, %v489
      %v8185 = vmul.f32 %v8163, %v489
      %v8186 = vmul.f32 %v8166, %v489
      %v8187 = vmul.f32 %v8169, %v489
      %v8188 = vmul.f32 %v8172, %v489
      %v8189 = vsub.f32 %v8107, %v8173
      %v8190 = vsub.f32 %v8108, %v8174
      %v8191 = vsub.f32 %v8109, %v8175
      %v8192 = vsub.f32 %v8110, %v8176
      %v8193 = vsub.f32 %v8111, %v8177
      %v8194 = vsub.f32 %v8112, %v8178
      %v8195 = vsub.f32 %v8113, %v8179
      %v8196 = vsub.f32 %v8114, %v8180
      %v8197 = vsub.f32 %v8115, %v8181
      %v8198 = vsub.f32 %v8116, %v8182
      %v8199 = vsub.f32 %v8117, %v8183
      %v8200 = vsub.f32 %v8118, %v8184
      %v8201 = vsub.f32 %v8119, %v8185
      %v8202 = vsub.f32 %v8120, %v8186
      %v8203 = vsub.f32 %v8121, %v8187
      %v8204 = vsub.f32 %v8122, %v8188
      %v8205 = vmul.f32 %v8189, %v8189
      %v8206 = vmul.f32 %v8190, %v8190
      %v8207 = vmul.f32 %v8191, %v8191
      %v8208 = vmul.f32 %v8192, %v8192
      %v8209 = vmul.f32 %v8193, %v8193
      %v8210 = vmul.f32 %v8194, %v8194
      %v8211 = vmul.f32 %v8195, %v8195
      %v8212 = vmul.f32 %v8196, %v8196
      %v8213 = vmul.f32 %v8197, %v8197
      %v8214 = vmul.f32 %v8198, %v8198
      %v8215 = vmul.f32 %v8199, %v8199
      %v8216 = vmul.f32 %v8200, %v8200
      %v8217 = vmul.f32 %v8201, %v8201
      %v8218 = vmul.f32 %v8202, %v8202
      %v8219 = vmul.f32 %v8203, %v8203
      %v8220 = vmul.f32 %v8204, %v8204
      %v8221 = vsel %vm440, %v8205, 0.0
      %8222 = vadd.xlane.f32.xlu0 %v8221
      %v8223 = vpop.xlane.xlu0 %8222
      %v8224 = vsel %vm440, %v8206, 0.0
      %8225 = vadd.xlane.f32.xlu0 %v8224
      %v8226 = vpop.xlane.xlu0 %8225
      %v8227 = vsel %vm440, %v8207, 0.0
      %8228 = vadd.xlane.f32.xlu0 %v8227
      %v8229 = vpop.xlane.xlu0 %8228
      %v8230 = vsel %vm440, %v8208, 0.0
      %8231 = vadd.xlane.f32.xlu0 %v8230
      %v8232 = vpop.xlane.xlu0 %8231
      %v8233 = vsel %vm440, %v8209, 0.0
      %8234 = vadd.xlane.f32.xlu0 %v8233
      %v8235 = vpop.xlane.xlu0 %8234
      %v8236 = vsel %vm440, %v8210, 0.0
      %8237 = vadd.xlane.f32.xlu0 %v8236
      %v8238 = vpop.xlane.xlu0 %8237
      %v8239 = vsel %vm440, %v8211, 0.0
      %8240 = vadd.xlane.f32.xlu0 %v8239
      %v8241 = vpop.xlane.xlu0 %8240
      %v8242 = vsel %vm440, %v8212, 0.0
      %8243 = vadd.xlane.f32.xlu0 %v8242
      %v8244 = vpop.xlane.xlu0 %8243
      %v8245 = vsel %vm440, %v8213, 0.0
      %8246 = vadd.xlane.f32.xlu0 %v8245
      %v8247 = vpop.xlane.xlu0 %8246
      %v8248 = vsel %vm440, %v8214, 0.0
      %8249 = vadd.xlane.f32.xlu0 %v8248
      %v8250 = vpop.xlane.xlu0 %8249
      %v8251 = vsel %vm440, %v8215, 0.0
      %8252 = vadd.xlane.f32.xlu0 %v8251
      %v8253 = vpop.xlane.xlu0 %8252
      %v8254 = vsel %vm440, %v8216, 0.0
      %8255 = vadd.xlane.f32.xlu0 %v8254
      %v8256 = vpop.xlane.xlu0 %8255
      %v8257 = vsel %vm440, %v8217, 0.0
      %8258 = vadd.xlane.f32.xlu0 %v8257
      %v8259 = vpop.xlane.xlu0 %8258
      %v8260 = vsel %vm440, %v8218, 0.0
      %8261 = vadd.xlane.f32.xlu0 %v8260
      %v8262 = vpop.xlane.xlu0 %8261
      %v8263 = vsel %vm440, %v8219, 0.0
      %8264 = vadd.xlane.f32.xlu0 %v8263
      %v8265 = vpop.xlane.xlu0 %8264
      %v8266 = vsel %vm440, %v8220, 0.0
      %8267 = vadd.xlane.f32.xlu0 %v8266
      %v8268 = vpop.xlane.xlu0 %8267
      %v8269 = vmul.f32 %v8223, %v489
      %v8270 = vmul.f32 %v8226, %v489
      %v8271 = vmul.f32 %v8229, %v489
      %v8272 = vmul.f32 %v8232, %v489
      %v8273 = vmul.f32 %v8235, %v489
      %v8274 = vmul.f32 %v8238, %v489
      %v8275 = vmul.f32 %v8241, %v489
      %v8276 = vmul.f32 %v8244, %v489
      %v8277 = vmul.f32 %v8247, %v489
      %v8278 = vmul.f32 %v8250, %v489
      %v8279 = vmul.f32 %v8253, %v489
      %v8280 = vmul.f32 %v8256, %v489
      %v8281 = vmul.f32 %v8259, %v489
      %v8282 = vmul.f32 %v8262, %v489
      %v8283 = vmul.f32 %v8265, %v489
      %v8284 = vmul.f32 %v8268, %v489
      %v8285 = vadd.f32 %v8269, 1e-05
      %v8286 = vadd.f32 %v8270, 1e-05
      %v8287 = vadd.f32 %v8271, 1e-05
      %v8288 = vadd.f32 %v8272, 1e-05
      %v8289 = vadd.f32 %v8273, 1e-05
      %v8290 = vadd.f32 %v8274, 1e-05
      %v8291 = vadd.f32 %v8275, 1e-05
      %v8292 = vadd.f32 %v8276, 1e-05
      %v8293 = vadd.f32 %v8277, 1e-05
      %v8294 = vadd.f32 %v8278, 1e-05
      %v8295 = vadd.f32 %v8279, 1e-05
      %v8296 = vadd.f32 %v8280, 1e-05
      %v8297 = vadd.f32 %v8281, 1e-05
      %v8298 = vadd.f32 %v8282, 1e-05
      %v8299 = vadd.f32 %v8283, 1e-05
      %v8300 = vadd.f32 %v8284, 1e-05
      %v8301 = vrsqrt.pop %v8285
      %v8302 = vrsqrt.pop %v8286
      %v8303 = vrsqrt.pop %v8287
      %v8304 = vrsqrt.pop %v8288
      %v8305 = vrsqrt.pop %v8289
      %v8306 = vrsqrt.pop %v8290
      %v8307 = vrsqrt.pop %v8291
      %v8308 = vrsqrt.pop %v8292
      %v8309 = vrsqrt.pop %v8293
      %v8310 = vrsqrt.pop %v8294
      %v8311 = vrsqrt.pop %v8295
      %v8312 = vrsqrt.pop %v8296
      %v8313 = vrsqrt.pop %v8297
      %v8314 = vrsqrt.pop %v8298
      %v8315 = vrsqrt.pop %v8299
      %v8316 = vrsqrt.pop %v8300
      %v8317 = vmul.f32 %v8189, %v8301
      %v8318 = vmul.f32 %v8190, %v8302
      %v8319 = vmul.f32 %v8191, %v8303
      %v8320 = vmul.f32 %v8192, %v8304
      %v8321 = vmul.f32 %v8193, %v8305
      %v8322 = vmul.f32 %v8194, %v8306
      %v8323 = vmul.f32 %v8195, %v8307
      %v8324 = vmul.f32 %v8196, %v8308
      %v8325 = vmul.f32 %v8197, %v8309
      %v8326 = vmul.f32 %v8198, %v8310
      %v8327 = vmul.f32 %v8199, %v8311
      %v8328 = vmul.f32 %v8200, %v8312
      %v8329 = vmul.f32 %v8201, %v8313
      %v8330 = vmul.f32 %v8202, %v8314
      %v8331 = vmul.f32 %v8203, %v8315
      %v8332 = vmul.f32 %v8204, %v8316
      %v8334 = vlaneseq
      %v8335 = vshrl.u32 %v8334, 7
      %v8336 = vsub.s32 0, %v8335
      %v8337 = vrot.slane %v8123, %v8336
      %v8339 = vmul.f32 %v8317, %v8337
      %v8340 = vmul.f32 %v8318, %v8337
      %v8341 = vmul.f32 %v8319, %v8337
      %v8342 = vmul.f32 %v8320, %v8337
      %v8343 = vmul.f32 %v8321, %v8337
      %v8344 = vmul.f32 %v8322, %v8337
      %v8345 = vmul.f32 %v8323, %v8337
      %v8346 = vmul.f32 %v8324, %v8337
      %v8347 = vmul.f32 %v8325, %v8337
      %v8348 = vmul.f32 %v8326, %v8337
      %v8349 = vmul.f32 %v8327, %v8337
      %v8350 = vmul.f32 %v8328, %v8337
      %v8351 = vmul.f32 %v8329, %v8337
      %v8352 = vmul.f32 %v8330, %v8337
      %v8353 = vmul.f32 %v8331, %v8337
      %v8354 = vmul.f32 %v8332, %v8337
      %v8356 = vlaneseq
      %v8357 = vshrl.u32 %v8356, 7
      %v8358 = vsub.s32 0, %v8357
      %v8359 = vrot.slane %v8124, %v8358
      %v8361 = vadd.f32 %v8339, %v8359
      %v8362 = vadd.f32 %v8340, %v8359
      %v8363 = vadd.f32 %v8341, %v8359
      %v8364 = vadd.f32 %v8342, %v8359
      %v8365 = vadd.f32 %v8343, %v8359
      %v8366 = vadd.f32 %v8344, %v8359
      %v8367 = vadd.f32 %v8345, %v8359
      %v8368 = vadd.f32 %v8346, %v8359
      %v8369 = vadd.f32 %v8347, %v8359
      %v8370 = vadd.f32 %v8348, %v8359
      %v8371 = vadd.f32 %v8349, %v8359
      %v8372 = vadd.f32 %v8350, %v8359
      %v8373 = vadd.f32 %v8351, %v8359
      %v8374 = vadd.f32 %v8352, %v8359
      %v8375 = vadd.f32 %v8353, %v8359
      %v8376 = vadd.f32 %v8354, %v8359
      %v8377 = vld [vmem:[%s8] sm:$0xff]
      %v8378 = vld [vmem:[%s8 + $0x8] sm:$0xff]
      %v8379 = vld [vmem:[%s8 + $0x10] sm:$0xff]
      %v8380 = vld [vmem:[%s8 + $0x18] sm:$0xff]
      %v8381 = vld [vmem:[%s8 + $0x20] sm:$0xff]
      %v8382 = vld [vmem:[%s8 + $0x28] sm:$0xff]
      %v8383 = vld [vmem:[%s8 + $0x30] sm:$0xff]
      %v8384 = vld [vmem:[%s8 + $0x38] sm:$0xff]
      %v8385 = vld [vmem:[%s8 + $0x40] sm:$0xff]
      %v8386 = vld [vmem:[%s8 + $0x48] sm:$0xff]
      %v8387 = vld [vmem:[%s8 + $0x50] sm:$0xff]
      %v8388 = vld [vmem:[%s8 + $0x58] sm:$0xff]
      %v8389 = vld [vmem:[%s8 + $0x60] sm:$0xff]
      %v8390 = vld [vmem:[%s8 + $0x68] sm:$0xff]
      %v8391 = vld [vmem:[%s8 + $0x70] sm:$0xff]
      %v8392 = vld [vmem:[%s8 + $0x78] sm:$0xff]
      %v8393 = vld [vmem:[%s9] sm:$0x3]
      %v8395 = vlaneseq
      %v8396 = vshrl.u32 %v8395, 7
      %v8397 = vsub.s32 0, %v8396
      %v8398 = vrot.slane %v8393, %v8397
      %v8399 = vlaneseq
      %v8400 = vshrl.u32 %v8399, 7
      %v8401 = vsub.s32 1, %v8400
      %v8402 = vrot.slane %v8393, %v8401
      %v8406 = vsel %vm440, %v8361, 0
      %v8409 = vsel %vm440, %v8362, 0
      %v8412 = vsel %vm440, %v8363, 0
      %v8415 = vsel %vm440, %v8364, 0
      %v8418 = vsel %vm440, %v8365, 0
      %v8421 = vsel %vm440, %v8366, 0
      %v8424 = vsel %vm440, %v8367, 0
      %v8427 = vsel %vm440, %v8368, 0
      %v8430 = vsel %vm440, %v8369, 0
      %v8433 = vsel %vm440, %v8370, 0
      %v8436 = vsel %vm440, %v8371, 0
      %v8439 = vsel %vm440, %v8372, 0
      %v8442 = vsel %vm440, %v8373, 0
      %v8445 = vsel %vm440, %v8374, 0
      %v8448 = vsel %vm440, %v8375, 0
      %v8451 = vsel %vm440, %v8376, 0
      %8453 = vmatprep.subr.mxu0 %v8378
      %8454 = vmatpush1.msra.mxu0 %v8377
      %8455 = vmatprep.subr.mxu0 %v8380
      %8456 = vmatpush1.msra.mxu0 %v8379
      %8457 = vmatprep.subr.mxu0 %v8382
      %8458 = vmatpush1.msra.mxu0 %v8381
      %8459 = vmatprep.subr.mxu0 %v8384
      %8460 = vmatpush1.msra.mxu0 %v8383
      %8461 = vmatprep.subr.mxu0 %v8386
      %8462 = vmatpush1.msra.mxu0 %v8385
      %8463 = vmatprep.subr.mxu0 %v8388
      %8464 = vmatpush1.msra.mxu0 %v8387
      %8465 = vmatprep.subr.mxu0 %v8390
      %8466 = vmatpush1.msra.mxu0 %v8389
      %8467 = vmatprep.subr.mxu0 %v8392
      %8468 = vmatpush1.msra.mxu0 %v8391
      %8469 = vmatprep.subr.mxu0 0.0
      %8470 = vmatpush1.msra.mxu0 0.0
      %8471 = vmatprep.subr.mxu0 0.0
      %8472 = vmatpush1.msra.mxu0 0.0
      %8473 = vmatprep.subr.mxu0 0.0
      %8474 = vmatpush1.msra.mxu0 0.0
      %8475 = vmatprep.subr.mxu0 0.0
      %8476 = vmatpush1.msra.mxu0 0.0
      %8477 = vmatprep.subr.mxu0 0.0
      %8478 = vmatpush1.msra.mxu0 0.0
      %8479 = vmatprep.subr.mxu0 0.0
      %8480 = vmatpush1.msra.mxu0 0.0
      %8481 = vmatprep.subr.mxu0 0.0
      %8482 = vmatpush1.msra.mxu0 0.0
      %8483 = vmatprep.subr.mxu0 0.0
      %8484 = vmatpush1.msra.mxu0 0.0
      %8485 = vmatprep.subr.mxu0 0.0
      %8486 = vmatpush1.msra.mxu0 0.0
      %8487 = vmatprep.subr.mxu0 0.0
      %8488 = vmatpush1.msra.mxu0 0.0
      %8489 = vmatprep.subr.mxu0 0.0
      %8490 = vmatpush1.msra.mxu0 0.0
      %8491 = vmatprep.subr.mxu0 0.0
      %8492 = vmatpush1.msra.mxu0 0.0
      %8493 = vmatprep.subr.mxu0 0.0
      %8494 = vmatpush1.msra.mxu0 0.0
      %8495 = vmatprep.subr.mxu0 0.0
      %8496 = vmatpush1.msra.mxu0 0.0
      %8497 = vmatprep.subr.mxu0 0.0
      %8498 = vmatpush1.msra.mxu0 0.0
      %8499 = vmatprep.subr.mxu0 0.0
      %8500 = vmatpush1.msra.mxu0 0.0
      %8501 = vmatprep.subr.mxu0 0.0
      %8502 = vmatpush1.msra.mxu0 0.0
      %8503 = vmatprep.subr.mxu0 0.0
      %8504 = vmatpush1.msra.mxu0 0.0
      %8505 = vmatprep.subr.mxu0 0.0
      %8506 = vmatpush1.msra.mxu0 0.0
      %8507 = vmatprep.subr.mxu0 0.0
      %8508 = vmatpush1.msra.mxu0 0.0
      %8509 = vmatprep.subr.mxu0 0.0
      %8510 = vmatpush1.msra.mxu0 0.0
      %8511 = vmatprep.subr.mxu0 0.0
      %8512 = vmatpush1.msra.mxu0 0.0
      %8513 = vmatprep.subr.mxu0 0.0
      %8514 = vmatpush1.msra.mxu0 0.0
      %8515 = vmatprep.subr.mxu0 0.0
      %8516 = vmatpush1.msra.mxu0 0.0
      %8517 = vmatprep.mubr.f32.mxu0 0.0
      %8518 = vmatmul.mubr.f32.gmra.mrb[0].mxu0 %v8406
      %v8519 = vpop.f32.mrb[0].mxu0
      %v8520 = vadd.f32 %v8398, %v8519
      %v8521 = vpop.f32.mrb[0].mxu0
      %v8522 = vadd.f32 %v8402, %v8521
      %8523 = vmatprep.mubr.f32.mxu0 0.0
      %8524 = vmatmul.mubr.f32.gmra.mrb[0].mxu0 %v8409
      %v8525 = vpop.f32.mrb[0].mxu0
      %v8526 = vadd.f32 %v8398, %v8525
      %v8527 = vpop.f32.mrb[0].mxu0
      %v8528 = vadd.f32 %v8402, %v8527
      %8529 = vmatprep.mubr.f32.mxu0 0.0
      %8530 = vmatmul.mubr.f32.gmra.mrb[0].mxu0 %v8412
      %v8531 = vpop.f32.mrb[0].mxu0
      %v8532 = vadd.f32 %v8398, %v8531
      %v8533 = vpop.f32.mrb[0].mxu0
      %v8534 = vadd.f32 %v8402, %v8533
      %8535 = vmatprep.mubr.f32.mxu0 0.0
      %8536 = vmatmul.mubr.f32.gmra.mrb[0].mxu0 %v8415
      %v8537 = vpop.f32.mrb[0].mxu0
      %v8538 = vadd.f32 %v8398, %v8537
      %v8539 = vpop.f32.mrb[0].mxu0
      %v8540 = vadd.f32 %v8402, %v8539
      %8541 = vmatprep.mubr.f32.mxu0 0.0
      %8542 = vmatmul.mubr.f32.gmra.mrb[0].mxu0 %v8418
      %v8543 = vpop.f32.mrb[0].mxu0
      %v8544 = vadd.f32 %v8398, %v8543
      %v8545 = vpop.f32.mrb[0].mxu0
      %v8546 = vadd.f32 %v8402, %v8545
      %8547 = vmatprep.mubr.f32.mxu0 0.0
      %8548 = vmatmul.mubr.f32.gmra.mrb[0].mxu0 %v8421
      %v8549 = vpop.f32.mrb[0].mxu0
      %v8550 = vadd.f32 %v8398, %v8549
      %v8551 = vpop.f32.mrb[0].mxu0
      %v8552 = vadd.f32 %v8402, %v8551
      %8553 = vmatprep.mubr.f32.mxu0 0.0
      %8554 = vmatmul.mubr.f32.gmra.mrb[0].mxu0 %v8424
      %v8555 = vpop.f32.mrb[0].mxu0
      %v8556 = vadd.f32 %v8398, %v8555
      %v8557 = vpop.f32.mrb[0].mxu0
      %v8558 = vadd.f32 %v8402, %v8557
      %8559 = vmatprep.mubr.f32.mxu0 0.0
      %8560 = vmatmul.mubr.f32.gmra.mrb[0].mxu0 %v8427
      %v8561 = vpop.f32.mrb[0].mxu0
      %v8562 = vadd.f32 %v8398, %v8561
      %v8563 = vpop.f32.mrb[0].mxu0
      %v8564 = vadd.f32 %v8402, %v8563
      %8565 = vmatprep.mubr.f32.mxu0 0.0
      %8566 = vmatmul.mubr.f32.gmra.mrb[0].mxu0 %v8430
      %v8567 = vpop.f32.mrb[0].mxu0
      %v8568 = vadd.f32 %v8398, %v8567
      %v8569 = vpop.f32.mrb[0].mxu0
      %v8570 = vadd.f32 %v8402, %v8569
      %8571 = vmatprep.mubr.f32.mxu0 0.0
      %8572 = vmatmul.mubr.f32.gmra.mrb[0].mxu0 %v8433
      %v8573 = vpop.f32.mrb[0].mxu0
      %v8574 = vadd.f32 %v8398, %v8573
      %v8575 = vpop.f32.mrb[0].mxu0
      %v8576 = vadd.f32 %v8402, %v8575
      %8577 = vmatprep.mubr.f32.mxu0 0.0
      %8578 = vmatmul.mubr.f32.gmra.mrb[0].mxu0 %v8436
      %v8579 = vpop.f32.mrb[0].mxu0
      %v8580 = vadd.f32 %v8398, %v8579
      %v8581 = vpop.f32.mrb[0].mxu0
      %v8582 = vadd.f32 %v8402, %v8581
      %8583 = vmatprep.mubr.f32.mxu0 0.0
      %8584 = vmatmul.mubr.f32.gmra.mrb[0].mxu0 %v8439
      %v8585 = vpop.f32.mrb[0].mxu0
      %v8586 = vadd.f32 %v8398, %v8585
      %v8587 = vpop.f32.mrb[0].mxu0
      %v8588 = vadd.f32 %v8402, %v8587
      %8589 = vmatprep.mubr.f32.mxu0 0.0
      %8590 = vmatmul.mubr.f32.gmra.mrb[0].mxu0 %v8442
      %v8591 = vpop.f32.mrb[0].mxu0
      %v8592 = vadd.f32 %v8398, %v8591
      %v8593 = vpop.f32.mrb[0].mxu0
      %v8594 = vadd.f32 %v8402, %v8593
      %8595 = vmatprep.mubr.f32.mxu0 0.0
      %8596 = vmatmul.mubr.f32.gmra.mrb[0].mxu0 %v8445
      %v8597 = vpop.f32.mrb[0].mxu0
      %v8598 = vadd.f32 %v8398, %v8597
      %v8599 = vpop.f32.mrb[0].mxu0
      %v8600 = vadd.f32 %v8402, %v8599
      %8601 = vmatprep.mubr.f32.mxu0 0.0
      %8602 = vmatmul.mubr.f32.gmra.mrb[0].mxu0 %v8448
      %v8603 = vpop.f32.mrb[0].mxu0
      %v8604 = vadd.f32 %v8398, %v8603
      %v8605 = vpop.f32.mrb[0].mxu0
      %v8606 = vadd.f32 %v8402, %v8605
      %8607 = vmatprep.mubr.f32.mxu0 0.0
      %8608 = vmatmul.mubr.f32.gmra.mrb[0].mxu0 %v8451
      %v8609 = vpop.f32.mrb[0].mxu0
      %v8610 = vadd.f32 %v8398, %v8609
      %v8611 = vpop.f32.mrb[0].mxu0
      %v8612 = vadd.f32 %v8402, %v8611
      %8613 = vdwg.mxu0
      %v8614 = vmax.f32 %v8520, 0.0
      %v8615 = vmax.f32 %v8522, 0.0
      %v8616 = vmax.f32 %v8526, 0.0
      %v8617 = vmax.f32 %v8528, 0.0
      %v8618 = vmax.f32 %v8532, 0.0
      %v8619 = vmax.f32 %v8534, 0.0
      %v8620 = vmax.f32 %v8538, 0.0
      %v8621 = vmax.f32 %v8540, 0.0
      %v8622 = vmax.f32 %v8544, 0.0
      %v8623 = vmax.f32 %v8546, 0.0
      %v8624 = vmax.f32 %v8550, 0.0
      %v8625 = vmax.f32 %v8552, 0.0
      %v8626 = vmax.f32 %v8556, 0.0
      %v8627 = vmax.f32 %v8558, 0.0
      %v8628 = vmax.f32 %v8562, 0.0
      %v8629 = vmax.f32 %v8564, 0.0
      %v8630 = vmax.f32 %v8568, 0.0
      %v8631 = vmax.f32 %v8570, 0.0
      %v8632 = vmax.f32 %v8574, 0.0
      %v8633 = vmax.f32 %v8576, 0.0
      %v8634 = vmax.f32 %v8580, 0.0
      %v8635 = vmax.f32 %v8582, 0.0
      %v8636 = vmax.f32 %v8586, 0.0
      %v8637 = vmax.f32 %v8588, 0.0
      %v8638 = vmax.f32 %v8592, 0.0
      %v8639 = vmax.f32 %v8594, 0.0
      %v8640 = vmax.f32 %v8598, 0.0
      %v8641 = vmax.f32 %v8600, 0.0
      %v8642 = vmax.f32 %v8604, 0.0
      %v8643 = vmax.f32 %v8606, 0.0
      %v8644 = vmax.f32 %v8610, 0.0
      %v8645 = vmax.f32 %v8612, 0.0
      %v8646 = vld [vmem:[%s10] sm:$0xff]
      %v8647 = vld [vmem:[%s10 + $0x8] sm:$0xff]
      %v8648 = vld [vmem:[%s10 + $0x10] sm:$0xff]
      %v8649 = vld [vmem:[%s10 + $0x18] sm:$0xff]
      %v8650 = vld [vmem:[%s10 + $0x20] sm:$0xff]
      %v8651 = vld [vmem:[%s10 + $0x28] sm:$0xff]
      %v8652 = vld [vmem:[%s10 + $0x30] sm:$0xff]
      %v8653 = vld [vmem:[%s10 + $0x38] sm:$0xff]
      %v8654 = vld [vmem:[%s10 + $0x40] sm:$0xff]
      %v8655 = vld [vmem:[%s10 + $0x48] sm:$0xff]
      %v8656 = vld [vmem:[%s10 + $0x50] sm:$0xff]
      %v8657 = vld [vmem:[%s10 + $0x58] sm:$0xff]
      %v8658 = vld [vmem:[%s10 + $0x60] sm:$0xff]
      %v8659 = vld [vmem:[%s10 + $0x68] sm:$0xff]
      %v8660 = vld [vmem:[%s10 + $0x70] sm:$0xff]
      %v8661 = vld [vmem:[%s10 + $0x78] sm:$0xff]
      %v8662 = vld [vmem:[%s10 + $0x80] sm:$0xff]
      %v8663 = vld [vmem:[%s10 + $0x88] sm:$0xff]
      %v8664 = vld [vmem:[%s10 + $0x90] sm:$0xff]
      %v8665 = vld [vmem:[%s10 + $0x98] sm:$0xff]
      %v8666 = vld [vmem:[%s10 + $0xa0] sm:$0xff]
      %v8667 = vld [vmem:[%s10 + $0xa8] sm:$0xff]
      %v8668 = vld [vmem:[%s10 + $0xb0] sm:$0xff]
      %v8669 = vld [vmem:[%s10 + $0xb8] sm:$0xff]
      %v8670 = vld [vmem:[%s10 + $0xc0] sm:$0xff]
      %v8671 = vld [vmem:[%s10 + $0xc8] sm:$0xff]
      %v8672 = vld [vmem:[%s10 + $0xd0] sm:$0xff]
      %v8673 = vld [vmem:[%s10 + $0xd8] sm:$0xff]
      %v8674 = vld [vmem:[%s10 + $0xe0] sm:$0xff]
      %v8675 = vld [vmem:[%s10 + $0xe8] sm:$0xff]
      %v8676 = vld [vmem:[%s10 + $0xf0] sm:$0xff]
      %v8677 = vld [vmem:[%s10 + $0xf8] sm:$0xff]
      %v8678 = vld [vmem:[%s11] sm:$0x1]
      %v8680 = vlaneseq
      %v8681 = vshrl.u32 %v8680, 7
      %v8682 = vsub.s32 0, %v8681
      %v8683 = vrot.slane %v8678, %v8682
      %8685 = vmatprep.subr.mxu0 0.0
      %8686 = vmatpush1.msra.mxu0 %v8646
      %8687 = vmatprep.subr.mxu0 0.0
      %8688 = vmatpush1.msra.mxu0 %v8647
      %8689 = vmatprep.subr.mxu0 0.0
      %8690 = vmatpush1.msra.mxu0 %v8648
      %8691 = vmatprep.subr.mxu0 0.0
      %8692 = vmatpush1.msra.mxu0 %v8649
      %8693 = vmatprep.subr.mxu0 0.0
      %8694 = vmatpush1.msra.mxu0 %v8650
      %8695 = vmatprep.subr.mxu0 0.0
      %8696 = vmatpush1.msra.mxu0 %v8651
      %8697 = vmatprep.subr.mxu0 0.0
      %8698 = vmatpush1.msra.mxu0 %v8652
      %8699 = vmatprep.subr.mxu0 0.0
      %8700 = vmatpush1.msra.mxu0 %v8653
      %8701 = vmatprep.subr.mxu0 0.0
      %8702 = vmatpush1.msra.mxu0 %v8654
      %8703 = vmatprep.subr.mxu0 0.0
      %8704 = vmatpush1.msra.mxu0 %v8655
      %8705 = vmatprep.subr.mxu0 0.0
      %8706 = vmatpush1.msra.mxu0 %v8656
      %8707 = vmatprep.subr.mxu0 0.0
      %8708 = vmatpush1.msra.mxu0 %v8657
      %8709 = vmatprep.subr.mxu0 0.0
      %8710 = vmatpush1.msra.mxu0 %v8658
      %8711 = vmatprep.subr.mxu0 0.0
      %8712 = vmatpush1.msra.mxu0 %v8659
      %8713 = vmatprep.subr.mxu0 0.0
      %8714 = vmatpush1.msra.mxu0 %v8660
      %8715 = vmatprep.subr.mxu0 0.0
      %8716 = vmatpush1.msra.mxu0 %v8661
      %8717 = vmatprep.subr.mxu0 0.0
      %8718 = vmatpush1.msra.mxu0 %v8662
      %8719 = vmatprep.subr.mxu0 0.0
      %8720 = vmatpush1.msra.mxu0 %v8663
      %8721 = vmatprep.subr.mxu0 0.0
      %8722 = vmatpush1.msra.mxu0 %v8664
      %8723 = vmatprep.subr.mxu0 0.0
      %8724 = vmatpush1.msra.mxu0 %v8665
      %8725 = vmatprep.subr.mxu0 0.0
      %8726 = vmatpush1.msra.mxu0 %v8666
      %8727 = vmatprep.subr.mxu0 0.0
      %8728 = vmatpush1.msra.mxu0 %v8667
      %8729 = vmatprep.subr.mxu0 0.0
      %8730 = vmatpush1.msra.mxu0 %v8668
      %8731 = vmatprep.subr.mxu0 0.0
      %8732 = vmatpush1.msra.mxu0 %v8669
      %8733 = vmatprep.subr.mxu0 0.0
      %8734 = vmatpush1.msra.mxu0 %v8670
      %8735 = vmatprep.subr.mxu0 0.0
      %8736 = vmatpush1.msra.mxu0 %v8671
      %8737 = vmatprep.subr.mxu0 0.0
      %8738 = vmatpush1.msra.mxu0 %v8672
      %8739 = vmatprep.subr.mxu0 0.0
      %8740 = vmatpush1.msra.mxu0 %v8673
      %8741 = vmatprep.subr.mxu0 0.0
      %8742 = vmatpush1.msra.mxu0 %v8674
      %8743 = vmatprep.subr.mxu0 0.0
      %8744 = vmatpush1.msra.mxu0 %v8675
      %8745 = vmatprep.subr.mxu0 0.0
      %8746 = vmatpush1.msra.mxu0 %v8676
      %8747 = vmatprep.subr.mxu0 0.0
      %8748 = vmatpush1.msra.mxu0 %v8677
      %8749 = vmatprep.mubr.f32.mxu0 %v8615
      %8750 = vmatmul.mubr.f32.gmra.mrb[0].mxu0 %v8614
      %v8751 = vpop.f32.mrb[0].mxu0
      %v8752 = vadd.f32 %v8683, %v8751
      %v8753 = vpop.f32.mrb[0].mxu0
      %8754 = vmatprep.mubr.f32.mxu0 %v8617
      %8755 = vmatmul.mubr.f32.gmra.mrb[0].mxu0 %v8616
      %v8756 = vpop.f32.mrb[0].mxu0
      %v8757 = vadd.f32 %v8683, %v8756
      %v8758 = vpop.f32.mrb[0].mxu0
      %8759 = vmatprep.mubr.f32.mxu0 %v8619
      %8760 = vmatmul.mubr.f32.gmra.mrb[0].mxu0 %v8618
      %v8761 = vpop.f32.mrb[0].mxu0
      %v8762 = vadd.f32 %v8683, %v8761
      %v8763 = vpop.f32.mrb[0].mxu0
      %8764 = vmatprep.mubr.f32.mxu0 %v8621
      %8765 = vmatmul.mubr.f32.gmra.mrb[0].mxu0 %v8620
      %v8766 = vpop.f32.mrb[0].mxu0
      %v8767 = vadd.f32 %v8683, %v8766
      %v8768 = vpop.f32.mrb[0].mxu0
      %8769 = vmatprep.mubr.f32.mxu0 %v8623
      %8770 = vmatmul.mubr.f32.gmra.mrb[0].mxu0 %v8622
      %v8771 = vpop.f32.mrb[0].mxu0
      %v8772 = vadd.f32 %v8683, %v8771
      %v8773 = vpop.f32.mrb[0].mxu0
      %8774 = vmatprep.mubr.f32.mxu0 %v8625
      %8775 = vmatmul.mubr.f32.gmra.mrb[0].mxu0 %v8624
      %v8776 = vpop.f32.mrb[0].mxu0
      %v8777 = vadd.f32 %v8683, %v8776
      %v8778 = vpop.f32.mrb[0].mxu0
      %8779 = vmatprep.mubr.f32.mxu0 %v8627
      %8780 = vmatmul.mubr.f32.gmra.mrb[0].mxu0 %v8626
      %v8781 = vpop.f32.mrb[0].mxu0
      %v8782 = vadd.f32 %v8683, %v8781
      %v8783 = vpop.f32.mrb[0].mxu0
      %8784 = vmatprep.mubr.f32.mxu0 %v8629
      %8785 = vmatmul.mubr.f32.gmra.mrb[0].mxu0 %v8628
      %v8786 = vpop.f32.mrb[0].mxu0
      %v8787 = vadd.f32 %v8683, %v8786
      %v8788 = vpop.f32.mrb[0].mxu0
      %8789 = vmatprep.mubr.f32.mxu0 %v8631
      %8790 = vmatmul.mubr.f32.gmra.mrb[0].mxu0 %v8630
      %v8791 = vpop.f32.mrb[0].mxu0
      %v8792 = vadd.f32 %v8683, %v8791
      %v8793 = vpop.f32.mrb[0].mxu0
      %8794 = vmatprep.mubr.f32.mxu0 %v8633
      %8795 = vmatmul.mubr.f32.gmra.mrb[0].mxu0 %v8632
      %v8796 = vpop.f32.mrb[0].mxu0
      %v8797 = vadd.f32 %v8683, %v8796
      %v8798 = vpop.f32.mrb[0].mxu0
      %8799 = vmatprep.mubr.f32.mxu0 %v8635
      %8800 = vmatmul.mubr.f32.gmra.mrb[0].mxu0 %v8634
      %v8801 = vpop.f32.mrb[0].mxu0
      %v8802 = vadd.f32 %v8683, %v8801
      %v8803 = vpop.f32.mrb[0].mxu0
      %8804 = vmatprep.mubr.f32.mxu0 %v8637
      %8805 = vmatmul.mubr.f32.gmra.mrb[0].mxu0 %v8636
      %v8806 = vpop.f32.mrb[0].mxu0
      %v8807 = vadd.f32 %v8683, %v8806
      %v8808 = vpop.f32.mrb[0].mxu0
      %8809 = vmatprep.mubr.f32.mxu0 %v8639
      %8810 = vmatmul.mubr.f32.gmra.mrb[0].mxu0 %v8638
      %v8811 = vpop.f32.mrb[0].mxu0
      %v8812 = vadd.f32 %v8683, %v8811
      %v8813 = vpop.f32.mrb[0].mxu0
      %8814 = vmatprep.mubr.f32.mxu0 %v8641
      %8815 = vmatmul.mubr.f32.gmra.mrb[0].mxu0 %v8640
      %v8816 = vpop.f32.mrb[0].mxu0
      %v8817 = vadd.f32 %v8683, %v8816
      %v8818 = vpop.f32.mrb[0].mxu0
      %8819 = vmatprep.mubr.f32.mxu0 %v8643
      %8820 = vmatmul.mubr.f32.gmra.mrb[0].mxu0 %v8642
      %v8821 = vpop.f32.mrb[0].mxu0
      %v8822 = vadd.f32 %v8683, %v8821
      %v8823 = vpop.f32.mrb[0].mxu0
      %8824 = vmatprep.mubr.f32.mxu0 %v8645
      %8825 = vmatmul.mubr.f32.gmra.mrb[0].mxu0 %v8644
      %v8826 = vpop.f32.mrb[0].mxu0
      %v8827 = vadd.f32 %v8683, %v8826
      %v8828 = vpop.f32.mrb[0].mxu0
      %8829 = vdwg.mxu0
      %v8830 = vadd.f32 %v8107, %v8752
      %v8831 = vadd.f32 %v8108, %v8757
      %v8832 = vadd.f32 %v8109, %v8762
      %v8833 = vadd.f32 %v8110, %v8767
      %v8834 = vadd.f32 %v8111, %v8772
      %v8835 = vadd.f32 %v8112, %v8777
      %v8836 = vadd.f32 %v8113, %v8782
      %v8837 = vadd.f32 %v8114, %v8787
      %v8838 = vadd.f32 %v8115, %v8792
      %v8839 = vadd.f32 %v8116, %v8797
      %v8840 = vadd.f32 %v8117, %v8802
      %v8841 = vadd.f32 %v8118, %v8807
      %v8842 = vadd.f32 %v8119, %v8812
      %v8843 = vadd.f32 %v8120, %v8817
      %v8844 = vadd.f32 %v8121, %v8822
      %v8845 = vadd.f32 %v8122, %v8827
      %8846 = vst.msk [vmem:[%s420] sm:$0xff] %vm440, %v8830
      %8847 = vst.msk [vmem:[%s420 + $0x8] sm:$0xff] %vm440, %v8831
      %8848 = vst.msk [vmem:[%s420 + $0x10] sm:$0xff] %vm440, %v8832
      %8849 = vst.msk [vmem:[%s420 + $0x18] sm:$0xff] %vm440, %v8833
      %8850 = vst.msk [vmem:[%s420 + $0x20] sm:$0xff] %vm440, %v8834
      %8851 = vst.msk [vmem:[%s420 + $0x28] sm:$0xff] %vm440, %v8835
      %8852 = vst.msk [vmem:[%s420 + $0x30] sm:$0xff] %vm440, %v8836
      %8853 = vst.msk [vmem:[%s420 + $0x38] sm:$0xff] %vm440, %v8837
      %8854 = vst.msk [vmem:[%s420 + $0x40] sm:$0xff] %vm440, %v8838
      %8855 = vst.msk [vmem:[%s420 + $0x48] sm:$0xff] %vm440, %v8839
      %8856 = vst.msk [vmem:[%s420 + $0x50] sm:$0xff] %vm440, %v8840
      %8857 = vst.msk [vmem:[%s420 + $0x58] sm:$0xff] %vm440, %v8841
      %8858 = vst.msk [vmem:[%s420 + $0x60] sm:$0xff] %vm440, %v8842
      %8859 = vst.msk [vmem:[%s420 + $0x68] sm:$0xff] %vm440, %v8843
      %8860 = vst.msk [vmem:[%s420 + $0x70] sm:$0xff] %vm440, %v8844
      %8861 = vst.msk [vmem:[%s420 + $0x78] sm:$0xff] %vm440, %v8845
      %s8862 = smul.u32 2, %s23
      %p8863 = scmp.lt.s32.totalorder %s8862, 3
      %s8864 = scalar_select %p8863, %s8862, 3
      %s8865 = smul.addr %s8864, 8
      %s8866 = smul.addr %s8865, 8
      %s8867 = scalar_lea.vmem %s12, %s8866
      // Predicated region
      $region69: #{bigram_lm_forward.5} parent=67 // pred_check
        %p8868 = pneg %p298
      $region70: #{bigram_lm_forward.5} parent=67 // pred_check_branch
        %8870 = sbr.rel (%p8868) target = $region72
      $region71: #{bigram_lm_forward.5} parent=67 // pred_region
        %s8871 = smul.u32 2, %s23
      $region72: #{bigram_lm_forward.5} parent=67 // pred_fallthru
        _
    $region68: #{bigram_lm_forward.5} parent=5 // pred_fallthru
      _
    %p8872 = scmp.le.s32.totalorder 2, %s18
    // Predicated region
    $region73: #{bigram_lm_forward.5} parent=5 // pred_check
      %p8873 = pneg %p8872
    $region74: #{bigram_lm_forward.5} parent=5 // pred_check_branch
      %8875 = sbr.rel (%p8873) target = $region76
    $region75: #{bigram_lm_forward.5} parent=5 // pred_region
      %s8876 = ssub.s32 %s18, 2
      // Predicated region
      $region77: #{bigram_lm_forward.5} parent=75 // pred_check
        %p8877 = pneg %p304
      $region78: #{bigram_lm_forward.5} parent=75 // pred_check_branch
        %8879 = sbr.rel (%p8877) target = $region80
      $region79: #{bigram_lm_forward.5} parent=75 // pred_region
        %s8880 = smul.u32 2, %s24
        %p8881 = scmp.lt.s32.totalorder %s8880, 3
        %s8882 = scalar_select %p8881, %s8880, 3
        %s8883 = smul.addr %s8882, 8
        %s8884 = smul.addr %s8883, 8
        %s8885 = scalar_lea.vmem %s12, %s8884
      $region80: #{bigram_lm_forward.5} parent=75 // pred_fallthru
        _
    $region76: #{bigram_lm_forward.5} parent=5 // pred_fallthru
      _
  $region6: #{bigram_lm_forward.5} parent=0 // loop_footer
    %s22 = sadd.s32 1, %s18
  $region7: #{bigram_lm_forward.5} parent=0 // loop_footer_branch
    %17 = sbr.rel target = $region3
  $region8: #{bigram_lm_forward.5} parent=0 // loop_exit
    _

</llo_original>
